<compile_context>
chip_gen: v6e
topology: v6e:2x2x1
jax: 0.10.0
libtpu: 0.0.40
codegen_flags: <defaults>
</compile_context>

<pallas_src>
import jax
import jax.numpy as jnp
import numpy as np
from jax import lax
from jax.experimental import pallas as pl
from jax.experimental.pallas import tpu as pltpu


# ----------------------------------------------------------------------------
# Fused conv + bias + ReLU + 2x2/2 max-pool (floor mode) kernel.
# Input arrives as 4 even/odd (row, col) phase planes, flat spatial,
# channels-first:  P[2r+s][ci, i*Wh + j] = x[ci, 2i+r, 2j+s].
# Output is the pooled map in a flat (Lout//Wh) x Wh grid with the unused
# columns / tail zeroed, so the next stage can consume it directly.
# ----------------------------------------------------------------------------
def _make_conv_pool_kernel(KH, KW, Cin, Wh, Lp, Lout, PW):
    NQR = KH + 1          # distinct row-shift phases (pa + ky) needed
    NQC = KW + 1          # distinct col-shift phases (pb + kx) needed

    def kernel(x_ref, w_ref, b_ref, o_ref, shifts_ref):
        # x_ref:      (1, 4, Cin, Sp)      phase planes, flat spatial
        # w_ref:      (Cout, KH*KW*Cin)    packed conv weight, (ky, kx, ci)-major
        # b_ref:      (Cout, 1)
        # o_ref:      (1, Cout, Lout)      pooled output, flat grid, row stride Wh
        # shifts_ref: (NQR*NQC*Cin, Lp)    dedup'd shifted tap slices (VMEM scratch)

        # 1) Fill the dedup'd shift table: each distinct (row, col) shift is
        #    loaded (lane-shifted) exactly once instead of once per pooling phase
        #    per tap (36 -> 16 for conv1, 100 -> 36 for conv2).
        for qr in range(NQR):
            for qc in range(NQC):
                r, dy = qr % 2, qr // 2
                s, dx = qc % 2, qc // 2
                off = dy * Wh + dx
                row = (qr * NQC + qc) * Cin
                shifts_ref[row:row + Cin, :] = x_ref[0, 2 * r + s, :, off:off + Lp]

        # 2) Per pooling phase: the im2col RHS is KH contiguous row-blocks of the
        #    shift table (rows already in (ky, kx, ci) order), one MXU matmul.
        w = w_ref[...]
        acc = None
        for pa in (0, 1):                  # row parity inside the 2x2 pool window
            for pb in (0, 1):              # col parity inside the 2x2 pool window
                blocks = []
                for ky in range(KH):
                    row = ((pa + ky) * NQC + pb) * Cin
                    blocks.append(shifts_ref[row:row + KW * Cin, :])
                rhs = jnp.concatenate(blocks, axis=0)            # (KH*KW*Cin, Lp)
                y = jnp.dot(w, rhs, preferred_element_type=jnp.float32)  # (Cout, Lp)
                acc = y if acc is None else jnp.maximum(acc, y)  # 2x2 max over phases

        # bias is per-channel constant and ReLU is monotone -> apply after the max
        acc = jnp.maximum(acc + b_ref[...], 0.0)

        # 3) Zero the stride-Wh garbage columns so the flat output is a clean
        #    zero-padded grid directly usable by the next stage (Wh is a power of 2).
        col = lax.broadcasted_iota(jnp.int32, acc.shape, 1)
        acc = jnp.where((col & (Wh - 1)) < PW, acc, 0.0)
        o_ref[0, :, :Lp] = acc
        if Lout > Lp:
            o_ref[0, :, Lp:] = jnp.zeros((acc.shape[0], Lout - Lp), acc.dtype)

    return kernel


def conv_relu_pool(planes, w_pack, bias, *, KH, KW, Wh, Lp, Lout, PW):
    B, _, Cin, Sp = planes.shape
    Cout, K = w_pack.shape
    kernel = _make_conv_pool_kernel(KH, KW, Cin, Wh, Lp, Lout, PW)
    return pl.pallas_call(
        kernel,
        out_shape=jax.ShapeDtypeStruct((B, Cout, Lout), jnp.float32),
        grid=(B,),
        in_specs=[
            pl.BlockSpec((1, 4, Cin, Sp), lambda i: (i, 0, 0, 0)),
            pl.BlockSpec((Cout, K), lambda i: (0, 0)),
            pl.BlockSpec((Cout, 1), lambda i: (0, 0)),
        ],
        out_specs=pl.BlockSpec((1, Cout, Lout), lambda i: (i, 0, 0)),
        scratch_shapes=[pltpu.VMEM(((KH + 1) * (KW + 1) * Cin, Lp), jnp.float32)],
        compiler_params=pltpu.CompilerParams(dimension_semantics=("parallel",)),
    )(planes, w_pack, bias)


# ----------------------------------------------------------------------------
# Fully fused FC head: fc1 (bf16 weight, f32 accum) + ReLU + fc2 + ReLU + fc3
# in a single VMEM-resident kernel (~3 MB of weights).
# ----------------------------------------------------------------------------
def _fc_head_kernel(x_ref, w1_ref, b1_ref, w2_ref, b2_ref, w3_ref, b3_ref, o_ref):
    h1 = jnp.dot(x_ref[...].astype(jnp.bfloat16), w1_ref[...],
                 preferred_element_type=jnp.float32) + b1_ref[...]
    h1 = jnp.maximum(h1, 0.0)
    h2 = jnp.dot(h1, w2_ref[...], preferred_element_type=jnp.float32) + b2_ref[...]
    h2 = jnp.maximum(h2, 0.0)
    o_ref[...] = jnp.dot(h2, w3_ref[...], preferred_element_type=jnp.float32) + b3_ref[...]


def fc_head(x, w1_bf16, b1, w2, b2, w3, b3):
    B = x.shape[0]
    vmem = pl.BlockSpec(memory_space=pltpu.MemorySpace.VMEM)
    return pl.pallas_call(
        _fc_head_kernel,
        out_shape=jax.ShapeDtypeStruct((B, w3.shape[1]), jnp.float32),
        in_specs=[vmem] * 7,
        out_specs=vmem,
    )(x, w1_bf16, b1, w2, b2, w3, b3)


# ----------------------------------------------------------------------------
# XLA-side glue (tiny tensors -> negligible cost).
# ----------------------------------------------------------------------------
def _phase_planes(x):
    # x: (B, C, H, W) with H, W even  ->  (B, 4, C, (H//2)*(W//2)), plane = 2*r + s
    B, C, H, W = x.shape
    planes = [x[:, :, r::2, s::2].reshape(B, C, (H // 2) * (W // 2))
              for r in (0, 1) for s in (0, 1)]
    return jnp.stack(planes, axis=1)


@jax.jit
def net_small_forward(x_nchw, p):
    B = x_nchw.shape[0]
    # conv1 (3x3, 1->6) + relu + pool: 64x64 -> 62x62 -> 31x31,
    # emitted as a zero-padded 32x32 flat grid.
    planes1 = _phase_planes(x_nchw)                                        # (B, 4, 1, 1024)
    h = conv_relu_pool(planes1, p["c1w"], p["c1b"],
                       KH=3, KW=3, Wh=32, Lp=991, Lout=1024, PW=31)        # (B, 6, 1024)
    # conv2 (5x5, 6->16) + relu + pool: 31x31 -> 27x27 -> 13x13,
    # emitted as a 13x16 flat grid (valid pooled outputs never read the padding).
    planes2 = _phase_planes(h.reshape(B, 6, 32, 32))                       # (B, 4, 6, 256)
    h = conv_relu_pool(planes2, p["c2w"], p["c2b"],
                       KH=5, KW=5, Wh=16, Lp=208, Lout=208, PW=13)         # (B, 16, 208)
    # flatten in PyTorch (C, H, W) order (already channel-first) -> fused FC head
    hf = h.reshape(B, 16, 13, 16)[:, :, :, :13].reshape(B, 16 * 13 * 13)   # (B, 2704)
    return fc_head(hf, p["f1w"], p["f1b"], p["f2w"], p["f2b"],
                   p["f3w"], p["f3b"])                                     # (B, 100)


# ----------------------------------------------------------------------------
# One-time weight repacking (outside the jitted forward: no in-jit transposes).
# ----------------------------------------------------------------------------
def pack_params(p):
    def conv_pack(w):  # OIHW -> (O, KH*KW*I), tap-major (ky, kx, ci)
        o, i, kh, kw = w.shape
        return jnp.transpose(w, (0, 2, 3, 1)).reshape(o, kh * kw * i)

    return {
        "c1w": conv_pack(p["conv1_w"]), "c1b": p["conv1_b"].reshape(-1, 1),
        "c2w": conv_pack(p["conv2_w"]), "c2b": p["conv2_b"].reshape(-1, 1),
        "f1w": p["fc1_w"].T.astype(jnp.bfloat16), "f1b": p["fc1_b"].reshape(1, -1),
        "f2w": p["fc2_w"].T, "f2b": p["fc2_b"].reshape(1, -1),
        "f3w": p["fc3_w"].T, "f3b": p["fc3_b"].reshape(1, -1),
    }


# ----------------------------------------------------------------------------
# Deterministic parameter init (PyTorch default-style U(-1/sqrt(fan_in), ...)).
# ----------------------------------------------------------------------------
def init_params(key):
    ks = jax.random.split(key, 10)

    def u(k, shape, fan_in):
        bound = 1.0 / np.sqrt(fan_in)
        return jax.random.uniform(k, shape, jnp.float32, -bound, bound)

    return {
        "conv1_w": u(ks[0], (6, 1, 3, 3), 1 * 3 * 3),     # OIHW
        "conv1_b": u(ks[1], (6,), 1 * 3 * 3),
        "conv2_w": u(ks[2], (16, 6, 5, 5), 6 * 5 * 5),
        "conv2_b": u(ks[3], (16,), 6 * 5 * 5),
        "fc1_w": u(ks[4], (512, 2704), 2704),             # (out, in) like PyTorch
        "fc1_b": u(ks[5], (512,), 2704),
        "fc2_w": u(ks[6], (84, 512), 512),
        "fc2_b": u(ks[7], (84,), 512),
        "fc3_w": u(ks[8], (100, 84), 84),
        "fc3_b": u(ks[9], (100,), 84),
    }


# ----------------------------------------------------------------------------
# Pure-JAX reference of the PyTorch forward (verification only).
# ----------------------------------------------------------------------------
def reference_forward(x, p):
    dn = ("NCHW", "OIHW", "NCHW")
    hp = lax.Precision.HIGHEST
    y = lax.conv_general_dilated(x, p["conv1_w"], (1, 1), "VALID",
                                 dimension_numbers=dn, precision=hp)
    y = jax.nn.relu(y + p["conv1_b"][None, :, None, None])
    y = lax.reduce_window(y, -jnp.inf, lax.max, (1, 1, 2, 2), (1, 1, 2, 2), "VALID")
    y = lax.conv_general_dilated(y, p["conv2_w"], (1, 1), "VALID",
                                 dimension_numbers=dn, precision=hp)
    y = jax.nn.relu(y + p["conv2_b"][None, :, None, None])
    y = lax.reduce_window(y, -jnp.inf, lax.max, (1, 1, 2, 2), (1, 1, 2, 2), "VALID")
    y = y.reshape(y.shape[0], -1)
    y = jax.nn.relu(jnp.dot(y, p["fc1_w"].T, precision=hp) + p["fc1_b"])
    y = jax.nn.relu(jnp.dot(y, p["fc2_w"].T, precision=hp) + p["fc2_b"])
    return jnp.dot(y, p["fc3_w"].T, precision=hp) + p["fc3_b"]


if __name__ == "__main__":
    key = jax.random.PRNGKey(0)
    pkey, xkey = jax.random.split(key)
    params = init_params(pkey)
    packed = pack_params(params)                              # one-time, outside jit
    x = jax.random.normal(xkey, (2, 1, 64, 64), jnp.float32)  # NCHW; 64x64 -> fc1 in = 2704

    out = jax.block_until_ready(net_small_forward(x, packed))
    assert out.shape == (2, 100), out.shape

    ref = jax.block_until_ready(reference_forward(x, params))
    np.testing.assert_allclose(np.asarray(out), np.asarray(ref), rtol=1e-2, atol=1e-2)

    print("KERNEL_OK")
</pallas_src>

<mosaic_0001>
module attributes {stable_mosaic.version = 11 : i64} {
  func.func @kernel(%arg0: i32, %arg1: memref<1x4x1x1024xf32, #tpu.memory_space<vmem>>, %arg2: memref<6x9xf32, #tpu.memory_space<vmem>>, %arg3: memref<6x1xf32, #tpu.memory_space<vmem>>, %arg4: memref<1x6x1024xf32, #tpu.memory_space<vmem>>, %arg5: memref<16x991xf32, #tpu.memory_space<vmem>>) attributes {dimension_semantics = [#tpu.dimension_semantics<parallel>], iteration_bounds = array<i64: 2>, scalar_prefetch = 0 : i64, scratch_operands = 1 : i64, tpu.core_type = #tpu.core_type<tc>, window_params = [{transform_indices = @transform_0, window_bounds = array<i64: 1, 4, 1, 1024>}, {pipeline_mode = #tpu.pipeline_mode<synchronous>, transform_indices = @transform_1, window_bounds = array<i64: 6, 9>}, {pipeline_mode = #tpu.pipeline_mode<synchronous>, transform_indices = @transform_2, window_bounds = array<i64: 6, 1>}, {transform_indices = @transform_3, window_bounds = array<i64: 1, 6, 1024>}]} {
    %c0 = arith.constant 0 : index
    %c0_0 = arith.constant 0 : index
    %c0_1 = arith.constant 0 : index
    %c0_2 = arith.constant 0 : index
    %0 = vector.load %arg1[%c0, %c0_0, %c0_1, %c0_2] : memref<1x4x1x1024xf32, #tpu.memory_space<vmem>>, vector<1x1x1x991xf32>
    %1 = vector.shape_cast %0 : vector<1x1x1x991xf32> to vector<1x991xf32>
    %c0_3 = arith.constant 0 : index
    %c0_4 = arith.constant 0 : index
    %2 = vector.load %arg5[%c0_3, %c0_4] : memref<16x991xf32, #tpu.memory_space<vmem>>, vector<1x991xf32>
    tpu.vector_store %arg5[%c0_3, %c0_4], %1 {strides = array<i32>} : memref<16x991xf32, #tpu.memory_space<vmem>>, vector<1x991xf32>,
    %c0_5 = arith.constant 0 : index
    %c1 = arith.constant 1 : index
    %c0_6 = arith.constant 0 : index
    %c0_7 = arith.constant 0 : index
    %3 = vector.load %arg1[%c0_5, %c1, %c0_6, %c0_7] : memref<1x4x1x1024xf32, #tpu.memory_space<vmem>>, vector<1x1x1x991xf32>
    %4 = vector.shape_cast %3 : vector<1x1x1x991xf32> to vector<1x991xf32>
    %c1_8 = arith.constant 1 : index
    %c0_9 = arith.constant 0 : index
    %5 = vector.load %arg5[%c1_8, %c0_9] : memref<16x991xf32, #tpu.memory_space<vmem>>, vector<1x991xf32>
    tpu.vector_store %arg5[%c1_8, %c0_9], %4 {strides = array<i32>} : memref<16x991xf32, #tpu.memory_space<vmem>>, vector<1x991xf32>,
    %c0_10 = arith.constant 0 : index
    %c0_11 = arith.constant 0 : index
    %c0_12 = arith.constant 0 : index
    %c1_13 = arith.constant 1 : index
    %6 = vector.load %arg1[%c0_10, %c0_11, %c0_12, %c1_13] : memref<1x4x1x1024xf32, #tpu.memory_space<vmem>>, vector<1x1x1x991xf32>
    %7 = vector.shape_cast %6 : vector<1x1x1x991xf32> to vector<1x991xf32>
    %c2 = arith.constant 2 : index
    %c0_14 = arith.constant 0 : index
    %8 = vector.load %arg5[%c2, %c0_14] : memref<16x991xf32, #tpu.memory_space<vmem>>, vector<1x991xf32>
    tpu.vector_store %arg5[%c2, %c0_14], %7 {strides = array<i32>} : memref<16x991xf32, #tpu.memory_space<vmem>>, vector<1x991xf32>,
    %c0_15 = arith.constant 0 : index
    %c1_16 = arith.constant 1 : index
    %c0_17 = arith.constant 0 : index
    %c1_18 = arith.constant 1 : index
    %9 = vector.load %arg1[%c0_15, %c1_16, %c0_17, %c1_18] : memref<1x4x1x1024xf32, #tpu.memory_space<vmem>>, vector<1x1x1x991xf32>
    %10 = vector.shape_cast %9 : vector<1x1x1x991xf32> to vector<1x991xf32>
    %c3 = arith.constant 3 : index
    %c0_19 = arith.constant 0 : index
    %11 = vector.load %arg5[%c3, %c0_19] : memref<16x991xf32, #tpu.memory_space<vmem>>, vector<1x991xf32>
    tpu.vector_store %arg5[%c3, %c0_19], %10 {strides = array<i32>} : memref<16x991xf32, #tpu.memory_space<vmem>>, vector<1x991xf32>,
    %c0_20 = arith.constant 0 : index
    %c2_21 = arith.constant 2 : index
    %c0_22 = arith.constant 0 : index
    %c0_23 = arith.constant 0 : index
    %12 = vector.load %arg1[%c0_20, %c2_21, %c0_22, %c0_23] : memref<1x4x1x1024xf32, #tpu.memory_space<vmem>>, vector<1x1x1x991xf32>
    %13 = vector.shape_cast %12 : vector<1x1x1x991xf32> to vector<1x991xf32>
    %c4 = arith.constant 4 : index
    %c0_24 = arith.constant 0 : index
    %14 = vector.load %arg5[%c4, %c0_24] : memref<16x991xf32, #tpu.memory_space<vmem>>, vector<1x991xf32>
    tpu.vector_store %arg5[%c4, %c0_24], %13 {strides = array<i32>} : memref<16x991xf32, #tpu.memory_space<vmem>>, vector<1x991xf32>,
    %c0_25 = arith.constant 0 : index
    %c3_26 = arith.constant 3 : index
    %c0_27 = arith.constant 0 : index
    %c0_28 = arith.constant 0 : index
    %15 = vector.load %arg1[%c0_25, %c3_26, %c0_27, %c0_28] : memref<1x4x1x1024xf32, #tpu.memory_space<vmem>>, vector<1x1x1x991xf32>
    %16 = vector.shape_cast %15 : vector<1x1x1x991xf32> to vector<1x991xf32>
    %c5 = arith.constant 5 : index
    %c0_29 = arith.constant 0 : index
    %17 = vector.load %arg5[%c5, %c0_29] : memref<16x991xf32, #tpu.memory_space<vmem>>, vector<1x991xf32>
    tpu.vector_store %arg5[%c5, %c0_29], %16 {strides = array<i32>} : memref<16x991xf32, #tpu.memory_space<vmem>>, vector<1x991xf32>,
    %c0_30 = arith.constant 0 : index
    %c2_31 = arith.constant 2 : index
    %c0_32 = arith.constant 0 : index
    %c1_33 = arith.constant 1 : index
    %18 = vector.load %arg1[%c0_30, %c2_31, %c0_32, %c1_33] : memref<1x4x1x1024xf32, #tpu.memory_space<vmem>>, vector<1x1x1x991xf32>
    %19 = vector.shape_cast %18 : vector<1x1x1x991xf32> to vector<1x991xf32>
    %c6 = arith.constant 6 : index
    %c0_34 = arith.constant 0 : index
    %20 = vector.load %arg5[%c6, %c0_34] : memref<16x991xf32, #tpu.memory_space<vmem>>, vector<1x991xf32>
    tpu.vector_store %arg5[%c6, %c0_34], %19 {strides = array<i32>} : memref<16x991xf32, #tpu.memory_space<vmem>>, vector<1x991xf32>,
    %c0_35 = arith.constant 0 : index
    %c3_36 = arith.constant 3 : index
    %c0_37 = arith.constant 0 : index
    %c1_38 = arith.constant 1 : index
    %21 = vector.load %arg1[%c0_35, %c3_36, %c0_37, %c1_38] : memref<1x4x1x1024xf32, #tpu.memory_space<vmem>>, vector<1x1x1x991xf32>
    %22 = vector.shape_cast %21 : vector<1x1x1x991xf32> to vector<1x991xf32>
    %c7 = arith.constant 7 : index
    %c0_39 = arith.constant 0 : index
    %23 = vector.load %arg5[%c7, %c0_39] : memref<16x991xf32, #tpu.memory_space<vmem>>, vector<1x991xf32>
    tpu.vector_store %arg5[%c7, %c0_39], %22 {strides = array<i32>} : memref<16x991xf32, #tpu.memory_space<vmem>>, vector<1x991xf32>,
    %c0_40 = arith.constant 0 : index
    %c0_41 = arith.constant 0 : index
    %c0_42 = arith.constant 0 : index
    %c32 = arith.constant 32 : index
    %24 = vector.load %arg1[%c0_40, %c0_41, %c0_42, %c32] : memref<1x4x1x1024xf32, #tpu.memory_space<vmem>>, vector<1x1x1x991xf32>
    %25 = vector.shape_cast %24 : vector<1x1x1x991xf32> to vector<1x991xf32>
    %c8 = arith.constant 8 : index
    %c0_43 = arith.constant 0 : index
    %26 = vector.load %arg5[%c8, %c0_43] : memref<16x991xf32, #tpu.memory_space<vmem>>, vector<1x991xf32>
    tpu.vector_store %arg5[%c8, %c0_43], %25 {strides = array<i32>} : memref<16x991xf32, #tpu.memory_space<vmem>>, vector<1x991xf32>,
    %c0_44 = arith.constant 0 : index
    %c1_45 = arith.constant 1 : index
    %c0_46 = arith.constant 0 : index
    %c32_47 = arith.constant 32 : index
    %27 = vector.load %arg1[%c0_44, %c1_45, %c0_46, %c32_47] : memref<1x4x1x1024xf32, #tpu.memory_space<vmem>>, vector<1x1x1x991xf32>
    %28 = vector.shape_cast %27 : vector<1x1x1x991xf32> to vector<1x991xf32>
    %c9 = arith.constant 9 : index
    %c0_48 = arith.constant 0 : index
    %29 = vector.load %arg5[%c9, %c0_48] : memref<16x991xf32, #tpu.memory_space<vmem>>, vector<1x991xf32>
    tpu.vector_store %arg5[%c9, %c0_48], %28 {strides = array<i32>} : memref<16x991xf32, #tpu.memory_space<vmem>>, vector<1x991xf32>,
    %c0_49 = arith.constant 0 : index
    %c0_50 = arith.constant 0 : index
    %c0_51 = arith.constant 0 : index
    %c33 = arith.constant 33 : index
    %30 = vector.load %arg1[%c0_49, %c0_50, %c0_51, %c33] : memref<1x4x1x1024xf32, #tpu.memory_space<vmem>>, vector<1x1x1x991xf32>
    %31 = vector.shape_cast %30 : vector<1x1x1x991xf32> to vector<1x991xf32>
    %c10 = arith.constant 10 : index
    %c0_52 = arith.constant 0 : index
    %32 = vector.load %arg5[%c10, %c0_52] : memref<16x991xf32, #tpu.memory_space<vmem>>, vector<1x991xf32>
    tpu.vector_store %arg5[%c10, %c0_52], %31 {strides = array<i32>} : memref<16x991xf32, #tpu.memory_space<vmem>>, vector<1x991xf32>,
    %c0_53 = arith.constant 0 : index
    %c1_54 = arith.constant 1 : index
    %c0_55 = arith.constant 0 : index
    %c33_56 = arith.constant 33 : index
    %33 = vector.load %arg1[%c0_53, %c1_54, %c0_55, %c33_56] : memref<1x4x1x1024xf32, #tpu.memory_space<vmem>>, vector<1x1x1x991xf32>
    %34 = vector.shape_cast %33 : vector<1x1x1x991xf32> to vector<1x991xf32>
    %c11 = arith.constant 11 : index
    %c0_57 = arith.constant 0 : index
    %35 = vector.load %arg5[%c11, %c0_57] : memref<16x991xf32, #tpu.memory_space<vmem>>, vector<1x991xf32>
    tpu.vector_store %arg5[%c11, %c0_57], %34 {strides = array<i32>} : memref<16x991xf32, #tpu.memory_space<vmem>>, vector<1x991xf32>,
    %c0_58 = arith.constant 0 : index
    %c2_59 = arith.constant 2 : index
    %c0_60 = arith.constant 0 : index
    %c32_61 = arith.constant 32 : index
    %36 = vector.load %arg1[%c0_58, %c2_59, %c0_60, %c32_61] : memref<1x4x1x1024xf32, #tpu.memory_space<vmem>>, vector<1x1x1x991xf32>
    %37 = vector.shape_cast %36 : vector<1x1x1x991xf32> to vector<1x991xf32>
    %c12 = arith.constant 12 : index
    %c0_62 = arith.constant 0 : index
    %38 = vector.load %arg5[%c12, %c0_62] : memref<16x991xf32, #tpu.memory_space<vmem>>, vector<1x991xf32>
    tpu.vector_store %arg5[%c12, %c0_62], %37 {strides = array<i32>} : memref<16x991xf32, #tpu.memory_space<vmem>>, vector<1x991xf32>,
    %c0_63 = arith.constant 0 : index
    %c3_64 = arith.constant 3 : index
    %c0_65 = arith.constant 0 : index
    %c32_66 = arith.constant 32 : index
    %39 = vector.load %arg1[%c0_63, %c3_64, %c0_65, %c32_66] : memref<1x4x1x1024xf32, #tpu.memory_space<vmem>>, vector<1x1x1x991xf32>
    %40 = vector.shape_cast %39 : vector<1x1x1x991xf32> to vector<1x991xf32>
    %c13 = arith.constant 13 : index
    %c0_67 = arith.constant 0 : index
    %41 = vector.load %arg5[%c13, %c0_67] : memref<16x991xf32, #tpu.memory_space<vmem>>, vector<1x991xf32>
    tpu.vector_store %arg5[%c13, %c0_67], %40 {strides = array<i32>} : memref<16x991xf32, #tpu.memory_space<vmem>>, vector<1x991xf32>,
    %c0_68 = arith.constant 0 : index
    %c2_69 = arith.constant 2 : index
    %c0_70 = arith.constant 0 : index
    %c33_71 = arith.constant 33 : index
    %42 = vector.load %arg1[%c0_68, %c2_69, %c0_70, %c33_71] : memref<1x4x1x1024xf32, #tpu.memory_space<vmem>>, vector<1x1x1x991xf32>
    %43 = vector.shape_cast %42 : vector<1x1x1x991xf32> to vector<1x991xf32>
    %c14 = arith.constant 14 : index
    %c0_72 = arith.constant 0 : index
    %44 = vector.load %arg5[%c14, %c0_72] : memref<16x991xf32, #tpu.memory_space<vmem>>, vector<1x991xf32>
    tpu.vector_store %arg5[%c14, %c0_72], %43 {strides = array<i32>} : memref<16x991xf32, #tpu.memory_space<vmem>>, vector<1x991xf32>,
    %c0_73 = arith.constant 0 : index
    %c3_74 = arith.constant 3 : index
    %c0_75 = arith.constant 0 : index
    %c33_76 = arith.constant 33 : index
    %45 = vector.load %arg1[%c0_73, %c3_74, %c0_75, %c33_76] : memref<1x4x1x1024xf32, #tpu.memory_space<vmem>>, vector<1x1x1x991xf32>
    %46 = vector.shape_cast %45 : vector<1x1x1x991xf32> to vector<1x991xf32>
    %c15 = arith.constant 15 : index
    %c0_77 = arith.constant 0 : index
    %47 = vector.load %arg5[%c15, %c0_77] : memref<16x991xf32, #tpu.memory_space<vmem>>, vector<1x991xf32>
    tpu.vector_store %arg5[%c15, %c0_77], %46 {strides = array<i32>} : memref<16x991xf32, #tpu.memory_space<vmem>>, vector<1x991xf32>,
    %c0_78 = arith.constant 0 : index
    %c0_79 = arith.constant 0 : index
    %48 = vector.load %arg2[%c0_78, %c0_79] : memref<6x9xf32, #tpu.memory_space<vmem>>, vector<6x9xf32>
    %c0_80 = arith.constant 0 : index
    %c0_81 = arith.constant 0 : index
    %49 = vector.load %arg5[%c0_80, %c0_81] : memref<16x991xf32, #tpu.memory_space<vmem>>, vector<3x991xf32>
    %c4_82 = arith.constant 4 : index
    %c0_83 = arith.constant 0 : index
    %50 = vector.load %arg5[%c4_82, %c0_83] : memref<16x991xf32, #tpu.memory_space<vmem>>, vector<3x991xf32>
    %c8_84 = arith.constant 8 : index
    %c0_85 = arith.constant 0 : index
    %51 = vector.load %arg5[%c8_84, %c0_85] : memref<16x991xf32, #tpu.memory_space<vmem>>, vector<3x991xf32>
    %52 = tpu.concatenate %49, %50, %51 in 0 : vector<3x991xf32>, vector<3x991xf32>, vector<3x991xf32> -> vector<9x991xf32>
    %cst = arith.constant dense<0.000000e+00> : vector<6x991xf32>
    %53 = tpu.matmul %48, %52, %cst {dimension_numbers = #tpu.dot_dimension_numbers<[1], [0], [0], [1], [0, 0, 1, 1], [], []>} : vector<6x9xf32>, vector<9x991xf32>, vector<6x991xf32> -> vector<6x991xf32>
    %c1_86 = arith.constant 1 : index
    %c0_87 = arith.constant 0 : index
    %54 = vector.load %arg5[%c1_86, %c0_87] : memref<16x991xf32, #tpu.memory_space<vmem>>, vector<3x991xf32>
    %c5_88 = arith.constant 5 : index
    %c0_89 = arith.constant 0 : index
    %55 = vector.load %arg5[%c5_88, %c0_89] : memref<16x991xf32, #tpu.memory_space<vmem>>, vector<3x991xf32>
    %c9_90 = arith.constant 9 : index
    %c0_91 = arith.constant 0 : index
    %56 = vector.load %arg5[%c9_90, %c0_91] : memref<16x991xf32, #tpu.memory_space<vmem>>, vector<3x991xf32>
    %57 = tpu.concatenate %54, %55, %56 in 0 : vector<3x991xf32>, vector<3x991xf32>, vector<3x991xf32> -> vector<9x991xf32>
    %cst_92 = arith.constant dense<0.000000e+00> : vector<6x991xf32>
    %58 = tpu.matmul %48, %57, %cst_92 {dimension_numbers = #tpu.dot_dimension_numbers<[1], [0], [0], [1], [0, 0, 1, 1], [], []>} : vector<6x9xf32>, vector<9x991xf32>, vector<6x991xf32> -> vector<6x991xf32>
    %59 = arith.maximumf %53, %58 : vector<6x991xf32>
    %c4_93 = arith.constant 4 : index
    %c0_94 = arith.constant 0 : index
    %60 = vector.load %arg5[%c4_93, %c0_94] : memref<16x991xf32, #tpu.memory_space<vmem>>, vector<3x991xf32>
    %c8_95 = arith.constant 8 : index
    %c0_96 = arith.constant 0 : index
    %61 = vector.load %arg5[%c8_95, %c0_96] : memref<16x991xf32, #tpu.memory_space<vmem>>, vector<3x991xf32>
    %c12_97 = arith.constant 12 : index
    %c0_98 = arith.constant 0 : index
    %62 = vector.load %arg5[%c12_97, %c0_98] : memref<16x991xf32, #tpu.memory_space<vmem>>, vector<3x991xf32>
    %63 = tpu.concatenate %60, %61, %62 in 0 : vector<3x991xf32>, vector<3x991xf32>, vector<3x991xf32> -> vector<9x991xf32>
    %cst_99 = arith.constant dense<0.000000e+00> : vector<6x991xf32>
    %64 = tpu.matmul %48, %63, %cst_99 {dimension_numbers = #tpu.dot_dimension_numbers<[1], [0], [0], [1], [0, 0, 1, 1], [], []>} : vector<6x9xf32>, vector<9x991xf32>, vector<6x991xf32> -> vector<6x991xf32>
    %65 = arith.maximumf %59, %64 : vector<6x991xf32>
    %c5_100 = arith.constant 5 : index
    %c0_101 = arith.constant 0 : index
    %66 = vector.load %arg5[%c5_100, %c0_101] : memref<16x991xf32, #tpu.memory_space<vmem>>, vector<3x991xf32>
    %c9_102 = arith.constant 9 : index
    %c0_103 = arith.constant 0 : index
    %67 = vector.load %arg5[%c9_102, %c0_103] : memref<16x991xf32, #tpu.memory_space<vmem>>, vector<3x991xf32>
    %c13_104 = arith.constant 13 : index
    %c0_105 = arith.constant 0 : index
    %68 = vector.load %arg5[%c13_104, %c0_105] : memref<16x991xf32, #tpu.memory_space<vmem>>, vector<3x991xf32>
    %69 = tpu.concatenate %66, %67, %68 in 0 : vector<3x991xf32>, vector<3x991xf32>, vector<3x991xf32> -> vector<9x991xf32>
    %cst_106 = arith.constant dense<0.000000e+00> : vector<6x991xf32>
    %70 = tpu.matmul %48, %69, %cst_106 {dimension_numbers = #tpu.dot_dimension_numbers<[1], [0], [0], [1], [0, 0, 1, 1], [], []>} : vector<6x9xf32>, vector<9x991xf32>, vector<6x991xf32> -> vector<6x991xf32>
    %71 = arith.maximumf %65, %70 : vector<6x991xf32>
    %c0_107 = arith.constant 0 : index
    %c0_108 = arith.constant 0 : index
    %72 = vector.load %arg3[%c0_107, %c0_108] : memref<6x1xf32, #tpu.memory_space<vmem>>, vector<6x1xf32>
    %73 = vector.broadcast %72 : vector<6x1xf32> to vector<6x991xf32>
    %74 = arith.addf %71, %73 : vector<6x991xf32>
    %cst_109 = arith.constant 0.000000e+00 : f32
    %75 = vector.broadcast %cst_109 : f32 to vector<6x991xf32>
    %76 = arith.maximumf %74, %75 : vector<6x991xf32>
    %77 = tpu.iota {dimensions = array<i32: 1>} : vector<6x991xi32>
    %c31_i32 = arith.constant 31 : i32
    %78 = vector.broadcast %c31_i32 : i32 to vector<6x991xi32>
    %79 = arith.andi %77, %78 : vector<6x991xi32>
    %c31_i32_110 = arith.constant 31 : i32
    %80 = vector.broadcast %c31_i32_110 : i32 to vector<6x991xi32>
    %81 = arith.cmpi slt, %79, %80 : vector<6x991xi32>
    %cst_111 = arith.constant 0.000000e+00 : f32
    %82 = vector.broadcast %cst_111 : f32 to vector<6x991xf32>
    %83 = arith.select %81, %76, %82 : vector<6x991xi1>, vector<6x991xf32>
    %c0_112 = arith.constant 0 : index
    %c0_113 = arith.constant 0 : index
    %c0_114 = arith.constant 0 : index
    %84 = vector.load %arg4[%c0_112, %c0_113, %c0_114] : memref<1x6x1024xf32, #tpu.memory_space<vmem>>, vector<1x6x991xf32>
    %85 = vector.shape_cast %84 : vector<1x6x991xf32> to vector<6x991xf32>
    %86 = vector.shape_cast %83 : vector<6x991xf32> to vector<1x6x991xf32>
    tpu.vector_store %arg4[%c0_112, %c0_113, %c0_114], %86 {strides = array<i32>} : memref<1x6x1024xf32, #tpu.memory_space<vmem>>, vector<1x6x991xf32>,
    %cst_115 = arith.constant 0.000000e+00 : f32
    %87 = vector.broadcast %cst_115 : f32 to vector<6x33xf32>
    %c0_116 = arith.constant 0 : index
    %c0_117 = arith.constant 0 : index
    %c991 = arith.constant 991 : index
    %88 = vector.load %arg4[%c0_116, %c0_117, %c991] : memref<1x6x1024xf32, #tpu.memory_space<vmem>>, vector<1x6x33xf32>
    %89 = vector.shape_cast %88 : vector<1x6x33xf32> to vector<6x33xf32>
    %90 = vector.shape_cast %87 : vector<6x33xf32> to vector<1x6x33xf32>
    tpu.vector_store %arg4[%c0_116, %c0_117, %c991], %90 {strides = array<i32>} : memref<1x6x1024xf32, #tpu.memory_space<vmem>>, vector<1x6x33xf32>,
    return
  }
  func.func @transform_0(%arg0: i32) -> (i32, i32, i32, i32) {
    %c0_i32 = arith.constant 0 : i32
    %c0_i32_0 = arith.constant 0 : i32
    %c0_i32_1 = arith.constant 0 : i32
    %c0_i32_2 = arith.constant 0 : i32
    return %arg0, %c0_i32, %c0_i32_0, %c0_i32_1 : i32, i32, i32, i32
  }
  func.func @transform_1(%arg0: i32) -> (i32, i32) {
    %c0_i32 = arith.constant 0 : i32
    %c0_i32_0 = arith.constant 0 : i32
    %c0_i32_1 = arith.constant 0 : i32
    return %c0_i32, %c0_i32_0 : i32, i32
  }
  func.func @transform_2(%arg0: i32) -> (i32, i32) {
    %c0_i32 = arith.constant 0 : i32
    %c0_i32_0 = arith.constant 0 : i32
    %c0_i32_1 = arith.constant 0 : i32
    return %c0_i32, %c0_i32_0 : i32, i32
  }
  func.func @transform_3(%arg0: i32) -> (i32, i32, i32) {
    %c0_i32 = arith.constant 0 : i32
    %c0_i32_0 = arith.constant 0 : i32
    %c0_i32_1 = arith.constant 0 : i32
    return %arg0, %c0_i32, %c0_i32_0 : i32, i32, i32
  }
}

module attributes {stable_mosaic.version = 11 : i64} {
  func.func @kernel(%arg0: i32, %arg1: memref<1x4x6x256xf32, #tpu.memory_space<vmem>>, %arg2: memref<16x150xf32, #tpu.memory_space<vmem>>, %arg3: memref<16x1xf32, #tpu.memory_space<vmem>>, %arg4: memref<1x16x208xf32, #tpu.memory_space<vmem>>, %arg5: memref<216x208xf32, #tpu.memory_space<vmem>>) attributes {dimension_semantics = [#tpu.dimension_semantics<parallel>], iteration_bounds = array<i64: 2>, scalar_prefetch = 0 : i64, scratch_operands = 1 : i64, tpu.core_type = #tpu.core_type<tc>, window_params = [{transform_indices = @transform_0, window_bounds = array<i64: 1, 4, 6, 256>}, {pipeline_mode = #tpu.pipeline_mode<synchronous>, transform_indices = @transform_1, window_bounds = array<i64: 16, 150>}, {pipeline_mode = #tpu.pipeline_mode<synchronous>, transform_indices = @transform_2, window_bounds = array<i64: 16, 1>}, {transform_indices = @transform_3, window_bounds = array<i64: 1, 16, 208>}]} {
    %c0 = arith.constant 0 : index
    %c0_0 = arith.constant 0 : index
    %c0_1 = arith.constant 0 : index
    %c0_2 = arith.constant 0 : index
    %0 = vector.load %arg1[%c0, %c0_0, %c0_1, %c0_2] : memref<1x4x6x256xf32, #tpu.memory_space<vmem>>, vector<1x1x6x208xf32>
    %1 = vector.shape_cast %0 : vector<1x1x6x208xf32> to vector<6x208xf32>
    %c0_3 = arith.constant 0 : index
    %c0_4 = arith.constant 0 : index
    %2 = vector.load %arg5[%c0_3, %c0_4] : memref<216x208xf32, #tpu.memory_space<vmem>>, vector<6x208xf32>
    tpu.vector_store %arg5[%c0_3, %c0_4], %1 {strides = array<i32>} : memref<216x208xf32, #tpu.memory_space<vmem>>, vector<6x208xf32>,
    %c0_5 = arith.constant 0 : index
    %c1 = arith.constant 1 : index
    %c0_6 = arith.constant 0 : index
    %c0_7 = arith.constant 0 : index
    %3 = vector.load %arg1[%c0_5, %c1, %c0_6, %c0_7] : memref<1x4x6x256xf32, #tpu.memory_space<vmem>>, vector<1x1x6x208xf32>
    %4 = vector.shape_cast %3 : vector<1x1x6x208xf32> to vector<6x208xf32>
    %c6 = arith.constant 6 : index
    %c0_8 = arith.constant 0 : index
    %5 = vector.load %arg5[%c6, %c0_8] : memref<216x208xf32, #tpu.memory_space<vmem>>, vector<6x208xf32>
    tpu.vector_store %arg5[%c6, %c0_8], %4 {strides = array<i32>} : memref<216x208xf32, #tpu.memory_space<vmem>>, vector<6x208xf32>,
    %c0_9 = arith.constant 0 : index
    %c0_10 = arith.constant 0 : index
    %c0_11 = arith.constant 0 : index
    %c1_12 = arith.constant 1 : index
    %6 = vector.load %arg1[%c0_9, %c0_10, %c0_11, %c1_12] : memref<1x4x6x256xf32, #tpu.memory_space<vmem>>, vector<1x1x6x208xf32>
    %7 = vector.shape_cast %6 : vector<1x1x6x208xf32> to vector<6x208xf32>
    %c12 = arith.constant 12 : index
    %c0_13 = arith.constant 0 : index
    %8 = vector.load %arg5[%c12, %c0_13] : memref<216x208xf32, #tpu.memory_space<vmem>>, vector<6x208xf32>
    tpu.vector_store %arg5[%c12, %c0_13], %7 {strides = array<i32>} : memref<216x208xf32, #tpu.memory_space<vmem>>, vector<6x208xf32>,
    %c0_14 = arith.constant 0 : index
    %c1_15 = arith.constant 1 : index
    %c0_16 = arith.constant 0 : index
    %c1_17 = arith.constant 1 : index
    %9 = vector.load %arg1[%c0_14, %c1_15, %c0_16, %c1_17] : memref<1x4x6x256xf32, #tpu.memory_space<vmem>>, vector<1x1x6x208xf32>
    %10 = vector.shape_cast %9 : vector<1x1x6x208xf32> to vector<6x208xf32>
    %c18 = arith.constant 18 : index
    %c0_18 = arith.constant 0 : index
    %11 = vector.load %arg5[%c18, %c0_18] : memref<216x208xf32, #tpu.memory_space<vmem>>, vector<6x208xf32>
    tpu.vector_store %arg5[%c18, %c0_18], %10 {strides = array<i32>} : memref<216x208xf32, #tpu.memory_space<vmem>>, vector<6x208xf32>,
    %c0_19 = arith.constant 0 : index
    %c0_20 = arith.constant 0 : index
    %c0_21 = arith.constant 0 : index
    %c2 = arith.constant 2 : index
    %12 = vector.load %arg1[%c0_19, %c0_20, %c0_21, %c2] : memref<1x4x6x256xf32, #tpu.memory_space<vmem>>, vector<1x1x6x208xf32>
    %13 = vector.shape_cast %12 : vector<1x1x6x208xf32> to vector<6x208xf32>
    %c24 = arith.constant 24 : index
    %c0_22 = arith.constant 0 : index
    %14 = vector.load %arg5[%c24, %c0_22] : memref<216x208xf32, #tpu.memory_space<vmem>>, vector<6x208xf32>
    tpu.vector_store %arg5[%c24, %c0_22], %13 {strides = array<i32>} : memref<216x208xf32, #tpu.memory_space<vmem>>, vector<6x208xf32>,
    %c0_23 = arith.constant 0 : index
    %c1_24 = arith.constant 1 : index
    %c0_25 = arith.constant 0 : index
    %c2_26 = arith.constant 2 : index
    %15 = vector.load %arg1[%c0_23, %c1_24, %c0_25, %c2_26] : memref<1x4x6x256xf32, #tpu.memory_space<vmem>>, vector<1x1x6x208xf32>
    %16 = vector.shape_cast %15 : vector<1x1x6x208xf32> to vector<6x208xf32>
    %c30 = arith.constant 30 : index
    %c0_27 = arith.constant 0 : index
    %17 = vector.load %arg5[%c30, %c0_27] : memref<216x208xf32, #tpu.memory_space<vmem>>, vector<6x208xf32>
    tpu.vector_store %arg5[%c30, %c0_27], %16 {strides = array<i32>} : memref<216x208xf32, #tpu.memory_space<vmem>>, vector<6x208xf32>,
    %c0_28 = arith.constant 0 : index
    %c2_29 = arith.constant 2 : index
    %c0_30 = arith.constant 0 : index
    %c0_31 = arith.constant 0 : index
    %18 = vector.load %arg1[%c0_28, %c2_29, %c0_30, %c0_31] : memref<1x4x6x256xf32, #tpu.memory_space<vmem>>, vector<1x1x6x208xf32>
    %19 = vector.shape_cast %18 : vector<1x1x6x208xf32> to vector<6x208xf32>
    %c36 = arith.constant 36 : index
    %c0_32 = arith.constant 0 : index
    %20 = vector.load %arg5[%c36, %c0_32] : memref<216x208xf32, #tpu.memory_space<vmem>>, vector<6x208xf32>
    tpu.vector_store %arg5[%c36, %c0_32], %19 {strides = array<i32>} : memref<216x208xf32, #tpu.memory_space<vmem>>, vector<6x208xf32>,
    %c0_33 = arith.constant 0 : index
    %c3 = arith.constant 3 : index
    %c0_34 = arith.constant 0 : index
    %c0_35 = arith.constant 0 : index
    %21 = vector.load %arg1[%c0_33, %c3, %c0_34, %c0_35] : memref<1x4x6x256xf32, #tpu.memory_space<vmem>>, vector<1x1x6x208xf32>
    %22 = vector.shape_cast %21 : vector<1x1x6x208xf32> to vector<6x208xf32>
    %c42 = arith.constant 42 : index
    %c0_36 = arith.constant 0 : index
    %23 = vector.load %arg5[%c42, %c0_36] : memref<216x208xf32, #tpu.memory_space<vmem>>, vector<6x208xf32>
    tpu.vector_store %arg5[%c42, %c0_36], %22 {strides = array<i32>} : memref<216x208xf32, #tpu.memory_space<vmem>>, vector<6x208xf32>,
    %c0_37 = arith.constant 0 : index
    %c2_38 = arith.constant 2 : index
    %c0_39 = arith.constant 0 : index
    %c1_40 = arith.constant 1 : index
    %24 = vector.load %arg1[%c0_37, %c2_38, %c0_39, %c1_40] : memref<1x4x6x256xf32, #tpu.memory_space<vmem>>, vector<1x1x6x208xf32>
    %25 = vector.shape_cast %24 : vector<1x1x6x208xf32> to vector<6x208xf32>
    %c48 = arith.constant 48 : index
    %c0_41 = arith.constant 0 : index
    %26 = vector.load %arg5[%c48, %c0_41] : memref<216x208xf32, #tpu.memory_space<vmem>>, vector<6x208xf32>
    tpu.vector_store %arg5[%c48, %c0_41], %25 {strides = array<i32>} : memref<216x208xf32, #tpu.memory_space<vmem>>, vector<6x208xf32>,
    %c0_42 = arith.constant 0 : index
    %c3_43 = arith.constant 3 : index
    %c0_44 = arith.constant 0 : index
    %c1_45 = arith.constant 1 : index
    %27 = vector.load %arg1[%c0_42, %c3_43, %c0_44, %c1_45] : memref<1x4x6x256xf32, #tpu.memory_space<vmem>>, vector<1x1x6x208xf32>
    %28 = vector.shape_cast %27 : vector<1x1x6x208xf32> to vector<6x208xf32>
    %c54 = arith.constant 54 : index
    %c0_46 = arith.constant 0 : index
    %29 = vector.load %arg5[%c54, %c0_46] : memref<216x208xf32, #tpu.memory_space<vmem>>, vector<6x208xf32>
    tpu.vector_store %arg5[%c54, %c0_46], %28 {strides = array<i32>} : memref<216x208xf32, #tpu.memory_space<vmem>>, vector<6x208xf32>,
    %c0_47 = arith.constant 0 : index
    %c2_48 = arith.constant 2 : index
    %c0_49 = arith.constant 0 : index
    %c2_50 = arith.constant 2 : index
    %30 = vector.load %arg1[%c0_47, %c2_48, %c0_49, %c2_50] : memref<1x4x6x256xf32, #tpu.memory_space<vmem>>, vector<1x1x6x208xf32>
    %31 = vector.shape_cast %30 : vector<1x1x6x208xf32> to vector<6x208xf32>
    %c60 = arith.constant 60 : index
    %c0_51 = arith.constant 0 : index
    %32 = vector.load %arg5[%c60, %c0_51] : memref<216x208xf32, #tpu.memory_space<vmem>>, vector<6x208xf32>
    tpu.vector_store %arg5[%c60, %c0_51], %31 {strides = array<i32>} : memref<216x208xf32, #tpu.memory_space<vmem>>, vector<6x208xf32>,
    %c0_52 = arith.constant 0 : index
    %c3_53 = arith.constant 3 : index
    %c0_54 = arith.constant 0 : index
    %c2_55 = arith.constant 2 : index
    %33 = vector.load %arg1[%c0_52, %c3_53, %c0_54, %c2_55] : memref<1x4x6x256xf32, #tpu.memory_space<vmem>>, vector<1x1x6x208xf32>
    %34 = vector.shape_cast %33 : vector<1x1x6x208xf32> to vector<6x208xf32>
    %c66 = arith.constant 66 : index
    %c0_56 = arith.constant 0 : index
    %35 = vector.load %arg5[%c66, %c0_56] : memref<216x208xf32, #tpu.memory_space<vmem>>, vector<6x208xf32>
    tpu.vector_store %arg5[%c66, %c0_56], %34 {strides = array<i32>} : memref<216x208xf32, #tpu.memory_space<vmem>>, vector<6x208xf32>,
    %c0_57 = arith.constant 0 : index
    %c0_58 = arith.constant 0 : index
    %c0_59 = arith.constant 0 : index
    %c16 = arith.constant 16 : index
    %36 = vector.load %arg1[%c0_57, %c0_58, %c0_59, %c16] : memref<1x4x6x256xf32, #tpu.memory_space<vmem>>, vector<1x1x6x208xf32>
    %37 = vector.shape_cast %36 : vector<1x1x6x208xf32> to vector<6x208xf32>
    %c72 = arith.constant 72 : index
    %c0_60 = arith.constant 0 : index
    %38 = vector.load %arg5[%c72, %c0_60] : memref<216x208xf32, #tpu.memory_space<vmem>>, vector<6x208xf32>
    tpu.vector_store %arg5[%c72, %c0_60], %37 {strides = array<i32>} : memref<216x208xf32, #tpu.memory_space<vmem>>, vector<6x208xf32>,
    %c0_61 = arith.constant 0 : index
    %c1_62 = arith.constant 1 : index
    %c0_63 = arith.constant 0 : index
    %c16_64 = arith.constant 16 : index
    %39 = vector.load %arg1[%c0_61, %c1_62, %c0_63, %c16_64] : memref<1x4x6x256xf32, #tpu.memory_space<vmem>>, vector<1x1x6x208xf32>
    %40 = vector.shape_cast %39 : vector<1x1x6x208xf32> to vector<6x208xf32>
    %c78 = arith.constant 78 : index
    %c0_65 = arith.constant 0 : index
    %41 = vector.load %arg5[%c78, %c0_65] : memref<216x208xf32, #tpu.memory_space<vmem>>, vector<6x208xf32>
    tpu.vector_store %arg5[%c78, %c0_65], %40 {strides = array<i32>} : memref<216x208xf32, #tpu.memory_space<vmem>>, vector<6x208xf32>,
    %c0_66 = arith.constant 0 : index
    %c0_67 = arith.constant 0 : index
    %c0_68 = arith.constant 0 : index
    %c17 = arith.constant 17 : index
    %42 = vector.load %arg1[%c0_66, %c0_67, %c0_68, %c17] : memref<1x4x6x256xf32, #tpu.memory_space<vmem>>, vector<1x1x6x208xf32>
    %43 = vector.shape_cast %42 : vector<1x1x6x208xf32> to vector<6x208xf32>
    %c84 = arith.constant 84 : index
    %c0_69 = arith.constant 0 : index
    %44 = vector.load %arg5[%c84, %c0_69] : memref<216x208xf32, #tpu.memory_space<vmem>>, vector<6x208xf32>
    tpu.vector_store %arg5[%c84, %c0_69], %43 {strides = array<i32>} : memref<216x208xf32, #tpu.memory_space<vmem>>, vector<6x208xf32>,
    %c0_70 = arith.constant 0 : index
    %c1_71 = arith.constant 1 : index
    %c0_72 = arith.constant 0 : index
    %c17_73 = arith.constant 17 : index
    %45 = vector.load %arg1[%c0_70, %c1_71, %c0_72, %c17_73] : memref<1x4x6x256xf32, #tpu.memory_space<vmem>>, vector<1x1x6x208xf32>
    %46 = vector.shape_cast %45 : vector<1x1x6x208xf32> to vector<6x208xf32>
    %c90 = arith.constant 90 : index
    %c0_74 = arith.constant 0 : index
    %47 = vector.load %arg5[%c90, %c0_74] : memref<216x208xf32, #tpu.memory_space<vmem>>, vector<6x208xf32>
    tpu.vector_store %arg5[%c90, %c0_74], %46 {strides = array<i32>} : memref<216x208xf32, #tpu.memory_space<vmem>>, vector<6x208xf32>,
    %c0_75 = arith.constant 0 : index
    %c0_76 = arith.constant 0 : index
    %c0_77 = arith.constant 0 : index
    %c18_78 = arith.constant 18 : index
    %48 = vector.load %arg1[%c0_75, %c0_76, %c0_77, %c18_78] : memref<1x4x6x256xf32, #tpu.memory_space<vmem>>, vector<1x1x6x208xf32>
    %49 = vector.shape_cast %48 : vector<1x1x6x208xf32> to vector<6x208xf32>
    %c96 = arith.constant 96 : index
    %c0_79 = arith.constant 0 : index
    %50 = vector.load %arg5[%c96, %c0_79] : memref<216x208xf32, #tpu.memory_space<vmem>>, vector<6x208xf32>
    tpu.vector_store %arg5[%c96, %c0_79], %49 {strides = array<i32>} : memref<216x208xf32, #tpu.memory_space<vmem>>, vector<6x208xf32>,
    %c0_80 = arith.constant 0 : index
    %c1_81 = arith.constant 1 : index
    %c0_82 = arith.constant 0 : index
    %c18_83 = arith.constant 18 : index
    %51 = vector.load %arg1[%c0_80, %c1_81, %c0_82, %c18_83] : memref<1x4x6x256xf32, #tpu.memory_space<vmem>>, vector<1x1x6x208xf32>
    %52 = vector.shape_cast %51 : vector<1x1x6x208xf32> to vector<6x208xf32>
    %c102 = arith.constant 102 : index
    %c0_84 = arith.constant 0 : index
    %53 = vector.load %arg5[%c102, %c0_84] : memref<216x208xf32, #tpu.memory_space<vmem>>, vector<6x208xf32>
    tpu.vector_store %arg5[%c102, %c0_84], %52 {strides = array<i32>} : memref<216x208xf32, #tpu.memory_space<vmem>>, vector<6x208xf32>,
    %c0_85 = arith.constant 0 : index
    %c2_86 = arith.constant 2 : index
    %c0_87 = arith.constant 0 : index
    %c16_88 = arith.constant 16 : index
    %54 = vector.load %arg1[%c0_85, %c2_86, %c0_87, %c16_88] : memref<1x4x6x256xf32, #tpu.memory_space<vmem>>, vector<1x1x6x208xf32>
    %55 = vector.shape_cast %54 : vector<1x1x6x208xf32> to vector<6x208xf32>
    %c108 = arith.constant 108 : index
    %c0_89 = arith.constant 0 : index
    %56 = vector.load %arg5[%c108, %c0_89] : memref<216x208xf32, #tpu.memory_space<vmem>>, vector<6x208xf32>
    tpu.vector_store %arg5[%c108, %c0_89], %55 {strides = array<i32>} : memref<216x208xf32, #tpu.memory_space<vmem>>, vector<6x208xf32>,
    %c0_90 = arith.constant 0 : index
    %c3_91 = arith.constant 3 : index
    %c0_92 = arith.constant 0 : index
    %c16_93 = arith.constant 16 : index
    %57 = vector.load %arg1[%c0_90, %c3_91, %c0_92, %c16_93] : memref<1x4x6x256xf32, #tpu.memory_space<vmem>>, vector<1x1x6x208xf32>
    %58 = vector.shape_cast %57 : vector<1x1x6x208xf32> to vector<6x208xf32>
    %c114 = arith.constant 114 : index
    %c0_94 = arith.constant 0 : index
    %59 = vector.load %arg5[%c114, %c0_94] : memref<216x208xf32, #tpu.memory_space<vmem>>, vector<6x208xf32>
    tpu.vector_store %arg5[%c114, %c0_94], %58 {strides = array<i32>} : memref<216x208xf32, #tpu.memory_space<vmem>>, vector<6x208xf32>,
    %c0_95 = arith.constant 0 : index
    %c2_96 = arith.constant 2 : index
    %c0_97 = arith.constant 0 : index
    %c17_98 = arith.constant 17 : index
    %60 = vector.load %arg1[%c0_95, %c2_96, %c0_97, %c17_98] : memref<1x4x6x256xf32, #tpu.memory_space<vmem>>, vector<1x1x6x208xf32>
    %61 = vector.shape_cast %60 : vector<1x1x6x208xf32> to vector<6x208xf32>
    %c120 = arith.constant 120 : index
    %c0_99 = arith.constant 0 : index
    %62 = vector.load %arg5[%c120, %c0_99] : memref<216x208xf32, #tpu.memory_space<vmem>>, vector<6x208xf32>
    tpu.vector_store %arg5[%c120, %c0_99], %61 {strides = array<i32>} : memref<216x208xf32, #tpu.memory_space<vmem>>, vector<6x208xf32>,
    %c0_100 = arith.constant 0 : index
    %c3_101 = arith.constant 3 : index
    %c0_102 = arith.constant 0 : index
    %c17_103 = arith.constant 17 : index
    %63 = vector.load %arg1[%c0_100, %c3_101, %c0_102, %c17_103] : memref<1x4x6x256xf32, #tpu.memory_space<vmem>>, vector<1x1x6x208xf32>
    %64 = vector.shape_cast %63 : vector<1x1x6x208xf32> to vector<6x208xf32>
    %c126 = arith.constant 126 : index
    %c0_104 = arith.constant 0 : index
    %65 = vector.load %arg5[%c126, %c0_104] : memref<216x208xf32, #tpu.memory_space<vmem>>, vector<6x208xf32>
    tpu.vector_store %arg5[%c126, %c0_104], %64 {strides = array<i32>} : memref<216x208xf32, #tpu.memory_space<vmem>>, vector<6x208xf32>,
    %c0_105 = arith.constant 0 : index
    %c2_106 = arith.constant 2 : index
    %c0_107 = arith.constant 0 : index
    %c18_108 = arith.constant 18 : index
    %66 = vector.load %arg1[%c0_105, %c2_106, %c0_107, %c18_108] : memref<1x4x6x256xf32, #tpu.memory_space<vmem>>, vector<1x1x6x208xf32>
    %67 = vector.shape_cast %66 : vector<1x1x6x208xf32> to vector<6x208xf32>
    %c132 = arith.constant 132 : index
    %c0_109 = arith.constant 0 : index
    %68 = vector.load %arg5[%c132, %c0_109] : memref<216x208xf32, #tpu.memory_space<vmem>>, vector<6x208xf32>
    tpu.vector_store %arg5[%c132, %c0_109], %67 {strides = array<i32>} : memref<216x208xf32, #tpu.memory_space<vmem>>, vector<6x208xf32>,
    %c0_110 = arith.constant 0 : index
    %c3_111 = arith.constant 3 : index
    %c0_112 = arith.constant 0 : index
    %c18_113 = arith.constant 18 : index
    %69 = vector.load %arg1[%c0_110, %c3_111, %c0_112, %c18_113] : memref<1x4x6x256xf32, #tpu.memory_space<vmem>>, vector<1x1x6x208xf32>
    %70 = vector.shape_cast %69 : vector<1x1x6x208xf32> to vector<6x208xf32>
    %c138 = arith.constant 138 : index
    %c0_114 = arith.constant 0 : index
    %71 = vector.load %arg5[%c138, %c0_114] : memref<216x208xf32, #tpu.memory_space<vmem>>, vector<6x208xf32>
    tpu.vector_store %arg5[%c138, %c0_114], %70 {strides = array<i32>} : memref<216x208xf32, #tpu.memory_space<vmem>>, vector<6x208xf32>,
    %c0_115 = arith.constant 0 : index
    %c0_116 = arith.constant 0 : index
    %c0_117 = arith.constant 0 : index
    %c32 = arith.constant 32 : index
    %72 = vector.load %arg1[%c0_115, %c0_116, %c0_117, %c32] : memref<1x4x6x256xf32, #tpu.memory_space<vmem>>, vector<1x1x6x208xf32>
    %73 = vector.shape_cast %72 : vector<1x1x6x208xf32> to vector<6x208xf32>
    %c144 = arith.constant 144 : index
    %c0_118 = arith.constant 0 : index
    %74 = vector.load %arg5[%c144, %c0_118] : memref<216x208xf32, #tpu.memory_space<vmem>>, vector<6x208xf32>
    tpu.vector_store %arg5[%c144, %c0_118], %73 {strides = array<i32>} : memref<216x208xf32, #tpu.memory_space<vmem>>, vector<6x208xf32>,
    %c0_119 = arith.constant 0 : index
    %c1_120 = arith.constant 1 : index
    %c0_121 = arith.constant 0 : index
    %c32_122 = arith.constant 32 : index
    %75 = vector.load %arg1[%c0_119, %c1_120, %c0_121, %c32_122] : memref<1x4x6x256xf32, #tpu.memory_space<vmem>>, vector<1x1x6x208xf32>
    %76 = vector.shape_cast %75 : vector<1x1x6x208xf32> to vector<6x208xf32>
    %c150 = arith.constant 150 : index
    %c0_123 = arith.constant 0 : index
    %77 = vector.load %arg5[%c150, %c0_123] : memref<216x208xf32, #tpu.memory_space<vmem>>, vector<6x208xf32>
    tpu.vector_store %arg5[%c150, %c0_123], %76 {strides = array<i32>} : memref<216x208xf32, #tpu.memory_space<vmem>>, vector<6x208xf32>,
    %c0_124 = arith.constant 0 : index
    %c0_125 = arith.constant 0 : index
    %c0_126 = arith.constant 0 : index
    %c33 = arith.constant 33 : index
    %78 = vector.load %arg1[%c0_124, %c0_125, %c0_126, %c33] : memref<1x4x6x256xf32, #tpu.memory_space<vmem>>, vector<1x1x6x208xf32>
    %79 = vector.shape_cast %78 : vector<1x1x6x208xf32> to vector<6x208xf32>
    %c156 = arith.constant 156 : index
    %c0_127 = arith.constant 0 : index
    %80 = vector.load %arg5[%c156, %c0_127] : memref<216x208xf32, #tpu.memory_space<vmem>>, vector<6x208xf32>
    tpu.vector_store %arg5[%c156, %c0_127], %79 {strides = array<i32>} : memref<216x208xf32, #tpu.memory_space<vmem>>, vector<6x208xf32>,
    %c0_128 = arith.constant 0 : index
    %c1_129 = arith.constant 1 : index
    %c0_130 = arith.constant 0 : index
    %c33_131 = arith.constant 33 : index
    %81 = vector.load %arg1[%c0_128, %c1_129, %c0_130, %c33_131] : memref<1x4x6x256xf32, #tpu.memory_space<vmem>>, vector<1x1x6x208xf32>
    %82 = vector.shape_cast %81 : vector<1x1x6x208xf32> to vector<6x208xf32>
    %c162 = arith.constant 162 : index
    %c0_132 = arith.constant 0 : index
    %83 = vector.load %arg5[%c162, %c0_132] : memref<216x208xf32, #tpu.memory_space<vmem>>, vector<6x208xf32>
    tpu.vector_store %arg5[%c162, %c0_132], %82 {strides = array<i32>} : memref<216x208xf32, #tpu.memory_space<vmem>>, vector<6x208xf32>,
    %c0_133 = arith.constant 0 : index
    %c0_134 = arith.constant 0 : index
    %c0_135 = arith.constant 0 : index
    %c34 = arith.constant 34 : index
    %84 = vector.load %arg1[%c0_133, %c0_134, %c0_135, %c34] : memref<1x4x6x256xf32, #tpu.memory_space<vmem>>, vector<1x1x6x208xf32>
    %85 = vector.shape_cast %84 : vector<1x1x6x208xf32> to vector<6x208xf32>
    %c168 = arith.constant 168 : index
    %c0_136 = arith.constant 0 : index
    %86 = vector.load %arg5[%c168, %c0_136] : memref<216x208xf32, #tpu.memory_space<vmem>>, vector<6x208xf32>
    tpu.vector_store %arg5[%c168, %c0_136], %85 {strides = array<i32>} : memref<216x208xf32, #tpu.memory_space<vmem>>, vector<6x208xf32>,
    %c0_137 = arith.constant 0 : index
    %c1_138 = arith.constant 1 : index
    %c0_139 = arith.constant 0 : index
    %c34_140 = arith.constant 34 : index
    %87 = vector.load %arg1[%c0_137, %c1_138, %c0_139, %c34_140] : memref<1x4x6x256xf32, #tpu.memory_space<vmem>>, vector<1x1x6x208xf32>
    %88 = vector.shape_cast %87 : vector<1x1x6x208xf32> to vector<6x208xf32>
    %c174 = arith.constant 174 : index
    %c0_141 = arith.constant 0 : index
    %89 = vector.load %arg5[%c174, %c0_141] : memref<216x208xf32, #tpu.memory_space<vmem>>, vector<6x208xf32>
    tpu.vector_store %arg5[%c174, %c0_141], %88 {strides = array<i32>} : memref<216x208xf32, #tpu.memory_space<vmem>>, vector<6x208xf32>,
    %c0_142 = arith.constant 0 : index
    %c2_143 = arith.constant 2 : index
    %c0_144 = arith.constant 0 : index
    %c32_145 = arith.constant 32 : index
    %90 = vector.load %arg1[%c0_142, %c2_143, %c0_144, %c32_145] : memref<1x4x6x256xf32, #tpu.memory_space<vmem>>, vector<1x1x6x208xf32>
    %91 = vector.shape_cast %90 : vector<1x1x6x208xf32> to vector<6x208xf32>
    %c180 = arith.constant 180 : index
    %c0_146 = arith.constant 0 : index
    %92 = vector.load %arg5[%c180, %c0_146] : memref<216x208xf32, #tpu.memory_space<vmem>>, vector<6x208xf32>
    tpu.vector_store %arg5[%c180, %c0_146], %91 {strides = array<i32>} : memref<216x208xf32, #tpu.memory_space<vmem>>, vector<6x208xf32>,
    %c0_147 = arith.constant 0 : index
    %c3_148 = arith.constant 3 : index
    %c0_149 = arith.constant 0 : index
    %c32_150 = arith.constant 32 : index
    %93 = vector.load %arg1[%c0_147, %c3_148, %c0_149, %c32_150] : memref<1x4x6x256xf32, #tpu.memory_space<vmem>>, vector<1x1x6x208xf32>
    %94 = vector.shape_cast %93 : vector<1x1x6x208xf32> to vector<6x208xf32>
    %c186 = arith.constant 186 : index
    %c0_151 = arith.constant 0 : index
    %95 = vector.load %arg5[%c186, %c0_151] : memref<216x208xf32, #tpu.memory_space<vmem>>, vector<6x208xf32>
    tpu.vector_store %arg5[%c186, %c0_151], %94 {strides = array<i32>} : memref<216x208xf32, #tpu.memory_space<vmem>>, vector<6x208xf32>,
    %c0_152 = arith.constant 0 : index
    %c2_153 = arith.constant 2 : index
    %c0_154 = arith.constant 0 : index
    %c33_155 = arith.constant 33 : index
    %96 = vector.load %arg1[%c0_152, %c2_153, %c0_154, %c33_155] : memref<1x4x6x256xf32, #tpu.memory_space<vmem>>, vector<1x1x6x208xf32>
    %97 = vector.shape_cast %96 : vector<1x1x6x208xf32> to vector<6x208xf32>
    %c192 = arith.constant 192 : index
    %c0_156 = arith.constant 0 : index
    %98 = vector.load %arg5[%c192, %c0_156] : memref<216x208xf32, #tpu.memory_space<vmem>>, vector<6x208xf32>
    tpu.vector_store %arg5[%c192, %c0_156], %97 {strides = array<i32>} : memref<216x208xf32, #tpu.memory_space<vmem>>, vector<6x208xf32>,
    %c0_157 = arith.constant 0 : index
    %c3_158 = arith.constant 3 : index
    %c0_159 = arith.constant 0 : index
    %c33_160 = arith.constant 33 : index
    %99 = vector.load %arg1[%c0_157, %c3_158, %c0_159, %c33_160] : memref<1x4x6x256xf32, #tpu.memory_space<vmem>>, vector<1x1x6x208xf32>
    %100 = vector.shape_cast %99 : vector<1x1x6x208xf32> to vector<6x208xf32>
    %c198 = arith.constant 198 : index
    %c0_161 = arith.constant 0 : index
    %101 = vector.load %arg5[%c198, %c0_161] : memref<216x208xf32, #tpu.memory_space<vmem>>, vector<6x208xf32>
    tpu.vector_store %arg5[%c198, %c0_161], %100 {strides = array<i32>} : memref<216x208xf32, #tpu.memory_space<vmem>>, vector<6x208xf32>,
    %c0_162 = arith.constant 0 : index
    %c2_163 = arith.constant 2 : index
    %c0_164 = arith.constant 0 : index
    %c34_165 = arith.constant 34 : index
    %102 = vector.load %arg1[%c0_162, %c2_163, %c0_164, %c34_165] : memref<1x4x6x256xf32, #tpu.memory_space<vmem>>, vector<1x1x6x208xf32>
    %103 = vector.shape_cast %102 : vector<1x1x6x208xf32> to vector<6x208xf32>
    %c204 = arith.constant 204 : index
    %c0_166 = arith.constant 0 : index
    %104 = vector.load %arg5[%c204, %c0_166] : memref<216x208xf32, #tpu.memory_space<vmem>>, vector<6x208xf32>
    tpu.vector_store %arg5[%c204, %c0_166], %103 {strides = array<i32>} : memref<216x208xf32, #tpu.memory_space<vmem>>, vector<6x208xf32>,
    %c0_167 = arith.constant 0 : index
    %c3_168 = arith.constant 3 : index
    %c0_169 = arith.constant 0 : index
    %c34_170 = arith.constant 34 : index
    %105 = vector.load %arg1[%c0_167, %c3_168, %c0_169, %c34_170] : memref<1x4x6x256xf32, #tpu.memory_space<vmem>>, vector<1x1x6x208xf32>
    %106 = vector.shape_cast %105 : vector<1x1x6x208xf32> to vector<6x208xf32>
    %c210 = arith.constant 210 : index
    %c0_171 = arith.constant 0 : index
    %107 = vector.load %arg5[%c210, %c0_171] : memref<216x208xf32, #tpu.memory_space<vmem>>, vector<6x208xf32>
    tpu.vector_store %arg5[%c210, %c0_171], %106 {strides = array<i32>} : memref<216x208xf32, #tpu.memory_space<vmem>>, vector<6x208xf32>,
    %c0_172 = arith.constant 0 : index
    %c0_173 = arith.constant 0 : index
    %108 = vector.load %arg2[%c0_172, %c0_173] : memref<16x150xf32, #tpu.memory_space<vmem>>, vector<16x150xf32>
    %c0_174 = arith.constant 0 : index
    %c0_175 = arith.constant 0 : index
    %109 = vector.load %arg5[%c0_174, %c0_175] : memref<216x208xf32, #tpu.memory_space<vmem>>, vector<30x208xf32>
    %c36_176 = arith.constant 36 : index
    %c0_177 = arith.constant 0 : index
    %110 = vector.load %arg5[%c36_176, %c0_177] : memref<216x208xf32, #tpu.memory_space<vmem>>, vector<30x208xf32>
    %c72_178 = arith.constant 72 : index
    %c0_179 = arith.constant 0 : index
    %111 = vector.load %arg5[%c72_178, %c0_179] : memref<216x208xf32, #tpu.memory_space<vmem>>, vector<30x208xf32>
    %c108_180 = arith.constant 108 : index
    %c0_181 = arith.constant 0 : index
    %112 = vector.load %arg5[%c108_180, %c0_181] : memref<216x208xf32, #tpu.memory_space<vmem>>, vector<30x208xf32>
    %c144_182 = arith.constant 144 : index
    %c0_183 = arith.constant 0 : index
    %113 = vector.load %arg5[%c144_182, %c0_183] : memref<216x208xf32, #tpu.memory_space<vmem>>, vector<30x208xf32>
    %114 = tpu.concatenate %109, %110, %111, %112, %113 in 0 : vector<30x208xf32>, vector<30x208xf32>, vector<30x208xf32>, vector<30x208xf32>, vector<30x208xf32> -> vector<150x208xf32>
    %cst = arith.constant dense<0.000000e+00> : vector<16x208xf32>
    %115 = tpu.matmul %108, %114, %cst {dimension_numbers = #tpu.dot_dimension_numbers<[1], [0], [0], [1], [0, 0, 1, 1], [], []>} : vector<16x150xf32>, vector<150x208xf32>, vector<16x208xf32> -> vector<16x208xf32>
    %c6_184 = arith.constant 6 : index
    %c0_185 = arith.constant 0 : index
    %116 = vector.load %arg5[%c6_184, %c0_185] : memref<216x208xf32, #tpu.memory_space<vmem>>, vector<30x208xf32>
    %c42_186 = arith.constant 42 : index
    %c0_187 = arith.constant 0 : index
    %117 = vector.load %arg5[%c42_186, %c0_187] : memref<216x208xf32, #tpu.memory_space<vmem>>, vector<30x208xf32>
    %c78_188 = arith.constant 78 : index
    %c0_189 = arith.constant 0 : index
    %118 = vector.load %arg5[%c78_188, %c0_189] : memref<216x208xf32, #tpu.memory_space<vmem>>, vector<30x208xf32>
    %c114_190 = arith.constant 114 : index
    %c0_191 = arith.constant 0 : index
    %119 = vector.load %arg5[%c114_190, %c0_191] : memref<216x208xf32, #tpu.memory_space<vmem>>, vector<30x208xf32>
    %c150_192 = arith.constant 150 : index
    %c0_193 = arith.constant 0 : index
    %120 = vector.load %arg5[%c150_192, %c0_193] : memref<216x208xf32, #tpu.memory_space<vmem>>, vector<30x208xf32>
    %121 = tpu.concatenate %116, %117, %118, %119, %120 in 0 : vector<30x208xf32>, vector<30x208xf32>, vector<30x208xf32>, vector<30x208xf32>, vector<30x208xf32> -> vector<150x208xf32>
    %cst_194 = arith.constant dense<0.000000e+00> : vector<16x208xf32>
    %122 = tpu.matmul %108, %121, %cst_194 {dimension_numbers = #tpu.dot_dimension_numbers<[1], [0], [0], [1], [0, 0, 1, 1], [], []>} : vector<16x150xf32>, vector<150x208xf32>, vector<16x208xf32> -> vector<16x208xf32>
    %123 = arith.maximumf %115, %122 : vector<16x208xf32>
    %c36_195 = arith.constant 36 : index
    %c0_196 = arith.constant 0 : index
    %124 = vector.load %arg5[%c36_195, %c0_196] : memref<216x208xf32, #tpu.memory_space<vmem>>, vector<30x208xf32>
    %c72_197 = arith.constant 72 : index
    %c0_198 = arith.constant 0 : index
    %125 = vector.load %arg5[%c72_197, %c0_198] : memref<216x208xf32, #tpu.memory_space<vmem>>, vector<30x208xf32>
    %c108_199 = arith.constant 108 : index
    %c0_200 = arith.constant 0 : index
    %126 = vector.load %arg5[%c108_199, %c0_200] : memref<216x208xf32, #tpu.memory_space<vmem>>, vector<30x208xf32>
    %c144_201 = arith.constant 144 : index
    %c0_202 = arith.constant 0 : index
    %127 = vector.load %arg5[%c144_201, %c0_202] : memref<216x208xf32, #tpu.memory_space<vmem>>, vector<30x208xf32>
    %c180_203 = arith.constant 180 : index
    %c0_204 = arith.constant 0 : index
    %128 = vector.load %arg5[%c180_203, %c0_204] : memref<216x208xf32, #tpu.memory_space<vmem>>, vector<30x208xf32>
    %129 = tpu.concatenate %124, %125, %126, %127, %128 in 0 : vector<30x208xf32>, vector<30x208xf32>, vector<30x208xf32>, vector<30x208xf32>, vector<30x208xf32> -> vector<150x208xf32>
    %cst_205 = arith.constant dense<0.000000e+00> : vector<16x208xf32>
    %130 = tpu.matmul %108, %129, %cst_205 {dimension_numbers = #tpu.dot_dimension_numbers<[1], [0], [0], [1], [0, 0, 1, 1], [], []>} : vector<16x150xf32>, vector<150x208xf32>, vector<16x208xf32> -> vector<16x208xf32>
    %131 = arith.maximumf %123, %130 : vector<16x208xf32>
    %c42_206 = arith.constant 42 : index
    %c0_207 = arith.constant 0 : index
    %132 = vector.load %arg5[%c42_206, %c0_207] : memref<216x208xf32, #tpu.memory_space<vmem>>, vector<30x208xf32>
    %c78_208 = arith.constant 78 : index
    %c0_209 = arith.constant 0 : index
    %133 = vector.load %arg5[%c78_208, %c0_209] : memref<216x208xf32, #tpu.memory_space<vmem>>, vector<30x208xf32>
    %c114_210 = arith.constant 114 : index
    %c0_211 = arith.constant 0 : index
    %134 = vector.load %arg5[%c114_210, %c0_211] : memref<216x208xf32, #tpu.memory_space<vmem>>, vector<30x208xf32>
    %c150_212 = arith.constant 150 : index
    %c0_213 = arith.constant 0 : index
    %135 = vector.load %arg5[%c150_212, %c0_213] : memref<216x208xf32, #tpu.memory_space<vmem>>, vector<30x208xf32>
    %c186_214 = arith.constant 186 : index
    %c0_215 = arith.constant 0 : index
    %136 = vector.load %arg5[%c186_214, %c0_215] : memref<216x208xf32, #tpu.memory_space<vmem>>, vector<30x208xf32>
    %137 = tpu.concatenate %132, %133, %134, %135, %136 in 0 : vector<30x208xf32>, vector<30x208xf32>, vector<30x208xf32>, vector<30x208xf32>, vector<30x208xf32> -> vector<150x208xf32>
    %cst_216 = arith.constant dense<0.000000e+00> : vector<16x208xf32>
    %138 = tpu.matmul %108, %137, %cst_216 {dimension_numbers = #tpu.dot_dimension_numbers<[1], [0], [0], [1], [0, 0, 1, 1], [], []>} : vector<16x150xf32>, vector<150x208xf32>, vector<16x208xf32> -> vector<16x208xf32>
    %139 = arith.maximumf %131, %138 : vector<16x208xf32>
    %c0_217 = arith.constant 0 : index
    %c0_218 = arith.constant 0 : index
    %140 = vector.load %arg3[%c0_217, %c0_218] : memref<16x1xf32, #tpu.memory_space<vmem>>, vector<16x1xf32>
    %141 = vector.broadcast %140 : vector<16x1xf32> to vector<16x208xf32>
    %142 = arith.addf %139, %141 : vector<16x208xf32>
    %cst_219 = arith.constant 0.000000e+00 : f32
    %143 = vector.broadcast %cst_219 : f32 to vector<16x208xf32>
    %144 = arith.maximumf %142, %143 : vector<16x208xf32>
    %145 = tpu.iota {dimensions = array<i32: 1>} : vector<16x208xi32>
    %c15_i32 = arith.constant 15 : i32
    %146 = vector.broadcast %c15_i32 : i32 to vector<16x208xi32>
    %147 = arith.andi %145, %146 : vector<16x208xi32>
    %c13_i32 = arith.constant 13 : i32
    %148 = vector.broadcast %c13_i32 : i32 to vector<16x208xi32>
    %149 = arith.cmpi slt, %147, %148 : vector<16x208xi32>
    %cst_220 = arith.constant 0.000000e+00 : f32
    %150 = vector.broadcast %cst_220 : f32 to vector<16x208xf32>
    %151 = arith.select %149, %144, %150 : vector<16x208xi1>, vector<16x208xf32>
    %c0_221 = arith.constant 0 : index
    %c0_222 = arith.constant 0 : index
    %c0_223 = arith.constant 0 : index
    %152 = vector.load %arg4[%c0_221, %c0_222, %c0_223] : memref<1x16x208xf32, #tpu.memory_space<vmem>>, vector<1x16x208xf32>
    %153 = vector.shape_cast %152 : vector<1x16x208xf32> to vector<16x208xf32>
    %154 = vector.shape_cast %151 : vector<16x208xf32> to vector<1x16x208xf32>
    tpu.vector_store %arg4[%c0_221, %c0_222, %c0_223], %154 {strides = array<i32>} : memref<1x16x208xf32, #tpu.memory_space<vmem>>, vector<1x16x208xf32>,
    return
  }
  func.func @transform_0(%arg0: i32) -> (i32, i32, i32, i32) {
    %c0_i32 = arith.constant 0 : i32
    %c0_i32_0 = arith.constant 0 : i32
    %c0_i32_1 = arith.constant 0 : i32
    %c0_i32_2 = arith.constant 0 : i32
    return %arg0, %c0_i32, %c0_i32_0, %c0_i32_1 : i32, i32, i32, i32
  }
  func.func @transform_1(%arg0: i32) -> (i32, i32) {
    %c0_i32 = arith.constant 0 : i32
    %c0_i32_0 = arith.constant 0 : i32
    %c0_i32_1 = arith.constant 0 : i32
    return %c0_i32, %c0_i32_0 : i32, i32
  }
  func.func @transform_2(%arg0: i32) -> (i32, i32) {
    %c0_i32 = arith.constant 0 : i32
    %c0_i32_0 = arith.constant 0 : i32
    %c0_i32_1 = arith.constant 0 : i32
    return %c0_i32, %c0_i32_0 : i32, i32
  }
  func.func @transform_3(%arg0: i32) -> (i32, i32, i32) {
    %c0_i32 = arith.constant 0 : i32
    %c0_i32_0 = arith.constant 0 : i32
    %c0_i32_1 = arith.constant 0 : i32
    return %arg0, %c0_i32, %c0_i32_0 : i32, i32, i32
  }
}

module attributes {stable_mosaic.version = 11 : i64} {
  func.func @_fc_head_kernel(%arg0: memref<2x2704xf32, #tpu.memory_space<vmem>>, %arg1: memref<2704x512xbf16, #tpu.memory_space<vmem>>, %arg2: memref<1x512xf32, #tpu.memory_space<vmem>>, %arg3: memref<512x84xf32, #tpu.memory_space<vmem>>, %arg4: memref<1x84xf32, #tpu.memory_space<vmem>>, %arg5: memref<84x100xf32, #tpu.memory_space<vmem>>, %arg6: memref<1x100xf32, #tpu.memory_space<vmem>>, %arg7: memref<2x100xf32, #tpu.memory_space<vmem>>) attributes {dimension_semantics = [], scalar_prefetch = 0 : i64, scratch_operands = 0 : i64, tpu.core_type = #tpu.core_type<tc>} {
    %c0 = arith.constant 0 : index
    %c0_0 = arith.constant 0 : index
    %0 = vector.load %arg0[%c0, %c0_0] : memref<2x2704xf32, #tpu.memory_space<vmem>>, vector<2x2704xf32>
    %1 = arith.truncf %0 : vector<2x2704xf32> to vector<2x2704xbf16>
    %c0_1 = arith.constant 0 : index
    %c0_2 = arith.constant 0 : index
    %2 = vector.load %arg1[%c0_1, %c0_2] : memref<2704x512xbf16, #tpu.memory_space<vmem>>, vector<2704x512xbf16>
    %cst = arith.constant dense<0.000000e+00> : vector<2x512xf32>
    %3 = tpu.matmul %1, %2, %cst {dimension_numbers = #tpu.dot_dimension_numbers<[1], [0], [0], [1], [0, 0, 1, 1], [], []>} : vector<2x2704xbf16>, vector<2704x512xbf16>, vector<2x512xf32> -> vector<2x512xf32>
    %c0_3 = arith.constant 0 : index
    %c0_4 = arith.constant 0 : index
    %4 = vector.load %arg2[%c0_3, %c0_4] : memref<1x512xf32, #tpu.memory_space<vmem>>, vector<1x512xf32>
    %5 = vector.broadcast %4 : vector<1x512xf32> to vector<2x512xf32>
    %6 = arith.addf %3, %5 : vector<2x512xf32>
    %cst_5 = arith.constant 0.000000e+00 : f32
    %7 = vector.broadcast %cst_5 : f32 to vector<2x512xf32>
    %8 = arith.maximumf %6, %7 : vector<2x512xf32>
    %c0_6 = arith.constant 0 : index
    %c0_7 = arith.constant 0 : index
    %9 = vector.load %arg3[%c0_6, %c0_7] : memref<512x84xf32, #tpu.memory_space<vmem>>, vector<512x84xf32>
    %cst_8 = arith.constant dense<0.000000e+00> : vector<2x84xf32>
    %10 = tpu.matmul %8, %9, %cst_8 {dimension_numbers = #tpu.dot_dimension_numbers<[1], [0], [0], [1], [0, 0, 1, 1], [], []>} : vector<2x512xf32>, vector<512x84xf32>, vector<2x84xf32> -> vector<2x84xf32>
    %c0_9 = arith.constant 0 : index
    %c0_10 = arith.constant 0 : index
    %11 = vector.load %arg4[%c0_9, %c0_10] : memref<1x84xf32, #tpu.memory_space<vmem>>, vector<1x84xf32>
    %12 = vector.broadcast %11 : vector<1x84xf32> to vector<2x84xf32>
    %13 = arith.addf %10, %12 : vector<2x84xf32>
    %cst_11 = arith.constant 0.000000e+00 : f32
    %14 = vector.broadcast %cst_11 : f32 to vector<2x84xf32>
    %15 = arith.maximumf %13, %14 : vector<2x84xf32>
    %c0_12 = arith.constant 0 : index
    %c0_13 = arith.constant 0 : index
    %16 = vector.load %arg5[%c0_12, %c0_13] : memref<84x100xf32, #tpu.memory_space<vmem>>, vector<84x100xf32>
    %cst_14 = arith.constant dense<0.000000e+00> : vector<2x100xf32>
    %17 = tpu.matmul %15, %16, %cst_14 {dimension_numbers = #tpu.dot_dimension_numbers<[1], [0], [0], [1], [0, 0, 1, 1], [], []>} : vector<2x84xf32>, vector<84x100xf32>, vector<2x100xf32> -> vector<2x100xf32>
    %c0_15 = arith.constant 0 : index
    %c0_16 = arith.constant 0 : index
    %18 = vector.load %arg6[%c0_15, %c0_16] : memref<1x100xf32, #tpu.memory_space<vmem>>, vector<1x100xf32>
    %19 = vector.broadcast %18 : vector<1x100xf32> to vector<2x100xf32>
    %20 = arith.addf %17, %19 : vector<2x100xf32>
    %c0_17 = arith.constant 0 : index
    %c0_18 = arith.constant 0 : index
    %21 = vector.load %arg7[%c0_17, %c0_18] : memref<2x100xf32, #tpu.memory_space<vmem>>, vector<2x100xf32>
    tpu.vector_store %arg7[%c0_17, %c0_18], %20 {strides = array<i32>} : memref<2x100xf32, #tpu.memory_space<vmem>>, vector<2x100xf32>,
    return
  }
}

</mosaic_0001>

<llo_original>
// kernel: net_small_forward.3
$region0: #{net_small_forward.3}
  #allocation0 [shape = 'u32[]', space=smem, size = 0x4, offset = 0x4, fixed_abs, tag = 'smem constant byte address 0x4 - core index']
  #allocation1 [shape = 'u32[144,128]{1,0:T(1,128)}', space=vmem, size = 0x12000, scoped, tag = 'internal scratch']
  #allocation2 [shape = 'f32[16,991]{1,0:T(8,128)}', space=vmem, size = 0x10000, scoped, tag = 'scratch operand']
  %s0 = inlined_call_operand.vmem [shape: f32[2,4,1,1024], index: 0, kind: input, shape index: {}]
  %s1 = inlined_call_operand.hbm [shape: f32[6,9], index: 1, kind: input, shape index: {}]
  %s2 = inlined_call_operand.vmem [shape: f32[6,1], index: 2, kind: input, shape index: {}]
  %s3 = inlined_call_operand.vmem [shape: f32[2,6,1024], index: 3, kind: output, shape index: {}]
  %s4 = sld [smem:[#allocation0]]
  $region49: #{net_small_forward.3} parent=0
    _
  %s6 = ssub.s32 1, %s4
  %s7 = scalar_select 0, %s6, %s4
  $region1: #{net_small_forward.3} parent=0
    #allocation3 [shape = 'u8[4096]{0}', space=vmem, size = 0x1000, scoped, tag = 'input window, operand 1, single buffered']
    #allocation4 [shape = 's32[2]{0}', space=sflag, size = 0x8, scoped, tag = 'scoped memory for net_small_forward.3']
    %8 = vsyncpa [#allocation4], 0
    loop: start=0, step=1, limit=4
    $region2: #{net_small_forward.3} parent=1 // loop_pre_header
      _
    $region3: #{net_small_forward.3} parent=1 // loop_header
      %s10 = sphi 0, %s14
      %p11 = scmp.ge.s32.totalorder %s10, 4
      %s20 = sphi 0, %s22
      %s23 = sphi 0, %s20
      %s24 = sphi 0, %s23
      %s40 = sphi 0, %s24
      %s44 = sphi 0, %s44
      %s46 = sphi 0, %s44
      %s47 = sphi 0, %s46
      %s61 = sphi 0, %s47
      %s65 = sphi 0, %s65
      %s67 = sphi 0, %s65
      %s68 = sphi 0, %s67
      %s82 = sphi 0, %s68
      %s88 = sphi 0, %s90
      %s91 = sphi 0, %s88
      %s92 = sphi 0, %s91
      %s108 = sphi 0, %s92
    $region4: #{net_small_forward.3} parent=1 // loop_header_branch
      %13 = sbr.rel (%p11) target = $region8
    $region5: #{net_small_forward.3} parent=1 // loop_body
      %s15 = ssub.s32 %s10, 1
      %s16 = ssub.s32 %s10, 2
      %s17 = sadd.s32 %s10, 1
      %s18 = ssub.s32 %s10, %s17
      %p19 = scmp.eq.s32.totalorder %s18, 0
      %s21 = sadd.s32 %s20, 1
      %s22 = scalar_select %p19, %s20, %s21
      %p25 = pneg %p19
      %p26 = scmp.eq.s32.totalorder %s10, 1
      %p27 = por %p25, %p26
      %p28 = scmp.ne.s32.totalorder %s20, %s23
      %p29 = scmp.eq.s32.totalorder %s10, 0
      %p30 = por %p28, %p29
      %p31 = scmp.ne.s32.totalorder %s20, %s23
      %p32 = scmp.eq.s32.totalorder %s15, 1
      %p33 = por %p31, %p32
      %p34 = scmp.ne.s32.totalorder %s23, %s24
      %p35 = scmp.eq.s32.totalorder %s15, 0
      %p36 = por %p34, %p35
      %p37 = scmp.ne.s32.totalorder %s23, %s24
      %p38 = scmp.eq.s32.totalorder %s16, 1
      %p39 = por %p37, %p38
      %p41 = scmp.ne.s32.totalorder %s24, %s40
      %p42 = scmp.eq.s32.totalorder %s16, 0
      %p43 = por %p41, %p42
      %s45 = sadd.s32 %s44, 1
      %p48 = scmp.eq.s32.totalorder %s10, 1
      %p49 = scmp.ne.s32.totalorder %s44, %s46
      %p50 = scmp.eq.s32.totalorder %s10, 0
      %p51 = por %p49, %p50
      %p52 = scmp.ne.s32.totalorder %s44, %s46
      %p53 = scmp.eq.s32.totalorder %s15, 1
      %p54 = por %p52, %p53
      %p55 = scmp.ne.s32.totalorder %s46, %s47
      %p56 = scmp.eq.s32.totalorder %s15, 0
      %p57 = por %p55, %p56
      %p58 = scmp.ne.s32.totalorder %s46, %s47
      %p59 = scmp.eq.s32.totalorder %s16, 1
      %p60 = por %p58, %p59
      %p62 = scmp.ne.s32.totalorder %s47, %s61
      %p63 = scmp.eq.s32.totalorder %s16, 0
      %p64 = por %p62, %p63
      %s66 = sadd.s32 %s65, 1
      %p69 = scmp.eq.s32.totalorder %s10, 1
      %p70 = scmp.ne.s32.totalorder %s65, %s67
      %p71 = scmp.eq.s32.totalorder %s10, 0
      %p72 = por %p70, %p71
      %p73 = scmp.ne.s32.totalorder %s65, %s67
      %p74 = scmp.eq.s32.totalorder %s15, 1
      %p75 = por %p73, %p74
      %p76 = scmp.ne.s32.totalorder %s67, %s68
      %p77 = scmp.eq.s32.totalorder %s15, 0
      %p78 = por %p76, %p77
      %p79 = scmp.ne.s32.totalorder %s67, %s68
      %p80 = scmp.eq.s32.totalorder %s16, 1
      %p81 = por %p79, %p80
      %p83 = scmp.ne.s32.totalorder %s68, %s82
      %p84 = scmp.eq.s32.totalorder %s16, 0
      %p85 = por %p83, %p84
      %s86 = ssub.s32 %s10, %s17
      %p87 = scmp.eq.s32.totalorder %s86, 0
      %s89 = sadd.s32 %s88, 1
      %s90 = scalar_select %p87, %s88, %s89
      %p93 = pneg %p87
      %p94 = scmp.eq.s32.totalorder %s10, 1
      %p95 = por %p93, %p94
      %p96 = scmp.ne.s32.totalorder %s88, %s91
      %p97 = scmp.eq.s32.totalorder %s10, 0
      %p98 = por %p96, %p97
      %p99 = scmp.ne.s32.totalorder %s88, %s91
      %p100 = scmp.eq.s32.totalorder %s15, 1
      %p101 = por %p99, %p100
      %p102 = scmp.ne.s32.totalorder %s91, %s92
      %p103 = scmp.eq.s32.totalorder %s15, 0
      %p104 = por %p102, %p103
      %p105 = scmp.ne.s32.totalorder %s91, %s92
      %p106 = scmp.eq.s32.totalorder %s16, 1
      %p107 = por %p105, %p106
      %p109 = scmp.ne.s32.totalorder %s92, %s108
      %p110 = scmp.eq.s32.totalorder %s16, 0
      %p111 = por %p109, %p110
      %p112 = scmp.le.s32.totalorder 1, %s10
      %p113 = scmp.lt.s32.totalorder %s10, 3
      %p114 = pnand %p112, %p113
      %p115 = pneg %p114
      // Predicated region
      $region9: #{net_small_forward.3} parent=5 // pred_check
        _
      $region10: #{net_small_forward.3} parent=5 // pred_check_branch
        %117 = sbr.rel (%p114) target = $region12
      $region11: #{net_small_forward.3} parent=5 // pred_region
        %s118 = ssub.s32 %s10, 1
        // Predicated region
        $region13: #{net_small_forward.3} parent=11 // pred_check
          %p119 = pneg %p57
        $region14: #{net_small_forward.3} parent=11 // pred_check_branch
          %121 = sbr.rel (%p119) target = $region16
        $region15: #{net_small_forward.3} parent=11 // pred_region
          %s123 = ssub.s32 128, 128
          %124 = vsyncadd [#allocation4], %s123
          %s126 = sshll.u32 [#allocation3], 4
          %s127 = int_to_ptr.vmem [resolvable:$true] %s126
          %129 = dma.hbm_to_vmem [thread:$0]  %s1, 128, %s127, [#allocation4]
        $region16: #{net_small_forward.3} parent=11 // pred_fallthru
          _
        // Predicated region
        $region17: #{net_small_forward.3} parent=11 // pred_check
          %p130 = pneg %p78
        $region18: #{net_small_forward.3} parent=11 // pred_check_branch
          %132 = sbr.rel (%p130) target = $region20
        $region19: #{net_small_forward.3} parent=11 // pred_region
          _
        $region20: #{net_small_forward.3} parent=11 // pred_fallthru
          _
      $region12: #{net_small_forward.3} parent=5 // pred_fallthru
        _
      %p133 = scmp.lt.s32.totalorder %s10, 2
      // Predicated region
      $region21: #{net_small_forward.3} parent=5 // pred_check
        %p134 = pneg %p133
      $region22: #{net_small_forward.3} parent=5 // pred_check_branch
        %136 = sbr.rel (%p134) target = $region24
      $region23: #{net_small_forward.3} parent=5 // pred_region
        // Predicated region
        $region25: #{net_small_forward.3} parent=23 // pred_check
          %p137 = pneg %p30
        $region26: #{net_small_forward.3} parent=23 // pred_check_branch
          %139 = sbr.rel (%p137) target = $region28
        $region27: #{net_small_forward.3} parent=23 // pred_region
          %p140 = scmp.lt.s32.totalorder %s10, 1
          %s141 = scalar_select %p140, %s10, 1
          %s142 = smul.addr %s141, 32
          %s143 = scalar_lea.vmem %s0, %s142
        $region28: #{net_small_forward.3} parent=23 // pred_fallthru
          _
      $region24: #{net_small_forward.3} parent=5 // pred_fallthru
        _
      %p144 = scmp.le.s32.totalorder 1, %s10
      %p145 = scmp.lt.s32.totalorder %s10, 3
      %p146 = pnand %p144, %p145
      %p147 = pneg %p146
      // Predicated region
      $region29: #{net_small_forward.3} parent=5 // pred_check
        _
      $region30: #{net_small_forward.3} parent=5 // pred_check_branch
        %149 = sbr.rel (%p146) target = $region32
      $region31: #{net_small_forward.3} parent=5 // pred_region
        %s150 = ssub.s32 %s10, 1
        // Predicated region
        $region33: #{net_small_forward.3} parent=31 // pred_check
          %p151 = pneg %p57
        $region34: #{net_small_forward.3} parent=31 // pred_check_branch
          %153 = sbr.rel (%p151) target = $region36
        $region35: #{net_small_forward.3} parent=31 // pred_region
          %154 = dma.done [#allocation4], 128
        $region36: #{net_small_forward.3} parent=31 // pred_fallthru
          _
        %p155 = scmp.lt.s32.totalorder %s15, 1
        %s156 = scalar_select %p155, %s15, 1
        %s157 = smul.addr %s156, 32
        %s158 = scalar_lea.vmem %s0, %s157
        %p159 = pneg %p36
        %p160 = pneg %p33
        %p161 = pneg %p57
        %p162 = pneg %p54
        %p163 = pneg %p78
        %p164 = pneg %p75
        %p165 = pneg %p104
        %p166 = pneg %p101
        %p167 = scmp.lt.s32.totalorder %s15, 1
        %s168 = scalar_select %p167, %s15, 1
        %s169 = smul.addr %s168, 8
        %s170 = smul.addr %s169, 8
        %s171 = scalar_lea.vmem %s3, %s170
        %p172 = scmp.lt.s32.totalorder %s15, 1
        %s173 = scalar_select %p172, %s15, 1
        %s174 = smul.addr %s173, 32
        %s175 = scalar_lea.vmem %s0, %s174
        %p176 = scmp.lt.s32.totalorder %s15, 1
        %s177 = scalar_select %p176, %s15, 1
        %s178 = smul.addr %s177, 8
        %s179 = smul.addr %s178, 8
        %s180 = scalar_lea.vmem %s3, %s179
        %v181 = vld [vmem:[%s175] sm:$0xff]
        %v182 = vlaneseq
        %vm183 = vcmp.ge.s32.totalorder %v182, 0
        %vm184 = vcmp.lt.s32.totalorder %v182, 991
        %vm185 = vmand %vm183, %vm184
        %186 = vst.msk [vmem:[#allocation2] ss:$8 sm:$0xf] %vm185, %v181
        %187 = vst.msk [vmem:[#allocation2] ss:$8 sm:$0xf0] %vm185, %v181
        %s188 = scalar_lea.vmem %s175, 8
        %v189 = vld [vmem:[%s188] sm:$0xff]
        %s190 = scalar_lea.vmem [#allocation2], 1
        %191 = vst.msk [vmem:[%s190] ss:$8 sm:$0xf] %vm185, %v189
        %192 = vst.msk [vmem:[%s190] ss:$8 sm:$0xf0] %vm185, %v189
        %v193 = vld [vmem:[%s175] sm:$0xff]
        %195 = vrot.lane.b32.xlu0 %v193, 127
        %v196 = vpop.permute.xlu0 %195
        %v197 = vrot.slane %v196, 1
        %vm198 = vcmask 1039360
        %v199 = vsel %vm198, %v196, %v197
        %s201 = scalar_lea.vmem [#allocation2], 2
        %202 = vst.msk [vmem:[%s201] ss:$8 sm:$0xf] %vm185, %v199
        %203 = vst.msk [vmem:[%s201] ss:$8 sm:$0xf0] %vm185, %v199
        %v204 = vld [vmem:[%s188] sm:$0xff]
        %206 = vrot.lane.b32.xlu0 %v204, 127
        %v207 = vpop.permute.xlu0 %206
        %v208 = vrot.slane %v207, 1
        %v209 = vsel %vm198, %v207, %v208
        %s211 = scalar_lea.vmem [#allocation2], 3
        %212 = vst.msk [vmem:[%s211] ss:$8 sm:$0xf] %vm185, %v209
        %213 = vst.msk [vmem:[%s211] ss:$8 sm:$0xf0] %vm185, %v209
        %s214 = scalar_lea.vmem %s175, 16
        %v215 = vld [vmem:[%s214] sm:$0xff]
        %s216 = scalar_lea.vmem [#allocation2], 4
        %217 = vst.msk [vmem:[%s216] ss:$8 sm:$0xf] %vm185, %v215
        %218 = vst.msk [vmem:[%s216] ss:$8 sm:$0xf0] %vm185, %v215
        %s219 = scalar_lea.vmem %s175, 24
        %v220 = vld [vmem:[%s219] sm:$0xff]
        %s221 = scalar_lea.vmem [#allocation2], 5
        %222 = vst.msk [vmem:[%s221] ss:$8 sm:$0xf] %vm185, %v220
        %223 = vst.msk [vmem:[%s221] ss:$8 sm:$0xf0] %vm185, %v220
        %v224 = vld [vmem:[%s214] sm:$0xff]
        %226 = vrot.lane.b32.xlu0 %v224, 127
        %v227 = vpop.permute.xlu0 %226
        %v228 = vrot.slane %v227, 1
        %v229 = vsel %vm198, %v227, %v228
        %s231 = scalar_lea.vmem [#allocation2], 6
        %232 = vst.msk [vmem:[%s231] ss:$8 sm:$0xf] %vm185, %v229
        %233 = vst.msk [vmem:[%s231] ss:$8 sm:$0xf0] %vm185, %v229
        %v234 = vld [vmem:[%s219] sm:$0xff]
        %236 = vrot.lane.b32.xlu0 %v234, 127
        %v237 = vpop.permute.xlu0 %236
        %v238 = vrot.slane %v237, 1
        %v239 = vsel %vm198, %v237, %v238
        %s241 = scalar_lea.vmem [#allocation2], 7
        %242 = vst.msk [vmem:[%s241] ss:$8 sm:$0xf] %vm185, %v239
        %243 = vst.msk [vmem:[%s241] ss:$8 sm:$0xf0] %vm185, %v239
        %v244 = vld [vmem:[%s175] sm:$0xff]
        %246 = vrot.lane.b32.xlu0 %v244, 96
        %v247 = vpop.permute.xlu0 %246
        %v248 = vrot.slane %v247, 1
        %vm249 = vcmask 785408
        %v250 = vsel %vm249, %v247, %v248
        %s252 = scalar_lea.vmem [#allocation2], 64
        %253 = vst.msk [vmem:[%s252] ss:$8 sm:$0xf] %vm185, %v250
        %254 = vst.msk [vmem:[%s252] ss:$8 sm:$0xf0] %vm185, %v250
        %v255 = vld [vmem:[%s188] sm:$0xff]
        %257 = vrot.lane.b32.xlu0 %v255, 96
        %v258 = vpop.permute.xlu0 %257
        %v259 = vrot.slane %v258, 1
        %v260 = vsel %vm249, %v258, %v259
        %s262 = scalar_lea.vmem [#allocation2], 65
        %263 = vst.msk [vmem:[%s262] ss:$8 sm:$0xf] %vm185, %v260
        %264 = vst.msk [vmem:[%s262] ss:$8 sm:$0xf0] %vm185, %v260
        %v265 = vld [vmem:[%s175] sm:$0xff]
        %267 = vrot.lane.b32.xlu0 %v265, 95
        %v268 = vpop.permute.xlu0 %267
        %v269 = vrot.slane %v268, 1
        %vm270 = vcmask 777216
        %v271 = vsel %vm270, %v268, %v269
        %s273 = scalar_lea.vmem [#allocation2], 66
        %274 = vst.msk [vmem:[%s273] ss:$8 sm:$0xf] %vm185, %v271
        %275 = vst.msk [vmem:[%s273] ss:$8 sm:$0xf0] %vm185, %v271
        %v276 = vld [vmem:[%s188] sm:$0xff]
        %278 = vrot.lane.b32.xlu0 %v276, 95
        %v279 = vpop.permute.xlu0 %278
        %v280 = vrot.slane %v279, 1
        %v281 = vsel %vm270, %v279, %v280
        %s283 = scalar_lea.vmem [#allocation2], 67
        %284 = vst.msk [vmem:[%s283] ss:$8 sm:$0xf] %vm185, %v281
        %285 = vst.msk [vmem:[%s283] ss:$8 sm:$0xf0] %vm185, %v281
        %v286 = vld [vmem:[%s214] sm:$0xff]
        %288 = vrot.lane.b32.xlu0 %v286, 96
        %v289 = vpop.permute.xlu0 %288
        %v290 = vrot.slane %v289, 1
        %v291 = vsel %vm249, %v289, %v290
        %s293 = scalar_lea.vmem [#allocation2], 68
        %294 = vst.msk [vmem:[%s293] ss:$8 sm:$0xf] %vm185, %v291
        %295 = vst.msk [vmem:[%s293] ss:$8 sm:$0xf0] %vm185, %v291
        %v296 = vld [vmem:[%s219] sm:$0xff]
        %298 = vrot.lane.b32.xlu0 %v296, 96
        %v299 = vpop.permute.xlu0 %298
        %v300 = vrot.slane %v299, 1
        %v301 = vsel %vm249, %v299, %v300
        %s303 = scalar_lea.vmem [#allocation2], 69
        %304 = vst.msk [vmem:[%s303] ss:$8 sm:$0xf] %vm185, %v301
        %305 = vst.msk [vmem:[%s303] ss:$8 sm:$0xf0] %vm185, %v301
        %v306 = vld [vmem:[%s214] sm:$0xff]
        %308 = vrot.lane.b32.xlu0 %v306, 95
        %v309 = vpop.permute.xlu0 %308
        %v310 = vrot.slane %v309, 1
        %v311 = vsel %vm270, %v309, %v310
        %s313 = scalar_lea.vmem [#allocation2], 70
        %314 = vst.msk [vmem:[%s313] ss:$8 sm:$0xf] %vm185, %v311
        %315 = vst.msk [vmem:[%s313] ss:$8 sm:$0xf0] %vm185, %v311
        %v316 = vld [vmem:[%s219] sm:$0xff]
        %318 = vrot.lane.b32.xlu0 %v316, 95
        %v319 = vpop.permute.xlu0 %318
        %v320 = vrot.slane %v319, 1
        %v321 = vsel %vm270, %v319, %v320
        %s323 = scalar_lea.vmem [#allocation2], 71
        %324 = vst.msk [vmem:[%s323] ss:$8 sm:$0xf] %vm185, %v321
        %325 = vst.msk [vmem:[%s323] ss:$8 sm:$0xf0] %vm185, %v321
        %v326 = vld [vmem:[#allocation3] sm:$0x3f]
        %v327 = vld [vmem:[#allocation2] sm:$0x7]
        %v328 = vld [vmem:[#allocation2 + $0x8] sm:$0x7]
        %v329 = vld [vmem:[#allocation2 + $0x10] sm:$0x7]
        %v330 = vld [vmem:[#allocation2 + $0x18] sm:$0x7]
        %v331 = vld [vmem:[#allocation2 + $0x20] sm:$0x7]
        %v332 = vld [vmem:[#allocation2 + $0x28] sm:$0x7]
        %v333 = vld [vmem:[#allocation2 + $0x30] sm:$0x7]
        %v334 = vld [vmem:[#allocation2 + $0x38] sm:$0x7]
        %v335 = vld [vmem:[#allocation2] sm:$0x70]
        %v336 = vld [vmem:[#allocation2 + $0x8] sm:$0x70]
        %v337 = vld [vmem:[#allocation2 + $0x10] sm:$0x70]
        %v338 = vld [vmem:[#allocation2 + $0x18] sm:$0x70]
        %v339 = vld [vmem:[#allocation2 + $0x20] sm:$0x70]
        %v340 = vld [vmem:[#allocation2 + $0x28] sm:$0x70]
        %v341 = vld [vmem:[#allocation2 + $0x30] sm:$0x70]
        %v342 = vld [vmem:[#allocation2 + $0x38] sm:$0x70]
        %v343 = vld [vmem:[#allocation2 + $0x40] sm:$0x7]
        %v344 = vld [vmem:[#allocation2 + $0x48] sm:$0x7]
        %v345 = vld [vmem:[#allocation2 + $0x50] sm:$0x7]
        %v346 = vld [vmem:[#allocation2 + $0x58] sm:$0x7]
        %v347 = vld [vmem:[#allocation2 + $0x60] sm:$0x7]
        %v348 = vld [vmem:[#allocation2 + $0x68] sm:$0x7]
        %v349 = vld [vmem:[#allocation2 + $0x70] sm:$0x7]
        %v350 = vld [vmem:[#allocation2 + $0x78] sm:$0x7]
        %v359 = vrot.slane %v335, 1
        %v360 = vrot.slane %v336, 1
        %v361 = vrot.slane %v337, 1
        %v362 = vrot.slane %v338, 1
        %v363 = vrot.slane %v339, 1
        %v364 = vrot.slane %v340, 1
        %v365 = vrot.slane %v341, 1
        %v366 = vrot.slane %v342, 1
        %v383 = vrot.slane %v343, 2
        %v384 = vrot.slane %v344, 2
        %v385 = vrot.slane %v345, 2
        %v386 = vrot.slane %v346, 2
        %v387 = vrot.slane %v347, 2
        %v388 = vrot.slane %v348, 2
        %v389 = vrot.slane %v349, 2
        %v390 = vrot.slane %v350, 2
        %vm399 = vcmask 1042432
        %v400 = vsel %vm399, %v327, %v359
        %v401 = vsel %vm399, %v328, %v360
        %v402 = vsel %vm399, %v329, %v361
        %v403 = vsel %vm399, %v330, %v362
        %v404 = vsel %vm399, %v331, %v363
        %v405 = vsel %vm399, %v332, %v364
        %v406 = vsel %vm399, %v333, %v365
        %v407 = vsel %vm399, %v334, %v366
        %vm408 = vcmask 1045504
        %v409 = vsel %vm408, %v400, %v383
        %v410 = vsel %vm408, %v401, %v384
        %v411 = vsel %vm408, %v402, %v385
        %v412 = vsel %vm408, %v403, %v386
        %v413 = vsel %vm408, %v404, %v387
        %v414 = vsel %vm408, %v405, %v388
        %v415 = vsel %vm408, %v406, %v389
        %v416 = vsel %vm408, %v407, %v390
        %vm417 = vcmask 72704
        %v419 = vsel %vm417, %v326, 0
        %vm421 = vcmask 1040384
        %v422 = vsel %vm421, %v383, 0
        %v424 = vsel %vm421, %v384, 0
        %v426 = vsel %vm421, %v385, 0
        %v428 = vsel %vm421, %v386, 0
        %v430 = vsel %vm421, %v387, 0
        %v432 = vsel %vm421, %v388, 0
        %v434 = vsel %vm421, %v389, 0
        %v436 = vsel %vm421, %v390, 0
        %438 = vmatprep.subr.mxu0 0.0
        %439 = vmatpush1.msra.mxu0 0.0
        %440 = vmatprep.subr.mxu0 0.0
        %441 = vmatpush1.msra.mxu0 0.0
        %442 = vmatprep.subr.mxu0 0.0
        %443 = vmatpush1.msra.mxu0 0.0
        %444 = vmatprep.subr.mxu0 0.0
        %445 = vmatpush1.msra.mxu0 0.0
        %446 = vmatprep.subr.mxu0 0.0
        %447 = vmatpush1.msra.mxu0 0.0
        %448 = vmatprep.subr.mxu0 0.0
        %449 = vmatpush1.msra.mxu0 0.0
        %450 = vmatprep.subr.mxu0 0.0
        %451 = vmatpush1.msra.mxu0 0.0
        %452 = vmatprep.subr.mxu0 0.0
        %453 = vmatpush1.msra.mxu0 0.0
        %454 = vmatprep.subr.mxu0 0.0
        %455 = vmatpush1.msra.mxu0 0.0
        %456 = vmatprep.subr.mxu0 0.0
        %457 = vmatpush1.msra.mxu0 0.0
        %458 = vmatprep.subr.mxu0 0.0
        %459 = vmatpush1.msra.mxu0 0.0
        %460 = vmatprep.subr.mxu0 0.0
        %461 = vmatpush1.msra.mxu0 0.0
        %462 = vmatprep.subr.mxu0 0.0
        %463 = vmatpush1.msra.mxu0 0.0
        %464 = vmatprep.subr.mxu0 0.0
        %465 = vmatpush1.msra.mxu0 0.0
        %466 = vmatprep.subr.mxu0 %v424
        %467 = vmatpush1.msra.mxu0 %v422
        %468 = vmatprep.subr.mxu0 %v410
        %469 = vmatpush1.msra.mxu0 %v409
        %470 = vmatprep.subr.mxu0 0.0
        %471 = vmatpush2.msra.mxu0 0.0
        %472 = vmatprep.subr.mxu0 0.0
        %473 = vmatpush2.msra.mxu0 0.0
        %474 = vmatprep.subr.mxu0 0.0
        %475 = vmatpush2.msra.mxu0 0.0
        %476 = vmatprep.subr.mxu0 0.0
        %477 = vmatpush2.msra.mxu0 0.0
        %478 = vmatprep.subr.mxu0 0.0
        %479 = vmatpush2.msra.mxu0 0.0
        %480 = vmatprep.subr.mxu0 0.0
        %481 = vmatpush2.msra.mxu0 0.0
        %482 = vmatprep.subr.mxu0 0.0
        %483 = vmatpush2.msra.mxu0 0.0
        %484 = vmatprep.subr.mxu0 0.0
        %485 = vmatpush2.msra.mxu0 0.0
        %486 = vmatprep.subr.mxu0 0.0
        %487 = vmatpush2.msra.mxu0 0.0
        %488 = vmatprep.subr.mxu0 0.0
        %489 = vmatpush2.msra.mxu0 0.0
        %490 = vmatprep.subr.mxu0 0.0
        %491 = vmatpush2.msra.mxu0 0.0
        %492 = vmatprep.subr.mxu0 0.0
        %493 = vmatpush2.msra.mxu0 0.0
        %494 = vmatprep.subr.mxu0 0.0
        %495 = vmatpush2.msra.mxu0 0.0
        %496 = vmatprep.subr.mxu0 0.0
        %497 = vmatpush2.msra.mxu0 0.0
        %498 = vmatprep.subr.mxu0 0.0
        %499 = vmatpush2.msra.mxu0 0.0
        %500 = vmatprep.subr.mxu0 0.0
        %501 = vmatpush2.msra.mxu0 0.0
        %502 = vmatprep.mubr.f32.mxu0 0.0
        %503 = vmatmul.mubr.f32.gmra.mxu0 %v419
        %v504 = vpop.f32.mrf.mxu0
        %v505 = vadd.f32 0.0, %v504
        %v506 = vpop.f32.mrf.mxu0
        %v507 = vadd.f32 0.0, %v506
        %508 = vdwg.mxu0
        %509 = vmatprep.subr.mxu0 0.0
        %510 = vmatpush1.msra.mxu0 0.0
        %511 = vmatprep.subr.mxu0 0.0
        %512 = vmatpush1.msra.mxu0 0.0
        %513 = vmatprep.subr.mxu0 0.0
        %514 = vmatpush1.msra.mxu0 0.0
        %515 = vmatprep.subr.mxu0 0.0
        %516 = vmatpush1.msra.mxu0 0.0
        %517 = vmatprep.subr.mxu0 0.0
        %518 = vmatpush1.msra.mxu0 0.0
        %519 = vmatprep.subr.mxu0 0.0
        %520 = vmatpush1.msra.mxu0 0.0
        %521 = vmatprep.subr.mxu0 0.0
        %522 = vmatpush1.msra.mxu0 0.0
        %523 = vmatprep.subr.mxu0 0.0
        %524 = vmatpush1.msra.mxu0 0.0
        %525 = vmatprep.subr.mxu0 0.0
        %526 = vmatpush1.msra.mxu0 0.0
        %527 = vmatprep.subr.mxu0 0.0
        %528 = vmatpush1.msra.mxu0 0.0
        %529 = vmatprep.subr.mxu0 0.0
        %530 = vmatpush1.msra.mxu0 0.0
        %531 = vmatprep.subr.mxu0 0.0
        %532 = vmatpush1.msra.mxu0 0.0
        %533 = vmatprep.subr.mxu0 0.0
        %534 = vmatpush1.msra.mxu0 0.0
        %535 = vmatprep.subr.mxu0 0.0
        %536 = vmatpush1.msra.mxu0 0.0
        %537 = vmatprep.subr.mxu0 %v428
        %538 = vmatpush1.msra.mxu0 %v426
        %539 = vmatprep.subr.mxu0 %v412
        %540 = vmatpush1.msra.mxu0 %v411
        %541 = vmatprep.subr.mxu0 0.0
        %542 = vmatpush2.msra.mxu0 0.0
        %543 = vmatprep.subr.mxu0 0.0
        %544 = vmatpush2.msra.mxu0 0.0
        %545 = vmatprep.subr.mxu0 0.0
        %546 = vmatpush2.msra.mxu0 0.0
        %547 = vmatprep.subr.mxu0 0.0
        %548 = vmatpush2.msra.mxu0 0.0
        %549 = vmatprep.subr.mxu0 0.0
        %550 = vmatpush2.msra.mxu0 0.0
        %551 = vmatprep.subr.mxu0 0.0
        %552 = vmatpush2.msra.mxu0 0.0
        %553 = vmatprep.subr.mxu0 0.0
        %554 = vmatpush2.msra.mxu0 0.0
        %555 = vmatprep.subr.mxu0 0.0
        %556 = vmatpush2.msra.mxu0 0.0
        %557 = vmatprep.subr.mxu0 0.0
        %558 = vmatpush2.msra.mxu0 0.0
        %559 = vmatprep.subr.mxu0 0.0
        %560 = vmatpush2.msra.mxu0 0.0
        %561 = vmatprep.subr.mxu0 0.0
        %562 = vmatpush2.msra.mxu0 0.0
        %563 = vmatprep.subr.mxu0 0.0
        %564 = vmatpush2.msra.mxu0 0.0
        %565 = vmatprep.subr.mxu0 0.0
        %566 = vmatpush2.msra.mxu0 0.0
        %567 = vmatprep.subr.mxu0 0.0
        %568 = vmatpush2.msra.mxu0 0.0
        %569 = vmatprep.subr.mxu0 0.0
        %570 = vmatpush2.msra.mxu0 0.0
        %571 = vmatprep.subr.mxu0 0.0
        %572 = vmatpush2.msra.mxu0 0.0
        %573 = vmatprep.mubr.f32.mxu0 0.0
        %574 = vmatmul.mubr.f32.gmra.mxu0 %v419
        %v575 = vpop.f32.mrf.mxu0
        %v576 = vadd.f32 0.0, %v575
        %v577 = vpop.f32.mrf.mxu0
        %v578 = vadd.f32 0.0, %v577
        %579 = vdwg.mxu0
        %580 = vmatprep.subr.mxu0 0.0
        %581 = vmatpush1.msra.mxu0 0.0
        %582 = vmatprep.subr.mxu0 0.0
        %583 = vmatpush1.msra.mxu0 0.0
        %584 = vmatprep.subr.mxu0 0.0
        %585 = vmatpush1.msra.mxu0 0.0
        %586 = vmatprep.subr.mxu0 0.0
        %587 = vmatpush1.msra.mxu0 0.0
        %588 = vmatprep.subr.mxu0 0.0
        %589 = vmatpush1.msra.mxu0 0.0
        %590 = vmatprep.subr.mxu0 0.0
        %591 = vmatpush1.msra.mxu0 0.0
        %592 = vmatprep.subr.mxu0 0.0
        %593 = vmatpush1.msra.mxu0 0.0
        %594 = vmatprep.subr.mxu0 0.0
        %595 = vmatpush1.msra.mxu0 0.0
        %596 = vmatprep.subr.mxu0 0.0
        %597 = vmatpush1.msra.mxu0 0.0
        %598 = vmatprep.subr.mxu0 0.0
        %599 = vmatpush1.msra.mxu0 0.0
        %600 = vmatprep.subr.mxu0 0.0
        %601 = vmatpush1.msra.mxu0 0.0
        %602 = vmatprep.subr.mxu0 0.0
        %603 = vmatpush1.msra.mxu0 0.0
        %604 = vmatprep.subr.mxu0 0.0
        %605 = vmatpush1.msra.mxu0 0.0
        %606 = vmatprep.subr.mxu0 0.0
        %607 = vmatpush1.msra.mxu0 0.0
        %608 = vmatprep.subr.mxu0 %v432
        %609 = vmatpush1.msra.mxu0 %v430
        %610 = vmatprep.subr.mxu0 %v414
        %611 = vmatpush1.msra.mxu0 %v413
        %612 = vmatprep.subr.mxu0 0.0
        %613 = vmatpush2.msra.mxu0 0.0
        %614 = vmatprep.subr.mxu0 0.0
        %615 = vmatpush2.msra.mxu0 0.0
        %616 = vmatprep.subr.mxu0 0.0
        %617 = vmatpush2.msra.mxu0 0.0
        %618 = vmatprep.subr.mxu0 0.0
        %619 = vmatpush2.msra.mxu0 0.0
        %620 = vmatprep.subr.mxu0 0.0
        %621 = vmatpush2.msra.mxu0 0.0
        %622 = vmatprep.subr.mxu0 0.0
        %623 = vmatpush2.msra.mxu0 0.0
        %624 = vmatprep.subr.mxu0 0.0
        %625 = vmatpush2.msra.mxu0 0.0
        %626 = vmatprep.subr.mxu0 0.0
        %627 = vmatpush2.msra.mxu0 0.0
        %628 = vmatprep.subr.mxu0 0.0
        %629 = vmatpush2.msra.mxu0 0.0
        %630 = vmatprep.subr.mxu0 0.0
        %631 = vmatpush2.msra.mxu0 0.0
        %632 = vmatprep.subr.mxu0 0.0
        %633 = vmatpush2.msra.mxu0 0.0
        %634 = vmatprep.subr.mxu0 0.0
        %635 = vmatpush2.msra.mxu0 0.0
        %636 = vmatprep.subr.mxu0 0.0
        %637 = vmatpush2.msra.mxu0 0.0
        %638 = vmatprep.subr.mxu0 0.0
        %639 = vmatpush2.msra.mxu0 0.0
        %640 = vmatprep.subr.mxu0 0.0
        %641 = vmatpush2.msra.mxu0 0.0
        %642 = vmatprep.subr.mxu0 0.0
        %643 = vmatpush2.msra.mxu0 0.0
        %644 = vmatprep.mubr.f32.mxu0 0.0
        %645 = vmatmul.mubr.f32.gmra.mxu0 %v419
        %v646 = vpop.f32.mrf.mxu0
        %v647 = vadd.f32 0.0, %v646
        %v648 = vpop.f32.mrf.mxu0
        %v649 = vadd.f32 0.0, %v648
        %650 = vdwg.mxu0
        %651 = vmatprep.subr.mxu0 0.0
        %652 = vmatpush1.msra.mxu0 0.0
        %653 = vmatprep.subr.mxu0 0.0
        %654 = vmatpush1.msra.mxu0 0.0
        %655 = vmatprep.subr.mxu0 0.0
        %656 = vmatpush1.msra.mxu0 0.0
        %657 = vmatprep.subr.mxu0 0.0
        %658 = vmatpush1.msra.mxu0 0.0
        %659 = vmatprep.subr.mxu0 0.0
        %660 = vmatpush1.msra.mxu0 0.0
        %661 = vmatprep.subr.mxu0 0.0
        %662 = vmatpush1.msra.mxu0 0.0
        %663 = vmatprep.subr.mxu0 0.0
        %664 = vmatpush1.msra.mxu0 0.0
        %665 = vmatprep.subr.mxu0 0.0
        %666 = vmatpush1.msra.mxu0 0.0
        %667 = vmatprep.subr.mxu0 0.0
        %668 = vmatpush1.msra.mxu0 0.0
        %669 = vmatprep.subr.mxu0 0.0
        %670 = vmatpush1.msra.mxu0 0.0
        %671 = vmatprep.subr.mxu0 0.0
        %672 = vmatpush1.msra.mxu0 0.0
        %673 = vmatprep.subr.mxu0 0.0
        %674 = vmatpush1.msra.mxu0 0.0
        %675 = vmatprep.subr.mxu0 0.0
        %676 = vmatpush1.msra.mxu0 0.0
        %677 = vmatprep.subr.mxu0 0.0
        %678 = vmatpush1.msra.mxu0 0.0
        %679 = vmatprep.subr.mxu0 %v436
        %680 = vmatpush1.msra.mxu0 %v434
        %681 = vmatprep.subr.mxu0 %v416
        %682 = vmatpush1.msra.mxu0 %v415
        %683 = vmatprep.subr.mxu0 0.0
        %684 = vmatpush2.msra.mxu0 0.0
        %685 = vmatprep.subr.mxu0 0.0
        %686 = vmatpush2.msra.mxu0 0.0
        %687 = vmatprep.subr.mxu0 0.0
        %688 = vmatpush2.msra.mxu0 0.0
        %689 = vmatprep.subr.mxu0 0.0
        %690 = vmatpush2.msra.mxu0 0.0
        %691 = vmatprep.subr.mxu0 0.0
        %692 = vmatpush2.msra.mxu0 0.0
        %693 = vmatprep.subr.mxu0 0.0
        %694 = vmatpush2.msra.mxu0 0.0
        %695 = vmatprep.subr.mxu0 0.0
        %696 = vmatpush2.msra.mxu0 0.0
        %697 = vmatprep.subr.mxu0 0.0
        %698 = vmatpush2.msra.mxu0 0.0
        %699 = vmatprep.subr.mxu0 0.0
        %700 = vmatpush2.msra.mxu0 0.0
        %701 = vmatprep.subr.mxu0 0.0
        %702 = vmatpush2.msra.mxu0 0.0
        %703 = vmatprep.subr.mxu0 0.0
        %704 = vmatpush2.msra.mxu0 0.0
        %705 = vmatprep.subr.mxu0 0.0
        %706 = vmatpush2.msra.mxu0 0.0
        %707 = vmatprep.subr.mxu0 0.0
        %708 = vmatpush2.msra.mxu0 0.0
        %709 = vmatprep.subr.mxu0 0.0
        %710 = vmatpush2.msra.mxu0 0.0
        %711 = vmatprep.subr.mxu0 0.0
        %712 = vmatpush2.msra.mxu0 0.0
        %713 = vmatprep.subr.mxu0 0.0
        %714 = vmatpush2.msra.mxu0 0.0
        %715 = vmatprep.mubr.f32.mxu0 0.0
        %716 = vmatmul.mubr.f32.gmra.mxu0 %v419
        %v717 = vpop.f32.mrf.mxu0
        %v718 = vadd.f32 0.0, %v717
        %v719 = vpop.f32.mrf.mxu0
        %v720 = vadd.f32 0.0, %v719
        %721 = vdwg.mxu0
        %v722 = vld [vmem:[#allocation2] sm:$0xe]
        %v723 = vld [vmem:[#allocation2 + $0x8] sm:$0xe]
        %v724 = vld [vmem:[#allocation2 + $0x10] sm:$0xe]
        %v725 = vld [vmem:[#allocation2 + $0x18] sm:$0xe]
        %v726 = vld [vmem:[#allocation2 + $0x20] sm:$0xe]
        %v727 = vld [vmem:[#allocation2 + $0x28] sm:$0xe]
        %v728 = vld [vmem:[#allocation2 + $0x30] sm:$0xe]
        %v729 = vld [vmem:[#allocation2 + $0x38] sm:$0xe]
        %v730 = vld [vmem:[#allocation2] sm:$0xe0]
        %v731 = vld [vmem:[#allocation2 + $0x8] sm:$0xe0]
        %v732 = vld [vmem:[#allocation2 + $0x10] sm:$0xe0]
        %v733 = vld [vmem:[#allocation2 + $0x18] sm:$0xe0]
        %v734 = vld [vmem:[#allocation2 + $0x20] sm:$0xe0]
        %v735 = vld [vmem:[#allocation2 + $0x28] sm:$0xe0]
        %v736 = vld [vmem:[#allocation2 + $0x30] sm:$0xe0]
        %v737 = vld [vmem:[#allocation2 + $0x38] sm:$0xe0]
        %v738 = vld [vmem:[#allocation2 + $0x40] sm:$0xe]
        %v739 = vld [vmem:[#allocation2 + $0x48] sm:$0xe]
        %v740 = vld [vmem:[#allocation2 + $0x50] sm:$0xe]
        %v741 = vld [vmem:[#allocation2 + $0x58] sm:$0xe]
        %v742 = vld [vmem:[#allocation2 + $0x60] sm:$0xe]
        %v743 = vld [vmem:[#allocation2 + $0x68] sm:$0xe]
        %v744 = vld [vmem:[#allocation2 + $0x70] sm:$0xe]
        %v745 = vld [vmem:[#allocation2 + $0x78] sm:$0xe]
        %v754 = vrot.slane %v722, 1
        %v755 = vrot.slane %v723, 1
        %v756 = vrot.slane %v724, 1
        %v757 = vrot.slane %v725, 1
        %v758 = vrot.slane %v726, 1
        %v759 = vrot.slane %v727, 1
        %v760 = vrot.slane %v728, 1
        %v761 = vrot.slane %v729, 1
        %v778 = vrot.slane %v730, 2
        %v779 = vrot.slane %v731, 2
        %v780 = vrot.slane %v732, 2
        %v781 = vrot.slane %v733, 2
        %v782 = vrot.slane %v734, 2
        %v783 = vrot.slane %v735, 2
        %v784 = vrot.slane %v736, 2
        %v785 = vrot.slane %v737, 2
        %v802 = vrot.slane %v738, 3
        %v803 = vrot.slane %v739, 3
        %v804 = vrot.slane %v740, 3
        %v805 = vrot.slane %v741, 3
        %v806 = vrot.slane %v742, 3
        %v807 = vrot.slane %v743, 3
        %v808 = vrot.slane %v744, 3
        %v809 = vrot.slane %v745, 3
        %v818 = vsel %vm399, %v754, %v778
        %v819 = vsel %vm399, %v755, %v779
        %v820 = vsel %vm399, %v756, %v780
        %v821 = vsel %vm399, %v757, %v781
        %v822 = vsel %vm399, %v758, %v782
        %v823 = vsel %vm399, %v759, %v783
        %v824 = vsel %vm399, %v760, %v784
        %v825 = vsel %vm399, %v761, %v785
        %v826 = vsel %vm408, %v818, %v802
        %v827 = vsel %vm408, %v819, %v803
        %v828 = vsel %vm408, %v820, %v804
        %v829 = vsel %vm408, %v821, %v805
        %v830 = vsel %vm408, %v822, %v806
        %v831 = vsel %vm408, %v823, %v807
        %v832 = vsel %vm408, %v824, %v808
        %v833 = vsel %vm408, %v825, %v809
        %v834 = vsel %vm421, %v802, 0
        %v836 = vsel %vm421, %v803, 0
        %v838 = vsel %vm421, %v804, 0
        %v840 = vsel %vm421, %v805, 0
        %v842 = vsel %vm421, %v806, 0
        %v844 = vsel %vm421, %v807, 0
        %v846 = vsel %vm421, %v808, 0
        %v848 = vsel %vm421, %v809, 0
        %850 = vmatprep.subr.mxu0 0.0
        %851 = vmatpush1.msra.mxu0 0.0
        %852 = vmatprep.subr.mxu0 0.0
        %853 = vmatpush1.msra.mxu0 0.0
        %854 = vmatprep.subr.mxu0 0.0
        %855 = vmatpush1.msra.mxu0 0.0
        %856 = vmatprep.subr.mxu0 0.0
        %857 = vmatpush1.msra.mxu0 0.0
        %858 = vmatprep.subr.mxu0 0.0
        %859 = vmatpush1.msra.mxu0 0.0
        %860 = vmatprep.subr.mxu0 0.0
        %861 = vmatpush1.msra.mxu0 0.0
        %862 = vmatprep.subr.mxu0 0.0
        %863 = vmatpush1.msra.mxu0 0.0
        %864 = vmatprep.subr.mxu0 0.0
        %865 = vmatpush1.msra.mxu0 0.0
        %866 = vmatprep.subr.mxu0 0.0
        %867 = vmatpush1.msra.mxu0 0.0
        %868 = vmatprep.subr.mxu0 0.0
        %869 = vmatpush1.msra.mxu0 0.0
        %870 = vmatprep.subr.mxu0 0.0
        %871 = vmatpush1.msra.mxu0 0.0
        %872 = vmatprep.subr.mxu0 0.0
        %873 = vmatpush1.msra.mxu0 0.0
        %874 = vmatprep.subr.mxu0 0.0
        %875 = vmatpush1.msra.mxu0 0.0
        %876 = vmatprep.subr.mxu0 0.0
        %877 = vmatpush1.msra.mxu0 0.0
        %878 = vmatprep.subr.mxu0 %v836
        %879 = vmatpush1.msra.mxu0 %v834
        %880 = vmatprep.subr.mxu0 %v827
        %881 = vmatpush1.msra.mxu0 %v826
        %882 = vmatprep.subr.mxu0 0.0
        %883 = vmatpush2.msra.mxu0 0.0
        %884 = vmatprep.subr.mxu0 0.0
        %885 = vmatpush2.msra.mxu0 0.0
        %886 = vmatprep.subr.mxu0 0.0
        %887 = vmatpush2.msra.mxu0 0.0
        %888 = vmatprep.subr.mxu0 0.0
        %889 = vmatpush2.msra.mxu0 0.0
        %890 = vmatprep.subr.mxu0 0.0
        %891 = vmatpush2.msra.mxu0 0.0
        %892 = vmatprep.subr.mxu0 0.0
        %893 = vmatpush2.msra.mxu0 0.0
        %894 = vmatprep.subr.mxu0 0.0
        %895 = vmatpush2.msra.mxu0 0.0
        %896 = vmatprep.subr.mxu0 0.0
        %897 = vmatpush2.msra.mxu0 0.0
        %898 = vmatprep.subr.mxu0 0.0
        %899 = vmatpush2.msra.mxu0 0.0
        %900 = vmatprep.subr.mxu0 0.0
        %901 = vmatpush2.msra.mxu0 0.0
        %902 = vmatprep.subr.mxu0 0.0
        %903 = vmatpush2.msra.mxu0 0.0
        %904 = vmatprep.subr.mxu0 0.0
        %905 = vmatpush2.msra.mxu0 0.0
        %906 = vmatprep.subr.mxu0 0.0
        %907 = vmatpush2.msra.mxu0 0.0
        %908 = vmatprep.subr.mxu0 0.0
        %909 = vmatpush2.msra.mxu0 0.0
        %910 = vmatprep.subr.mxu0 0.0
        %911 = vmatpush2.msra.mxu0 0.0
        %912 = vmatprep.subr.mxu0 0.0
        %913 = vmatpush2.msra.mxu0 0.0
        %914 = vmatprep.mubr.f32.mxu0 0.0
        %915 = vmatmul.mubr.f32.gmra.mxu0 %v419
        %v916 = vpop.f32.mrf.mxu0
        %v917 = vadd.f32 0.0, %v916
        %v918 = vpop.f32.mrf.mxu0
        %v919 = vadd.f32 0.0, %v918
        %920 = vdwg.mxu0
        %921 = vmatprep.subr.mxu0 0.0
        %922 = vmatpush1.msra.mxu0 0.0
        %923 = vmatprep.subr.mxu0 0.0
        %924 = vmatpush1.msra.mxu0 0.0
        %925 = vmatprep.subr.mxu0 0.0
        %926 = vmatpush1.msra.mxu0 0.0
        %927 = vmatprep.subr.mxu0 0.0
        %928 = vmatpush1.msra.mxu0 0.0
        %929 = vmatprep.subr.mxu0 0.0
        %930 = vmatpush1.msra.mxu0 0.0
        %931 = vmatprep.subr.mxu0 0.0
        %932 = vmatpush1.msra.mxu0 0.0
        %933 = vmatprep.subr.mxu0 0.0
        %934 = vmatpush1.msra.mxu0 0.0
        %935 = vmatprep.subr.mxu0 0.0
        %936 = vmatpush1.msra.mxu0 0.0
        %937 = vmatprep.subr.mxu0 0.0
        %938 = vmatpush1.msra.mxu0 0.0
        %939 = vmatprep.subr.mxu0 0.0
        %940 = vmatpush1.msra.mxu0 0.0
        %941 = vmatprep.subr.mxu0 0.0
        %942 = vmatpush1.msra.mxu0 0.0
        %943 = vmatprep.subr.mxu0 0.0
        %944 = vmatpush1.msra.mxu0 0.0
        %945 = vmatprep.subr.mxu0 0.0
        %946 = vmatpush1.msra.mxu0 0.0
        %947 = vmatprep.subr.mxu0 0.0
        %948 = vmatpush1.msra.mxu0 0.0
        %949 = vmatprep.subr.mxu0 %v840
        %950 = vmatpush1.msra.mxu0 %v838
        %951 = vmatprep.subr.mxu0 %v829
        %952 = vmatpush1.msra.mxu0 %v828
        %953 = vmatprep.subr.mxu0 0.0
        %954 = vmatpush2.msra.mxu0 0.0
        %955 = vmatprep.subr.mxu0 0.0
        %956 = vmatpush2.msra.mxu0 0.0
        %957 = vmatprep.subr.mxu0 0.0
        %958 = vmatpush2.msra.mxu0 0.0
        %959 = vmatprep.subr.mxu0 0.0
        %960 = vmatpush2.msra.mxu0 0.0
        %961 = vmatprep.subr.mxu0 0.0
        %962 = vmatpush2.msra.mxu0 0.0
        %963 = vmatprep.subr.mxu0 0.0
        %964 = vmatpush2.msra.mxu0 0.0
        %965 = vmatprep.subr.mxu0 0.0
        %966 = vmatpush2.msra.mxu0 0.0
        %967 = vmatprep.subr.mxu0 0.0
        %968 = vmatpush2.msra.mxu0 0.0
        %969 = vmatprep.subr.mxu0 0.0
        %970 = vmatpush2.msra.mxu0 0.0
        %971 = vmatprep.subr.mxu0 0.0
        %972 = vmatpush2.msra.mxu0 0.0
        %973 = vmatprep.subr.mxu0 0.0
        %974 = vmatpush2.msra.mxu0 0.0
        %975 = vmatprep.subr.mxu0 0.0
        %976 = vmatpush2.msra.mxu0 0.0
        %977 = vmatprep.subr.mxu0 0.0
        %978 = vmatpush2.msra.mxu0 0.0
        %979 = vmatprep.subr.mxu0 0.0
        %980 = vmatpush2.msra.mxu0 0.0
        %981 = vmatprep.subr.mxu0 0.0
        %982 = vmatpush2.msra.mxu0 0.0
        %983 = vmatprep.subr.mxu0 0.0
        %984 = vmatpush2.msra.mxu0 0.0
        %985 = vmatprep.mubr.f32.mxu0 0.0
        %986 = vmatmul.mubr.f32.gmra.mxu0 %v419
        %v987 = vpop.f32.mrf.mxu0
        %v988 = vadd.f32 0.0, %v987
        %v989 = vpop.f32.mrf.mxu0
        %v990 = vadd.f32 0.0, %v989
        %991 = vdwg.mxu0
        %992 = vmatprep.subr.mxu0 0.0
        %993 = vmatpush1.msra.mxu0 0.0
        %994 = vmatprep.subr.mxu0 0.0
        %995 = vmatpush1.msra.mxu0 0.0
        %996 = vmatprep.subr.mxu0 0.0
        %997 = vmatpush1.msra.mxu0 0.0
        %998 = vmatprep.subr.mxu0 0.0
        %999 = vmatpush1.msra.mxu0 0.0
        %1000 = vmatprep.subr.mxu0 0.0
        %1001 = vmatpush1.msra.mxu0 0.0
        %1002 = vmatprep.subr.mxu0 0.0
        %1003 = vmatpush1.msra.mxu0 0.0
        %1004 = vmatprep.subr.mxu0 0.0
        %1005 = vmatpush1.msra.mxu0 0.0
        %1006 = vmatprep.subr.mxu0 0.0
        %1007 = vmatpush1.msra.mxu0 0.0
        %1008 = vmatprep.subr.mxu0 0.0
        %1009 = vmatpush1.msra.mxu0 0.0
        %1010 = vmatprep.subr.mxu0 0.0
        %1011 = vmatpush1.msra.mxu0 0.0
        %1012 = vmatprep.subr.mxu0 0.0
        %1013 = vmatpush1.msra.mxu0 0.0
        %1014 = vmatprep.subr.mxu0 0.0
        %1015 = vmatpush1.msra.mxu0 0.0
        %1016 = vmatprep.subr.mxu0 0.0
        %1017 = vmatpush1.msra.mxu0 0.0
        %1018 = vmatprep.subr.mxu0 0.0
        %1019 = vmatpush1.msra.mxu0 0.0
        %1020 = vmatprep.subr.mxu0 %v844
        %1021 = vmatpush1.msra.mxu0 %v842
        %1022 = vmatprep.subr.mxu0 %v831
        %1023 = vmatpush1.msra.mxu0 %v830
        %1024 = vmatprep.subr.mxu0 0.0
        %1025 = vmatpush2.msra.mxu0 0.0
        %1026 = vmatprep.subr.mxu0 0.0
        %1027 = vmatpush2.msra.mxu0 0.0
        %1028 = vmatprep.subr.mxu0 0.0
        %1029 = vmatpush2.msra.mxu0 0.0
        %1030 = vmatprep.subr.mxu0 0.0
        %1031 = vmatpush2.msra.mxu0 0.0
        %1032 = vmatprep.subr.mxu0 0.0
        %1033 = vmatpush2.msra.mxu0 0.0
        %1034 = vmatprep.subr.mxu0 0.0
        %1035 = vmatpush2.msra.mxu0 0.0
        %1036 = vmatprep.subr.mxu0 0.0
        %1037 = vmatpush2.msra.mxu0 0.0
        %1038 = vmatprep.subr.mxu0 0.0
        %1039 = vmatpush2.msra.mxu0 0.0
        %1040 = vmatprep.subr.mxu0 0.0
        %1041 = vmatpush2.msra.mxu0 0.0
        %1042 = vmatprep.subr.mxu0 0.0
        %1043 = vmatpush2.msra.mxu0 0.0
        %1044 = vmatprep.subr.mxu0 0.0
        %1045 = vmatpush2.msra.mxu0 0.0
        %1046 = vmatprep.subr.mxu0 0.0
        %1047 = vmatpush2.msra.mxu0 0.0
        %1048 = vmatprep.subr.mxu0 0.0
        %1049 = vmatpush2.msra.mxu0 0.0
        %1050 = vmatprep.subr.mxu0 0.0
        %1051 = vmatpush2.msra.mxu0 0.0
        %1052 = vmatprep.subr.mxu0 0.0
        %1053 = vmatpush2.msra.mxu0 0.0
        %1054 = vmatprep.subr.mxu0 0.0
        %1055 = vmatpush2.msra.mxu0 0.0
        %1056 = vmatprep.mubr.f32.mxu0 0.0
        %1057 = vmatmul.mubr.f32.gmra.mxu0 %v419
        %v1058 = vpop.f32.mrf.mxu0
        %v1059 = vadd.f32 0.0, %v1058
        %v1060 = vpop.f32.mrf.mxu0
        %v1061 = vadd.f32 0.0, %v1060
        %1062 = vdwg.mxu0
        %1063 = vmatprep.subr.mxu0 0.0
        %1064 = vmatpush1.msra.mxu0 0.0
        %1065 = vmatprep.subr.mxu0 0.0
        %1066 = vmatpush1.msra.mxu0 0.0
        %1067 = vmatprep.subr.mxu0 0.0
        %1068 = vmatpush1.msra.mxu0 0.0
        %1069 = vmatprep.subr.mxu0 0.0
        %1070 = vmatpush1.msra.mxu0 0.0
        %1071 = vmatprep.subr.mxu0 0.0
        %1072 = vmatpush1.msra.mxu0 0.0
        %1073 = vmatprep.subr.mxu0 0.0
        %1074 = vmatpush1.msra.mxu0 0.0
        %1075 = vmatprep.subr.mxu0 0.0
        %1076 = vmatpush1.msra.mxu0 0.0
        %1077 = vmatprep.subr.mxu0 0.0
        %1078 = vmatpush1.msra.mxu0 0.0
        %1079 = vmatprep.subr.mxu0 0.0
        %1080 = vmatpush1.msra.mxu0 0.0
        %1081 = vmatprep.subr.mxu0 0.0
        %1082 = vmatpush1.msra.mxu0 0.0
        %1083 = vmatprep.subr.mxu0 0.0
        %1084 = vmatpush1.msra.mxu0 0.0
        %1085 = vmatprep.subr.mxu0 0.0
        %1086 = vmatpush1.msra.mxu0 0.0
        %1087 = vmatprep.subr.mxu0 0.0
        %1088 = vmatpush1.msra.mxu0 0.0
        %1089 = vmatprep.subr.mxu0 0.0
        %1090 = vmatpush1.msra.mxu0 0.0
        %1091 = vmatprep.subr.mxu0 %v848
        %1092 = vmatpush1.msra.mxu0 %v846
        %1093 = vmatprep.subr.mxu0 %v833
        %1094 = vmatpush1.msra.mxu0 %v832
        %1095 = vmatprep.subr.mxu0 0.0
        %1096 = vmatpush2.msra.mxu0 0.0
        %1097 = vmatprep.subr.mxu0 0.0
        %1098 = vmatpush2.msra.mxu0 0.0
        %1099 = vmatprep.subr.mxu0 0.0
        %1100 = vmatpush2.msra.mxu0 0.0
        %1101 = vmatprep.subr.mxu0 0.0
        %1102 = vmatpush2.msra.mxu0 0.0
        %1103 = vmatprep.subr.mxu0 0.0
        %1104 = vmatpush2.msra.mxu0 0.0
        %1105 = vmatprep.subr.mxu0 0.0
        %1106 = vmatpush2.msra.mxu0 0.0
        %1107 = vmatprep.subr.mxu0 0.0
        %1108 = vmatpush2.msra.mxu0 0.0
        %1109 = vmatprep.subr.mxu0 0.0
        %1110 = vmatpush2.msra.mxu0 0.0
        %1111 = vmatprep.subr.mxu0 0.0
        %1112 = vmatpush2.msra.mxu0 0.0
        %1113 = vmatprep.subr.mxu0 0.0
        %1114 = vmatpush2.msra.mxu0 0.0
        %1115 = vmatprep.subr.mxu0 0.0
        %1116 = vmatpush2.msra.mxu0 0.0
        %1117 = vmatprep.subr.mxu0 0.0
        %1118 = vmatpush2.msra.mxu0 0.0
        %1119 = vmatprep.subr.mxu0 0.0
        %1120 = vmatpush2.msra.mxu0 0.0
        %1121 = vmatprep.subr.mxu0 0.0
        %1122 = vmatpush2.msra.mxu0 0.0
        %1123 = vmatprep.subr.mxu0 0.0
        %1124 = vmatpush2.msra.mxu0 0.0
        %1125 = vmatprep.subr.mxu0 0.0
        %1126 = vmatpush2.msra.mxu0 0.0
        %1127 = vmatprep.mubr.f32.mxu0 0.0
        %1128 = vmatmul.mubr.f32.gmra.mxu0 %v419
        %v1129 = vpop.f32.mrf.mxu0
        %v1130 = vadd.f32 0.0, %v1129
        %v1131 = vpop.f32.mrf.mxu0
        %v1132 = vadd.f32 0.0, %v1131
        %1133 = vdwg.mxu0
        %v1134 = vmax.f32 %v505, %v917
        %v1135 = vmax.f32 %v507, %v919
        %v1136 = vmax.f32 %v576, %v988
        %v1137 = vmax.f32 %v578, %v990
        %v1138 = vmax.f32 %v647, %v1059
        %v1139 = vmax.f32 %v649, %v1061
        %v1140 = vmax.f32 %v718, %v1130
        %v1141 = vmax.f32 %v720, %v1132
        %v1142 = vld [vmem:[#allocation2 + $0x40] sm:$0x70]
        %v1143 = vld [vmem:[#allocation2 + $0x48] sm:$0x70]
        %v1144 = vld [vmem:[#allocation2 + $0x50] sm:$0x70]
        %v1145 = vld [vmem:[#allocation2 + $0x58] sm:$0x70]
        %v1146 = vld [vmem:[#allocation2 + $0x60] sm:$0x70]
        %v1147 = vld [vmem:[#allocation2 + $0x68] sm:$0x70]
        %v1148 = vld [vmem:[#allocation2 + $0x70] sm:$0x70]
        %v1149 = vld [vmem:[#allocation2 + $0x78] sm:$0x70]
        %v1150 = vrot.slane %v335, 4
        %v1151 = vrot.slane %v336, 4
        %v1152 = vrot.slane %v337, 4
        %v1153 = vrot.slane %v338, 4
        %v1154 = vrot.slane %v339, 4
        %v1155 = vrot.slane %v340, 4
        %v1156 = vrot.slane %v341, 4
        %v1157 = vrot.slane %v342, 4
        %v1166 = vrot.slane %v343, 5
        %v1167 = vrot.slane %v344, 5
        %v1168 = vrot.slane %v345, 5
        %v1169 = vrot.slane %v346, 5
        %v1170 = vrot.slane %v347, 5
        %v1171 = vrot.slane %v348, 5
        %v1172 = vrot.slane %v349, 5
        %v1173 = vrot.slane %v350, 5
        %v1190 = vrot.slane %v1142, 6
        %v1191 = vrot.slane %v1143, 6
        %v1192 = vrot.slane %v1144, 6
        %v1193 = vrot.slane %v1145, 6
        %v1194 = vrot.slane %v1146, 6
        %v1195 = vrot.slane %v1147, 6
        %v1196 = vrot.slane %v1148, 6
        %v1197 = vrot.slane %v1149, 6
        %v1206 = vsel %vm399, %v1150, %v1166
        %v1207 = vsel %vm399, %v1151, %v1167
        %v1208 = vsel %vm399, %v1152, %v1168
        %v1209 = vsel %vm399, %v1153, %v1169
        %v1210 = vsel %vm399, %v1154, %v1170
        %v1211 = vsel %vm399, %v1155, %v1171
        %v1212 = vsel %vm399, %v1156, %v1172
        %v1213 = vsel %vm399, %v1157, %v1173
        %v1214 = vsel %vm408, %v1206, %v1190
        %v1215 = vsel %vm408, %v1207, %v1191
        %v1216 = vsel %vm408, %v1208, %v1192
        %v1217 = vsel %vm408, %v1209, %v1193
        %v1218 = vsel %vm408, %v1210, %v1194
        %v1219 = vsel %vm408, %v1211, %v1195
        %v1220 = vsel %vm408, %v1212, %v1196
        %v1221 = vsel %vm408, %v1213, %v1197
        %v1222 = vsel %vm421, %v1190, 0
        %v1224 = vsel %vm421, %v1191, 0
        %v1226 = vsel %vm421, %v1192, 0
        %v1228 = vsel %vm421, %v1193, 0
        %v1230 = vsel %vm421, %v1194, 0
        %v1232 = vsel %vm421, %v1195, 0
        %v1234 = vsel %vm421, %v1196, 0
        %v1236 = vsel %vm421, %v1197, 0
        %1238 = vmatprep.subr.mxu0 0.0
        %1239 = vmatpush1.msra.mxu0 0.0
        %1240 = vmatprep.subr.mxu0 0.0
        %1241 = vmatpush1.msra.mxu0 0.0
        %1242 = vmatprep.subr.mxu0 0.0
        %1243 = vmatpush1.msra.mxu0 0.0
        %1244 = vmatprep.subr.mxu0 0.0
        %1245 = vmatpush1.msra.mxu0 0.0
        %1246 = vmatprep.subr.mxu0 0.0
        %1247 = vmatpush1.msra.mxu0 0.0
        %1248 = vmatprep.subr.mxu0 0.0
        %1249 = vmatpush1.msra.mxu0 0.0
        %1250 = vmatprep.subr.mxu0 0.0
        %1251 = vmatpush1.msra.mxu0 0.0
        %1252 = vmatprep.subr.mxu0 0.0
        %1253 = vmatpush1.msra.mxu0 0.0
        %1254 = vmatprep.subr.mxu0 0.0
        %1255 = vmatpush1.msra.mxu0 0.0
        %1256 = vmatprep.subr.mxu0 0.0
        %1257 = vmatpush1.msra.mxu0 0.0
        %1258 = vmatprep.subr.mxu0 0.0
        %1259 = vmatpush1.msra.mxu0 0.0
        %1260 = vmatprep.subr.mxu0 0.0
        %1261 = vmatpush1.msra.mxu0 0.0
        %1262 = vmatprep.subr.mxu0 0.0
        %1263 = vmatpush1.msra.mxu0 0.0
        %1264 = vmatprep.subr.mxu0 0.0
        %1265 = vmatpush1.msra.mxu0 0.0
        %1266 = vmatprep.subr.mxu0 %v1224
        %1267 = vmatpush1.msra.mxu0 %v1222
        %1268 = vmatprep.subr.mxu0 %v1215
        %1269 = vmatpush1.msra.mxu0 %v1214
        %1270 = vmatprep.subr.mxu0 0.0
        %1271 = vmatpush2.msra.mxu0 0.0
        %1272 = vmatprep.subr.mxu0 0.0
        %1273 = vmatpush2.msra.mxu0 0.0
        %1274 = vmatprep.subr.mxu0 0.0
        %1275 = vmatpush2.msra.mxu0 0.0
        %1276 = vmatprep.subr.mxu0 0.0
        %1277 = vmatpush2.msra.mxu0 0.0
        %1278 = vmatprep.subr.mxu0 0.0
        %1279 = vmatpush2.msra.mxu0 0.0
        %1280 = vmatprep.subr.mxu0 0.0
        %1281 = vmatpush2.msra.mxu0 0.0
        %1282 = vmatprep.subr.mxu0 0.0
        %1283 = vmatpush2.msra.mxu0 0.0
        %1284 = vmatprep.subr.mxu0 0.0
        %1285 = vmatpush2.msra.mxu0 0.0
        %1286 = vmatprep.subr.mxu0 0.0
        %1287 = vmatpush2.msra.mxu0 0.0
        %1288 = vmatprep.subr.mxu0 0.0
        %1289 = vmatpush2.msra.mxu0 0.0
        %1290 = vmatprep.subr.mxu0 0.0
        %1291 = vmatpush2.msra.mxu0 0.0
        %1292 = vmatprep.subr.mxu0 0.0
        %1293 = vmatpush2.msra.mxu0 0.0
        %1294 = vmatprep.subr.mxu0 0.0
        %1295 = vmatpush2.msra.mxu0 0.0
        %1296 = vmatprep.subr.mxu0 0.0
        %1297 = vmatpush2.msra.mxu0 0.0
        %1298 = vmatprep.subr.mxu0 0.0
        %1299 = vmatpush2.msra.mxu0 0.0
        %1300 = vmatprep.subr.mxu0 0.0
        %1301 = vmatpush2.msra.mxu0 0.0
        %1302 = vmatprep.mubr.f32.mxu0 0.0
        %1303 = vmatmul.mubr.f32.gmra.mxu0 %v419
        %v1304 = vpop.f32.mrf.mxu0
        %v1305 = vadd.f32 0.0, %v1304
        %v1306 = vpop.f32.mrf.mxu0
        %v1307 = vadd.f32 0.0, %v1306
        %1308 = vdwg.mxu0
        %1309 = vmatprep.subr.mxu0 0.0
        %1310 = vmatpush1.msra.mxu0 0.0
        %1311 = vmatprep.subr.mxu0 0.0
        %1312 = vmatpush1.msra.mxu0 0.0
        %1313 = vmatprep.subr.mxu0 0.0
        %1314 = vmatpush1.msra.mxu0 0.0
        %1315 = vmatprep.subr.mxu0 0.0
        %1316 = vmatpush1.msra.mxu0 0.0
        %1317 = vmatprep.subr.mxu0 0.0
        %1318 = vmatpush1.msra.mxu0 0.0
        %1319 = vmatprep.subr.mxu0 0.0
        %1320 = vmatpush1.msra.mxu0 0.0
        %1321 = vmatprep.subr.mxu0 0.0
        %1322 = vmatpush1.msra.mxu0 0.0
        %1323 = vmatprep.subr.mxu0 0.0
        %1324 = vmatpush1.msra.mxu0 0.0
        %1325 = vmatprep.subr.mxu0 0.0
        %1326 = vmatpush1.msra.mxu0 0.0
        %1327 = vmatprep.subr.mxu0 0.0
        %1328 = vmatpush1.msra.mxu0 0.0
        %1329 = vmatprep.subr.mxu0 0.0
        %1330 = vmatpush1.msra.mxu0 0.0
        %1331 = vmatprep.subr.mxu0 0.0
        %1332 = vmatpush1.msra.mxu0 0.0
        %1333 = vmatprep.subr.mxu0 0.0
        %1334 = vmatpush1.msra.mxu0 0.0
        %1335 = vmatprep.subr.mxu0 0.0
        %1336 = vmatpush1.msra.mxu0 0.0
        %1337 = vmatprep.subr.mxu0 %v1228
        %1338 = vmatpush1.msra.mxu0 %v1226
        %1339 = vmatprep.subr.mxu0 %v1217
        %1340 = vmatpush1.msra.mxu0 %v1216
        %1341 = vmatprep.subr.mxu0 0.0
        %1342 = vmatpush2.msra.mxu0 0.0
        %1343 = vmatprep.subr.mxu0 0.0
        %1344 = vmatpush2.msra.mxu0 0.0
        %1345 = vmatprep.subr.mxu0 0.0
        %1346 = vmatpush2.msra.mxu0 0.0
        %1347 = vmatprep.subr.mxu0 0.0
        %1348 = vmatpush2.msra.mxu0 0.0
        %1349 = vmatprep.subr.mxu0 0.0
        %1350 = vmatpush2.msra.mxu0 0.0
        %1351 = vmatprep.subr.mxu0 0.0
        %1352 = vmatpush2.msra.mxu0 0.0
        %1353 = vmatprep.subr.mxu0 0.0
        %1354 = vmatpush2.msra.mxu0 0.0
        %1355 = vmatprep.subr.mxu0 0.0
        %1356 = vmatpush2.msra.mxu0 0.0
        %1357 = vmatprep.subr.mxu0 0.0
        %1358 = vmatpush2.msra.mxu0 0.0
        %1359 = vmatprep.subr.mxu0 0.0
        %1360 = vmatpush2.msra.mxu0 0.0
        %1361 = vmatprep.subr.mxu0 0.0
        %1362 = vmatpush2.msra.mxu0 0.0
        %1363 = vmatprep.subr.mxu0 0.0
        %1364 = vmatpush2.msra.mxu0 0.0
        %1365 = vmatprep.subr.mxu0 0.0
        %1366 = vmatpush2.msra.mxu0 0.0
        %1367 = vmatprep.subr.mxu0 0.0
        %1368 = vmatpush2.msra.mxu0 0.0
        %1369 = vmatprep.subr.mxu0 0.0
        %1370 = vmatpush2.msra.mxu0 0.0
        %1371 = vmatprep.subr.mxu0 0.0
        %1372 = vmatpush2.msra.mxu0 0.0
        %1373 = vmatprep.mubr.f32.mxu0 0.0
        %1374 = vmatmul.mubr.f32.gmra.mxu0 %v419
        %v1375 = vpop.f32.mrf.mxu0
        %v1376 = vadd.f32 0.0, %v1375
        %v1377 = vpop.f32.mrf.mxu0
        %v1378 = vadd.f32 0.0, %v1377
        %1379 = vdwg.mxu0
        %1380 = vmatprep.subr.mxu0 0.0
        %1381 = vmatpush1.msra.mxu0 0.0
        %1382 = vmatprep.subr.mxu0 0.0
        %1383 = vmatpush1.msra.mxu0 0.0
        %1384 = vmatprep.subr.mxu0 0.0
        %1385 = vmatpush1.msra.mxu0 0.0
        %1386 = vmatprep.subr.mxu0 0.0
        %1387 = vmatpush1.msra.mxu0 0.0
        %1388 = vmatprep.subr.mxu0 0.0
        %1389 = vmatpush1.msra.mxu0 0.0
        %1390 = vmatprep.subr.mxu0 0.0
        %1391 = vmatpush1.msra.mxu0 0.0
        %1392 = vmatprep.subr.mxu0 0.0
        %1393 = vmatpush1.msra.mxu0 0.0
        %1394 = vmatprep.subr.mxu0 0.0
        %1395 = vmatpush1.msra.mxu0 0.0
        %1396 = vmatprep.subr.mxu0 0.0
        %1397 = vmatpush1.msra.mxu0 0.0
        %1398 = vmatprep.subr.mxu0 0.0
        %1399 = vmatpush1.msra.mxu0 0.0
        %1400 = vmatprep.subr.mxu0 0.0
        %1401 = vmatpush1.msra.mxu0 0.0
        %1402 = vmatprep.subr.mxu0 0.0
        %1403 = vmatpush1.msra.mxu0 0.0
        %1404 = vmatprep.subr.mxu0 0.0
        %1405 = vmatpush1.msra.mxu0 0.0
        %1406 = vmatprep.subr.mxu0 0.0
        %1407 = vmatpush1.msra.mxu0 0.0
        %1408 = vmatprep.subr.mxu0 %v1232
        %1409 = vmatpush1.msra.mxu0 %v1230
        %1410 = vmatprep.subr.mxu0 %v1219
        %1411 = vmatpush1.msra.mxu0 %v1218
        %1412 = vmatprep.subr.mxu0 0.0
        %1413 = vmatpush2.msra.mxu0 0.0
        %1414 = vmatprep.subr.mxu0 0.0
        %1415 = vmatpush2.msra.mxu0 0.0
        %1416 = vmatprep.subr.mxu0 0.0
        %1417 = vmatpush2.msra.mxu0 0.0
        %1418 = vmatprep.subr.mxu0 0.0
        %1419 = vmatpush2.msra.mxu0 0.0
        %1420 = vmatprep.subr.mxu0 0.0
        %1421 = vmatpush2.msra.mxu0 0.0
        %1422 = vmatprep.subr.mxu0 0.0
        %1423 = vmatpush2.msra.mxu0 0.0
        %1424 = vmatprep.subr.mxu0 0.0
        %1425 = vmatpush2.msra.mxu0 0.0
        %1426 = vmatprep.subr.mxu0 0.0
        %1427 = vmatpush2.msra.mxu0 0.0
        %1428 = vmatprep.subr.mxu0 0.0
        %1429 = vmatpush2.msra.mxu0 0.0
        %1430 = vmatprep.subr.mxu0 0.0
        %1431 = vmatpush2.msra.mxu0 0.0
        %1432 = vmatprep.subr.mxu0 0.0
        %1433 = vmatpush2.msra.mxu0 0.0
        %1434 = vmatprep.subr.mxu0 0.0
        %1435 = vmatpush2.msra.mxu0 0.0
        %1436 = vmatprep.subr.mxu0 0.0
        %1437 = vmatpush2.msra.mxu0 0.0
        %1438 = vmatprep.subr.mxu0 0.0
        %1439 = vmatpush2.msra.mxu0 0.0
        %1440 = vmatprep.subr.mxu0 0.0
        %1441 = vmatpush2.msra.mxu0 0.0
        %1442 = vmatprep.subr.mxu0 0.0
        %1443 = vmatpush2.msra.mxu0 0.0
        %1444 = vmatprep.mubr.f32.mxu0 0.0
        %1445 = vmatmul.mubr.f32.gmra.mxu0 %v419
        %v1446 = vpop.f32.mrf.mxu0
        %v1447 = vadd.f32 0.0, %v1446
        %v1448 = vpop.f32.mrf.mxu0
        %v1449 = vadd.f32 0.0, %v1448
        %1450 = vdwg.mxu0
        %1451 = vmatprep.subr.mxu0 0.0
        %1452 = vmatpush1.msra.mxu0 0.0
        %1453 = vmatprep.subr.mxu0 0.0
        %1454 = vmatpush1.msra.mxu0 0.0
        %1455 = vmatprep.subr.mxu0 0.0
        %1456 = vmatpush1.msra.mxu0 0.0
        %1457 = vmatprep.subr.mxu0 0.0
        %1458 = vmatpush1.msra.mxu0 0.0
        %1459 = vmatprep.subr.mxu0 0.0
        %1460 = vmatpush1.msra.mxu0 0.0
        %1461 = vmatprep.subr.mxu0 0.0
        %1462 = vmatpush1.msra.mxu0 0.0
        %1463 = vmatprep.subr.mxu0 0.0
        %1464 = vmatpush1.msra.mxu0 0.0
        %1465 = vmatprep.subr.mxu0 0.0
        %1466 = vmatpush1.msra.mxu0 0.0
        %1467 = vmatprep.subr.mxu0 0.0
        %1468 = vmatpush1.msra.mxu0 0.0
        %1469 = vmatprep.subr.mxu0 0.0
        %1470 = vmatpush1.msra.mxu0 0.0
        %1471 = vmatprep.subr.mxu0 0.0
        %1472 = vmatpush1.msra.mxu0 0.0
        %1473 = vmatprep.subr.mxu0 0.0
        %1474 = vmatpush1.msra.mxu0 0.0
        %1475 = vmatprep.subr.mxu0 0.0
        %1476 = vmatpush1.msra.mxu0 0.0
        %1477 = vmatprep.subr.mxu0 0.0
        %1478 = vmatpush1.msra.mxu0 0.0
        %1479 = vmatprep.subr.mxu0 %v1236
        %1480 = vmatpush1.msra.mxu0 %v1234
        %1481 = vmatprep.subr.mxu0 %v1221
        %1482 = vmatpush1.msra.mxu0 %v1220
        %1483 = vmatprep.subr.mxu0 0.0
        %1484 = vmatpush2.msra.mxu0 0.0
        %1485 = vmatprep.subr.mxu0 0.0
        %1486 = vmatpush2.msra.mxu0 0.0
        %1487 = vmatprep.subr.mxu0 0.0
        %1488 = vmatpush2.msra.mxu0 0.0
        %1489 = vmatprep.subr.mxu0 0.0
        %1490 = vmatpush2.msra.mxu0 0.0
        %1491 = vmatprep.subr.mxu0 0.0
        %1492 = vmatpush2.msra.mxu0 0.0
        %1493 = vmatprep.subr.mxu0 0.0
        %1494 = vmatpush2.msra.mxu0 0.0
        %1495 = vmatprep.subr.mxu0 0.0
        %1496 = vmatpush2.msra.mxu0 0.0
        %1497 = vmatprep.subr.mxu0 0.0
        %1498 = vmatpush2.msra.mxu0 0.0
        %1499 = vmatprep.subr.mxu0 0.0
        %1500 = vmatpush2.msra.mxu0 0.0
        %1501 = vmatprep.subr.mxu0 0.0
        %1502 = vmatpush2.msra.mxu0 0.0
        %1503 = vmatprep.subr.mxu0 0.0
        %1504 = vmatpush2.msra.mxu0 0.0
        %1505 = vmatprep.subr.mxu0 0.0
        %1506 = vmatpush2.msra.mxu0 0.0
        %1507 = vmatprep.subr.mxu0 0.0
        %1508 = vmatpush2.msra.mxu0 0.0
        %1509 = vmatprep.subr.mxu0 0.0
        %1510 = vmatpush2.msra.mxu0 0.0
        %1511 = vmatprep.subr.mxu0 0.0
        %1512 = vmatpush2.msra.mxu0 0.0
        %1513 = vmatprep.subr.mxu0 0.0
        %1514 = vmatpush2.msra.mxu0 0.0
        %1515 = vmatprep.mubr.f32.mxu0 0.0
        %1516 = vmatmul.mubr.f32.gmra.mxu0 %v419
        %v1517 = vpop.f32.mrf.mxu0
        %v1518 = vadd.f32 0.0, %v1517
        %v1519 = vpop.f32.mrf.mxu0
        %v1520 = vadd.f32 0.0, %v1519
        %1521 = vdwg.mxu0
        %v1522 = vmax.f32 %v1134, %v1305
        %v1523 = vmax.f32 %v1135, %v1307
        %v1524 = vmax.f32 %v1136, %v1376
        %v1525 = vmax.f32 %v1137, %v1378
        %v1526 = vmax.f32 %v1138, %v1447
        %v1527 = vmax.f32 %v1139, %v1449
        %v1528 = vmax.f32 %v1140, %v1518
        %v1529 = vmax.f32 %v1141, %v1520
        %v1530 = vld [vmem:[#allocation2 + $0x40] sm:$0xe0]
        %v1531 = vld [vmem:[#allocation2 + $0x48] sm:$0xe0]
        %v1532 = vld [vmem:[#allocation2 + $0x50] sm:$0xe0]
        %v1533 = vld [vmem:[#allocation2 + $0x58] sm:$0xe0]
        %v1534 = vld [vmem:[#allocation2 + $0x60] sm:$0xe0]
        %v1535 = vld [vmem:[#allocation2 + $0x68] sm:$0xe0]
        %v1536 = vld [vmem:[#allocation2 + $0x70] sm:$0xe0]
        %v1537 = vld [vmem:[#allocation2 + $0x78] sm:$0xe0]
        %v1538 = vrot.slane %v730, 5
        %v1539 = vrot.slane %v731, 5
        %v1540 = vrot.slane %v732, 5
        %v1541 = vrot.slane %v733, 5
        %v1542 = vrot.slane %v734, 5
        %v1543 = vrot.slane %v735, 5
        %v1544 = vrot.slane %v736, 5
        %v1545 = vrot.slane %v737, 5
        %v1554 = vrot.slane %v738, 6
        %v1555 = vrot.slane %v739, 6
        %v1556 = vrot.slane %v740, 6
        %v1557 = vrot.slane %v741, 6
        %v1558 = vrot.slane %v742, 6
        %v1559 = vrot.slane %v743, 6
        %v1560 = vrot.slane %v744, 6
        %v1561 = vrot.slane %v745, 6
        %v1578 = vrot.slane %v1530, 7
        %v1579 = vrot.slane %v1531, 7
        %v1580 = vrot.slane %v1532, 7
        %v1581 = vrot.slane %v1533, 7
        %v1582 = vrot.slane %v1534, 7
        %v1583 = vrot.slane %v1535, 7
        %v1584 = vrot.slane %v1536, 7
        %v1585 = vrot.slane %v1537, 7
        %v1594 = vsel %vm399, %v1538, %v1554
        %v1595 = vsel %vm399, %v1539, %v1555
        %v1596 = vsel %vm399, %v1540, %v1556
        %v1597 = vsel %vm399, %v1541, %v1557
        %v1598 = vsel %vm399, %v1542, %v1558
        %v1599 = vsel %vm399, %v1543, %v1559
        %v1600 = vsel %vm399, %v1544, %v1560
        %v1601 = vsel %vm399, %v1545, %v1561
        %v1602 = vsel %vm408, %v1594, %v1578
        %v1603 = vsel %vm408, %v1595, %v1579
        %v1604 = vsel %vm408, %v1596, %v1580
        %v1605 = vsel %vm408, %v1597, %v1581
        %v1606 = vsel %vm408, %v1598, %v1582
        %v1607 = vsel %vm408, %v1599, %v1583
        %v1608 = vsel %vm408, %v1600, %v1584
        %v1609 = vsel %vm408, %v1601, %v1585
        %v1610 = vsel %vm421, %v1578, 0
        %v1612 = vsel %vm421, %v1579, 0
        %v1614 = vsel %vm421, %v1580, 0
        %v1616 = vsel %vm421, %v1581, 0
        %v1618 = vsel %vm421, %v1582, 0
        %v1620 = vsel %vm421, %v1583, 0
        %v1622 = vsel %vm421, %v1584, 0
        %v1624 = vsel %vm421, %v1585, 0
        %1626 = vmatprep.subr.mxu0 0.0
        %1627 = vmatpush1.msra.mxu0 0.0
        %1628 = vmatprep.subr.mxu0 0.0
        %1629 = vmatpush1.msra.mxu0 0.0
        %1630 = vmatprep.subr.mxu0 0.0
        %1631 = vmatpush1.msra.mxu0 0.0
        %1632 = vmatprep.subr.mxu0 0.0
        %1633 = vmatpush1.msra.mxu0 0.0
        %1634 = vmatprep.subr.mxu0 0.0
        %1635 = vmatpush1.msra.mxu0 0.0
        %1636 = vmatprep.subr.mxu0 0.0
        %1637 = vmatpush1.msra.mxu0 0.0
        %1638 = vmatprep.subr.mxu0 0.0
        %1639 = vmatpush1.msra.mxu0 0.0
        %1640 = vmatprep.subr.mxu0 0.0
        %1641 = vmatpush1.msra.mxu0 0.0
        %1642 = vmatprep.subr.mxu0 0.0
        %1643 = vmatpush1.msra.mxu0 0.0
        %1644 = vmatprep.subr.mxu0 0.0
        %1645 = vmatpush1.msra.mxu0 0.0
        %1646 = vmatprep.subr.mxu0 0.0
        %1647 = vmatpush1.msra.mxu0 0.0
        %1648 = vmatprep.subr.mxu0 0.0
        %1649 = vmatpush1.msra.mxu0 0.0
        %1650 = vmatprep.subr.mxu0 0.0
        %1651 = vmatpush1.msra.mxu0 0.0
        %1652 = vmatprep.subr.mxu0 0.0
        %1653 = vmatpush1.msra.mxu0 0.0
        %1654 = vmatprep.subr.mxu0 %v1612
        %1655 = vmatpush1.msra.mxu0 %v1610
        %1656 = vmatprep.subr.mxu0 %v1603
        %1657 = vmatpush1.msra.mxu0 %v1602
        %1658 = vmatprep.subr.mxu0 0.0
        %1659 = vmatpush2.msra.mxu0 0.0
        %1660 = vmatprep.subr.mxu0 0.0
        %1661 = vmatpush2.msra.mxu0 0.0
        %1662 = vmatprep.subr.mxu0 0.0
        %1663 = vmatpush2.msra.mxu0 0.0
        %1664 = vmatprep.subr.mxu0 0.0
        %1665 = vmatpush2.msra.mxu0 0.0
        %1666 = vmatprep.subr.mxu0 0.0
        %1667 = vmatpush2.msra.mxu0 0.0
        %1668 = vmatprep.subr.mxu0 0.0
        %1669 = vmatpush2.msra.mxu0 0.0
        %1670 = vmatprep.subr.mxu0 0.0
        %1671 = vmatpush2.msra.mxu0 0.0
        %1672 = vmatprep.subr.mxu0 0.0
        %1673 = vmatpush2.msra.mxu0 0.0
        %1674 = vmatprep.subr.mxu0 0.0
        %1675 = vmatpush2.msra.mxu0 0.0
        %1676 = vmatprep.subr.mxu0 0.0
        %1677 = vmatpush2.msra.mxu0 0.0
        %1678 = vmatprep.subr.mxu0 0.0
        %1679 = vmatpush2.msra.mxu0 0.0
        %1680 = vmatprep.subr.mxu0 0.0
        %1681 = vmatpush2.msra.mxu0 0.0
        %1682 = vmatprep.subr.mxu0 0.0
        %1683 = vmatpush2.msra.mxu0 0.0
        %1684 = vmatprep.subr.mxu0 0.0
        %1685 = vmatpush2.msra.mxu0 0.0
        %1686 = vmatprep.subr.mxu0 0.0
        %1687 = vmatpush2.msra.mxu0 0.0
        %1688 = vmatprep.subr.mxu0 0.0
        %1689 = vmatpush2.msra.mxu0 0.0
        %1690 = vmatprep.mubr.f32.mxu0 0.0
        %1691 = vmatmul.mubr.f32.gmra.mxu0 %v419
        %v1692 = vpop.f32.mrf.mxu0
        %v1693 = vadd.f32 0.0, %v1692
        %v1694 = vpop.f32.mrf.mxu0
        %v1695 = vadd.f32 0.0, %v1694
        %1696 = vdwg.mxu0
        %1697 = vmatprep.subr.mxu0 0.0
        %1698 = vmatpush1.msra.mxu0 0.0
        %1699 = vmatprep.subr.mxu0 0.0
        %1700 = vmatpush1.msra.mxu0 0.0
        %1701 = vmatprep.subr.mxu0 0.0
        %1702 = vmatpush1.msra.mxu0 0.0
        %1703 = vmatprep.subr.mxu0 0.0
        %1704 = vmatpush1.msra.mxu0 0.0
        %1705 = vmatprep.subr.mxu0 0.0
        %1706 = vmatpush1.msra.mxu0 0.0
        %1707 = vmatprep.subr.mxu0 0.0
        %1708 = vmatpush1.msra.mxu0 0.0
        %1709 = vmatprep.subr.mxu0 0.0
        %1710 = vmatpush1.msra.mxu0 0.0
        %1711 = vmatprep.subr.mxu0 0.0
        %1712 = vmatpush1.msra.mxu0 0.0
        %1713 = vmatprep.subr.mxu0 0.0
        %1714 = vmatpush1.msra.mxu0 0.0
        %1715 = vmatprep.subr.mxu0 0.0
        %1716 = vmatpush1.msra.mxu0 0.0
        %1717 = vmatprep.subr.mxu0 0.0
        %1718 = vmatpush1.msra.mxu0 0.0
        %1719 = vmatprep.subr.mxu0 0.0
        %1720 = vmatpush1.msra.mxu0 0.0
        %1721 = vmatprep.subr.mxu0 0.0
        %1722 = vmatpush1.msra.mxu0 0.0
        %1723 = vmatprep.subr.mxu0 0.0
        %1724 = vmatpush1.msra.mxu0 0.0
        %1725 = vmatprep.subr.mxu0 %v1616
        %1726 = vmatpush1.msra.mxu0 %v1614
        %1727 = vmatprep.subr.mxu0 %v1605
        %1728 = vmatpush1.msra.mxu0 %v1604
        %1729 = vmatprep.subr.mxu0 0.0
        %1730 = vmatpush2.msra.mxu0 0.0
        %1731 = vmatprep.subr.mxu0 0.0
        %1732 = vmatpush2.msra.mxu0 0.0
        %1733 = vmatprep.subr.mxu0 0.0
        %1734 = vmatpush2.msra.mxu0 0.0
        %1735 = vmatprep.subr.mxu0 0.0
        %1736 = vmatpush2.msra.mxu0 0.0
        %1737 = vmatprep.subr.mxu0 0.0
        %1738 = vmatpush2.msra.mxu0 0.0
        %1739 = vmatprep.subr.mxu0 0.0
        %1740 = vmatpush2.msra.mxu0 0.0
        %1741 = vmatprep.subr.mxu0 0.0
        %1742 = vmatpush2.msra.mxu0 0.0
        %1743 = vmatprep.subr.mxu0 0.0
        %1744 = vmatpush2.msra.mxu0 0.0
        %1745 = vmatprep.subr.mxu0 0.0
        %1746 = vmatpush2.msra.mxu0 0.0
        %1747 = vmatprep.subr.mxu0 0.0
        %1748 = vmatpush2.msra.mxu0 0.0
        %1749 = vmatprep.subr.mxu0 0.0
        %1750 = vmatpush2.msra.mxu0 0.0
        %1751 = vmatprep.subr.mxu0 0.0
        %1752 = vmatpush2.msra.mxu0 0.0
        %1753 = vmatprep.subr.mxu0 0.0
        %1754 = vmatpush2.msra.mxu0 0.0
        %1755 = vmatprep.subr.mxu0 0.0
        %1756 = vmatpush2.msra.mxu0 0.0
        %1757 = vmatprep.subr.mxu0 0.0
        %1758 = vmatpush2.msra.mxu0 0.0
        %1759 = vmatprep.subr.mxu0 0.0
        %1760 = vmatpush2.msra.mxu0 0.0
        %1761 = vmatprep.mubr.f32.mxu0 0.0
        %1762 = vmatmul.mubr.f32.gmra.mxu0 %v419
        %v1763 = vpop.f32.mrf.mxu0
        %v1764 = vadd.f32 0.0, %v1763
        %v1765 = vpop.f32.mrf.mxu0
        %v1766 = vadd.f32 0.0, %v1765
        %1767 = vdwg.mxu0
        %1768 = vmatprep.subr.mxu0 0.0
        %1769 = vmatpush1.msra.mxu0 0.0
        %1770 = vmatprep.subr.mxu0 0.0
        %1771 = vmatpush1.msra.mxu0 0.0
        %1772 = vmatprep.subr.mxu0 0.0
        %1773 = vmatpush1.msra.mxu0 0.0
        %1774 = vmatprep.subr.mxu0 0.0
        %1775 = vmatpush1.msra.mxu0 0.0
        %1776 = vmatprep.subr.mxu0 0.0
        %1777 = vmatpush1.msra.mxu0 0.0
        %1778 = vmatprep.subr.mxu0 0.0
        %1779 = vmatpush1.msra.mxu0 0.0
        %1780 = vmatprep.subr.mxu0 0.0
        %1781 = vmatpush1.msra.mxu0 0.0
        %1782 = vmatprep.subr.mxu0 0.0
        %1783 = vmatpush1.msra.mxu0 0.0
        %1784 = vmatprep.subr.mxu0 0.0
        %1785 = vmatpush1.msra.mxu0 0.0
        %1786 = vmatprep.subr.mxu0 0.0
        %1787 = vmatpush1.msra.mxu0 0.0
        %1788 = vmatprep.subr.mxu0 0.0
        %1789 = vmatpush1.msra.mxu0 0.0
        %1790 = vmatprep.subr.mxu0 0.0
        %1791 = vmatpush1.msra.mxu0 0.0
        %1792 = vmatprep.subr.mxu0 0.0
        %1793 = vmatpush1.msra.mxu0 0.0
        %1794 = vmatprep.subr.mxu0 0.0
        %1795 = vmatpush1.msra.mxu0 0.0
        %1796 = vmatprep.subr.mxu0 %v1620
        %1797 = vmatpush1.msra.mxu0 %v1618
        %1798 = vmatprep.subr.mxu0 %v1607
        %1799 = vmatpush1.msra.mxu0 %v1606
        %1800 = vmatprep.subr.mxu0 0.0
        %1801 = vmatpush2.msra.mxu0 0.0
        %1802 = vmatprep.subr.mxu0 0.0
        %1803 = vmatpush2.msra.mxu0 0.0
        %1804 = vmatprep.subr.mxu0 0.0
        %1805 = vmatpush2.msra.mxu0 0.0
        %1806 = vmatprep.subr.mxu0 0.0
        %1807 = vmatpush2.msra.mxu0 0.0
        %1808 = vmatprep.subr.mxu0 0.0
        %1809 = vmatpush2.msra.mxu0 0.0
        %1810 = vmatprep.subr.mxu0 0.0
        %1811 = vmatpush2.msra.mxu0 0.0
        %1812 = vmatprep.subr.mxu0 0.0
        %1813 = vmatpush2.msra.mxu0 0.0
        %1814 = vmatprep.subr.mxu0 0.0
        %1815 = vmatpush2.msra.mxu0 0.0
        %1816 = vmatprep.subr.mxu0 0.0
        %1817 = vmatpush2.msra.mxu0 0.0
        %1818 = vmatprep.subr.mxu0 0.0
        %1819 = vmatpush2.msra.mxu0 0.0
        %1820 = vmatprep.subr.mxu0 0.0
        %1821 = vmatpush2.msra.mxu0 0.0
        %1822 = vmatprep.subr.mxu0 0.0
        %1823 = vmatpush2.msra.mxu0 0.0
        %1824 = vmatprep.subr.mxu0 0.0
        %1825 = vmatpush2.msra.mxu0 0.0
        %1826 = vmatprep.subr.mxu0 0.0
        %1827 = vmatpush2.msra.mxu0 0.0
        %1828 = vmatprep.subr.mxu0 0.0
        %1829 = vmatpush2.msra.mxu0 0.0
        %1830 = vmatprep.subr.mxu0 0.0
        %1831 = vmatpush2.msra.mxu0 0.0
        %1832 = vmatprep.mubr.f32.mxu0 0.0
        %1833 = vmatmul.mubr.f32.gmra.mxu0 %v419
        %v1834 = vpop.f32.mrf.mxu0
        %v1835 = vadd.f32 0.0, %v1834
        %v1836 = vpop.f32.mrf.mxu0
        %v1837 = vadd.f32 0.0, %v1836
        %1838 = vdwg.mxu0
        %1839 = vmatprep.subr.mxu0 0.0
        %1840 = vmatpush1.msra.mxu0 0.0
        %1841 = vmatprep.subr.mxu0 0.0
        %1842 = vmatpush1.msra.mxu0 0.0
        %1843 = vmatprep.subr.mxu0 0.0
        %1844 = vmatpush1.msra.mxu0 0.0
        %1845 = vmatprep.subr.mxu0 0.0
        %1846 = vmatpush1.msra.mxu0 0.0
        %1847 = vmatprep.subr.mxu0 0.0
        %1848 = vmatpush1.msra.mxu0 0.0
        %1849 = vmatprep.subr.mxu0 0.0
        %1850 = vmatpush1.msra.mxu0 0.0
        %1851 = vmatprep.subr.mxu0 0.0
        %1852 = vmatpush1.msra.mxu0 0.0
        %1853 = vmatprep.subr.mxu0 0.0
        %1854 = vmatpush1.msra.mxu0 0.0
        %1855 = vmatprep.subr.mxu0 0.0
        %1856 = vmatpush1.msra.mxu0 0.0
        %1857 = vmatprep.subr.mxu0 0.0
        %1858 = vmatpush1.msra.mxu0 0.0
        %1859 = vmatprep.subr.mxu0 0.0
        %1860 = vmatpush1.msra.mxu0 0.0
        %1861 = vmatprep.subr.mxu0 0.0
        %1862 = vmatpush1.msra.mxu0 0.0
        %1863 = vmatprep.subr.mxu0 0.0
        %1864 = vmatpush1.msra.mxu0 0.0
        %1865 = vmatprep.subr.mxu0 0.0
        %1866 = vmatpush1.msra.mxu0 0.0
        %1867 = vmatprep.subr.mxu0 %v1624
        %1868 = vmatpush1.msra.mxu0 %v1622
        %1869 = vmatprep.subr.mxu0 %v1609
        %1870 = vmatpush1.msra.mxu0 %v1608
        %1871 = vmatprep.subr.mxu0 0.0
        %1872 = vmatpush2.msra.mxu0 0.0
        %1873 = vmatprep.subr.mxu0 0.0
        %1874 = vmatpush2.msra.mxu0 0.0
        %1875 = vmatprep.subr.mxu0 0.0
        %1876 = vmatpush2.msra.mxu0 0.0
        %1877 = vmatprep.subr.mxu0 0.0
        %1878 = vmatpush2.msra.mxu0 0.0
        %1879 = vmatprep.subr.mxu0 0.0
        %1880 = vmatpush2.msra.mxu0 0.0
        %1881 = vmatprep.subr.mxu0 0.0
        %1882 = vmatpush2.msra.mxu0 0.0
        %1883 = vmatprep.subr.mxu0 0.0
        %1884 = vmatpush2.msra.mxu0 0.0
        %1885 = vmatprep.subr.mxu0 0.0
        %1886 = vmatpush2.msra.mxu0 0.0
        %1887 = vmatprep.subr.mxu0 0.0
        %1888 = vmatpush2.msra.mxu0 0.0
        %1889 = vmatprep.subr.mxu0 0.0
        %1890 = vmatpush2.msra.mxu0 0.0
        %1891 = vmatprep.subr.mxu0 0.0
        %1892 = vmatpush2.msra.mxu0 0.0
        %1893 = vmatprep.subr.mxu0 0.0
        %1894 = vmatpush2.msra.mxu0 0.0
        %1895 = vmatprep.subr.mxu0 0.0
        %1896 = vmatpush2.msra.mxu0 0.0
        %1897 = vmatprep.subr.mxu0 0.0
        %1898 = vmatpush2.msra.mxu0 0.0
        %1899 = vmatprep.subr.mxu0 0.0
        %1900 = vmatpush2.msra.mxu0 0.0
        %1901 = vmatprep.subr.mxu0 0.0
        %1902 = vmatpush2.msra.mxu0 0.0
        %1903 = vmatprep.mubr.f32.mxu0 0.0
        %1904 = vmatmul.mubr.f32.gmra.mxu0 %v419
        %v1905 = vpop.f32.mrf.mxu0
        %v1906 = vadd.f32 0.0, %v1905
        %v1907 = vpop.f32.mrf.mxu0
        %v1908 = vadd.f32 0.0, %v1907
        %1909 = vdwg.mxu0
        %v1910 = vmax.f32 %v1522, %v1693
        %v1911 = vmax.f32 %v1523, %v1695
        %v1912 = vmax.f32 %v1524, %v1764
        %v1913 = vmax.f32 %v1525, %v1766
        %v1914 = vmax.f32 %v1526, %v1835
        %v1915 = vmax.f32 %v1527, %v1837
        %v1916 = vmax.f32 %v1528, %v1906
        %v1917 = vmax.f32 %v1529, %v1908
        %v1918 = vld [vmem:[%s2] sm:$0x3f]
        %1920 = vset.pattern.permute.xlu0 0
        %1921 = vperm.xlu0 %1920, %v1918
        %v1922 = vpop.permute.xlu0 %1921
        %v1924 = vadd.f32 %v1910, %v1922
        %v1925 = vadd.f32 %v1911, %v1922
        %v1926 = vadd.f32 %v1912, %v1922
        %v1927 = vadd.f32 %v1913, %v1922
        %v1928 = vadd.f32 %v1914, %v1922
        %v1929 = vadd.f32 %v1915, %v1922
        %v1930 = vadd.f32 %v1916, %v1922
        %v1931 = vadd.f32 %v1917, %v1922
        %v1932 = vmax.f32 %v1924, 0.0
        %v1933 = vmax.f32 %v1925, 0.0
        %v1934 = vmax.f32 %v1926, 0.0
        %v1935 = vmax.f32 %v1927, 0.0
        %v1936 = vmax.f32 %v1928, 0.0
        %v1937 = vmax.f32 %v1929, 0.0
        %v1938 = vmax.f32 %v1930, 0.0
        %v1939 = vmax.f32 %v1931, 0.0
        %v1940 = vlaneseq
        %v1941 = vand.u32 %v1940, 127
        %v1942 = vadd.s32 %v1941, 128
        %v1943 = vadd.s32 %v1941, 256
        %v1944 = vadd.s32 %v1941, 384
        %v1945 = vadd.s32 %v1941, 512
        %v1946 = vadd.s32 %v1941, 640
        %v1947 = vadd.s32 %v1941, 768
        %v1948 = vadd.s32 %v1941, 896
        %v1949 = vand.u32 %v1941, 31
        %v1950 = vand.u32 %v1942, 31
        %v1951 = vand.u32 %v1943, 31
        %v1952 = vand.u32 %v1944, 31
        %v1953 = vand.u32 %v1945, 31
        %v1954 = vand.u32 %v1946, 31
        %v1955 = vand.u32 %v1947, 31
        %v1956 = vand.u32 %v1948, 31
        %vm1957 = vcmp.lt.s32.totalorder %v1949, 31
        %vm1958 = vcmp.lt.s32.totalorder %v1950, 31
        %vm1959 = vcmp.lt.s32.totalorder %v1951, 31
        %vm1960 = vcmp.lt.s32.totalorder %v1952, 31
        %vm1961 = vcmp.lt.s32.totalorder %v1953, 31
        %vm1962 = vcmp.lt.s32.totalorder %v1954, 31
        %vm1963 = vcmp.lt.s32.totalorder %v1955, 31
        %vm1964 = vcmp.lt.s32.totalorder %v1956, 31
        %v1965 = vsel %vm1957, %v1932, 0.0
        %v1966 = vsel %vm1958, %v1933, 0.0
        %v1967 = vsel %vm1959, %v1934, 0.0
        %v1968 = vsel %vm1960, %v1935, 0.0
        %v1969 = vsel %vm1961, %v1936, 0.0
        %v1970 = vsel %vm1962, %v1937, 0.0
        %v1971 = vsel %vm1963, %v1938, 0.0
        %v1972 = vsel %vm1964, %v1939, 0.0
        %1973 = vst [vmem:[%s180] sm:$0x3f] %v1965
        %1974 = vst [vmem:[%s180 + $0x8] sm:$0x3f] %v1966
        %1975 = vst [vmem:[%s180 + $0x10] sm:$0x3f] %v1967
        %1976 = vst [vmem:[%s180 + $0x18] sm:$0x3f] %v1968
        %1977 = vst [vmem:[%s180 + $0x20] sm:$0x3f] %v1969
        %1978 = vst [vmem:[%s180 + $0x28] sm:$0x3f] %v1970
        %1979 = vst [vmem:[%s180 + $0x30] sm:$0x3f] %v1971
        %vm1980 = vcmask 775168
        %1981 = vst.msk [vmem:[%s180 + $0x38] sm:$0x3f] %vm1980, %v1972
        %vm1982 = vcmask 1046264
        %1983 = vst.msk [vmem:[%s180 + $0x38] sm:$0x3f] %vm1982, 0.0
        %p1984 = scmp.lt.s32.totalorder %s15, 1
        %s1985 = scalar_select %p1984, %s15, 1
        %s1986 = smul.addr %s1985, 8
        %s1987 = smul.addr %s1986, 8
        %s1988 = scalar_lea.vmem %s3, %s1987
        // Predicated region
        $region37: #{net_small_forward.3} parent=31 // pred_check
          %p1989 = pneg %p101
        $region38: #{net_small_forward.3} parent=31 // pred_check_branch
          %1991 = sbr.rel (%p1989) target = $region40
        $region39: #{net_small_forward.3} parent=31 // pred_region
          _
        $region40: #{net_small_forward.3} parent=31 // pred_fallthru
          _
      $region32: #{net_small_forward.3} parent=5 // pred_fallthru
        _
      %p1992 = scmp.le.s32.totalorder 2, %s10
      // Predicated region
      $region41: #{net_small_forward.3} parent=5 // pred_check
        %p1993 = pneg %p1992
      $region42: #{net_small_forward.3} parent=5 // pred_check_branch
        %1995 = sbr.rel (%p1993) target = $region44
      $region43: #{net_small_forward.3} parent=5 // pred_region
        %s1996 = ssub.s32 %s10, 2
        // Predicated region
        $region45: #{net_small_forward.3} parent=43 // pred_check
          %p1997 = pneg %p107
        $region46: #{net_small_forward.3} parent=43 // pred_check_branch
          %1999 = sbr.rel (%p1997) target = $region48
        $region47: #{net_small_forward.3} parent=43 // pred_region
          %p2000 = scmp.lt.s32.totalorder %s16, 1
          %s2001 = scalar_select %p2000, %s16, 1
          %s2002 = smul.addr %s2001, 8
          %s2003 = smul.addr %s2002, 8
          %s2004 = scalar_lea.vmem %s3, %s2003
        $region48: #{net_small_forward.3} parent=43 // pred_fallthru
          _
      $region44: #{net_small_forward.3} parent=5 // pred_fallthru
        _
    $region6: #{net_small_forward.3} parent=1 // loop_footer
      %s14 = sadd.s32 1, %s10
    $region7: #{net_small_forward.3} parent=1 // loop_footer_branch
      %9 = sbr.rel target = $region3
    $region8: #{net_small_forward.3} parent=1 // loop_exit
      _
    %2005 = vsyncpa [#allocation4], 1
    %s2006 = scalar_lea.sflag [#allocation4], 1
    %2007 = vsyncpa %s2006, 1

// kernel: net_small_forward.4
$region0: #{net_small_forward.4}
  #allocation0 [shape = 'u32[]', space=smem, size = 0x4, offset = 0x4, fixed_abs, tag = 'smem constant byte address 0x4 - core index']
  #allocation1 [shape = 'u32[144,128]{1,0:T(1,128)}', space=vmem, size = 0x12000, scoped, tag = 'internal scratch']
  #allocation2 [shape = 'f32[216,208]{1,0:T(8,128)}', space=vmem, size = 0x36000, scoped, tag = 'scratch operand']
  %s0 = inlined_call_operand.vmem [shape: f32[2,4,6,256], index: 0, kind: input, shape index: {}]
  %s1 = inlined_call_operand.hbm [shape: f32[16,150], index: 1, kind: input, shape index: {}]
  %s2 = inlined_call_operand.vmem [shape: f32[16,1], index: 2, kind: input, shape index: {}]
  %s3 = inlined_call_operand.vmem [shape: f32[2,16,208], index: 3, kind: output, shape index: {}]
  %s4 = sld [smem:[#allocation0]]
  $region49: #{net_small_forward.4} parent=0
    _
  %s6 = ssub.s32 1, %s4
  %s7 = scalar_select 0, %s6, %s4
  $region1: #{net_small_forward.4} parent=0
    #allocation3 [shape = 'u8[16384]{0}', space=vmem, size = 0x4000, scoped, tag = 'input window, operand 1, single buffered']
    #allocation4 [shape = 's32[2]{0}', space=sflag, size = 0x8, scoped, tag = 'scoped memory for net_small_forward.4']
    %8 = vsyncpa [#allocation4], 0
    loop: start=0, step=1, limit=4
    $region2: #{net_small_forward.4} parent=1 // loop_pre_header
      _
    $region3: #{net_small_forward.4} parent=1 // loop_header
      %s10 = sphi 0, %s14
      %p11 = scmp.ge.s32.totalorder %s10, 4
      %s20 = sphi 0, %s22
      %s23 = sphi 0, %s20
      %s24 = sphi 0, %s23
      %s40 = sphi 0, %s24
      %s44 = sphi 0, %s44
      %s46 = sphi 0, %s44
      %s47 = sphi 0, %s46
      %s61 = sphi 0, %s47
      %s65 = sphi 0, %s65
      %s67 = sphi 0, %s65
      %s68 = sphi 0, %s67
      %s82 = sphi 0, %s68
      %s88 = sphi 0, %s90
      %s91 = sphi 0, %s88
      %s92 = sphi 0, %s91
      %s108 = sphi 0, %s92
    $region4: #{net_small_forward.4} parent=1 // loop_header_branch
      %13 = sbr.rel (%p11) target = $region8
    $region5: #{net_small_forward.4} parent=1 // loop_body
      %s15 = ssub.s32 %s10, 1
      %s16 = ssub.s32 %s10, 2
      %s17 = sadd.s32 %s10, 1
      %s18 = ssub.s32 %s10, %s17
      %p19 = scmp.eq.s32.totalorder %s18, 0
      %s21 = sadd.s32 %s20, 1
      %s22 = scalar_select %p19, %s20, %s21
      %p25 = pneg %p19
      %p26 = scmp.eq.s32.totalorder %s10, 1
      %p27 = por %p25, %p26
      %p28 = scmp.ne.s32.totalorder %s20, %s23
      %p29 = scmp.eq.s32.totalorder %s10, 0
      %p30 = por %p28, %p29
      %p31 = scmp.ne.s32.totalorder %s20, %s23
      %p32 = scmp.eq.s32.totalorder %s15, 1
      %p33 = por %p31, %p32
      %p34 = scmp.ne.s32.totalorder %s23, %s24
      %p35 = scmp.eq.s32.totalorder %s15, 0
      %p36 = por %p34, %p35
      %p37 = scmp.ne.s32.totalorder %s23, %s24
      %p38 = scmp.eq.s32.totalorder %s16, 1
      %p39 = por %p37, %p38
      %p41 = scmp.ne.s32.totalorder %s24, %s40
      %p42 = scmp.eq.s32.totalorder %s16, 0
      %p43 = por %p41, %p42
      %s45 = sadd.s32 %s44, 1
      %p48 = scmp.eq.s32.totalorder %s10, 1
      %p49 = scmp.ne.s32.totalorder %s44, %s46
      %p50 = scmp.eq.s32.totalorder %s10, 0
      %p51 = por %p49, %p50
      %p52 = scmp.ne.s32.totalorder %s44, %s46
      %p53 = scmp.eq.s32.totalorder %s15, 1
      %p54 = por %p52, %p53
      %p55 = scmp.ne.s32.totalorder %s46, %s47
      %p56 = scmp.eq.s32.totalorder %s15, 0
      %p57 = por %p55, %p56
      %p58 = scmp.ne.s32.totalorder %s46, %s47
      %p59 = scmp.eq.s32.totalorder %s16, 1
      %p60 = por %p58, %p59
      %p62 = scmp.ne.s32.totalorder %s47, %s61
      %p63 = scmp.eq.s32.totalorder %s16, 0
      %p64 = por %p62, %p63
      %s66 = sadd.s32 %s65, 1
      %p69 = scmp.eq.s32.totalorder %s10, 1
      %p70 = scmp.ne.s32.totalorder %s65, %s67
      %p71 = scmp.eq.s32.totalorder %s10, 0
      %p72 = por %p70, %p71
      %p73 = scmp.ne.s32.totalorder %s65, %s67
      %p74 = scmp.eq.s32.totalorder %s15, 1
      %p75 = por %p73, %p74
      %p76 = scmp.ne.s32.totalorder %s67, %s68
      %p77 = scmp.eq.s32.totalorder %s15, 0
      %p78 = por %p76, %p77
      %p79 = scmp.ne.s32.totalorder %s67, %s68
      %p80 = scmp.eq.s32.totalorder %s16, 1
      %p81 = por %p79, %p80
      %p83 = scmp.ne.s32.totalorder %s68, %s82
      %p84 = scmp.eq.s32.totalorder %s16, 0
      %p85 = por %p83, %p84
      %s86 = ssub.s32 %s10, %s17
      %p87 = scmp.eq.s32.totalorder %s86, 0
      %s89 = sadd.s32 %s88, 1
      %s90 = scalar_select %p87, %s88, %s89
      %p93 = pneg %p87
      %p94 = scmp.eq.s32.totalorder %s10, 1
      %p95 = por %p93, %p94
      %p96 = scmp.ne.s32.totalorder %s88, %s91
      %p97 = scmp.eq.s32.totalorder %s10, 0
      %p98 = por %p96, %p97
      %p99 = scmp.ne.s32.totalorder %s88, %s91
      %p100 = scmp.eq.s32.totalorder %s15, 1
      %p101 = por %p99, %p100
      %p102 = scmp.ne.s32.totalorder %s91, %s92
      %p103 = scmp.eq.s32.totalorder %s15, 0
      %p104 = por %p102, %p103
      %p105 = scmp.ne.s32.totalorder %s91, %s92
      %p106 = scmp.eq.s32.totalorder %s16, 1
      %p107 = por %p105, %p106
      %p109 = scmp.ne.s32.totalorder %s92, %s108
      %p110 = scmp.eq.s32.totalorder %s16, 0
      %p111 = por %p109, %p110
      %p112 = scmp.le.s32.totalorder 1, %s10
      %p113 = scmp.lt.s32.totalorder %s10, 3
      %p114 = pnand %p112, %p113
      %p115 = pneg %p114
      // Predicated region
      $region9: #{net_small_forward.4} parent=5 // pred_check
        _
      $region10: #{net_small_forward.4} parent=5 // pred_check_branch
        %117 = sbr.rel (%p114) target = $region12
      $region11: #{net_small_forward.4} parent=5 // pred_region
        %s118 = ssub.s32 %s10, 1
        // Predicated region
        $region13: #{net_small_forward.4} parent=11 // pred_check
          %p119 = pneg %p57
        $region14: #{net_small_forward.4} parent=11 // pred_check_branch
          %121 = sbr.rel (%p119) target = $region16
        $region15: #{net_small_forward.4} parent=11 // pred_region
          %s123 = ssub.s32 512, 512
          %124 = vsyncadd [#allocation4], %s123
          %s125 = sshll.u32 [#allocation3], 4
          %s126 = int_to_ptr.vmem [resolvable:$true] %s125
          %131 = dma.hbm_to_vmem [thread:$0]  %s1, 512, %s126, [#allocation4], 256, 256, 16
        $region16: #{net_small_forward.4} parent=11 // pred_fallthru
          _
        // Predicated region
        $region17: #{net_small_forward.4} parent=11 // pred_check
          %p132 = pneg %p78
        $region18: #{net_small_forward.4} parent=11 // pred_check_branch
          %134 = sbr.rel (%p132) target = $region20
        $region19: #{net_small_forward.4} parent=11 // pred_region
          _
        $region20: #{net_small_forward.4} parent=11 // pred_fallthru
          _
      $region12: #{net_small_forward.4} parent=5 // pred_fallthru
        _
      %p135 = scmp.lt.s32.totalorder %s10, 2
      // Predicated region
      $region21: #{net_small_forward.4} parent=5 // pred_check
        %p136 = pneg %p135
      $region22: #{net_small_forward.4} parent=5 // pred_check_branch
        %138 = sbr.rel (%p136) target = $region24
      $region23: #{net_small_forward.4} parent=5 // pred_region
        // Predicated region
        $region25: #{net_small_forward.4} parent=23 // pred_check
          %p139 = pneg %p30
        $region26: #{net_small_forward.4} parent=23 // pred_check_branch
          %141 = sbr.rel (%p139) target = $region28
        $region27: #{net_small_forward.4} parent=23 // pred_region
          %p142 = scmp.lt.s32.totalorder %s10, 1
          %s143 = scalar_select %p142, %s10, 1
          %s144 = smul.addr %s143, 8
          %s145 = smul.addr %s144, 8
          %s146 = scalar_lea.vmem %s0, %s145
        $region28: #{net_small_forward.4} parent=23 // pred_fallthru
          _
      $region24: #{net_small_forward.4} parent=5 // pred_fallthru
        _
      %p147 = scmp.le.s32.totalorder 1, %s10
      %p148 = scmp.lt.s32.totalorder %s10, 3
      %p149 = pnand %p147, %p148
      %p150 = pneg %p149
      // Predicated region
      $region29: #{net_small_forward.4} parent=5 // pred_check
        _
      $region30: #{net_small_forward.4} parent=5 // pred_check_branch
        %152 = sbr.rel (%p149) target = $region32
      $region31: #{net_small_forward.4} parent=5 // pred_region
        %s153 = ssub.s32 %s10, 1
        // Predicated region
        $region33: #{net_small_forward.4} parent=31 // pred_check
          %p154 = pneg %p57
        $region34: #{net_small_forward.4} parent=31 // pred_check_branch
          %156 = sbr.rel (%p154) target = $region36
        $region35: #{net_small_forward.4} parent=31 // pred_region
          %157 = dma.done [#allocation4], 512
        $region36: #{net_small_forward.4} parent=31 // pred_fallthru
          _
        %p158 = scmp.lt.s32.totalorder %s15, 1
        %s159 = scalar_select %p158, %s15, 1
        %s160 = smul.addr %s159, 8
        %s161 = smul.addr %s160, 8
        %s162 = scalar_lea.vmem %s0, %s161
        %p163 = pneg %p36
        %p164 = pneg %p33
        %p165 = pneg %p57
        %p166 = pneg %p54
        %p167 = pneg %p78
        %p168 = pneg %p75
        %p169 = pneg %p104
        %p170 = pneg %p101
        %p171 = scmp.lt.s32.totalorder %s15, 1
        %s172 = scalar_select %p171, %s15, 1
        %s173 = smul.addr %s172, 4
        %s174 = smul.addr %s173, 8
        %s175 = scalar_lea.vmem %s3, %s174
        %p176 = scmp.lt.s32.totalorder %s15, 1
        %s177 = scalar_select %p176, %s15, 1
        %s178 = smul.addr %s177, 8
        %s179 = smul.addr %s178, 8
        %s180 = scalar_lea.vmem %s0, %s179
        %p181 = scmp.lt.s32.totalorder %s15, 1
        %s182 = scalar_select %p181, %s15, 1
        %s183 = smul.addr %s182, 4
        %s184 = smul.addr %s183, 8
        %s185 = scalar_lea.vmem %s3, %s184
        %v186 = vld [vmem:[%s180] sm:$0x3f]
        %v187 = vld [vmem:[%s180 + $0x8] sm:$0x3f]
        %188 = vst [vmem:[#allocation2] sm:$0x3f] %v186
        %vm189 = vcmask 652288
        %190 = vst.msk [vmem:[#allocation2 + $0x8] sm:$0x3f] %vm189, %v187
        %s191 = scalar_lea.vmem %s180, 16
        %v192 = vld [vmem:[%s191] sm:$0x3f]
        %v193 = vld [vmem:[%s191 + $0x8] sm:$0x3f]
        %v196 = vrot.slane %v192, 2
        %v197 = vrot.slane %v193, 2
        %200 = vst [vmem:[#allocation2] sm:$0xc0] %v196
        %vm201 = vcmask 654342
        %202 = vst.msk [vmem:[#allocation2 + $0x8] sm:$0xc0] %vm201, %v197
        %203 = vst [vmem:[#allocation2 + $0x10] sm:$0xf] %v196
        %vm204 = vcmask 650240
        %205 = vst.msk [vmem:[#allocation2 + $0x18] sm:$0xf] %vm204, %v197
        %v206 = vld [vmem:[%s180] sm:$0x3f]
        %v207 = vld [vmem:[%s180 + $0x8] sm:$0x3f]
        %v210 = vrot.slane %v206, 4
        %v211 = vrot.slane %v207, 4
        %212 = vrot.lane.b32.xlu0 %v210, 127
        %v213 = vpop.permute.xlu0 %212
        %214 = vrot.lane.b32.xlu0 %v211, 127
        %v215 = vpop.permute.xlu0 %214
        %vm216 = vcmask 1039360
        %v217 = vsel %vm216, %v213, %v215
        %220 = vst [vmem:[#allocation2 + $0x10] sm:$0xf0] %v217
        %vm221 = vcmask 654340
        %222 = vst.msk [vmem:[#allocation2 + $0x18] sm:$0xf0] %vm221, %v215
        %223 = vst [vmem:[#allocation2 + $0x20] sm:$0x3] %v217
        %vm224 = vcmask 648192
        %225 = vst.msk [vmem:[#allocation2 + $0x28] sm:$0x3] %vm224, %v215
        %v226 = vld [vmem:[%s191] sm:$0x3f]
        %v227 = vld [vmem:[%s191 + $0x8] sm:$0x3f]
        %v230 = vrot.slane %v226, 6
        %v231 = vrot.slane %v227, 6
        %232 = vrot.lane.b32.xlu0 %v230, 127
        %v233 = vpop.permute.xlu0 %232
        %234 = vrot.lane.b32.xlu0 %v231, 127
        %v235 = vpop.permute.xlu0 %234
        %v236 = vsel %vm216, %v233, %v235
        %239 = vst [vmem:[#allocation2 + $0x20] sm:$0xfc] %v236
        %vm240 = vcmask 654338
        %241 = vst.msk [vmem:[#allocation2 + $0x28] sm:$0xfc] %vm240, %v235
        %v242 = vld [vmem:[%s180] sm:$0x3f]
        %v243 = vld [vmem:[%s180 + $0x8] sm:$0x3f]
        %246 = vrot.lane.b32.xlu0 %v242, 126
        %v247 = vpop.permute.xlu0 %246
        %248 = vrot.lane.b32.xlu0 %v243, 126
        %v249 = vpop.permute.xlu0 %248
        %vm250 = vcmask 1031168
        %v251 = vsel %vm250, %v247, %v249
        %254 = vst [vmem:[#allocation2 + $0x30] sm:$0x3f] %v251
        %255 = vst.msk [vmem:[#allocation2 + $0x38] sm:$0x3f] %vm189, %v249
        %v256 = vld [vmem:[%s191] sm:$0x3f]
        %v257 = vld [vmem:[%s191 + $0x8] sm:$0x3f]
        %v260 = vrot.slane %v256, 2
        %v261 = vrot.slane %v257, 2
        %262 = vrot.lane.b32.xlu0 %v260, 126
        %v263 = vpop.permute.xlu0 %262
        %264 = vrot.lane.b32.xlu0 %v261, 126
        %v265 = vpop.permute.xlu0 %264
        %v266 = vsel %vm250, %v263, %v265
        %269 = vst [vmem:[#allocation2 + $0x30] sm:$0xc0] %v266
        %270 = vst.msk [vmem:[#allocation2 + $0x38] sm:$0xc0] %vm201, %v265
        %271 = vst [vmem:[#allocation2 + $0x40] sm:$0xf] %v266
        %272 = vst.msk [vmem:[#allocation2 + $0x48] sm:$0xf] %vm204, %v265
        %s273 = scalar_lea.vmem %s180, 32
        %v274 = vld [vmem:[%s273] sm:$0x3f]
        %v275 = vld [vmem:[%s273 + $0x8] sm:$0x3f]
        %v278 = vrot.slane %v274, 4
        %v279 = vrot.slane %v275, 4
        %282 = vst [vmem:[#allocation2 + $0x40] sm:$0xf0] %v278
        %283 = vst.msk [vmem:[#allocation2 + $0x48] sm:$0xf0] %vm221, %v279
        %284 = vst [vmem:[#allocation2 + $0x50] sm:$0x3] %v278
        %285 = vst.msk [vmem:[#allocation2 + $0x58] sm:$0x3] %vm224, %v279
        %s286 = scalar_lea.vmem %s180, 48
        %v287 = vld [vmem:[%s286] sm:$0x3f]
        %v288 = vld [vmem:[%s286 + $0x8] sm:$0x3f]
        %v291 = vrot.slane %v287, 6
        %v292 = vrot.slane %v288, 6
        %295 = vst [vmem:[#allocation2 + $0x50] sm:$0xfc] %v291
        %296 = vst.msk [vmem:[#allocation2 + $0x58] sm:$0xfc] %vm240, %v292
        %v297 = vld [vmem:[%s273] sm:$0x3f]
        %v298 = vld [vmem:[%s273 + $0x8] sm:$0x3f]
        %301 = vrot.lane.b32.xlu0 %v297, 127
        %v302 = vpop.permute.xlu0 %301
        %303 = vrot.lane.b32.xlu0 %v298, 127
        %v304 = vpop.permute.xlu0 %303
        %v305 = vsel %vm216, %v302, %v304
        %308 = vst [vmem:[#allocation2 + $0x60] sm:$0x3f] %v305
        %309 = vst.msk [vmem:[#allocation2 + $0x68] sm:$0x3f] %vm189, %v304
        %v310 = vld [vmem:[%s286] sm:$0x3f]
        %v311 = vld [vmem:[%s286 + $0x8] sm:$0x3f]
        %v314 = vrot.slane %v310, 2
        %v315 = vrot.slane %v311, 2
        %316 = vrot.lane.b32.xlu0 %v314, 127
        %v317 = vpop.permute.xlu0 %316
        %318 = vrot.lane.b32.xlu0 %v315, 127
        %v319 = vpop.permute.xlu0 %318
        %v320 = vsel %vm216, %v317, %v319
        %323 = vst [vmem:[#allocation2 + $0x60] sm:$0xc0] %v320
        %324 = vst.msk [vmem:[#allocation2 + $0x68] sm:$0xc0] %vm201, %v319
        %325 = vst [vmem:[#allocation2 + $0x70] sm:$0xf] %v320
        %326 = vst.msk [vmem:[#allocation2 + $0x78] sm:$0xf] %vm204, %v319
        %v327 = vld [vmem:[%s273] sm:$0x3f]
        %v328 = vld [vmem:[%s273 + $0x8] sm:$0x3f]
        %v331 = vrot.slane %v327, 4
        %v332 = vrot.slane %v328, 4
        %333 = vrot.lane.b32.xlu0 %v331, 126
        %v334 = vpop.permute.xlu0 %333
        %335 = vrot.lane.b32.xlu0 %v332, 126
        %v336 = vpop.permute.xlu0 %335
        %v337 = vsel %vm250, %v334, %v336
        %340 = vst [vmem:[#allocation2 + $0x70] sm:$0xf0] %v337
        %341 = vst.msk [vmem:[#allocation2 + $0x78] sm:$0xf0] %vm221, %v336
        %342 = vst [vmem:[#allocation2 + $0x80] sm:$0x3] %v337
        %343 = vst.msk [vmem:[#allocation2 + $0x88] sm:$0x3] %vm224, %v336
        %v344 = vld [vmem:[%s286] sm:$0x3f]
        %v345 = vld [vmem:[%s286 + $0x8] sm:$0x3f]
        %v348 = vrot.slane %v344, 6
        %v349 = vrot.slane %v345, 6
        %350 = vrot.lane.b32.xlu0 %v348, 126
        %v351 = vpop.permute.xlu0 %350
        %352 = vrot.lane.b32.xlu0 %v349, 126
        %v353 = vpop.permute.xlu0 %352
        %v354 = vsel %vm250, %v351, %v353
        %357 = vst [vmem:[#allocation2 + $0x80] sm:$0xfc] %v354
        %358 = vst.msk [vmem:[#allocation2 + $0x88] sm:$0xfc] %vm240, %v353
        %v359 = vld [vmem:[%s180] sm:$0x3f]
        %v360 = vld [vmem:[%s180 + $0x8] sm:$0x3f]
        %363 = vrot.lane.b32.xlu0 %v359, 112
        %v364 = vpop.permute.xlu0 %363
        %365 = vrot.lane.b32.xlu0 %v360, 112
        %v366 = vpop.permute.xlu0 %365
        %vm367 = vcmask 916480
        %v368 = vsel %vm367, %v364, %v366
        %371 = vst [vmem:[#allocation2 + $0x90] sm:$0x3f] %v368
        %372 = vst.msk [vmem:[#allocation2 + $0x98] sm:$0x3f] %vm189, %v366
        %v373 = vld [vmem:[%s191] sm:$0x3f]
        %v374 = vld [vmem:[%s191 + $0x8] sm:$0x3f]
        %v377 = vrot.slane %v373, 2
        %v378 = vrot.slane %v374, 2
        %379 = vrot.lane.b32.xlu0 %v377, 112
        %v380 = vpop.permute.xlu0 %379
        %381 = vrot.lane.b32.xlu0 %v378, 112
        %v382 = vpop.permute.xlu0 %381
        %v383 = vsel %vm367, %v380, %v382
        %386 = vst [vmem:[#allocation2 + $0x90] sm:$0xc0] %v383
        %387 = vst.msk [vmem:[#allocation2 + $0x98] sm:$0xc0] %vm201, %v382
        %388 = vst [vmem:[#allocation2 + $0xa0] sm:$0xf] %v383
        %389 = vst.msk [vmem:[#allocation2 + $0xa8] sm:$0xf] %vm204, %v382
        %v390 = vld [vmem:[%s180] sm:$0x3f]
        %v391 = vld [vmem:[%s180 + $0x8] sm:$0x3f]
        %v394 = vrot.slane %v390, 4
        %v395 = vrot.slane %v391, 4
        %396 = vrot.lane.b32.xlu0 %v394, 111
        %v397 = vpop.permute.xlu0 %396
        %398 = vrot.lane.b32.xlu0 %v395, 111
        %v399 = vpop.permute.xlu0 %398
        %vm400 = vcmask 908288
        %v401 = vsel %vm400, %v397, %v399
        %404 = vst [vmem:[#allocation2 + $0xa0] sm:$0xf0] %v401
        %405 = vst.msk [vmem:[#allocation2 + $0xa8] sm:$0xf0] %vm221, %v399
        %406 = vst [vmem:[#allocation2 + $0xb0] sm:$0x3] %v401
        %407 = vst.msk [vmem:[#allocation2 + $0xb8] sm:$0x3] %vm224, %v399
        %v408 = vld [vmem:[%s191] sm:$0x3f]
        %v409 = vld [vmem:[%s191 + $0x8] sm:$0x3f]
        %v412 = vrot.slane %v408, 6
        %v413 = vrot.slane %v409, 6
        %414 = vrot.lane.b32.xlu0 %v412, 111
        %v415 = vpop.permute.xlu0 %414
        %416 = vrot.lane.b32.xlu0 %v413, 111
        %v417 = vpop.permute.xlu0 %416
        %v418 = vsel %vm400, %v415, %v417
        %421 = vst [vmem:[#allocation2 + $0xb0] sm:$0xfc] %v418
        %422 = vst.msk [vmem:[#allocation2 + $0xb8] sm:$0xfc] %vm240, %v417
        %v423 = vld [vmem:[%s180] sm:$0x3f]
        %v424 = vld [vmem:[%s180 + $0x8] sm:$0x3f]
        %427 = vrot.lane.b32.xlu0 %v423, 110
        %v428 = vpop.permute.xlu0 %427
        %429 = vrot.lane.b32.xlu0 %v424, 110
        %v430 = vpop.permute.xlu0 %429
        %vm431 = vcmask 900096
        %v432 = vsel %vm431, %v428, %v430
        %435 = vst [vmem:[#allocation2 + $0xc0] sm:$0x3f] %v432
        %436 = vst.msk [vmem:[#allocation2 + $0xc8] sm:$0x3f] %vm189, %v430
        %v437 = vld [vmem:[%s191] sm:$0x3f]
        %v438 = vld [vmem:[%s191 + $0x8] sm:$0x3f]
        %v441 = vrot.slane %v437, 2
        %v442 = vrot.slane %v438, 2
        %443 = vrot.lane.b32.xlu0 %v441, 110
        %v444 = vpop.permute.xlu0 %443
        %445 = vrot.lane.b32.xlu0 %v442, 110
        %v446 = vpop.permute.xlu0 %445
        %v447 = vsel %vm431, %v444, %v446
        %450 = vst [vmem:[#allocation2 + $0xc0] sm:$0xc0] %v447
        %451 = vst.msk [vmem:[#allocation2 + $0xc8] sm:$0xc0] %vm201, %v446
        %452 = vst [vmem:[#allocation2 + $0xd0] sm:$0xf] %v447
        %453 = vst.msk [vmem:[#allocation2 + $0xd8] sm:$0xf] %vm204, %v446
        %v454 = vld [vmem:[%s273] sm:$0x3f]
        %v455 = vld [vmem:[%s273 + $0x8] sm:$0x3f]
        %v458 = vrot.slane %v454, 4
        %v459 = vrot.slane %v455, 4
        %460 = vrot.lane.b32.xlu0 %v458, 112
        %v461 = vpop.permute.xlu0 %460
        %462 = vrot.lane.b32.xlu0 %v459, 112
        %v463 = vpop.permute.xlu0 %462
        %v464 = vsel %vm367, %v461, %v463
        %467 = vst [vmem:[#allocation2 + $0xd0] sm:$0xf0] %v464
        %468 = vst.msk [vmem:[#allocation2 + $0xd8] sm:$0xf0] %vm221, %v463
        %469 = vst [vmem:[#allocation2 + $0xe0] sm:$0x3] %v464
        %470 = vst.msk [vmem:[#allocation2 + $0xe8] sm:$0x3] %vm224, %v463
        %v471 = vld [vmem:[%s286] sm:$0x3f]
        %v472 = vld [vmem:[%s286 + $0x8] sm:$0x3f]
        %v475 = vrot.slane %v471, 6
        %v476 = vrot.slane %v472, 6
        %477 = vrot.lane.b32.xlu0 %v475, 112
        %v478 = vpop.permute.xlu0 %477
        %479 = vrot.lane.b32.xlu0 %v476, 112
        %v480 = vpop.permute.xlu0 %479
        %v481 = vsel %vm367, %v478, %v480
        %484 = vst [vmem:[#allocation2 + $0xe0] sm:$0xfc] %v481
        %485 = vst.msk [vmem:[#allocation2 + $0xe8] sm:$0xfc] %vm240, %v480
        %v486 = vld [vmem:[%s273] sm:$0x3f]
        %v487 = vld [vmem:[%s273 + $0x8] sm:$0x3f]
        %490 = vrot.lane.b32.xlu0 %v486, 111
        %v491 = vpop.permute.xlu0 %490
        %492 = vrot.lane.b32.xlu0 %v487, 111
        %v493 = vpop.permute.xlu0 %492
        %v494 = vsel %vm400, %v491, %v493
        %497 = vst [vmem:[#allocation2 + $0xf0] sm:$0x3f] %v494
        %498 = vst.msk [vmem:[#allocation2 + $0xf8] sm:$0x3f] %vm189, %v493
        %v499 = vld [vmem:[%s286] sm:$0x3f]
        %v500 = vld [vmem:[%s286 + $0x8] sm:$0x3f]
        %v503 = vrot.slane %v499, 2
        %v504 = vrot.slane %v500, 2
        %505 = vrot.lane.b32.xlu0 %v503, 111
        %v506 = vpop.permute.xlu0 %505
        %507 = vrot.lane.b32.xlu0 %v504, 111
        %v508 = vpop.permute.xlu0 %507
        %v509 = vsel %vm400, %v506, %v508
        %512 = vst [vmem:[#allocation2 + $0xf0] sm:$0xc0] %v509
        %513 = vst.msk [vmem:[#allocation2 + $0xf8] sm:$0xc0] %vm201, %v508
        %514 = vst [vmem:[#allocation2 + $0x100] sm:$0xf] %v509
        %515 = vst.msk [vmem:[#allocation2 + $0x108] sm:$0xf] %vm204, %v508
        %v516 = vld [vmem:[%s273] sm:$0x3f]
        %v517 = vld [vmem:[%s273 + $0x8] sm:$0x3f]
        %v520 = vrot.slane %v516, 4
        %v521 = vrot.slane %v517, 4
        %522 = vrot.lane.b32.xlu0 %v520, 110
        %v523 = vpop.permute.xlu0 %522
        %524 = vrot.lane.b32.xlu0 %v521, 110
        %v525 = vpop.permute.xlu0 %524
        %v526 = vsel %vm431, %v523, %v525
        %529 = vst [vmem:[#allocation2 + $0x100] sm:$0xf0] %v526
        %530 = vst.msk [vmem:[#allocation2 + $0x108] sm:$0xf0] %vm221, %v525
        %531 = vst [vmem:[#allocation2 + $0x110] sm:$0x3] %v526
        %532 = vst.msk [vmem:[#allocation2 + $0x118] sm:$0x3] %vm224, %v525
        %v533 = vld [vmem:[%s286] sm:$0x3f]
        %v534 = vld [vmem:[%s286 + $0x8] sm:$0x3f]
        %v537 = vrot.slane %v533, 6
        %v538 = vrot.slane %v534, 6
        %539 = vrot.lane.b32.xlu0 %v537, 110
        %v540 = vpop.permute.xlu0 %539
        %541 = vrot.lane.b32.xlu0 %v538, 110
        %v542 = vpop.permute.xlu0 %541
        %v543 = vsel %vm431, %v540, %v542
        %546 = vst [vmem:[#allocation2 + $0x110] sm:$0xfc] %v543
        %547 = vst.msk [vmem:[#allocation2 + $0x118] sm:$0xfc] %vm240, %v542
        %v548 = vld [vmem:[%s180] sm:$0x3f]
        %v549 = vld [vmem:[%s180 + $0x8] sm:$0x3f]
        %552 = vrot.lane.b32.xlu0 %v548, 96
        %v553 = vpop.permute.xlu0 %552
        %554 = vrot.lane.b32.xlu0 %v549, 96
        %v555 = vpop.permute.xlu0 %554
        %vm556 = vcmask 785408
        %v557 = vsel %vm556, %v553, %v555
        %560 = vst [vmem:[#allocation2 + $0x120] sm:$0x3f] %v557
        %561 = vst.msk [vmem:[#allocation2 + $0x128] sm:$0x3f] %vm189, %v555
        %v562 = vld [vmem:[%s191] sm:$0x3f]
        %v563 = vld [vmem:[%s191 + $0x8] sm:$0x3f]
        %v566 = vrot.slane %v562, 2
        %v567 = vrot.slane %v563, 2
        %568 = vrot.lane.b32.xlu0 %v566, 96
        %v569 = vpop.permute.xlu0 %568
        %570 = vrot.lane.b32.xlu0 %v567, 96
        %v571 = vpop.permute.xlu0 %570
        %v572 = vsel %vm556, %v569, %v571
        %575 = vst [vmem:[#allocation2 + $0x120] sm:$0xc0] %v572
        %576 = vst.msk [vmem:[#allocation2 + $0x128] sm:$0xc0] %vm201, %v571
        %577 = vst [vmem:[#allocation2 + $0x130] sm:$0xf] %v572
        %578 = vst.msk [vmem:[#allocation2 + $0x138] sm:$0xf] %vm204, %v571
        %v579 = vld [vmem:[%s180] sm:$0x3f]
        %v580 = vld [vmem:[%s180 + $0x8] sm:$0x3f]
        %v583 = vrot.slane %v579, 4
        %v584 = vrot.slane %v580, 4
        %585 = vrot.lane.b32.xlu0 %v583, 95
        %v586 = vpop.permute.xlu0 %585
        %587 = vrot.lane.b32.xlu0 %v584, 95
        %v588 = vpop.permute.xlu0 %587
        %vm589 = vcmask 777216
        %v590 = vsel %vm589, %v586, %v588
        %593 = vst [vmem:[#allocation2 + $0x130] sm:$0xf0] %v590
        %594 = vst.msk [vmem:[#allocation2 + $0x138] sm:$0xf0] %vm221, %v588
        %595 = vst [vmem:[#allocation2 + $0x140] sm:$0x3] %v590
        %596 = vst.msk [vmem:[#allocation2 + $0x148] sm:$0x3] %vm224, %v588
        %v597 = vld [vmem:[%s191] sm:$0x3f]
        %v598 = vld [vmem:[%s191 + $0x8] sm:$0x3f]
        %v601 = vrot.slane %v597, 6
        %v602 = vrot.slane %v598, 6
        %603 = vrot.lane.b32.xlu0 %v601, 95
        %v604 = vpop.permute.xlu0 %603
        %605 = vrot.lane.b32.xlu0 %v602, 95
        %v606 = vpop.permute.xlu0 %605
        %v607 = vsel %vm589, %v604, %v606
        %610 = vst [vmem:[#allocation2 + $0x140] sm:$0xfc] %v607
        %611 = vst.msk [vmem:[#allocation2 + $0x148] sm:$0xfc] %vm240, %v606
        %v612 = vld [vmem:[%s180] sm:$0x3f]
        %v613 = vld [vmem:[%s180 + $0x8] sm:$0x3f]
        %616 = vrot.lane.b32.xlu0 %v612, 94
        %v617 = vpop.permute.xlu0 %616
        %618 = vrot.lane.b32.xlu0 %v613, 94
        %v619 = vpop.permute.xlu0 %618
        %vm620 = vcmask 769024
        %v621 = vsel %vm620, %v617, %v619
        %624 = vst [vmem:[#allocation2 + $0x150] sm:$0x3f] %v621
        %625 = vst.msk [vmem:[#allocation2 + $0x158] sm:$0x3f] %vm189, %v619
        %v626 = vld [vmem:[%s191] sm:$0x3f]
        %v627 = vld [vmem:[%s191 + $0x8] sm:$0x3f]
        %v630 = vrot.slane %v626, 2
        %v631 = vrot.slane %v627, 2
        %632 = vrot.lane.b32.xlu0 %v630, 94
        %v633 = vpop.permute.xlu0 %632
        %634 = vrot.lane.b32.xlu0 %v631, 94
        %v635 = vpop.permute.xlu0 %634
        %v636 = vsel %vm620, %v633, %v635
        %639 = vst [vmem:[#allocation2 + $0x150] sm:$0xc0] %v636
        %640 = vst.msk [vmem:[#allocation2 + $0x158] sm:$0xc0] %vm201, %v635
        %641 = vst [vmem:[#allocation2 + $0x160] sm:$0xf] %v636
        %642 = vst.msk [vmem:[#allocation2 + $0x168] sm:$0xf] %vm204, %v635
        %v643 = vld [vmem:[%s273] sm:$0x3f]
        %v644 = vld [vmem:[%s273 + $0x8] sm:$0x3f]
        %v647 = vrot.slane %v643, 4
        %v648 = vrot.slane %v644, 4
        %649 = vrot.lane.b32.xlu0 %v647, 96
        %v650 = vpop.permute.xlu0 %649
        %651 = vrot.lane.b32.xlu0 %v648, 96
        %v652 = vpop.permute.xlu0 %651
        %v653 = vsel %vm556, %v650, %v652
        %656 = vst [vmem:[#allocation2 + $0x160] sm:$0xf0] %v653
        %657 = vst.msk [vmem:[#allocation2 + $0x168] sm:$0xf0] %vm221, %v652
        %658 = vst [vmem:[#allocation2 + $0x170] sm:$0x3] %v653
        %659 = vst.msk [vmem:[#allocation2 + $0x178] sm:$0x3] %vm224, %v652
        %v660 = vld [vmem:[%s286] sm:$0x3f]
        %v661 = vld [vmem:[%s286 + $0x8] sm:$0x3f]
        %v664 = vrot.slane %v660, 6
        %v665 = vrot.slane %v661, 6
        %666 = vrot.lane.b32.xlu0 %v664, 96
        %v667 = vpop.permute.xlu0 %666
        %668 = vrot.lane.b32.xlu0 %v665, 96
        %v669 = vpop.permute.xlu0 %668
        %v670 = vsel %vm556, %v667, %v669
        %673 = vst [vmem:[#allocation2 + $0x170] sm:$0xfc] %v670
        %674 = vst.msk [vmem:[#allocation2 + $0x178] sm:$0xfc] %vm240, %v669
        %v675 = vld [vmem:[%s273] sm:$0x3f]
        %v676 = vld [vmem:[%s273 + $0x8] sm:$0x3f]
        %679 = vrot.lane.b32.xlu0 %v675, 95
        %v680 = vpop.permute.xlu0 %679
        %681 = vrot.lane.b32.xlu0 %v676, 95
        %v682 = vpop.permute.xlu0 %681
        %v683 = vsel %vm589, %v680, %v682
        %686 = vst [vmem:[#allocation2 + $0x180] sm:$0x3f] %v683
        %687 = vst.msk [vmem:[#allocation2 + $0x188] sm:$0x3f] %vm189, %v682
        %v688 = vld [vmem:[%s286] sm:$0x3f]
        %v689 = vld [vmem:[%s286 + $0x8] sm:$0x3f]
        %v692 = vrot.slane %v688, 2
        %v693 = vrot.slane %v689, 2
        %694 = vrot.lane.b32.xlu0 %v692, 95
        %v695 = vpop.permute.xlu0 %694
        %696 = vrot.lane.b32.xlu0 %v693, 95
        %v697 = vpop.permute.xlu0 %696
        %v698 = vsel %vm589, %v695, %v697
        %701 = vst [vmem:[#allocation2 + $0x180] sm:$0xc0] %v698
        %702 = vst.msk [vmem:[#allocation2 + $0x188] sm:$0xc0] %vm201, %v697
        %703 = vst [vmem:[#allocation2 + $0x190] sm:$0xf] %v698
        %704 = vst.msk [vmem:[#allocation2 + $0x198] sm:$0xf] %vm204, %v697
        %v705 = vld [vmem:[%s273] sm:$0x3f]
        %v706 = vld [vmem:[%s273 + $0x8] sm:$0x3f]
        %v709 = vrot.slane %v705, 4
        %v710 = vrot.slane %v706, 4
        %711 = vrot.lane.b32.xlu0 %v709, 94
        %v712 = vpop.permute.xlu0 %711
        %713 = vrot.lane.b32.xlu0 %v710, 94
        %v714 = vpop.permute.xlu0 %713
        %v715 = vsel %vm620, %v712, %v714
        %718 = vst [vmem:[#allocation2 + $0x190] sm:$0xf0] %v715
        %719 = vst.msk [vmem:[#allocation2 + $0x198] sm:$0xf0] %vm221, %v714
        %720 = vst [vmem:[#allocation2 + $0x1a0] sm:$0x3] %v715
        %721 = vst.msk [vmem:[#allocation2 + $0x1a8] sm:$0x3] %vm224, %v714
        %v722 = vld [vmem:[%s286] sm:$0x3f]
        %v723 = vld [vmem:[%s286 + $0x8] sm:$0x3f]
        %v726 = vrot.slane %v722, 6
        %v727 = vrot.slane %v723, 6
        %728 = vrot.lane.b32.xlu0 %v726, 94
        %v729 = vpop.permute.xlu0 %728
        %730 = vrot.lane.b32.xlu0 %v727, 94
        %v731 = vpop.permute.xlu0 %730
        %v732 = vsel %vm620, %v729, %v731
        %735 = vst [vmem:[#allocation2 + $0x1a0] sm:$0xfc] %v732
        %736 = vst.msk [vmem:[#allocation2 + $0x1a8] sm:$0xfc] %vm240, %v731
        %v737 = vld [vmem:[#allocation3] sm:$0xff]
        %v738 = vld [vmem:[#allocation3 + $0x8] sm:$0xff]
        %v739 = vld [vmem:[#allocation3 + $0x10] sm:$0xff]
        %v740 = vld [vmem:[#allocation3 + $0x18] sm:$0xff]
        %v741 = vld [vmem:[#allocation2] sm:$0xff]
        %v742 = vld [vmem:[#allocation2 + $0x8] sm:$0xff]
        %v743 = vld [vmem:[#allocation2 + $0x10] sm:$0xff]
        %v744 = vld [vmem:[#allocation2 + $0x18] sm:$0xff]
        %v745 = vld [vmem:[#allocation2 + $0x20] sm:$0xff]
        %v746 = vld [vmem:[#allocation2 + $0x28] sm:$0xff]
        %v747 = vld [vmem:[#allocation2 + $0x30] sm:$0x3f]
        %v748 = vld [vmem:[#allocation2 + $0x38] sm:$0x3f]
        %v749 = vld [vmem:[#allocation2 + $0x40] sm:$0xf0]
        %v750 = vld [vmem:[#allocation2 + $0x48] sm:$0xf0]
        %v751 = vld [vmem:[#allocation2 + $0x50] sm:$0xff]
        %v752 = vld [vmem:[#allocation2 + $0x58] sm:$0xff]
        %v753 = vld [vmem:[#allocation2 + $0x60] sm:$0xff]
        %v754 = vld [vmem:[#allocation2 + $0x68] sm:$0xff]
        %v755 = vld [vmem:[#allocation2 + $0x70] sm:$0xff]
        %v756 = vld [vmem:[#allocation2 + $0x78] sm:$0xff]
        %v757 = vld [vmem:[#allocation2 + $0x80] sm:$0x3]
        %v758 = vld [vmem:[#allocation2 + $0x88] sm:$0x3]
        %v759 = vld [vmem:[#allocation2 + $0x90] sm:$0xff]
        %v760 = vld [vmem:[#allocation2 + $0x98] sm:$0xff]
        %v761 = vld [vmem:[#allocation2 + $0xa0] sm:$0xff]
        %v762 = vld [vmem:[#allocation2 + $0xa8] sm:$0xff]
        %v763 = vld [vmem:[#allocation2 + $0xb0] sm:$0xff]
        %v764 = vld [vmem:[#allocation2 + $0xb8] sm:$0xff]
        %v765 = vld [vmem:[#allocation2 + $0xc0] sm:$0x3f]
        %v766 = vld [vmem:[#allocation2 + $0xc8] sm:$0x3f]
        %v767 = vld [vmem:[#allocation2 + $0xd0] sm:$0xf0]
        %v768 = vld [vmem:[#allocation2 + $0xd8] sm:$0xf0]
        %v769 = vld [vmem:[#allocation2 + $0xe0] sm:$0xff]
        %v770 = vld [vmem:[#allocation2 + $0xe8] sm:$0xff]
        %v771 = vld [vmem:[#allocation2 + $0xf0] sm:$0xff]
        %v772 = vld [vmem:[#allocation2 + $0xf8] sm:$0xff]
        %v773 = vld [vmem:[#allocation2 + $0x100] sm:$0xff]
        %v774 = vld [vmem:[#allocation2 + $0x108] sm:$0xff]
        %v775 = vld [vmem:[#allocation2 + $0x110] sm:$0x3]
        %v776 = vld [vmem:[#allocation2 + $0x118] sm:$0x3]
        %v777 = vld [vmem:[#allocation2 + $0x120] sm:$0xff]
        %v778 = vld [vmem:[#allocation2 + $0x128] sm:$0xff]
        %v779 = vld [vmem:[#allocation2 + $0x130] sm:$0xff]
        %v780 = vld [vmem:[#allocation2 + $0x138] sm:$0xff]
        %v781 = vld [vmem:[#allocation2 + $0x140] sm:$0xff]
        %v782 = vld [vmem:[#allocation2 + $0x148] sm:$0xff]
        %v783 = vld [vmem:[#allocation2 + $0x150] sm:$0x3f]
        %v784 = vld [vmem:[#allocation2 + $0x158] sm:$0x3f]
        %vm795 = vcmask 1041408
        %v796 = vrot.slane %v749, 6
        %v797 = vrot.slane %v750, 6
        %v798 = vrot.slane %v751, 6
        %v799 = vsel %vm795, %v796, %v798
        %v800 = vrot.slane %v752, 6
        %v801 = vsel %vm795, %v797, %v800
        %v802 = vrot.slane %v753, 6
        %v803 = vsel %vm795, %v798, %v802
        %v804 = vrot.slane %v754, 6
        %v805 = vsel %vm795, %v800, %v804
        %v806 = vrot.slane %v755, 6
        %v807 = vsel %vm795, %v802, %v806
        %v808 = vrot.slane %v756, 6
        %v809 = vsel %vm795, %v804, %v808
        %v810 = vrot.slane %v757, 6
        %v811 = vsel %vm795, %v806, %v810
        %v812 = vrot.slane %v758, 6
        %v813 = vsel %vm795, %v808, %v812
        %vm832 = vcmask 1043456
        %v833 = vrot.slane %v759, 4
        %v834 = vrot.slane %v760, 4
        %v835 = vrot.slane %v761, 4
        %v836 = vsel %vm832, %v833, %v835
        %v837 = vrot.slane %v762, 4
        %v838 = vsel %vm832, %v834, %v837
        %v839 = vrot.slane %v763, 4
        %v840 = vsel %vm832, %v835, %v839
        %v841 = vrot.slane %v764, 4
        %v842 = vsel %vm832, %v837, %v841
        %v843 = vrot.slane %v765, 4
        %v844 = vsel %vm832, %v839, %v843
        %v845 = vrot.slane %v766, 4
        %v846 = vsel %vm832, %v841, %v845
        %vm867 = vcmask 1045504
        %v868 = vrot.slane %v767, 2
        %v869 = vrot.slane %v769, 2
        %v870 = vsel %vm867, %v868, %v869
        %v871 = vrot.slane %v768, 2
        %v872 = vrot.slane %v770, 2
        %v873 = vsel %vm867, %v871, %v872
        %v874 = vrot.slane %v771, 2
        %v875 = vsel %vm867, %v869, %v874
        %v876 = vrot.slane %v772, 2
        %v877 = vsel %vm867, %v872, %v876
        %v878 = vrot.slane %v773, 2
        %v879 = vsel %vm867, %v874, %v878
        %v880 = vrot.slane %v774, 2
        %v881 = vsel %vm867, %v876, %v880
        %v882 = vrot.slane %v775, 2
        %v883 = vsel %vm867, %v878, %v882
        %v884 = vrot.slane %v776, 2
        %v885 = vsel %vm867, %v880, %v884
        %v894 = vsel %vm867, %v747, %v796
        %v895 = vsel %vm867, %v748, %v797
        %v896 = vsel %vm832, %v811, %v833
        %v897 = vsel %vm832, %v813, %v834
        %v898 = vsel %vm795, %v843, %v870
        %v899 = vsel %vm795, %v845, %v873
        %vm900 = vcmask 179200
        %v902 = vsel %vm900, %v738, 0
        %v905 = vsel %vm900, %v740, 0
        %v908 = vsel %vm867, %v783, 0
        %v911 = vsel %vm867, %v784, 0
        %913 = vmatprep.subr.mxu0 %v778
        %914 = vmatpush1.msra.mxu0 %v777
        %915 = vmatprep.subr.mxu0 %v885
        %916 = vmatpush1.msra.mxu0 %v883
        %917 = vmatprep.subr.mxu0 %v881
        %918 = vmatpush1.msra.mxu0 %v879
        %919 = vmatprep.subr.mxu0 %v877
        %920 = vmatpush1.msra.mxu0 %v875
        %921 = vmatprep.subr.mxu0 %v899
        %922 = vmatpush1.msra.mxu0 %v898
        %923 = vmatprep.subr.mxu0 %v846
        %924 = vmatpush1.msra.mxu0 %v844
        %925 = vmatprep.subr.mxu0 %v842
        %926 = vmatpush1.msra.mxu0 %v840
        %927 = vmatprep.subr.mxu0 %v838
        %928 = vmatpush1.msra.mxu0 %v836
        %929 = vmatprep.subr.mxu0 %v897
        %930 = vmatpush1.msra.mxu0 %v896
        %931 = vmatprep.subr.mxu0 %v809
        %932 = vmatpush1.msra.mxu0 %v807
        %933 = vmatprep.subr.mxu0 %v805
        %934 = vmatpush1.msra.mxu0 %v803
        %935 = vmatprep.subr.mxu0 %v801
        %936 = vmatpush1.msra.mxu0 %v799
        %937 = vmatprep.subr.mxu0 %v895
        %938 = vmatpush1.msra.mxu0 %v894
        %939 = vmatprep.subr.mxu0 %v746
        %940 = vmatpush1.msra.mxu0 %v745
        %941 = vmatprep.subr.mxu0 %v744
        %942 = vmatpush1.msra.mxu0 %v743
        %943 = vmatprep.subr.mxu0 %v742
        %944 = vmatpush1.msra.mxu0 %v741
        %945 = vmatprep.subr.mxu0 0.0
        %946 = vmatpush2.msra.mxu0 0.0
        %947 = vmatprep.subr.mxu0 0.0
        %948 = vmatpush2.msra.mxu0 0.0
        %949 = vmatprep.subr.mxu0 0.0
        %950 = vmatpush2.msra.mxu0 0.0
        %951 = vmatprep.subr.mxu0 0.0
        %952 = vmatpush2.msra.mxu0 0.0
        %953 = vmatprep.subr.mxu0 0.0
        %954 = vmatpush2.msra.mxu0 0.0
        %955 = vmatprep.subr.mxu0 0.0
        %956 = vmatpush2.msra.mxu0 0.0
        %957 = vmatprep.subr.mxu0 0.0
        %958 = vmatpush2.msra.mxu0 0.0
        %959 = vmatprep.subr.mxu0 0.0
        %960 = vmatpush2.msra.mxu0 0.0
        %961 = vmatprep.subr.mxu0 0.0
        %962 = vmatpush2.msra.mxu0 0.0
        %963 = vmatprep.subr.mxu0 0.0
        %964 = vmatpush2.msra.mxu0 0.0
        %965 = vmatprep.subr.mxu0 0.0
        %966 = vmatpush2.msra.mxu0 0.0
        %967 = vmatprep.subr.mxu0 0.0
        %968 = vmatpush2.msra.mxu0 0.0
        %969 = vmatprep.subr.mxu0 0.0
        %970 = vmatpush2.msra.mxu0 0.0
        %971 = vmatprep.subr.mxu0 %v911
        %972 = vmatpush2.msra.mxu0 %v908
        %973 = vmatprep.subr.mxu0 %v782
        %974 = vmatpush2.msra.mxu0 %v781
        %975 = vmatprep.subr.mxu0 %v780
        %976 = vmatpush2.msra.mxu0 %v779
        %977 = vmatprep.mubr.f32.mxu0 %v902
        %978 = vmatmul.mubr.f32.gmra.mxu0 %v737
        %v979 = vpop.f32.mrf.mxu0
        %v980 = vadd.f32 0.0, %v979
        %v981 = vpop.f32.mrf.mxu0
        %v982 = vadd.f32 0.0, %v981
        %983 = vmatprep.mubr.f32.mxu0 %v905
        %984 = vmatmul.mubr.f32.gmra.mxu0 %v739
        %v985 = vpop.f32.mrf.mxu0
        %v986 = vadd.f32 0.0, %v985
        %v987 = vpop.f32.mrf.mxu0
        %v988 = vadd.f32 0.0, %v987
        %989 = vdwg.mxu0
        %v990 = vld [vmem:[#allocation2] sm:$0xc0]
        %v991 = vld [vmem:[#allocation2 + $0x8] sm:$0xc0]
        %v992 = vld [vmem:[#allocation2 + $0x10] sm:$0xff]
        %v993 = vld [vmem:[#allocation2 + $0x18] sm:$0xff]
        %v994 = vld [vmem:[#allocation2 + $0x20] sm:$0xff]
        %v995 = vld [vmem:[#allocation2 + $0x28] sm:$0xff]
        %v996 = vld [vmem:[#allocation2 + $0x30] sm:$0xff]
        %v997 = vld [vmem:[#allocation2 + $0x38] sm:$0xff]
        %v998 = vld [vmem:[#allocation2 + $0x40] sm:$0xf]
        %v999 = vld [vmem:[#allocation2 + $0x48] sm:$0xf]
        %v1000 = vld [vmem:[#allocation2 + $0x50] sm:$0xfc]
        %v1001 = vld [vmem:[#allocation2 + $0x58] sm:$0xfc]
        %v1002 = vld [vmem:[#allocation2 + $0x80] sm:$0xff]
        %v1003 = vld [vmem:[#allocation2 + $0x88] sm:$0xff]
        %v1004 = vld [vmem:[#allocation2 + $0x90] sm:$0xc0]
        %v1005 = vld [vmem:[#allocation2 + $0x98] sm:$0xc0]
        %v1006 = vld [vmem:[#allocation2 + $0xa0] sm:$0xff]
        %v1007 = vld [vmem:[#allocation2 + $0xa8] sm:$0xff]
        %v1008 = vld [vmem:[#allocation2 + $0xb0] sm:$0xff]
        %v1009 = vld [vmem:[#allocation2 + $0xb8] sm:$0xff]
        %v1010 = vld [vmem:[#allocation2 + $0xc0] sm:$0xff]
        %v1011 = vld [vmem:[#allocation2 + $0xc8] sm:$0xff]
        %v1012 = vld [vmem:[#allocation2 + $0xd0] sm:$0xf]
        %v1013 = vld [vmem:[#allocation2 + $0xd8] sm:$0xf]
        %v1014 = vld [vmem:[#allocation2 + $0xe0] sm:$0xfc]
        %v1015 = vld [vmem:[#allocation2 + $0xe8] sm:$0xfc]
        %v1016 = vld [vmem:[#allocation2 + $0x110] sm:$0xff]
        %v1017 = vld [vmem:[#allocation2 + $0x118] sm:$0xff]
        %v1018 = vld [vmem:[#allocation2 + $0x120] sm:$0xc0]
        %v1019 = vld [vmem:[#allocation2 + $0x128] sm:$0xc0]
        %v1020 = vld [vmem:[#allocation2 + $0x130] sm:$0xff]
        %v1021 = vld [vmem:[#allocation2 + $0x138] sm:$0xff]
        %v1022 = vld [vmem:[#allocation2 + $0x140] sm:$0xff]
        %v1023 = vld [vmem:[#allocation2 + $0x148] sm:$0xff]
        %v1024 = vld [vmem:[#allocation2 + $0x150] sm:$0xff]
        %v1025 = vld [vmem:[#allocation2 + $0x158] sm:$0xff]
        %v1026 = vld [vmem:[#allocation2 + $0x160] sm:$0xf]
        %v1027 = vld [vmem:[#allocation2 + $0x168] sm:$0xf]
        %v1038 = vrot.slane %v990, 6
        %v1039 = vrot.slane %v992, 6
        %v1040 = vsel %vm795, %v1038, %v1039
        %v1041 = vrot.slane %v991, 6
        %v1042 = vrot.slane %v993, 6
        %v1043 = vsel %vm795, %v1041, %v1042
        %v1044 = vrot.slane %v994, 6
        %v1045 = vsel %vm795, %v1039, %v1044
        %v1046 = vrot.slane %v995, 6
        %v1047 = vsel %vm795, %v1042, %v1046
        %v1048 = vrot.slane %v996, 6
        %v1049 = vsel %vm795, %v1044, %v1048
        %v1050 = vrot.slane %v997, 6
        %v1051 = vsel %vm795, %v1046, %v1050
        %v1052 = vrot.slane %v998, 6
        %v1053 = vsel %vm795, %v1048, %v1052
        %v1054 = vrot.slane %v999, 6
        %v1055 = vsel %vm795, %v1050, %v1054
        %v1068 = vrot.slane %v1000, 4
        %v1069 = vrot.slane %v1001, 4
        %v1070 = vrot.slane %v753, 4
        %v1071 = vsel %vm832, %v1068, %v1070
        %v1072 = vrot.slane %v754, 4
        %v1073 = vsel %vm832, %v1069, %v1072
        %v1074 = vrot.slane %v755, 4
        %v1075 = vsel %vm832, %v1070, %v1074
        %v1076 = vrot.slane %v756, 4
        %v1077 = vsel %vm832, %v1072, %v1076
        %v1078 = vrot.slane %v1002, 4
        %v1079 = vsel %vm832, %v1074, %v1078
        %v1080 = vrot.slane %v1003, 4
        %v1081 = vsel %vm832, %v1076, %v1080
        %v1102 = vrot.slane %v1004, 2
        %v1103 = vrot.slane %v1006, 2
        %v1104 = vsel %vm867, %v1102, %v1103
        %v1105 = vrot.slane %v1005, 2
        %v1106 = vrot.slane %v1007, 2
        %v1107 = vsel %vm867, %v1105, %v1106
        %v1108 = vrot.slane %v1008, 2
        %v1109 = vsel %vm867, %v1103, %v1108
        %v1110 = vrot.slane %v1009, 2
        %v1111 = vsel %vm867, %v1106, %v1110
        %v1112 = vrot.slane %v1010, 2
        %v1113 = vsel %vm867, %v1108, %v1112
        %v1114 = vrot.slane %v1011, 2
        %v1115 = vsel %vm867, %v1110, %v1114
        %v1116 = vrot.slane %v1012, 2
        %v1117 = vsel %vm867, %v1112, %v1116
        %v1118 = vrot.slane %v1013, 2
        %v1119 = vsel %vm867, %v1114, %v1118
        %v1140 = vrot.slane %v1018, 6
        %v1141 = vrot.slane %v1020, 6
        %v1142 = vsel %vm795, %v1140, %v1141
        %v1143 = vrot.slane %v1019, 6
        %v1144 = vrot.slane %v1021, 6
        %v1145 = vsel %vm795, %v1143, %v1144
        %v1146 = vrot.slane %v1022, 6
        %v1147 = vsel %vm795, %v1141, %v1146
        %v1148 = vrot.slane %v1023, 6
        %v1149 = vsel %vm795, %v1144, %v1148
        %v1150 = vrot.slane %v1024, 6
        %v1151 = vsel %vm795, %v1146, %v1150
        %v1152 = vrot.slane %v1025, 6
        %v1153 = vsel %vm795, %v1148, %v1152
        %v1154 = vrot.slane %v1026, 6
        %v1155 = vsel %vm795, %v1150, %v1154
        %v1156 = vrot.slane %v1027, 6
        %v1157 = vsel %vm795, %v1152, %v1156
        %v1164 = vsel %vm867, %v1053, %v1068
        %v1165 = vsel %vm867, %v1055, %v1069
        %v1166 = vsel %vm832, %v1078, %v1104
        %v1167 = vsel %vm832, %v1080, %v1107
        %v1168 = vsel %vm795, %v1116, %v1014
        %v1169 = vsel %vm795, %v1118, %v1015
        %v1170 = vsel %vm867, %v1155, 0
        %v1172 = vsel %vm867, %v1157, 0
        %1174 = vmatprep.subr.mxu0 %v1145
        %1175 = vmatpush1.msra.mxu0 %v1142
        %1176 = vmatprep.subr.mxu0 %v1017
        %1177 = vmatpush1.msra.mxu0 %v1016
        %1178 = vmatprep.subr.mxu0 %v774
        %1179 = vmatpush1.msra.mxu0 %v773
        %1180 = vmatprep.subr.mxu0 %v772
        %1181 = vmatpush1.msra.mxu0 %v771
        %1182 = vmatprep.subr.mxu0 %v1169
        %1183 = vmatpush1.msra.mxu0 %v1168
        %1184 = vmatprep.subr.mxu0 %v1119
        %1185 = vmatpush1.msra.mxu0 %v1117
        %1186 = vmatprep.subr.mxu0 %v1115
        %1187 = vmatpush1.msra.mxu0 %v1113
        %1188 = vmatprep.subr.mxu0 %v1111
        %1189 = vmatpush1.msra.mxu0 %v1109
        %1190 = vmatprep.subr.mxu0 %v1167
        %1191 = vmatpush1.msra.mxu0 %v1166
        %1192 = vmatprep.subr.mxu0 %v1081
        %1193 = vmatpush1.msra.mxu0 %v1079
        %1194 = vmatprep.subr.mxu0 %v1077
        %1195 = vmatpush1.msra.mxu0 %v1075
        %1196 = vmatprep.subr.mxu0 %v1073
        %1197 = vmatpush1.msra.mxu0 %v1071
        %1198 = vmatprep.subr.mxu0 %v1165
        %1199 = vmatpush1.msra.mxu0 %v1164
        %1200 = vmatprep.subr.mxu0 %v1051
        %1201 = vmatpush1.msra.mxu0 %v1049
        %1202 = vmatprep.subr.mxu0 %v1047
        %1203 = vmatpush1.msra.mxu0 %v1045
        %1204 = vmatprep.subr.mxu0 %v1043
        %1205 = vmatpush1.msra.mxu0 %v1040
        %1206 = vmatprep.subr.mxu0 0.0
        %1207 = vmatpush2.msra.mxu0 0.0
        %1208 = vmatprep.subr.mxu0 0.0
        %1209 = vmatpush2.msra.mxu0 0.0
        %1210 = vmatprep.subr.mxu0 0.0
        %1211 = vmatpush2.msra.mxu0 0.0
        %1212 = vmatprep.subr.mxu0 0.0
        %1213 = vmatpush2.msra.mxu0 0.0
        %1214 = vmatprep.subr.mxu0 0.0
        %1215 = vmatpush2.msra.mxu0 0.0
        %1216 = vmatprep.subr.mxu0 0.0
        %1217 = vmatpush2.msra.mxu0 0.0
        %1218 = vmatprep.subr.mxu0 0.0
        %1219 = vmatpush2.msra.mxu0 0.0
        %1220 = vmatprep.subr.mxu0 0.0
        %1221 = vmatpush2.msra.mxu0 0.0
        %1222 = vmatprep.subr.mxu0 0.0
        %1223 = vmatpush2.msra.mxu0 0.0
        %1224 = vmatprep.subr.mxu0 0.0
        %1225 = vmatpush2.msra.mxu0 0.0
        %1226 = vmatprep.subr.mxu0 0.0
        %1227 = vmatpush2.msra.mxu0 0.0
        %1228 = vmatprep.subr.mxu0 0.0
        %1229 = vmatpush2.msra.mxu0 0.0
        %1230 = vmatprep.subr.mxu0 0.0
        %1231 = vmatpush2.msra.mxu0 0.0
        %1232 = vmatprep.subr.mxu0 %v1172
        %1233 = vmatpush2.msra.mxu0 %v1170
        %1234 = vmatprep.subr.mxu0 %v1153
        %1235 = vmatpush2.msra.mxu0 %v1151
        %1236 = vmatprep.subr.mxu0 %v1149
        %1237 = vmatpush2.msra.mxu0 %v1147
        %1238 = vmatprep.mubr.f32.mxu0 %v902
        %1239 = vmatmul.mubr.f32.gmra.mxu0 %v737
        %v1240 = vpop.f32.mrf.mxu0
        %v1241 = vadd.f32 0.0, %v1240
        %v1242 = vpop.f32.mrf.mxu0
        %v1243 = vadd.f32 0.0, %v1242
        %1244 = vmatprep.mubr.f32.mxu0 %v905
        %1245 = vmatmul.mubr.f32.gmra.mxu0 %v739
        %v1246 = vpop.f32.mrf.mxu0
        %v1247 = vadd.f32 0.0, %v1246
        %v1248 = vpop.f32.mrf.mxu0
        %v1249 = vadd.f32 0.0, %v1248
        %1250 = vdwg.mxu0
        %v1251 = vmax.f32 %v980, %v1241
        %v1252 = vmax.f32 %v982, %v1243
        %v1253 = vmax.f32 %v986, %v1247
        %v1254 = vmax.f32 %v988, %v1249
        %v1255 = vld [vmem:[#allocation2 + $0x160] sm:$0xf0]
        %v1256 = vld [vmem:[#allocation2 + $0x168] sm:$0xf0]
        %v1257 = vld [vmem:[#allocation2 + $0x170] sm:$0xff]
        %v1258 = vld [vmem:[#allocation2 + $0x178] sm:$0xff]
        %v1259 = vld [vmem:[#allocation2 + $0x180] sm:$0xff]
        %v1260 = vld [vmem:[#allocation2 + $0x188] sm:$0xff]
        %v1261 = vld [vmem:[#allocation2 + $0x190] sm:$0xff]
        %v1262 = vld [vmem:[#allocation2 + $0x198] sm:$0xff]
        %v1263 = vld [vmem:[#allocation2 + $0x1a0] sm:$0x3]
        %v1264 = vld [vmem:[#allocation2 + $0x1a8] sm:$0x3]
        %v1265 = vrot.slane %v749, 4
        %v1266 = vrot.slane %v751, 4
        %v1267 = vsel %vm832, %v1265, %v1266
        %v1268 = vrot.slane %v750, 4
        %v1269 = vrot.slane %v752, 4
        %v1270 = vsel %vm832, %v1268, %v1269
        %v1271 = vsel %vm832, %v1266, %v1070
        %v1272 = vsel %vm832, %v1269, %v1072
        %v1273 = vrot.slane %v757, 4
        %v1274 = vsel %vm832, %v1074, %v1273
        %v1275 = vrot.slane %v758, 4
        %v1276 = vsel %vm832, %v1076, %v1275
        %v1283 = vrot.slane %v759, 2
        %v1284 = vrot.slane %v760, 2
        %v1285 = vrot.slane %v761, 2
        %v1286 = vsel %vm867, %v1283, %v1285
        %v1287 = vrot.slane %v762, 2
        %v1288 = vsel %vm867, %v1284, %v1287
        %v1289 = vrot.slane %v763, 2
        %v1290 = vsel %vm867, %v1285, %v1289
        %v1291 = vrot.slane %v764, 2
        %v1292 = vsel %vm867, %v1287, %v1291
        %v1293 = vrot.slane %v765, 2
        %v1294 = vsel %vm867, %v1289, %v1293
        %v1295 = vrot.slane %v766, 2
        %v1296 = vsel %vm867, %v1291, %v1295
        %v1313 = vrot.slane %v777, 6
        %v1314 = vrot.slane %v778, 6
        %v1315 = vrot.slane %v779, 6
        %v1316 = vsel %vm795, %v1313, %v1315
        %v1317 = vrot.slane %v780, 6
        %v1318 = vsel %vm795, %v1314, %v1317
        %v1319 = vrot.slane %v781, 6
        %v1320 = vsel %vm795, %v1315, %v1319
        %v1321 = vrot.slane %v782, 6
        %v1322 = vsel %vm795, %v1317, %v1321
        %v1323 = vrot.slane %v783, 6
        %v1324 = vsel %vm795, %v1319, %v1323
        %v1325 = vrot.slane %v784, 6
        %v1326 = vsel %vm795, %v1321, %v1325
        %v1345 = vrot.slane %v1255, 4
        %v1346 = vrot.slane %v1257, 4
        %v1347 = vsel %vm832, %v1345, %v1346
        %v1348 = vrot.slane %v1256, 4
        %v1349 = vrot.slane %v1258, 4
        %v1350 = vsel %vm832, %v1348, %v1349
        %v1351 = vrot.slane %v1259, 4
        %v1352 = vsel %vm832, %v1346, %v1351
        %v1353 = vrot.slane %v1260, 4
        %v1354 = vsel %vm832, %v1349, %v1353
        %v1355 = vrot.slane %v1261, 4
        %v1356 = vsel %vm832, %v1351, %v1355
        %v1357 = vrot.slane %v1262, 4
        %v1358 = vsel %vm832, %v1353, %v1357
        %v1359 = vrot.slane %v1263, 4
        %v1360 = vsel %vm832, %v1355, %v1359
        %v1361 = vrot.slane %v1264, 4
        %v1362 = vsel %vm832, %v1357, %v1361
        %v1369 = vsel %vm867, %v1274, %v1283
        %v1370 = vsel %vm867, %v1276, %v1284
        %v1371 = vsel %vm832, %v1293, %v767
        %v1372 = vsel %vm832, %v1295, %v768
        %v1373 = vsel %vm795, %v775, %v1313
        %v1374 = vsel %vm795, %v776, %v1314
        %v1375 = vsel %vm867, %v1360, 0
        %v1377 = vsel %vm867, %v1362, 0
        %1379 = vmatprep.subr.mxu0 %v1350
        %1380 = vmatpush1.msra.mxu0 %v1347
        %1381 = vmatprep.subr.mxu0 %v1326
        %1382 = vmatpush1.msra.mxu0 %v1324
        %1383 = vmatprep.subr.mxu0 %v1322
        %1384 = vmatpush1.msra.mxu0 %v1320
        %1385 = vmatprep.subr.mxu0 %v1318
        %1386 = vmatpush1.msra.mxu0 %v1316
        %1387 = vmatprep.subr.mxu0 %v1374
        %1388 = vmatpush1.msra.mxu0 %v1373
        %1389 = vmatprep.subr.mxu0 %v774
        %1390 = vmatpush1.msra.mxu0 %v773
        %1391 = vmatprep.subr.mxu0 %v772
        %1392 = vmatpush1.msra.mxu0 %v771
        %1393 = vmatprep.subr.mxu0 %v770
        %1394 = vmatpush1.msra.mxu0 %v769
        %1395 = vmatprep.subr.mxu0 %v1372
        %1396 = vmatpush1.msra.mxu0 %v1371
        %1397 = vmatprep.subr.mxu0 %v1296
        %1398 = vmatpush1.msra.mxu0 %v1294
        %1399 = vmatprep.subr.mxu0 %v1292
        %1400 = vmatpush1.msra.mxu0 %v1290
        %1401 = vmatprep.subr.mxu0 %v1288
        %1402 = vmatpush1.msra.mxu0 %v1286
        %1403 = vmatprep.subr.mxu0 %v1370
        %1404 = vmatpush1.msra.mxu0 %v1369
        %1405 = vmatprep.subr.mxu0 %v1077
        %1406 = vmatpush1.msra.mxu0 %v1075
        %1407 = vmatprep.subr.mxu0 %v1272
        %1408 = vmatpush1.msra.mxu0 %v1271
        %1409 = vmatprep.subr.mxu0 %v1270
        %1410 = vmatpush1.msra.mxu0 %v1267
        %1411 = vmatprep.subr.mxu0 0.0
        %1412 = vmatpush2.msra.mxu0 0.0
        %1413 = vmatprep.subr.mxu0 0.0
        %1414 = vmatpush2.msra.mxu0 0.0
        %1415 = vmatprep.subr.mxu0 0.0
        %1416 = vmatpush2.msra.mxu0 0.0
        %1417 = vmatprep.subr.mxu0 0.0
        %1418 = vmatpush2.msra.mxu0 0.0
        %1419 = vmatprep.subr.mxu0 0.0
        %1420 = vmatpush2.msra.mxu0 0.0
        %1421 = vmatprep.subr.mxu0 0.0
        %1422 = vmatpush2.msra.mxu0 0.0
        %1423 = vmatprep.subr.mxu0 0.0
        %1424 = vmatpush2.msra.mxu0 0.0
        %1425 = vmatprep.subr.mxu0 0.0
        %1426 = vmatpush2.msra.mxu0 0.0
        %1427 = vmatprep.subr.mxu0 0.0
        %1428 = vmatpush2.msra.mxu0 0.0
        %1429 = vmatprep.subr.mxu0 0.0
        %1430 = vmatpush2.msra.mxu0 0.0
        %1431 = vmatprep.subr.mxu0 0.0
        %1432 = vmatpush2.msra.mxu0 0.0
        %1433 = vmatprep.subr.mxu0 0.0
        %1434 = vmatpush2.msra.mxu0 0.0
        %1435 = vmatprep.subr.mxu0 0.0
        %1436 = vmatpush2.msra.mxu0 0.0
        %1437 = vmatprep.subr.mxu0 %v1377
        %1438 = vmatpush2.msra.mxu0 %v1375
        %1439 = vmatprep.subr.mxu0 %v1358
        %1440 = vmatpush2.msra.mxu0 %v1356
        %1441 = vmatprep.subr.mxu0 %v1354
        %1442 = vmatpush2.msra.mxu0 %v1352
        %1443 = vmatprep.mubr.f32.mxu0 %v902
        %1444 = vmatmul.mubr.f32.gmra.mxu0 %v737
        %v1445 = vpop.f32.mrf.mxu0
        %v1446 = vadd.f32 0.0, %v1445
        %v1447 = vpop.f32.mrf.mxu0
        %v1448 = vadd.f32 0.0, %v1447
        %1449 = vmatprep.mubr.f32.mxu0 %v905
        %1450 = vmatmul.mubr.f32.gmra.mxu0 %v739
        %v1451 = vpop.f32.mrf.mxu0
        %v1452 = vadd.f32 0.0, %v1451
        %v1453 = vpop.f32.mrf.mxu0
        %v1454 = vadd.f32 0.0, %v1453
        %1455 = vdwg.mxu0
        %v1456 = vmax.f32 %v1251, %v1446
        %v1457 = vmax.f32 %v1252, %v1448
        %v1458 = vmax.f32 %v1253, %v1452
        %v1459 = vmax.f32 %v1254, %v1454
        %v1460 = vld [vmem:[#allocation2 + $0x170] sm:$0xfc]
        %v1461 = vld [vmem:[#allocation2 + $0x178] sm:$0xfc]
        %v1462 = vld [vmem:[#allocation2 + $0x1a0] sm:$0xff]
        %v1463 = vld [vmem:[#allocation2 + $0x1a8] sm:$0xff]
        %v1464 = vrot.slane %v1000, 2
        %v1465 = vrot.slane %v753, 2
        %v1466 = vsel %vm867, %v1464, %v1465
        %v1467 = vrot.slane %v1001, 2
        %v1468 = vrot.slane %v754, 2
        %v1469 = vsel %vm867, %v1467, %v1468
        %v1470 = vrot.slane %v755, 2
        %v1471 = vsel %vm867, %v1465, %v1470
        %v1472 = vrot.slane %v756, 2
        %v1473 = vsel %vm867, %v1468, %v1472
        %v1474 = vrot.slane %v1002, 2
        %v1475 = vsel %vm867, %v1470, %v1474
        %v1476 = vrot.slane %v1003, 2
        %v1477 = vsel %vm867, %v1472, %v1476
        %v1490 = vrot.slane %v1014, 6
        %v1491 = vrot.slane %v1015, 6
        %v1492 = vrot.slane %v771, 6
        %v1493 = vsel %vm795, %v1490, %v1492
        %v1494 = vrot.slane %v772, 6
        %v1495 = vsel %vm795, %v1491, %v1494
        %v1496 = vrot.slane %v773, 6
        %v1497 = vsel %vm795, %v1492, %v1496
        %v1498 = vrot.slane %v774, 6
        %v1499 = vsel %vm795, %v1494, %v1498
        %v1500 = vrot.slane %v1016, 6
        %v1501 = vsel %vm795, %v1496, %v1500
        %v1502 = vrot.slane %v1017, 6
        %v1503 = vsel %vm795, %v1498, %v1502
        %v1514 = vrot.slane %v1018, 4
        %v1515 = vrot.slane %v1020, 4
        %v1516 = vsel %vm832, %v1514, %v1515
        %v1517 = vrot.slane %v1019, 4
        %v1518 = vrot.slane %v1021, 4
        %v1519 = vsel %vm832, %v1517, %v1518
        %v1520 = vrot.slane %v1022, 4
        %v1521 = vsel %vm832, %v1515, %v1520
        %v1522 = vrot.slane %v1023, 4
        %v1523 = vsel %vm832, %v1518, %v1522
        %v1524 = vrot.slane %v1024, 4
        %v1525 = vsel %vm832, %v1520, %v1524
        %v1526 = vrot.slane %v1025, 4
        %v1527 = vsel %vm832, %v1522, %v1526
        %v1528 = vrot.slane %v1026, 4
        %v1529 = vsel %vm832, %v1524, %v1528
        %v1530 = vrot.slane %v1027, 4
        %v1531 = vsel %vm832, %v1526, %v1530
        %v1544 = vrot.slane %v1460, 2
        %v1545 = vrot.slane %v1259, 2
        %v1546 = vsel %vm867, %v1544, %v1545
        %v1547 = vrot.slane %v1461, 2
        %v1548 = vrot.slane %v1260, 2
        %v1549 = vsel %vm867, %v1547, %v1548
        %v1550 = vrot.slane %v1261, 2
        %v1551 = vsel %vm867, %v1545, %v1550
        %v1552 = vrot.slane %v1262, 2
        %v1553 = vsel %vm867, %v1548, %v1552
        %v1554 = vrot.slane %v1462, 2
        %v1555 = vsel %vm867, %v1550, %v1554
        %v1556 = vrot.slane %v1463, 2
        %v1557 = vsel %vm867, %v1552, %v1556
        %v1564 = vsel %vm867, %v1474, %v1004
        %v1565 = vsel %vm867, %v1476, %v1005
        %v1566 = vsel %vm832, %v1012, %v1490
        %v1567 = vsel %vm832, %v1013, %v1491
        %v1568 = vsel %vm795, %v1500, %v1516
        %v1569 = vsel %vm795, %v1502, %v1519
        %v1570 = vsel %vm867, %v1554, 0
        %v1572 = vsel %vm867, %v1556, 0
        %1574 = vmatprep.subr.mxu0 %v1549
        %1575 = vmatpush1.msra.mxu0 %v1546
        %1576 = vmatprep.subr.mxu0 %v1531
        %1577 = vmatpush1.msra.mxu0 %v1529
        %1578 = vmatprep.subr.mxu0 %v1527
        %1579 = vmatpush1.msra.mxu0 %v1525
        %1580 = vmatprep.subr.mxu0 %v1523
        %1581 = vmatpush1.msra.mxu0 %v1521
        %1582 = vmatprep.subr.mxu0 %v1569
        %1583 = vmatpush1.msra.mxu0 %v1568
        %1584 = vmatprep.subr.mxu0 %v1503
        %1585 = vmatpush1.msra.mxu0 %v1501
        %1586 = vmatprep.subr.mxu0 %v1499
        %1587 = vmatpush1.msra.mxu0 %v1497
        %1588 = vmatprep.subr.mxu0 %v1495
        %1589 = vmatpush1.msra.mxu0 %v1493
        %1590 = vmatprep.subr.mxu0 %v1567
        %1591 = vmatpush1.msra.mxu0 %v1566
        %1592 = vmatprep.subr.mxu0 %v1011
        %1593 = vmatpush1.msra.mxu0 %v1010
        %1594 = vmatprep.subr.mxu0 %v1009
        %1595 = vmatpush1.msra.mxu0 %v1008
        %1596 = vmatprep.subr.mxu0 %v1007
        %1597 = vmatpush1.msra.mxu0 %v1006
        %1598 = vmatprep.subr.mxu0 %v1565
        %1599 = vmatpush1.msra.mxu0 %v1564
        %1600 = vmatprep.subr.mxu0 %v1477
        %1601 = vmatpush1.msra.mxu0 %v1475
        %1602 = vmatprep.subr.mxu0 %v1473
        %1603 = vmatpush1.msra.mxu0 %v1471
        %1604 = vmatprep.subr.mxu0 %v1469
        %1605 = vmatpush1.msra.mxu0 %v1466
        %1606 = vmatprep.subr.mxu0 0.0
        %1607 = vmatpush2.msra.mxu0 0.0
        %1608 = vmatprep.subr.mxu0 0.0
        %1609 = vmatpush2.msra.mxu0 0.0
        %1610 = vmatprep.subr.mxu0 0.0
        %1611 = vmatpush2.msra.mxu0 0.0
        %1612 = vmatprep.subr.mxu0 0.0
        %1613 = vmatpush2.msra.mxu0 0.0
        %1614 = vmatprep.subr.mxu0 0.0
        %1615 = vmatpush2.msra.mxu0 0.0
        %1616 = vmatprep.subr.mxu0 0.0
        %1617 = vmatpush2.msra.mxu0 0.0
        %1618 = vmatprep.subr.mxu0 0.0
        %1619 = vmatpush2.msra.mxu0 0.0
        %1620 = vmatprep.subr.mxu0 0.0
        %1621 = vmatpush2.msra.mxu0 0.0
        %1622 = vmatprep.subr.mxu0 0.0
        %1623 = vmatpush2.msra.mxu0 0.0
        %1624 = vmatprep.subr.mxu0 0.0
        %1625 = vmatpush2.msra.mxu0 0.0
        %1626 = vmatprep.subr.mxu0 0.0
        %1627 = vmatpush2.msra.mxu0 0.0
        %1628 = vmatprep.subr.mxu0 0.0
        %1629 = vmatpush2.msra.mxu0 0.0
        %1630 = vmatprep.subr.mxu0 0.0
        %1631 = vmatpush2.msra.mxu0 0.0
        %1632 = vmatprep.subr.mxu0 %v1572
        %1633 = vmatpush2.msra.mxu0 %v1570
        %1634 = vmatprep.subr.mxu0 %v1557
        %1635 = vmatpush2.msra.mxu0 %v1555
        %1636 = vmatprep.subr.mxu0 %v1553
        %1637 = vmatpush2.msra.mxu0 %v1551
        %1638 = vmatprep.mubr.f32.mxu0 %v902
        %1639 = vmatmul.mubr.f32.gmra.mxu0 %v737
        %v1640 = vpop.f32.mrf.mxu0
        %v1641 = vadd.f32 0.0, %v1640
        %v1642 = vpop.f32.mrf.mxu0
        %v1643 = vadd.f32 0.0, %v1642
        %1644 = vmatprep.mubr.f32.mxu0 %v905
        %1645 = vmatmul.mubr.f32.gmra.mxu0 %v739
        %v1646 = vpop.f32.mrf.mxu0
        %v1647 = vadd.f32 0.0, %v1646
        %v1648 = vpop.f32.mrf.mxu0
        %v1649 = vadd.f32 0.0, %v1648
        %1650 = vdwg.mxu0
        %v1651 = vmax.f32 %v1456, %v1641
        %v1652 = vmax.f32 %v1457, %v1643
        %v1653 = vmax.f32 %v1458, %v1647
        %v1654 = vmax.f32 %v1459, %v1649
        %v1655 = vld [vmem:[%s2] sm:$0xff]
        %v1656 = vld [vmem:[%s2 + $0x8] sm:$0xff]
        %1658 = vset.pattern.permute.xlu0 0
        %1659 = vperm.xlu0 %1658, %v1655
        %v1660 = vpop.permute.xlu0 %1659
        %1663 = vset.pattern.permute.xlu0 0
        %1664 = vperm.xlu0 %1663, %v1656
        %v1665 = vpop.permute.xlu0 %1664
        %v1667 = vadd.f32 %v1651, %v1660
        %v1668 = vadd.f32 %v1652, %v1660
        %v1669 = vadd.f32 %v1653, %v1665
        %v1670 = vadd.f32 %v1654, %v1665
        %v1671 = vmax.f32 %v1667, 0.0
        %v1672 = vmax.f32 %v1668, 0.0
        %v1673 = vmax.f32 %v1669, 0.0
        %v1674 = vmax.f32 %v1670, 0.0
        %v1675 = vlaneseq
        %v1676 = vand.u32 %v1675, 127
        %v1677 = vadd.s32 %v1676, 128
        %v1678 = vand.u32 %v1676, 15
        %v1679 = vand.u32 %v1677, 15
        %vm1680 = vcmp.lt.s32.totalorder %v1678, 13
        %vm1681 = vcmp.lt.s32.totalorder %v1679, 13
        %v1682 = vsel %vm1680, %v1671, 0.0
        %v1683 = vsel %vm1681, %v1672, 0.0
        %v1684 = vsel %vm1680, %v1673, 0.0
        %v1685 = vsel %vm1681, %v1674, 0.0
        %1686 = vst [vmem:[%s185] sm:$0xff] %v1682
        %vm1687 = vcmask 654336
        %1688 = vst.msk [vmem:[%s185 + $0x8] sm:$0xff] %vm1687, %v1683
        %1689 = vst [vmem:[%s185 + $0x10] sm:$0xff] %v1684
        %1690 = vst.msk [vmem:[%s185 + $0x18] sm:$0xff] %vm1687, %v1685
        %p1691 = scmp.lt.s32.totalorder %s15, 1
        %s1692 = scalar_select %p1691, %s15, 1
        %s1693 = smul.addr %s1692, 4
        %s1694 = smul.addr %s1693, 8
        %s1695 = scalar_lea.vmem %s3, %s1694
        // Predicated region
        $region37: #{net_small_forward.4} parent=31 // pred_check
          %p1696 = pneg %p101
        $region38: #{net_small_forward.4} parent=31 // pred_check_branch
          %1698 = sbr.rel (%p1696) target = $region40
        $region39: #{net_small_forward.4} parent=31 // pred_region
          _
        $region40: #{net_small_forward.4} parent=31 // pred_fallthru
          _
      $region32: #{net_small_forward.4} parent=5 // pred_fallthru
        _
      %p1699 = scmp.le.s32.totalorder 2, %s10
      // Predicated region
      $region41: #{net_small_forward.4} parent=5 // pred_check
        %p1700 = pneg %p1699
      $region42: #{net_small_forward.4} parent=5 // pred_check_branch
        %1702 = sbr.rel (%p1700) target = $region44
      $region43: #{net_small_forward.4} parent=5 // pred_region
        %s1703 = ssub.s32 %s10, 2
        // Predicated region
        $region45: #{net_small_forward.4} parent=43 // pred_check
          %p1704 = pneg %p107
        $region46: #{net_small_forward.4} parent=43 // pred_check_branch
          %1706 = sbr.rel (%p1704) target = $region48
        $region47: #{net_small_forward.4} parent=43 // pred_region
          %p1707 = scmp.lt.s32.totalorder %s16, 1
          %s1708 = scalar_select %p1707, %s16, 1
          %s1709 = smul.addr %s1708, 4
          %s1710 = smul.addr %s1709, 8
          %s1711 = scalar_lea.vmem %s3, %s1710
        $region48: #{net_small_forward.4} parent=43 // pred_fallthru
          _
      $region44: #{net_small_forward.4} parent=5 // pred_fallthru
        _
    $region6: #{net_small_forward.4} parent=1 // loop_footer
      %s14 = sadd.s32 1, %s10
    $region7: #{net_small_forward.4} parent=1 // loop_footer_branch
      %9 = sbr.rel target = $region3
    $region8: #{net_small_forward.4} parent=1 // loop_exit
      _
    %1712 = vsyncpa [#allocation4], 1
    %s1713 = scalar_lea.sflag [#allocation4], 1
    %1714 = vsyncpa %s1713, 1

// kernel: net_small_forward.5
$region0: #{net_small_forward.5}
  #allocation0 [shape = 'u32[]', space=smem, size = 0x4, offset = 0x4, fixed_abs, tag = 'smem constant byte address 0x4 - core index']
  #allocation1 [shape = 'u32[144,128]{1,0:T(1,128)}', space=vmem, size = 0x12000, scoped, tag = 'internal scratch']
  %s0 = inlined_call_operand.vmem [shape: f32[2,2704], index: 0, kind: input, shape index: {}]
  %s1 = inlined_call_operand.vmem [shape: bf16[2704,512], index: 1, kind: input, shape index: {}]
  %s2 = inlined_call_operand.vmem [shape: f32[1,512], index: 2, kind: input, shape index: {}]
  %s3 = inlined_call_operand.vmem [shape: f32[512,84], index: 3, kind: input, shape index: {}]
  %s4 = inlined_call_operand.vmem [shape: f32[1,84], index: 4, kind: input, shape index: {}]
  %s5 = inlined_call_operand.vmem [shape: f32[84,100], index: 5, kind: input, shape index: {}]
  %s6 = inlined_call_operand.vmem [shape: f32[1,100], index: 6, kind: input, shape index: {}]
  %s7 = inlined_call_operand.hbm [shape: f32[2,100], index: 7, kind: output, shape index: {}]
  %s8 = sld [smem:[#allocation0]]
  $region38: #{net_small_forward.5} parent=0
    _
  %s10 = ssub.s32 1, %s8
  %s11 = scalar_select 0, %s10, %s8
  $region1: #{net_small_forward.5} parent=0
    #allocation2 [shape = 'u8[1024]{0}', space=vmem, size = 0x400, scoped, tag = 'output window, operand 0, single buffered']
    #allocation3 [shape = 's32[1]{0}', space=sflag, size = 0x4, scoped, tag = 'scoped memory for net_small_forward.5']
    %12 = vsyncpa [#allocation3], 0
    // Predicated region
    $region2: #{net_small_forward.5} parent=1 // pred_check
      _
    $region3: #{net_small_forward.5} parent=1 // pred_check_branch
      %14 = sbr.rel (0) target = $region5
    $region4: #{net_small_forward.5} parent=1 // pred_region
      _
    $region5: #{net_small_forward.5} parent=1 // pred_fallthru
      _
    // Predicated region
    $region6: #{net_small_forward.5} parent=1 // pred_check
      _
    $region7: #{net_small_forward.5} parent=1 // pred_check_branch
      %16 = sbr.rel (0) target = $region9
    $region8: #{net_small_forward.5} parent=1 // pred_region
      _
    $region9: #{net_small_forward.5} parent=1 // pred_fallthru
      _
    // Predicated region
    $region10: #{net_small_forward.5} parent=1 // pred_check
      _
    $region11: #{net_small_forward.5} parent=1 // pred_check_branch
      %18 = sbr.rel (0) target = $region13
    $region12: #{net_small_forward.5} parent=1 // pred_region
      _
    $region13: #{net_small_forward.5} parent=1 // pred_fallthru
      _
    // Predicated region
    $region14: #{net_small_forward.5} parent=1 // pred_check
      _
    $region15: #{net_small_forward.5} parent=1 // pred_check_branch
      %20 = sbr.rel (0) target = $region17
    $region16: #{net_small_forward.5} parent=1 // pred_region
      _
    $region17: #{net_small_forward.5} parent=1 // pred_fallthru
      _
    // Predicated region
    $region18: #{net_small_forward.5} parent=1 // pred_check
      _
    $region19: #{net_small_forward.5} parent=1 // pred_check_branch
      %22 = sbr.rel (0) target = $region21
    $region20: #{net_small_forward.5} parent=1 // pred_region
      _
    $region21: #{net_small_forward.5} parent=1 // pred_fallthru
      _
    // Predicated region
    $region22: #{net_small_forward.5} parent=1 // pred_check
      _
    $region23: #{net_small_forward.5} parent=1 // pred_check_branch
      %24 = sbr.rel (0) target = $region25
    $region24: #{net_small_forward.5} parent=1 // pred_region
      _
    $region25: #{net_small_forward.5} parent=1 // pred_fallthru
      _
    // Predicated region
    $region26: #{net_small_forward.5} parent=1 // pred_check
      _
    $region27: #{net_small_forward.5} parent=1 // pred_check_branch
      %26 = sbr.rel (0) target = $region29
    $region28: #{net_small_forward.5} parent=1 // pred_region
      _
    $region29: #{net_small_forward.5} parent=1 // pred_fallthru
      _
    %v28 = vld [vmem:[%s0] sm:$0xff]
    %v29 = vld [vmem:[%s0 + $0x8] sm:$0xff]
    %v30 = vld [vmem:[%s0 + $0x10] sm:$0xff]
    %v31 = vld [vmem:[%s0 + $0x18] sm:$0xff]
    %v32 = vld [vmem:[%s0 + $0x20] sm:$0xff]
    %v33 = vld [vmem:[%s0 + $0x28] sm:$0xf]
    %v40 = vcombine.high %v28, %v28
    %v42 = vunpack.c.l.s4 1983009808
    %v43 = vunpack.c.0.s8 %v42
    %v44 = vlaneseq
    %v45 = vshrl.u32 %v44, 7
    %v46 = vsub.s32 %v43, %v45
    %v47 = vrot.slane %v28, %v46
    %v49 = vunpack.c.l.s4 1983009808
    %v50 = vunpack.c.0.s8 %v49
    %v51 = vlaneseq
    %v52 = vshrl.u32 %v51, 7
    %v53 = vsub.s32 %v50, %v52
    %v54 = vrot.slane %v40, %v53
    %v55 = vcombine.high %v47, %v47
    %v56 = vcombine.high %v54, %v54
    %v57 = vcombine.high %v29, %v29
    %v59 = vunpack.c.l.s4 1983009808
    %v60 = vunpack.c.0.s8 %v59
    %v61 = vlaneseq
    %v62 = vshrl.u32 %v61, 7
    %v63 = vsub.s32 %v60, %v62
    %v64 = vrot.slane %v29, %v63
    %v66 = vunpack.c.l.s4 1983009808
    %v67 = vunpack.c.0.s8 %v66
    %v68 = vlaneseq
    %v69 = vshrl.u32 %v68, 7
    %v70 = vsub.s32 %v67, %v69
    %v71 = vrot.slane %v57, %v70
    %v72 = vcombine.high %v64, %v64
    %v73 = vcombine.high %v71, %v71
    %v74 = vcombine.high %v30, %v30
    %v76 = vunpack.c.l.s4 1983009808
    %v77 = vunpack.c.0.s8 %v76
    %v78 = vlaneseq
    %v79 = vshrl.u32 %v78, 7
    %v80 = vsub.s32 %v77, %v79
    %v81 = vrot.slane %v30, %v80
    %v83 = vunpack.c.l.s4 1983009808
    %v84 = vunpack.c.0.s8 %v83
    %v85 = vlaneseq
    %v86 = vshrl.u32 %v85, 7
    %v87 = vsub.s32 %v84, %v86
    %v88 = vrot.slane %v74, %v87
    %v89 = vcombine.high %v81, %v81
    %v90 = vcombine.high %v88, %v88
    %v91 = vcombine.high %v31, %v31
    %v93 = vunpack.c.l.s4 1983009808
    %v94 = vunpack.c.0.s8 %v93
    %v95 = vlaneseq
    %v96 = vshrl.u32 %v95, 7
    %v97 = vsub.s32 %v94, %v96
    %v98 = vrot.slane %v31, %v97
    %v100 = vunpack.c.l.s4 1983009808
    %v101 = vunpack.c.0.s8 %v100
    %v102 = vlaneseq
    %v103 = vshrl.u32 %v102, 7
    %v104 = vsub.s32 %v101, %v103
    %v105 = vrot.slane %v91, %v104
    %v106 = vcombine.high %v98, %v98
    %v107 = vcombine.high %v105, %v105
    %v108 = vcombine.high %v32, %v32
    %v110 = vunpack.c.l.s4 1983009808
    %v111 = vunpack.c.0.s8 %v110
    %v112 = vlaneseq
    %v113 = vshrl.u32 %v112, 7
    %v114 = vsub.s32 %v111, %v113
    %v115 = vrot.slane %v32, %v114
    %v117 = vunpack.c.l.s4 1983009808
    %v118 = vunpack.c.0.s8 %v117
    %v119 = vlaneseq
    %v120 = vshrl.u32 %v119, 7
    %v121 = vsub.s32 %v118, %v120
    %v122 = vrot.slane %v108, %v121
    %v123 = vcombine.high %v115, %v115
    %v124 = vcombine.high %v122, %v122
    %v126 = vunpack.c.l.s4 1983009808
    %v127 = vunpack.c.0.s8 %v126
    %v128 = vlaneseq
    %v129 = vshrl.u32 %v128, 7
    %v130 = vsub.s32 %v127, %v129
    %v131 = vrot.slane %v33, %v130
    %v132 = vcombine.high %v131, %v131
    %v155 = vpack.c.bf16 %v47, %v47
    %v156 = vpack.c.bf16 %v55, %v55
    %v157 = vpack.c.bf16 %v54, %v54
    %v158 = vpack.c.bf16 %v56, %v56
    %v159 = vpack.c.bf16 %v64, %v64
    %v160 = vpack.c.bf16 %v72, %v72
    %v161 = vpack.c.bf16 %v71, %v71
    %v162 = vpack.c.bf16 %v73, %v73
    %v163 = vpack.c.bf16 %v81, %v81
    %v164 = vpack.c.bf16 %v89, %v89
    %v165 = vpack.c.bf16 %v88, %v88
    %v166 = vpack.c.bf16 %v90, %v90
    %v167 = vpack.c.bf16 %v98, %v98
    %v168 = vpack.c.bf16 %v106, %v106
    %v169 = vpack.c.bf16 %v105, %v105
    %v170 = vpack.c.bf16 %v107, %v107
    %v171 = vpack.c.bf16 %v115, %v115
    %v172 = vpack.c.bf16 %v123, %v123
    %v173 = vpack.c.bf16 %v122, %v122
    %v174 = vpack.c.bf16 %v124, %v124
    %v175 = vpack.c.bf16 %v131, %v131
    %v176 = vpack.c.bf16 %v132, %v132
    %v177 = vld [vmem:[%s1] sm:$0xff]
    %v178 = vld [vmem:[%s1 + $0x8] sm:$0xff]
    %v179 = vld [vmem:[%s1 + $0x10] sm:$0xff]
    %v180 = vld [vmem:[%s1 + $0x18] sm:$0xff]
    %v181 = vld [vmem:[%s1 + $0x20] sm:$0xff]
    %v182 = vld [vmem:[%s1 + $0x28] sm:$0xff]
    %v183 = vld [vmem:[%s1 + $0x30] sm:$0xff]
    %v184 = vld [vmem:[%s1 + $0x38] sm:$0xff]
    %v185 = vld [vmem:[%s1 + $0x40] sm:$0xff]
    %v186 = vld [vmem:[%s1 + $0x48] sm:$0xff]
    %v187 = vld [vmem:[%s1 + $0x50] sm:$0xff]
    %v188 = vld [vmem:[%s1 + $0x58] sm:$0xff]
    %v189 = vld [vmem:[%s1 + $0x60] sm:$0xff]
    %v190 = vld [vmem:[%s1 + $0x68] sm:$0xff]
    %v191 = vld [vmem:[%s1 + $0x70] sm:$0xff]
    %v192 = vld [vmem:[%s1 + $0x78] sm:$0xff]
    %v193 = vld [vmem:[%s1 + $0x80] sm:$0xff]
    %v194 = vld [vmem:[%s1 + $0x88] sm:$0xff]
    %v195 = vld [vmem:[%s1 + $0x90] sm:$0xff]
    %v196 = vld [vmem:[%s1 + $0x98] sm:$0xff]
    %v197 = vld [vmem:[%s1 + $0xa0] sm:$0xff]
    %v198 = vld [vmem:[%s1 + $0xa8] sm:$0xff]
    %v199 = vld [vmem:[%s1 + $0xb0] sm:$0xff]
    %v200 = vld [vmem:[%s1 + $0xb8] sm:$0xff]
    %v201 = vld [vmem:[%s1 + $0xc0] sm:$0xff]
    %v202 = vld [vmem:[%s1 + $0xc8] sm:$0xff]
    %v203 = vld [vmem:[%s1 + $0xd0] sm:$0xff]
    %v204 = vld [vmem:[%s1 + $0xd8] sm:$0xff]
    %v205 = vld [vmem:[%s1 + $0xe0] sm:$0xff]
    %v206 = vld [vmem:[%s1 + $0xe8] sm:$0xff]
    %v207 = vld [vmem:[%s1 + $0xf0] sm:$0xff]
    %v208 = vld [vmem:[%s1 + $0xf8] sm:$0xff]
    %v209 = vld [vmem:[%s1 + $0x100] sm:$0xff]
    %v210 = vld [vmem:[%s1 + $0x108] sm:$0xff]
    %v211 = vld [vmem:[%s1 + $0x110] sm:$0xff]
    %v212 = vld [vmem:[%s1 + $0x118] sm:$0xff]
    %v213 = vld [vmem:[%s1 + $0x120] sm:$0xff]
    %v214 = vld [vmem:[%s1 + $0x128] sm:$0xff]
    %v215 = vld [vmem:[%s1 + $0x130] sm:$0xff]
    %v216 = vld [vmem:[%s1 + $0x138] sm:$0xff]
    %v217 = vld [vmem:[%s1 + $0x140] sm:$0xff]
    %v218 = vld [vmem:[%s1 + $0x148] sm:$0xff]
    %v219 = vld [vmem:[%s1 + $0x150] sm:$0xff]
    %v220 = vld [vmem:[%s1 + $0x158] sm:$0xff]
    %v221 = vld [vmem:[%s1 + $0x160] sm:$0xff]
    %v222 = vld [vmem:[%s1 + $0x168] sm:$0xff]
    %v223 = vld [vmem:[%s1 + $0x170] sm:$0xff]
    %v224 = vld [vmem:[%s1 + $0x178] sm:$0xff]
    %v225 = vld [vmem:[%s1 + $0x180] sm:$0xff]
    %v226 = vld [vmem:[%s1 + $0x188] sm:$0xff]
    %v227 = vld [vmem:[%s1 + $0x190] sm:$0xff]
    %v228 = vld [vmem:[%s1 + $0x198] sm:$0xff]
    %v229 = vld [vmem:[%s1 + $0x1a0] sm:$0xff]
    %v230 = vld [vmem:[%s1 + $0x1a8] sm:$0xff]
    %v231 = vld [vmem:[%s1 + $0x1b0] sm:$0xff]
    %v232 = vld [vmem:[%s1 + $0x1b8] sm:$0xff]
    %v233 = vld [vmem:[%s1 + $0x1c0] sm:$0xff]
    %v234 = vld [vmem:[%s1 + $0x1c8] sm:$0xff]
    %v235 = vld [vmem:[%s1 + $0x1d0] sm:$0xff]
    %v236 = vld [vmem:[%s1 + $0x1d8] sm:$0xff]
    %v237 = vld [vmem:[%s1 + $0x1e0] sm:$0xff]
    %v238 = vld [vmem:[%s1 + $0x1e8] sm:$0xff]
    %v239 = vld [vmem:[%s1 + $0x1f0] sm:$0xff]
    %v240 = vld [vmem:[%s1 + $0x1f8] sm:$0xff]
    %v241 = vld [vmem:[%s1 + $0x200] sm:$0xff]
    %v242 = vld [vmem:[%s1 + $0x208] sm:$0xff]
    %v243 = vld [vmem:[%s1 + $0x210] sm:$0xff]
    %v244 = vld [vmem:[%s1 + $0x218] sm:$0xff]
    %v245 = vld [vmem:[%s1 + $0x220] sm:$0xff]
    %v246 = vld [vmem:[%s1 + $0x228] sm:$0xff]
    %v247 = vld [vmem:[%s1 + $0x230] sm:$0xff]
    %v248 = vld [vmem:[%s1 + $0x238] sm:$0xff]
    %v249 = vld [vmem:[%s1 + $0x240] sm:$0xff]
    %v250 = vld [vmem:[%s1 + $0x248] sm:$0xff]
    %v251 = vld [vmem:[%s1 + $0x250] sm:$0xff]
    %v252 = vld [vmem:[%s1 + $0x258] sm:$0xff]
    %v253 = vld [vmem:[%s1 + $0x260] sm:$0xff]
    %v254 = vld [vmem:[%s1 + $0x268] sm:$0xff]
    %v255 = vld [vmem:[%s1 + $0x270] sm:$0xff]
    %v256 = vld [vmem:[%s1 + $0x278] sm:$0xff]
    %v257 = vld [vmem:[%s1 + $0x280] sm:$0xff]
    %v258 = vld [vmem:[%s1 + $0x288] sm:$0xff]
    %v259 = vld [vmem:[%s1 + $0x290] sm:$0xff]
    %v260 = vld [vmem:[%s1 + $0x298] sm:$0xff]
    %v261 = vld [vmem:[%s1 + $0x2a0] sm:$0xff]
    %v262 = vld [vmem:[%s1 + $0x2a8] sm:$0xff]
    %v263 = vld [vmem:[%s1 + $0x2b0] sm:$0xff]
    %v264 = vld [vmem:[%s1 + $0x2b8] sm:$0xff]
    %v265 = vld [vmem:[%s1 + $0x2c0] sm:$0xff]
    %v266 = vld [vmem:[%s1 + $0x2c8] sm:$0xff]
    %v267 = vld [vmem:[%s1 + $0x2d0] sm:$0xff]
    %v268 = vld [vmem:[%s1 + $0x2d8] sm:$0xff]
    %v269 = vld [vmem:[%s1 + $0x2e0] sm:$0xff]
    %v270 = vld [vmem:[%s1 + $0x2e8] sm:$0xff]
    %v271 = vld [vmem:[%s1 + $0x2f0] sm:$0xff]
    %v272 = vld [vmem:[%s1 + $0x2f8] sm:$0xff]
    %v273 = vld [vmem:[%s1 + $0x300] sm:$0xff]
    %v274 = vld [vmem:[%s1 + $0x308] sm:$0xff]
    %v275 = vld [vmem:[%s1 + $0x310] sm:$0xff]
    %v276 = vld [vmem:[%s1 + $0x318] sm:$0xff]
    %v277 = vld [vmem:[%s1 + $0x320] sm:$0xff]
    %v278 = vld [vmem:[%s1 + $0x328] sm:$0xff]
    %v279 = vld [vmem:[%s1 + $0x330] sm:$0xff]
    %v280 = vld [vmem:[%s1 + $0x338] sm:$0xff]
    %v281 = vld [vmem:[%s1 + $0x340] sm:$0xff]
    %v282 = vld [vmem:[%s1 + $0x348] sm:$0xff]
    %v283 = vld [vmem:[%s1 + $0x350] sm:$0xff]
    %v284 = vld [vmem:[%s1 + $0x358] sm:$0xff]
    %v285 = vld [vmem:[%s1 + $0x360] sm:$0xff]
    %v286 = vld [vmem:[%s1 + $0x368] sm:$0xff]
    %v287 = vld [vmem:[%s1 + $0x370] sm:$0xff]
    %v288 = vld [vmem:[%s1 + $0x378] sm:$0xff]
    %v289 = vld [vmem:[%s1 + $0x380] sm:$0xff]
    %v290 = vld [vmem:[%s1 + $0x388] sm:$0xff]
    %v291 = vld [vmem:[%s1 + $0x390] sm:$0xff]
    %v292 = vld [vmem:[%s1 + $0x398] sm:$0xff]
    %v293 = vld [vmem:[%s1 + $0x3a0] sm:$0xff]
    %v294 = vld [vmem:[%s1 + $0x3a8] sm:$0xff]
    %v295 = vld [vmem:[%s1 + $0x3b0] sm:$0xff]
    %v296 = vld [vmem:[%s1 + $0x3b8] sm:$0xff]
    %v297 = vld [vmem:[%s1 + $0x3c0] sm:$0xff]
    %v298 = vld [vmem:[%s1 + $0x3c8] sm:$0xff]
    %v299 = vld [vmem:[%s1 + $0x3d0] sm:$0xff]
    %v300 = vld [vmem:[%s1 + $0x3d8] sm:$0xff]
    %v301 = vld [vmem:[%s1 + $0x3e0] sm:$0xff]
    %v302 = vld [vmem:[%s1 + $0x3e8] sm:$0xff]
    %v303 = vld [vmem:[%s1 + $0x3f0] sm:$0xff]
    %v304 = vld [vmem:[%s1 + $0x3f8] sm:$0xff]
    %v305 = vld [vmem:[%s1 + $0x400] sm:$0xff]
    %v306 = vld [vmem:[%s1 + $0x408] sm:$0xff]
    %v307 = vld [vmem:[%s1 + $0x410] sm:$0xff]
    %v308 = vld [vmem:[%s1 + $0x418] sm:$0xff]
    %v309 = vld [vmem:[%s1 + $0x420] sm:$0xff]
    %v310 = vld [vmem:[%s1 + $0x428] sm:$0xff]
    %v311 = vld [vmem:[%s1 + $0x430] sm:$0xff]
    %v312 = vld [vmem:[%s1 + $0x438] sm:$0xff]
    %v313 = vld [vmem:[%s1 + $0x440] sm:$0xff]
    %v314 = vld [vmem:[%s1 + $0x448] sm:$0xff]
    %v315 = vld [vmem:[%s1 + $0x450] sm:$0xff]
    %v316 = vld [vmem:[%s1 + $0x458] sm:$0xff]
    %v317 = vld [vmem:[%s1 + $0x460] sm:$0xff]
    %v318 = vld [vmem:[%s1 + $0x468] sm:$0xff]
    %v319 = vld [vmem:[%s1 + $0x470] sm:$0xff]
    %v320 = vld [vmem:[%s1 + $0x478] sm:$0xff]
    %v321 = vld [vmem:[%s1 + $0x480] sm:$0xff]
    %v322 = vld [vmem:[%s1 + $0x488] sm:$0xff]
    %v323 = vld [vmem:[%s1 + $0x490] sm:$0xff]
    %v324 = vld [vmem:[%s1 + $0x498] sm:$0xff]
    %v325 = vld [vmem:[%s1 + $0x4a0] sm:$0xff]
    %v326 = vld [vmem:[%s1 + $0x4a8] sm:$0xff]
    %v327 = vld [vmem:[%s1 + $0x4b0] sm:$0xff]
    %v328 = vld [vmem:[%s1 + $0x4b8] sm:$0xff]
    %v329 = vld [vmem:[%s1 + $0x4c0] sm:$0xff]
    %v330 = vld [vmem:[%s1 + $0x4c8] sm:$0xff]
    %v331 = vld [vmem:[%s1 + $0x4d0] sm:$0xff]
    %v332 = vld [vmem:[%s1 + $0x4d8] sm:$0xff]
    %v333 = vld [vmem:[%s1 + $0x4e0] sm:$0xff]
    %v334 = vld [vmem:[%s1 + $0x4e8] sm:$0xff]
    %v335 = vld [vmem:[%s1 + $0x4f0] sm:$0xff]
    %v336 = vld [vmem:[%s1 + $0x4f8] sm:$0xff]
    %v337 = vld [vmem:[%s1 + $0x500] sm:$0xff]
    %v338 = vld [vmem:[%s1 + $0x508] sm:$0xff]
    %v339 = vld [vmem:[%s1 + $0x510] sm:$0xff]
    %v340 = vld [vmem:[%s1 + $0x518] sm:$0xff]
    %v341 = vld [vmem:[%s1 + $0x520] sm:$0xff]
    %v342 = vld [vmem:[%s1 + $0x528] sm:$0xff]
    %v343 = vld [vmem:[%s1 + $0x530] sm:$0xff]
    %v344 = vld [vmem:[%s1 + $0x538] sm:$0xff]
    %v345 = vld [vmem:[%s1 + $0x540] sm:$0xff]
    %v346 = vld [vmem:[%s1 + $0x548] sm:$0xff]
    %v347 = vld [vmem:[%s1 + $0x550] sm:$0xff]
    %v348 = vld [vmem:[%s1 + $0x558] sm:$0xff]
    %v349 = vld [vmem:[%s1 + $0x560] sm:$0xff]
    %v350 = vld [vmem:[%s1 + $0x568] sm:$0xff]
    %v351 = vld [vmem:[%s1 + $0x570] sm:$0xff]
    %v352 = vld [vmem:[%s1 + $0x578] sm:$0xff]
    %v353 = vld [vmem:[%s1 + $0x580] sm:$0xff]
    %v354 = vld [vmem:[%s1 + $0x588] sm:$0xff]
    %v355 = vld [vmem:[%s1 + $0x590] sm:$0xff]
    %v356 = vld [vmem:[%s1 + $0x598] sm:$0xff]
    %v357 = vld [vmem:[%s1 + $0x5a0] sm:$0xff]
    %v358 = vld [vmem:[%s1 + $0x5a8] sm:$0xff]
    %v359 = vld [vmem:[%s1 + $0x5b0] sm:$0xff]
    %v360 = vld [vmem:[%s1 + $0x5b8] sm:$0xff]
    %v361 = vld [vmem:[%s1 + $0x5c0] sm:$0xff]
    %v362 = vld [vmem:[%s1 + $0x5c8] sm:$0xff]
    %v363 = vld [vmem:[%s1 + $0x5d0] sm:$0xff]
    %v364 = vld [vmem:[%s1 + $0x5d8] sm:$0xff]
    %v365 = vld [vmem:[%s1 + $0x5e0] sm:$0xff]
    %v366 = vld [vmem:[%s1 + $0x5e8] sm:$0xff]
    %v367 = vld [vmem:[%s1 + $0x5f0] sm:$0xff]
    %v368 = vld [vmem:[%s1 + $0x5f8] sm:$0xff]
    %v369 = vld [vmem:[%s1 + $0x600] sm:$0xff]
    %v370 = vld [vmem:[%s1 + $0x608] sm:$0xff]
    %v371 = vld [vmem:[%s1 + $0x610] sm:$0xff]
    %v372 = vld [vmem:[%s1 + $0x618] sm:$0xff]
    %v373 = vld [vmem:[%s1 + $0x620] sm:$0xff]
    %v374 = vld [vmem:[%s1 + $0x628] sm:$0xff]
    %v375 = vld [vmem:[%s1 + $0x630] sm:$0xff]
    %v376 = vld [vmem:[%s1 + $0x638] sm:$0xff]
    %v377 = vld [vmem:[%s1 + $0x640] sm:$0xff]
    %v378 = vld [vmem:[%s1 + $0x648] sm:$0xff]
    %v379 = vld [vmem:[%s1 + $0x650] sm:$0xff]
    %v380 = vld [vmem:[%s1 + $0x658] sm:$0xff]
    %v381 = vld [vmem:[%s1 + $0x660] sm:$0xff]
    %v382 = vld [vmem:[%s1 + $0x668] sm:$0xff]
    %v383 = vld [vmem:[%s1 + $0x670] sm:$0xff]
    %v384 = vld [vmem:[%s1 + $0x678] sm:$0xff]
    %v385 = vld [vmem:[%s1 + $0x680] sm:$0xff]
    %v386 = vld [vmem:[%s1 + $0x688] sm:$0xff]
    %v387 = vld [vmem:[%s1 + $0x690] sm:$0xff]
    %v388 = vld [vmem:[%s1 + $0x698] sm:$0xff]
    %v389 = vld [vmem:[%s1 + $0x6a0] sm:$0xff]
    %v390 = vld [vmem:[%s1 + $0x6a8] sm:$0xff]
    %v391 = vld [vmem:[%s1 + $0x6b0] sm:$0xff]
    %v392 = vld [vmem:[%s1 + $0x6b8] sm:$0xff]
    %v393 = vld [vmem:[%s1 + $0x6c0] sm:$0xff]
    %v394 = vld [vmem:[%s1 + $0x6c8] sm:$0xff]
    %v395 = vld [vmem:[%s1 + $0x6d0] sm:$0xff]
    %v396 = vld [vmem:[%s1 + $0x6d8] sm:$0xff]
    %v397 = vld [vmem:[%s1 + $0x6e0] sm:$0xff]
    %v398 = vld [vmem:[%s1 + $0x6e8] sm:$0xff]
    %v399 = vld [vmem:[%s1 + $0x6f0] sm:$0xff]
    %v400 = vld [vmem:[%s1 + $0x6f8] sm:$0xff]
    %v401 = vld [vmem:[%s1 + $0x700] sm:$0xff]
    %v402 = vld [vmem:[%s1 + $0x708] sm:$0xff]
    %v403 = vld [vmem:[%s1 + $0x710] sm:$0xff]
    %v404 = vld [vmem:[%s1 + $0x718] sm:$0xff]
    %v405 = vld [vmem:[%s1 + $0x720] sm:$0xff]
    %v406 = vld [vmem:[%s1 + $0x728] sm:$0xff]
    %v407 = vld [vmem:[%s1 + $0x730] sm:$0xff]
    %v408 = vld [vmem:[%s1 + $0x738] sm:$0xff]
    %v409 = vld [vmem:[%s1 + $0x740] sm:$0xff]
    %v410 = vld [vmem:[%s1 + $0x748] sm:$0xff]
    %v411 = vld [vmem:[%s1 + $0x750] sm:$0xff]
    %v412 = vld [vmem:[%s1 + $0x758] sm:$0xff]
    %v413 = vld [vmem:[%s1 + $0x760] sm:$0xff]
    %v414 = vld [vmem:[%s1 + $0x768] sm:$0xff]
    %v415 = vld [vmem:[%s1 + $0x770] sm:$0xff]
    %v416 = vld [vmem:[%s1 + $0x778] sm:$0xff]
    %v417 = vld [vmem:[%s1 + $0x780] sm:$0xff]
    %v418 = vld [vmem:[%s1 + $0x788] sm:$0xff]
    %v419 = vld [vmem:[%s1 + $0x790] sm:$0xff]
    %v420 = vld [vmem:[%s1 + $0x798] sm:$0xff]
    %v421 = vld [vmem:[%s1 + $0x7a0] sm:$0xff]
    %v422 = vld [vmem:[%s1 + $0x7a8] sm:$0xff]
    %v423 = vld [vmem:[%s1 + $0x7b0] sm:$0xff]
    %v424 = vld [vmem:[%s1 + $0x7b8] sm:$0xff]
    %v425 = vld [vmem:[%s1 + $0x7c0] sm:$0xff]
    %v426 = vld [vmem:[%s1 + $0x7c8] sm:$0xff]
    %v427 = vld [vmem:[%s1 + $0x7d0] sm:$0xff]
    %v428 = vld [vmem:[%s1 + $0x7d8] sm:$0xff]
    %v429 = vld [vmem:[%s1 + $0x7e0] sm:$0xff]
    %v430 = vld [vmem:[%s1 + $0x7e8] sm:$0xff]
    %v431 = vld [vmem:[%s1 + $0x7f0] sm:$0xff]
    %v432 = vld [vmem:[%s1 + $0x7f8] sm:$0xff]
    %v433 = vld [vmem:[%s1 + $0x800] sm:$0xff]
    %v434 = vld [vmem:[%s1 + $0x808] sm:$0xff]
    %v435 = vld [vmem:[%s1 + $0x810] sm:$0xff]
    %v436 = vld [vmem:[%s1 + $0x818] sm:$0xff]
    %v437 = vld [vmem:[%s1 + $0x820] sm:$0xff]
    %v438 = vld [vmem:[%s1 + $0x828] sm:$0xff]
    %v439 = vld [vmem:[%s1 + $0x830] sm:$0xff]
    %v440 = vld [vmem:[%s1 + $0x838] sm:$0xff]
    %v441 = vld [vmem:[%s1 + $0x840] sm:$0xff]
    %v442 = vld [vmem:[%s1 + $0x848] sm:$0xff]
    %v443 = vld [vmem:[%s1 + $0x850] sm:$0xff]
    %v444 = vld [vmem:[%s1 + $0x858] sm:$0xff]
    %v445 = vld [vmem:[%s1 + $0x860] sm:$0xff]
    %v446 = vld [vmem:[%s1 + $0x868] sm:$0xff]
    %v447 = vld [vmem:[%s1 + $0x870] sm:$0xff]
    %v448 = vld [vmem:[%s1 + $0x878] sm:$0xff]
    %v449 = vld [vmem:[%s1 + $0x880] sm:$0xff]
    %v450 = vld [vmem:[%s1 + $0x888] sm:$0xff]
    %v451 = vld [vmem:[%s1 + $0x890] sm:$0xff]
    %v452 = vld [vmem:[%s1 + $0x898] sm:$0xff]
    %v453 = vld [vmem:[%s1 + $0x8a0] sm:$0xff]
    %v454 = vld [vmem:[%s1 + $0x8a8] sm:$0xff]
    %v455 = vld [vmem:[%s1 + $0x8b0] sm:$0xff]
    %v456 = vld [vmem:[%s1 + $0x8b8] sm:$0xff]
    %v457 = vld [vmem:[%s1 + $0x8c0] sm:$0xff]
    %v458 = vld [vmem:[%s1 + $0x8c8] sm:$0xff]
    %v459 = vld [vmem:[%s1 + $0x8d0] sm:$0xff]
    %v460 = vld [vmem:[%s1 + $0x8d8] sm:$0xff]
    %v461 = vld [vmem:[%s1 + $0x8e0] sm:$0xff]
    %v462 = vld [vmem:[%s1 + $0x8e8] sm:$0xff]
    %v463 = vld [vmem:[%s1 + $0x8f0] sm:$0xff]
    %v464 = vld [vmem:[%s1 + $0x8f8] sm:$0xff]
    %v465 = vld [vmem:[%s1 + $0x900] sm:$0xff]
    %v466 = vld [vmem:[%s1 + $0x908] sm:$0xff]
    %v467 = vld [vmem:[%s1 + $0x910] sm:$0xff]
    %v468 = vld [vmem:[%s1 + $0x918] sm:$0xff]
    %v469 = vld [vmem:[%s1 + $0x920] sm:$0xff]
    %v470 = vld [vmem:[%s1 + $0x928] sm:$0xff]
    %v471 = vld [vmem:[%s1 + $0x930] sm:$0xff]
    %v472 = vld [vmem:[%s1 + $0x938] sm:$0xff]
    %v473 = vld [vmem:[%s1 + $0x940] sm:$0xff]
    %v474 = vld [vmem:[%s1 + $0x948] sm:$0xff]
    %v475 = vld [vmem:[%s1 + $0x950] sm:$0xff]
    %v476 = vld [vmem:[%s1 + $0x958] sm:$0xff]
    %v477 = vld [vmem:[%s1 + $0x960] sm:$0xff]
    %v478 = vld [vmem:[%s1 + $0x968] sm:$0xff]
    %v479 = vld [vmem:[%s1 + $0x970] sm:$0xff]
    %v480 = vld [vmem:[%s1 + $0x978] sm:$0xff]
    %v481 = vld [vmem:[%s1 + $0x980] sm:$0xff]
    %v482 = vld [vmem:[%s1 + $0x988] sm:$0xff]
    %v483 = vld [vmem:[%s1 + $0x990] sm:$0xff]
    %v484 = vld [vmem:[%s1 + $0x998] sm:$0xff]
    %v485 = vld [vmem:[%s1 + $0x9a0] sm:$0xff]
    %v486 = vld [vmem:[%s1 + $0x9a8] sm:$0xff]
    %v487 = vld [vmem:[%s1 + $0x9b0] sm:$0xff]
    %v488 = vld [vmem:[%s1 + $0x9b8] sm:$0xff]
    %v489 = vld [vmem:[%s1 + $0x9c0] sm:$0xff]
    %v490 = vld [vmem:[%s1 + $0x9c8] sm:$0xff]
    %v491 = vld [vmem:[%s1 + $0x9d0] sm:$0xff]
    %v492 = vld [vmem:[%s1 + $0x9d8] sm:$0xff]
    %v493 = vld [vmem:[%s1 + $0x9e0] sm:$0xff]
    %v494 = vld [vmem:[%s1 + $0x9e8] sm:$0xff]
    %v495 = vld [vmem:[%s1 + $0x9f0] sm:$0xff]
    %v496 = vld [vmem:[%s1 + $0x9f8] sm:$0xff]
    %v497 = vld [vmem:[%s1 + $0xa00] sm:$0xff]
    %v498 = vld [vmem:[%s1 + $0xa08] sm:$0xff]
    %v499 = vld [vmem:[%s1 + $0xa10] sm:$0xff]
    %v500 = vld [vmem:[%s1 + $0xa18] sm:$0xff]
    %v501 = vld [vmem:[%s1 + $0xa20] sm:$0xff]
    %v502 = vld [vmem:[%s1 + $0xa28] sm:$0xff]
    %v503 = vld [vmem:[%s1 + $0xa30] sm:$0xff]
    %v504 = vld [vmem:[%s1 + $0xa38] sm:$0xff]
    %v505 = vld [vmem:[%s1 + $0xa40] sm:$0xff]
    %v506 = vld [vmem:[%s1 + $0xa48] sm:$0xff]
    %v507 = vld [vmem:[%s1 + $0xa50] sm:$0xff]
    %v508 = vld [vmem:[%s1 + $0xa58] sm:$0xff]
    %v509 = vld [vmem:[%s1 + $0xa60] sm:$0xff]
    %v510 = vld [vmem:[%s1 + $0xa68] sm:$0xff]
    %v511 = vld [vmem:[%s1 + $0xa70] sm:$0xff]
    %v512 = vld [vmem:[%s1 + $0xa78] sm:$0xff]
    %v513 = vld [vmem:[%s1 + $0xa80] sm:$0xff]
    %v514 = vld [vmem:[%s1 + $0xa88] sm:$0xff]
    %v515 = vld [vmem:[%s1 + $0xa90] sm:$0xff]
    %v516 = vld [vmem:[%s1 + $0xa98] sm:$0xff]
    %v517 = vld [vmem:[%s1 + $0xaa0] sm:$0xff]
    %v518 = vld [vmem:[%s1 + $0xaa8] sm:$0xff]
    %v519 = vld [vmem:[%s1 + $0xab0] sm:$0xff]
    %v520 = vld [vmem:[%s1 + $0xab8] sm:$0xff]
    %v521 = vld [vmem:[%s1 + $0xac0] sm:$0xff]
    %v522 = vld [vmem:[%s1 + $0xac8] sm:$0xff]
    %v523 = vld [vmem:[%s1 + $0xad0] sm:$0xff]
    %v524 = vld [vmem:[%s1 + $0xad8] sm:$0xff]
    %v525 = vld [vmem:[%s1 + $0xae0] sm:$0xff]
    %v526 = vld [vmem:[%s1 + $0xae8] sm:$0xff]
    %v527 = vld [vmem:[%s1 + $0xaf0] sm:$0xff]
    %v528 = vld [vmem:[%s1 + $0xaf8] sm:$0xff]
    %v529 = vld [vmem:[%s1 + $0xb00] sm:$0xff]
    %v530 = vld [vmem:[%s1 + $0xb08] sm:$0xff]
    %v531 = vld [vmem:[%s1 + $0xb10] sm:$0xff]
    %v532 = vld [vmem:[%s1 + $0xb18] sm:$0xff]
    %v533 = vld [vmem:[%s1 + $0xb20] sm:$0xff]
    %v534 = vld [vmem:[%s1 + $0xb28] sm:$0xff]
    %v535 = vld [vmem:[%s1 + $0xb30] sm:$0xff]
    %v536 = vld [vmem:[%s1 + $0xb38] sm:$0xff]
    %v537 = vld [vmem:[%s1 + $0xb40] sm:$0xff]
    %v538 = vld [vmem:[%s1 + $0xb48] sm:$0xff]
    %v539 = vld [vmem:[%s1 + $0xb50] sm:$0xff]
    %v540 = vld [vmem:[%s1 + $0xb58] sm:$0xff]
    %v541 = vld [vmem:[%s1 + $0xb60] sm:$0xff]
    %v542 = vld [vmem:[%s1 + $0xb68] sm:$0xff]
    %v543 = vld [vmem:[%s1 + $0xb70] sm:$0xff]
    %v544 = vld [vmem:[%s1 + $0xb78] sm:$0xff]
    %v545 = vld [vmem:[%s1 + $0xb80] sm:$0xff]
    %v546 = vld [vmem:[%s1 + $0xb88] sm:$0xff]
    %v547 = vld [vmem:[%s1 + $0xb90] sm:$0xff]
    %v548 = vld [vmem:[%s1 + $0xb98] sm:$0xff]
    %v549 = vld [vmem:[%s1 + $0xba0] sm:$0xff]
    %v550 = vld [vmem:[%s1 + $0xba8] sm:$0xff]
    %v551 = vld [vmem:[%s1 + $0xbb0] sm:$0xff]
    %v552 = vld [vmem:[%s1 + $0xbb8] sm:$0xff]
    %v553 = vld [vmem:[%s1 + $0xbc0] sm:$0xff]
    %v554 = vld [vmem:[%s1 + $0xbc8] sm:$0xff]
    %v555 = vld [vmem:[%s1 + $0xbd0] sm:$0xff]
    %v556 = vld [vmem:[%s1 + $0xbd8] sm:$0xff]
    %v557 = vld [vmem:[%s1 + $0xbe0] sm:$0xff]
    %v558 = vld [vmem:[%s1 + $0xbe8] sm:$0xff]
    %v559 = vld [vmem:[%s1 + $0xbf0] sm:$0xff]
    %v560 = vld [vmem:[%s1 + $0xbf8] sm:$0xff]
    %v561 = vld [vmem:[%s1 + $0xc00] sm:$0xff]
    %v562 = vld [vmem:[%s1 + $0xc08] sm:$0xff]
    %v563 = vld [vmem:[%s1 + $0xc10] sm:$0xff]
    %v564 = vld [vmem:[%s1 + $0xc18] sm:$0xff]
    %v565 = vld [vmem:[%s1 + $0xc20] sm:$0xff]
    %v566 = vld [vmem:[%s1 + $0xc28] sm:$0xff]
    %v567 = vld [vmem:[%s1 + $0xc30] sm:$0xff]
    %v568 = vld [vmem:[%s1 + $0xc38] sm:$0xff]
    %v569 = vld [vmem:[%s1 + $0xc40] sm:$0xff]
    %v570 = vld [vmem:[%s1 + $0xc48] sm:$0xff]
    %v571 = vld [vmem:[%s1 + $0xc50] sm:$0xff]
    %v572 = vld [vmem:[%s1 + $0xc58] sm:$0xff]
    %v573 = vld [vmem:[%s1 + $0xc60] sm:$0xff]
    %v574 = vld [vmem:[%s1 + $0xc68] sm:$0xff]
    %v575 = vld [vmem:[%s1 + $0xc70] sm:$0xff]
    %v576 = vld [vmem:[%s1 + $0xc78] sm:$0xff]
    %v577 = vld [vmem:[%s1 + $0xc80] sm:$0xff]
    %v578 = vld [vmem:[%s1 + $0xc88] sm:$0xff]
    %v579 = vld [vmem:[%s1 + $0xc90] sm:$0xff]
    %v580 = vld [vmem:[%s1 + $0xc98] sm:$0xff]
    %v581 = vld [vmem:[%s1 + $0xca0] sm:$0xff]
    %v582 = vld [vmem:[%s1 + $0xca8] sm:$0xff]
    %v583 = vld [vmem:[%s1 + $0xcb0] sm:$0xff]
    %v584 = vld [vmem:[%s1 + $0xcb8] sm:$0xff]
    %v585 = vld [vmem:[%s1 + $0xcc0] sm:$0xff]
    %v586 = vld [vmem:[%s1 + $0xcc8] sm:$0xff]
    %v587 = vld [vmem:[%s1 + $0xcd0] sm:$0xff]
    %v588 = vld [vmem:[%s1 + $0xcd8] sm:$0xff]
    %v589 = vld [vmem:[%s1 + $0xce0] sm:$0xff]
    %v590 = vld [vmem:[%s1 + $0xce8] sm:$0xff]
    %v591 = vld [vmem:[%s1 + $0xcf0] sm:$0xff]
    %v592 = vld [vmem:[%s1 + $0xcf8] sm:$0xff]
    %v593 = vld [vmem:[%s1 + $0xd00] sm:$0xff]
    %v594 = vld [vmem:[%s1 + $0xd08] sm:$0xff]
    %v595 = vld [vmem:[%s1 + $0xd10] sm:$0xff]
    %v596 = vld [vmem:[%s1 + $0xd18] sm:$0xff]
    %v597 = vld [vmem:[%s1 + $0xd20] sm:$0xff]
    %v598 = vld [vmem:[%s1 + $0xd28] sm:$0xff]
    %v599 = vld [vmem:[%s1 + $0xd30] sm:$0xff]
    %v600 = vld [vmem:[%s1 + $0xd38] sm:$0xff]
    %v601 = vld [vmem:[%s1 + $0xd40] sm:$0xff]
    %v602 = vld [vmem:[%s1 + $0xd48] sm:$0xff]
    %v603 = vld [vmem:[%s1 + $0xd50] sm:$0xff]
    %v604 = vld [vmem:[%s1 + $0xd58] sm:$0xff]
    %v605 = vld [vmem:[%s1 + $0xd60] sm:$0xff]
    %v606 = vld [vmem:[%s1 + $0xd68] sm:$0xff]
    %v607 = vld [vmem:[%s1 + $0xd70] sm:$0xff]
    %v608 = vld [vmem:[%s1 + $0xd78] sm:$0xff]
    %v609 = vld [vmem:[%s1 + $0xd80] sm:$0xff]
    %v610 = vld [vmem:[%s1 + $0xd88] sm:$0xff]
    %v611 = vld [vmem:[%s1 + $0xd90] sm:$0xff]
    %v612 = vld [vmem:[%s1 + $0xd98] sm:$0xff]
    %v613 = vld [vmem:[%s1 + $0xda0] sm:$0xff]
    %v614 = vld [vmem:[%s1 + $0xda8] sm:$0xff]
    %v615 = vld [vmem:[%s1 + $0xdb0] sm:$0xff]
    %v616 = vld [vmem:[%s1 + $0xdb8] sm:$0xff]
    %v617 = vld [vmem:[%s1 + $0xdc0] sm:$0xff]
    %v618 = vld [vmem:[%s1 + $0xdc8] sm:$0xff]
    %v619 = vld [vmem:[%s1 + $0xdd0] sm:$0xff]
    %v620 = vld [vmem:[%s1 + $0xdd8] sm:$0xff]
    %v621 = vld [vmem:[%s1 + $0xde0] sm:$0xff]
    %v622 = vld [vmem:[%s1 + $0xde8] sm:$0xff]
    %v623 = vld [vmem:[%s1 + $0xdf0] sm:$0xff]
    %v624 = vld [vmem:[%s1 + $0xdf8] sm:$0xff]
    %v625 = vld [vmem:[%s1 + $0xe00] sm:$0xff]
    %v626 = vld [vmem:[%s1 + $0xe08] sm:$0xff]
    %v627 = vld [vmem:[%s1 + $0xe10] sm:$0xff]
    %v628 = vld [vmem:[%s1 + $0xe18] sm:$0xff]
    %v629 = vld [vmem:[%s1 + $0xe20] sm:$0xff]
    %v630 = vld [vmem:[%s1 + $0xe28] sm:$0xff]
    %v631 = vld [vmem:[%s1 + $0xe30] sm:$0xff]
    %v632 = vld [vmem:[%s1 + $0xe38] sm:$0xff]
    %v633 = vld [vmem:[%s1 + $0xe40] sm:$0xff]
    %v634 = vld [vmem:[%s1 + $0xe48] sm:$0xff]
    %v635 = vld [vmem:[%s1 + $0xe50] sm:$0xff]
    %v636 = vld [vmem:[%s1 + $0xe58] sm:$0xff]
    %v637 = vld [vmem:[%s1 + $0xe60] sm:$0xff]
    %v638 = vld [vmem:[%s1 + $0xe68] sm:$0xff]
    %v639 = vld [vmem:[%s1 + $0xe70] sm:$0xff]
    %v640 = vld [vmem:[%s1 + $0xe78] sm:$0xff]
    %v641 = vld [vmem:[%s1 + $0xe80] sm:$0xff]
    %v642 = vld [vmem:[%s1 + $0xe88] sm:$0xff]
    %v643 = vld [vmem:[%s1 + $0xe90] sm:$0xff]
    %v644 = vld [vmem:[%s1 + $0xe98] sm:$0xff]
    %v645 = vld [vmem:[%s1 + $0xea0] sm:$0xff]
    %v646 = vld [vmem:[%s1 + $0xea8] sm:$0xff]
    %v647 = vld [vmem:[%s1 + $0xeb0] sm:$0xff]
    %v648 = vld [vmem:[%s1 + $0xeb8] sm:$0xff]
    %v649 = vld [vmem:[%s1 + $0xec0] sm:$0xff]
    %v650 = vld [vmem:[%s1 + $0xec8] sm:$0xff]
    %v651 = vld [vmem:[%s1 + $0xed0] sm:$0xff]
    %v652 = vld [vmem:[%s1 + $0xed8] sm:$0xff]
    %v653 = vld [vmem:[%s1 + $0xee0] sm:$0xff]
    %v654 = vld [vmem:[%s1 + $0xee8] sm:$0xff]
    %v655 = vld [vmem:[%s1 + $0xef0] sm:$0xff]
    %v656 = vld [vmem:[%s1 + $0xef8] sm:$0xff]
    %v657 = vld [vmem:[%s1 + $0xf00] sm:$0xff]
    %v658 = vld [vmem:[%s1 + $0xf08] sm:$0xff]
    %v659 = vld [vmem:[%s1 + $0xf10] sm:$0xff]
    %v660 = vld [vmem:[%s1 + $0xf18] sm:$0xff]
    %v661 = vld [vmem:[%s1 + $0xf20] sm:$0xff]
    %v662 = vld [vmem:[%s1 + $0xf28] sm:$0xff]
    %v663 = vld [vmem:[%s1 + $0xf30] sm:$0xff]
    %v664 = vld [vmem:[%s1 + $0xf38] sm:$0xff]
    %v665 = vld [vmem:[%s1 + $0xf40] sm:$0xff]
    %v666 = vld [vmem:[%s1 + $0xf48] sm:$0xff]
    %v667 = vld [vmem:[%s1 + $0xf50] sm:$0xff]
    %v668 = vld [vmem:[%s1 + $0xf58] sm:$0xff]
    %v669 = vld [vmem:[%s1 + $0xf60] sm:$0xff]
    %v670 = vld [vmem:[%s1 + $0xf68] sm:$0xff]
    %v671 = vld [vmem:[%s1 + $0xf70] sm:$0xff]
    %v672 = vld [vmem:[%s1 + $0xf78] sm:$0xff]
    %v673 = vld [vmem:[%s1 + $0xf80] sm:$0xff]
    %v674 = vld [vmem:[%s1 + $0xf88] sm:$0xff]
    %v675 = vld [vmem:[%s1 + $0xf90] sm:$0xff]
    %v676 = vld [vmem:[%s1 + $0xf98] sm:$0xff]
    %v677 = vld [vmem:[%s1 + $0xfa0] sm:$0xff]
    %v678 = vld [vmem:[%s1 + $0xfa8] sm:$0xff]
    %v679 = vld [vmem:[%s1 + $0xfb0] sm:$0xff]
    %v680 = vld [vmem:[%s1 + $0xfb8] sm:$0xff]
    %v681 = vld [vmem:[%s1 + $0xfc0] sm:$0xff]
    %v682 = vld [vmem:[%s1 + $0xfc8] sm:$0xff]
    %v683 = vld [vmem:[%s1 + $0xfd0] sm:$0xff]
    %v684 = vld [vmem:[%s1 + $0xfd8] sm:$0xff]
    %v685 = vld [vmem:[%s1 + $0xfe0] sm:$0xff]
    %v686 = vld [vmem:[%s1 + $0xfe8] sm:$0xff]
    %v687 = vld [vmem:[%s1 + $0xff0] sm:$0xff]
    %v688 = vld [vmem:[%s1 + $0xff8] sm:$0xff]
    %v689 = vld [vmem:[%s1 + $0x1000] sm:$0xff]
    %v690 = vld [vmem:[%s1 + $0x1008] sm:$0xff]
    %v691 = vld [vmem:[%s1 + $0x1010] sm:$0xff]
    %v692 = vld [vmem:[%s1 + $0x1018] sm:$0xff]
    %v693 = vld [vmem:[%s1 + $0x1020] sm:$0xff]
    %v694 = vld [vmem:[%s1 + $0x1028] sm:$0xff]
    %v695 = vld [vmem:[%s1 + $0x1030] sm:$0xff]
    %v696 = vld [vmem:[%s1 + $0x1038] sm:$0xff]
    %v697 = vld [vmem:[%s1 + $0x1040] sm:$0xff]
    %v698 = vld [vmem:[%s1 + $0x1048] sm:$0xff]
    %v699 = vld [vmem:[%s1 + $0x1050] sm:$0xff]
    %v700 = vld [vmem:[%s1 + $0x1058] sm:$0xff]
    %v701 = vld [vmem:[%s1 + $0x1060] sm:$0xff]
    %v702 = vld [vmem:[%s1 + $0x1068] sm:$0xff]
    %v703 = vld [vmem:[%s1 + $0x1070] sm:$0xff]
    %v704 = vld [vmem:[%s1 + $0x1078] sm:$0xff]
    %v705 = vld [vmem:[%s1 + $0x1080] sm:$0xff]
    %v706 = vld [vmem:[%s1 + $0x1088] sm:$0xff]
    %v707 = vld [vmem:[%s1 + $0x1090] sm:$0xff]
    %v708 = vld [vmem:[%s1 + $0x1098] sm:$0xff]
    %v709 = vld [vmem:[%s1 + $0x10a0] sm:$0xff]
    %v710 = vld [vmem:[%s1 + $0x10a8] sm:$0xff]
    %v711 = vld [vmem:[%s1 + $0x10b0] sm:$0xff]
    %v712 = vld [vmem:[%s1 + $0x10b8] sm:$0xff]
    %v713 = vld [vmem:[%s1 + $0x10c0] sm:$0xff]
    %v714 = vld [vmem:[%s1 + $0x10c8] sm:$0xff]
    %v715 = vld [vmem:[%s1 + $0x10d0] sm:$0xff]
    %v716 = vld [vmem:[%s1 + $0x10d8] sm:$0xff]
    %v717 = vld [vmem:[%s1 + $0x10e0] sm:$0xff]
    %v718 = vld [vmem:[%s1 + $0x10e8] sm:$0xff]
    %v719 = vld [vmem:[%s1 + $0x10f0] sm:$0xff]
    %v720 = vld [vmem:[%s1 + $0x10f8] sm:$0xff]
    %v721 = vld [vmem:[%s1 + $0x1100] sm:$0xff]
    %v722 = vld [vmem:[%s1 + $0x1108] sm:$0xff]
    %v723 = vld [vmem:[%s1 + $0x1110] sm:$0xff]
    %v724 = vld [vmem:[%s1 + $0x1118] sm:$0xff]
    %v725 = vld [vmem:[%s1 + $0x1120] sm:$0xff]
    %v726 = vld [vmem:[%s1 + $0x1128] sm:$0xff]
    %v727 = vld [vmem:[%s1 + $0x1130] sm:$0xff]
    %v728 = vld [vmem:[%s1 + $0x1138] sm:$0xff]
    %v729 = vld [vmem:[%s1 + $0x1140] sm:$0xff]
    %v730 = vld [vmem:[%s1 + $0x1148] sm:$0xff]
    %v731 = vld [vmem:[%s1 + $0x1150] sm:$0xff]
    %v732 = vld [vmem:[%s1 + $0x1158] sm:$0xff]
    %v733 = vld [vmem:[%s1 + $0x1160] sm:$0xff]
    %v734 = vld [vmem:[%s1 + $0x1168] sm:$0xff]
    %v735 = vld [vmem:[%s1 + $0x1170] sm:$0xff]
    %v736 = vld [vmem:[%s1 + $0x1178] sm:$0xff]
    %v737 = vld [vmem:[%s1 + $0x1180] sm:$0xff]
    %v738 = vld [vmem:[%s1 + $0x1188] sm:$0xff]
    %v739 = vld [vmem:[%s1 + $0x1190] sm:$0xff]
    %v740 = vld [vmem:[%s1 + $0x1198] sm:$0xff]
    %v741 = vld [vmem:[%s1 + $0x11a0] sm:$0xff]
    %v742 = vld [vmem:[%s1 + $0x11a8] sm:$0xff]
    %v743 = vld [vmem:[%s1 + $0x11b0] sm:$0xff]
    %v744 = vld [vmem:[%s1 + $0x11b8] sm:$0xff]
    %v745 = vld [vmem:[%s1 + $0x11c0] sm:$0xff]
    %v746 = vld [vmem:[%s1 + $0x11c8] sm:$0xff]
    %v747 = vld [vmem:[%s1 + $0x11d0] sm:$0xff]
    %v748 = vld [vmem:[%s1 + $0x11d8] sm:$0xff]
    %v749 = vld [vmem:[%s1 + $0x11e0] sm:$0xff]
    %v750 = vld [vmem:[%s1 + $0x11e8] sm:$0xff]
    %v751 = vld [vmem:[%s1 + $0x11f0] sm:$0xff]
    %v752 = vld [vmem:[%s1 + $0x11f8] sm:$0xff]
    %v753 = vld [vmem:[%s1 + $0x1200] sm:$0xff]
    %v754 = vld [vmem:[%s1 + $0x1208] sm:$0xff]
    %v755 = vld [vmem:[%s1 + $0x1210] sm:$0xff]
    %v756 = vld [vmem:[%s1 + $0x1218] sm:$0xff]
    %v757 = vld [vmem:[%s1 + $0x1220] sm:$0xff]
    %v758 = vld [vmem:[%s1 + $0x1228] sm:$0xff]
    %v759 = vld [vmem:[%s1 + $0x1230] sm:$0xff]
    %v760 = vld [vmem:[%s1 + $0x1238] sm:$0xff]
    %v761 = vld [vmem:[%s1 + $0x1240] sm:$0xff]
    %v762 = vld [vmem:[%s1 + $0x1248] sm:$0xff]
    %v763 = vld [vmem:[%s1 + $0x1250] sm:$0xff]
    %v764 = vld [vmem:[%s1 + $0x1258] sm:$0xff]
    %v765 = vld [vmem:[%s1 + $0x1260] sm:$0xff]
    %v766 = vld [vmem:[%s1 + $0x1268] sm:$0xff]
    %v767 = vld [vmem:[%s1 + $0x1270] sm:$0xff]
    %v768 = vld [vmem:[%s1 + $0x1278] sm:$0xff]
    %v769 = vld [vmem:[%s1 + $0x1280] sm:$0xff]
    %v770 = vld [vmem:[%s1 + $0x1288] sm:$0xff]
    %v771 = vld [vmem:[%s1 + $0x1290] sm:$0xff]
    %v772 = vld [vmem:[%s1 + $0x1298] sm:$0xff]
    %v773 = vld [vmem:[%s1 + $0x12a0] sm:$0xff]
    %v774 = vld [vmem:[%s1 + $0x12a8] sm:$0xff]
    %v775 = vld [vmem:[%s1 + $0x12b0] sm:$0xff]
    %v776 = vld [vmem:[%s1 + $0x12b8] sm:$0xff]
    %v777 = vld [vmem:[%s1 + $0x12c0] sm:$0xff]
    %v778 = vld [vmem:[%s1 + $0x12c8] sm:$0xff]
    %v779 = vld [vmem:[%s1 + $0x12d0] sm:$0xff]
    %v780 = vld [vmem:[%s1 + $0x12d8] sm:$0xff]
    %v781 = vld [vmem:[%s1 + $0x12e0] sm:$0xff]
    %v782 = vld [vmem:[%s1 + $0x12e8] sm:$0xff]
    %v783 = vld [vmem:[%s1 + $0x12f0] sm:$0xff]
    %v784 = vld [vmem:[%s1 + $0x12f8] sm:$0xff]
    %v785 = vld [vmem:[%s1 + $0x1300] sm:$0xff]
    %v786 = vld [vmem:[%s1 + $0x1308] sm:$0xff]
    %v787 = vld [vmem:[%s1 + $0x1310] sm:$0xff]
    %v788 = vld [vmem:[%s1 + $0x1318] sm:$0xff]
    %v789 = vld [vmem:[%s1 + $0x1320] sm:$0xff]
    %v790 = vld [vmem:[%s1 + $0x1328] sm:$0xff]
    %v791 = vld [vmem:[%s1 + $0x1330] sm:$0xff]
    %v792 = vld [vmem:[%s1 + $0x1338] sm:$0xff]
    %v793 = vld [vmem:[%s1 + $0x1340] sm:$0xff]
    %v794 = vld [vmem:[%s1 + $0x1348] sm:$0xff]
    %v795 = vld [vmem:[%s1 + $0x1350] sm:$0xff]
    %v796 = vld [vmem:[%s1 + $0x1358] sm:$0xff]
    %v797 = vld [vmem:[%s1 + $0x1360] sm:$0xff]
    %v798 = vld [vmem:[%s1 + $0x1368] sm:$0xff]
    %v799 = vld [vmem:[%s1 + $0x1370] sm:$0xff]
    %v800 = vld [vmem:[%s1 + $0x1378] sm:$0xff]
    %v801 = vld [vmem:[%s1 + $0x1380] sm:$0xff]
    %v802 = vld [vmem:[%s1 + $0x1388] sm:$0xff]
    %v803 = vld [vmem:[%s1 + $0x1390] sm:$0xff]
    %v804 = vld [vmem:[%s1 + $0x1398] sm:$0xff]
    %v805 = vld [vmem:[%s1 + $0x13a0] sm:$0xff]
    %v806 = vld [vmem:[%s1 + $0x13a8] sm:$0xff]
    %v807 = vld [vmem:[%s1 + $0x13b0] sm:$0xff]
    %v808 = vld [vmem:[%s1 + $0x13b8] sm:$0xff]
    %v809 = vld [vmem:[%s1 + $0x13c0] sm:$0xff]
    %v810 = vld [vmem:[%s1 + $0x13c8] sm:$0xff]
    %v811 = vld [vmem:[%s1 + $0x13d0] sm:$0xff]
    %v812 = vld [vmem:[%s1 + $0x13d8] sm:$0xff]
    %v813 = vld [vmem:[%s1 + $0x13e0] sm:$0xff]
    %v814 = vld [vmem:[%s1 + $0x13e8] sm:$0xff]
    %v815 = vld [vmem:[%s1 + $0x13f0] sm:$0xff]
    %v816 = vld [vmem:[%s1 + $0x13f8] sm:$0xff]
    %v817 = vld [vmem:[%s1 + $0x1400] sm:$0xff]
    %v818 = vld [vmem:[%s1 + $0x1408] sm:$0xff]
    %v819 = vld [vmem:[%s1 + $0x1410] sm:$0xff]
    %v820 = vld [vmem:[%s1 + $0x1418] sm:$0xff]
    %v821 = vld [vmem:[%s1 + $0x1420] sm:$0xff]
    %v822 = vld [vmem:[%s1 + $0x1428] sm:$0xff]
    %v823 = vld [vmem:[%s1 + $0x1430] sm:$0xff]
    %v824 = vld [vmem:[%s1 + $0x1438] sm:$0xff]
    %v825 = vld [vmem:[%s1 + $0x1440] sm:$0xff]
    %v826 = vld [vmem:[%s1 + $0x1448] sm:$0xff]
    %v827 = vld [vmem:[%s1 + $0x1450] sm:$0xff]
    %v828 = vld [vmem:[%s1 + $0x1458] sm:$0xff]
    %v829 = vld [vmem:[%s1 + $0x1460] sm:$0xff]
    %v830 = vld [vmem:[%s1 + $0x1468] sm:$0xff]
    %v831 = vld [vmem:[%s1 + $0x1470] sm:$0xff]
    %v832 = vld [vmem:[%s1 + $0x1478] sm:$0xff]
    %v833 = vld [vmem:[%s1 + $0x1480] sm:$0xff]
    %v834 = vld [vmem:[%s1 + $0x1488] sm:$0xff]
    %v835 = vld [vmem:[%s1 + $0x1490] sm:$0xff]
    %v836 = vld [vmem:[%s1 + $0x1498] sm:$0xff]
    %v837 = vld [vmem:[%s1 + $0x14a0] sm:$0xff]
    %v838 = vld [vmem:[%s1 + $0x14a8] sm:$0xff]
    %v839 = vld [vmem:[%s1 + $0x14b0] sm:$0xff]
    %v840 = vld [vmem:[%s1 + $0x14b8] sm:$0xff]
    %v841 = vld [vmem:[%s1 + $0x14c0] sm:$0xff]
    %v842 = vld [vmem:[%s1 + $0x14c8] sm:$0xff]
    %v843 = vld [vmem:[%s1 + $0x14d0] sm:$0xff]
    %v844 = vld [vmem:[%s1 + $0x14d8] sm:$0xff]
    %v845 = vld [vmem:[%s1 + $0x14e0] sm:$0xff]
    %v846 = vld [vmem:[%s1 + $0x14e8] sm:$0xff]
    %v847 = vld [vmem:[%s1 + $0x14f0] sm:$0xff]
    %v848 = vld [vmem:[%s1 + $0x14f8] sm:$0xff]
    %v849 = vld [vmem:[%s1 + $0x1500] sm:$0xff]
    %v850 = vld [vmem:[%s1 + $0x1508] sm:$0xff]
    %v851 = vld [vmem:[%s1 + $0x1510] sm:$0xff]
    %v852 = vld [vmem:[%s1 + $0x1518] sm:$0xff]
    %v853 = vld [vmem:[%s2] sm:$0xf]
    %v855 = vlaneseq
    %v856 = vshrl.u32 %v855, 7
    %v857 = vsub.s32 0, %v856
    %v858 = vrot.slane %v853, %v857
    %v859 = vlaneseq
    %v860 = vshrl.u32 %v859, 7
    %v861 = vsub.s32 1, %v860
    %v862 = vrot.slane %v853, %v861
    %v863 = vlaneseq
    %v864 = vshrl.u32 %v863, 7
    %v865 = vsub.s32 2, %v864
    %v866 = vrot.slane %v853, %v865
    %v867 = vlaneseq
    %v868 = vshrl.u32 %v867, 7
    %v869 = vsub.s32 3, %v868
    %v870 = vrot.slane %v853, %v869
    %v1551 = vunpack.c.l.b16 %v177
    %v1552 = vunpack.c.h.b16 %v177
    %v1553 = vunpack.c.l.b16 %v178
    %v1554 = vunpack.c.h.b16 %v178
    %v1555 = vunpack.c.l.b16 %v179
    %v1556 = vunpack.c.h.b16 %v179
    %v1557 = vunpack.c.l.b16 %v180
    %v1558 = vunpack.c.h.b16 %v180
    %v1559 = vunpack.c.l.b16 %v181
    %v1560 = vunpack.c.h.b16 %v181
    %v1561 = vunpack.c.l.b16 %v182
    %v1562 = vunpack.c.h.b16 %v182
    %v1563 = vunpack.c.l.b16 %v183
    %v1564 = vunpack.c.h.b16 %v183
    %v1565 = vunpack.c.l.b16 %v184
    %v1566 = vunpack.c.h.b16 %v184
    %v1567 = vunpack.c.l.b16 %v185
    %v1568 = vunpack.c.h.b16 %v185
    %v1569 = vunpack.c.l.b16 %v186
    %v1570 = vunpack.c.h.b16 %v186
    %v1571 = vunpack.c.l.b16 %v187
    %v1572 = vunpack.c.h.b16 %v187
    %v1573 = vunpack.c.l.b16 %v188
    %v1574 = vunpack.c.h.b16 %v188
    %v1575 = vunpack.c.l.b16 %v189
    %v1576 = vunpack.c.h.b16 %v189
    %v1577 = vunpack.c.l.b16 %v190
    %v1578 = vunpack.c.h.b16 %v190
    %v1579 = vunpack.c.l.b16 %v191
    %v1580 = vunpack.c.h.b16 %v191
    %v1581 = vunpack.c.l.b16 %v192
    %v1582 = vunpack.c.h.b16 %v192
    %v1583 = vunpack.c.l.b16 %v193
    %v1584 = vunpack.c.h.b16 %v193
    %v1585 = vunpack.c.l.b16 %v194
    %v1586 = vunpack.c.h.b16 %v194
    %v1587 = vunpack.c.l.b16 %v195
    %v1588 = vunpack.c.h.b16 %v195
    %v1589 = vunpack.c.l.b16 %v196
    %v1590 = vunpack.c.h.b16 %v196
    %v1591 = vunpack.c.l.b16 %v197
    %v1592 = vunpack.c.h.b16 %v197
    %v1593 = vunpack.c.l.b16 %v198
    %v1594 = vunpack.c.h.b16 %v198
    %v1595 = vunpack.c.l.b16 %v199
    %v1596 = vunpack.c.h.b16 %v199
    %v1597 = vunpack.c.l.b16 %v200
    %v1598 = vunpack.c.h.b16 %v200
    %v1599 = vunpack.c.l.b16 %v201
    %v1600 = vunpack.c.h.b16 %v201
    %v1601 = vunpack.c.l.b16 %v202
    %v1602 = vunpack.c.h.b16 %v202
    %v1603 = vunpack.c.l.b16 %v203
    %v1604 = vunpack.c.h.b16 %v203
    %v1605 = vunpack.c.l.b16 %v204
    %v1606 = vunpack.c.h.b16 %v204
    %v1607 = vunpack.c.l.b16 %v205
    %v1608 = vunpack.c.h.b16 %v205
    %v1609 = vunpack.c.l.b16 %v206
    %v1610 = vunpack.c.h.b16 %v206
    %v1611 = vunpack.c.l.b16 %v207
    %v1612 = vunpack.c.h.b16 %v207
    %v1613 = vunpack.c.l.b16 %v208
    %v1614 = vunpack.c.h.b16 %v208
    %v1615 = vunpack.c.l.b16 %v209
    %v1616 = vunpack.c.h.b16 %v209
    %v1617 = vunpack.c.l.b16 %v210
    %v1618 = vunpack.c.h.b16 %v210
    %v1619 = vunpack.c.l.b16 %v211
    %v1620 = vunpack.c.h.b16 %v211
    %v1621 = vunpack.c.l.b16 %v212
    %v1622 = vunpack.c.h.b16 %v212
    %v1623 = vunpack.c.l.b16 %v213
    %v1624 = vunpack.c.h.b16 %v213
    %v1625 = vunpack.c.l.b16 %v214
    %v1626 = vunpack.c.h.b16 %v214
    %v1627 = vunpack.c.l.b16 %v215
    %v1628 = vunpack.c.h.b16 %v215
    %v1629 = vunpack.c.l.b16 %v216
    %v1630 = vunpack.c.h.b16 %v216
    %v1631 = vunpack.c.l.b16 %v217
    %v1632 = vunpack.c.h.b16 %v217
    %v1633 = vunpack.c.l.b16 %v218
    %v1634 = vunpack.c.h.b16 %v218
    %v1635 = vunpack.c.l.b16 %v219
    %v1636 = vunpack.c.h.b16 %v219
    %v1637 = vunpack.c.l.b16 %v220
    %v1638 = vunpack.c.h.b16 %v220
    %v1639 = vunpack.c.l.b16 %v221
    %v1640 = vunpack.c.h.b16 %v221
    %v1641 = vunpack.c.l.b16 %v222
    %v1642 = vunpack.c.h.b16 %v222
    %v1643 = vunpack.c.l.b16 %v223
    %v1644 = vunpack.c.h.b16 %v223
    %v1645 = vunpack.c.l.b16 %v224
    %v1646 = vunpack.c.h.b16 %v224
    %v1647 = vunpack.c.l.b16 %v225
    %v1648 = vunpack.c.h.b16 %v225
    %v1649 = vunpack.c.l.b16 %v226
    %v1650 = vunpack.c.h.b16 %v226
    %v1651 = vunpack.c.l.b16 %v227
    %v1652 = vunpack.c.h.b16 %v227
    %v1653 = vunpack.c.l.b16 %v228
    %v1654 = vunpack.c.h.b16 %v228
    %v1655 = vunpack.c.l.b16 %v229
    %v1656 = vunpack.c.h.b16 %v229
    %v1657 = vunpack.c.l.b16 %v230
    %v1658 = vunpack.c.h.b16 %v230
    %v1659 = vunpack.c.l.b16 %v231
    %v1660 = vunpack.c.h.b16 %v231
    %v1661 = vunpack.c.l.b16 %v232
    %v1662 = vunpack.c.h.b16 %v232
    %v1663 = vunpack.c.l.b16 %v233
    %v1664 = vunpack.c.h.b16 %v233
    %v1665 = vunpack.c.l.b16 %v234
    %v1666 = vunpack.c.h.b16 %v234
    %v1667 = vunpack.c.l.b16 %v235
    %v1668 = vunpack.c.h.b16 %v235
    %v1669 = vunpack.c.l.b16 %v236
    %v1670 = vunpack.c.h.b16 %v236
    %v1671 = vunpack.c.l.b16 %v237
    %v1672 = vunpack.c.h.b16 %v237
    %v1673 = vunpack.c.l.b16 %v238
    %v1674 = vunpack.c.h.b16 %v238
    %v1675 = vunpack.c.l.b16 %v239
    %v1676 = vunpack.c.h.b16 %v239
    %v1677 = vunpack.c.l.b16 %v240
    %v1678 = vunpack.c.h.b16 %v240
    %v1679 = vunpack.c.l.b16 %v241
    %v1680 = vunpack.c.h.b16 %v241
    %v1681 = vunpack.c.l.b16 %v242
    %v1682 = vunpack.c.h.b16 %v242
    %v1683 = vunpack.c.l.b16 %v243
    %v1684 = vunpack.c.h.b16 %v243
    %v1685 = vunpack.c.l.b16 %v244
    %v1686 = vunpack.c.h.b16 %v244
    %v1687 = vunpack.c.l.b16 %v245
    %v1688 = vunpack.c.h.b16 %v245
    %v1689 = vunpack.c.l.b16 %v246
    %v1690 = vunpack.c.h.b16 %v246
    %v1691 = vunpack.c.l.b16 %v247
    %v1692 = vunpack.c.h.b16 %v247
    %v1693 = vunpack.c.l.b16 %v248
    %v1694 = vunpack.c.h.b16 %v248
    %v1695 = vunpack.c.l.b16 %v249
    %v1696 = vunpack.c.h.b16 %v249
    %v1697 = vunpack.c.l.b16 %v250
    %v1698 = vunpack.c.h.b16 %v250
    %v1699 = vunpack.c.l.b16 %v251
    %v1700 = vunpack.c.h.b16 %v251
    %v1701 = vunpack.c.l.b16 %v252
    %v1702 = vunpack.c.h.b16 %v252
    %v1703 = vunpack.c.l.b16 %v253
    %v1704 = vunpack.c.h.b16 %v253
    %v1705 = vunpack.c.l.b16 %v254
    %v1706 = vunpack.c.h.b16 %v254
    %v1707 = vunpack.c.l.b16 %v255
    %v1708 = vunpack.c.h.b16 %v255
    %v1709 = vunpack.c.l.b16 %v256
    %v1710 = vunpack.c.h.b16 %v256
    %v1711 = vunpack.c.l.b16 %v257
    %v1712 = vunpack.c.h.b16 %v257
    %v1713 = vunpack.c.l.b16 %v258
    %v1714 = vunpack.c.h.b16 %v258
    %v1715 = vunpack.c.l.b16 %v259
    %v1716 = vunpack.c.h.b16 %v259
    %v1717 = vunpack.c.l.b16 %v260
    %v1718 = vunpack.c.h.b16 %v260
    %v1719 = vunpack.c.l.b16 %v261
    %v1720 = vunpack.c.h.b16 %v261
    %v1721 = vunpack.c.l.b16 %v262
    %v1722 = vunpack.c.h.b16 %v262
    %v1723 = vunpack.c.l.b16 %v263
    %v1724 = vunpack.c.h.b16 %v263
    %v1725 = vunpack.c.l.b16 %v264
    %v1726 = vunpack.c.h.b16 %v264
    %v1727 = vunpack.c.l.b16 %v265
    %v1728 = vunpack.c.h.b16 %v265
    %v1729 = vunpack.c.l.b16 %v266
    %v1730 = vunpack.c.h.b16 %v266
    %v1731 = vunpack.c.l.b16 %v267
    %v1732 = vunpack.c.h.b16 %v267
    %v1733 = vunpack.c.l.b16 %v268
    %v1734 = vunpack.c.h.b16 %v268
    %v1735 = vunpack.c.l.b16 %v269
    %v1736 = vunpack.c.h.b16 %v269
    %v1737 = vunpack.c.l.b16 %v270
    %v1738 = vunpack.c.h.b16 %v270
    %v1739 = vunpack.c.l.b16 %v271
    %v1740 = vunpack.c.h.b16 %v271
    %v1741 = vunpack.c.l.b16 %v272
    %v1742 = vunpack.c.h.b16 %v272
    %v1743 = vunpack.c.l.b16 %v273
    %v1744 = vunpack.c.h.b16 %v273
    %v1745 = vunpack.c.l.b16 %v274
    %v1746 = vunpack.c.h.b16 %v274
    %v1747 = vunpack.c.l.b16 %v275
    %v1748 = vunpack.c.h.b16 %v275
    %v1749 = vunpack.c.l.b16 %v276
    %v1750 = vunpack.c.h.b16 %v276
    %v1751 = vunpack.c.l.b16 %v277
    %v1752 = vunpack.c.h.b16 %v277
    %v1753 = vunpack.c.l.b16 %v278
    %v1754 = vunpack.c.h.b16 %v278
    %v1755 = vunpack.c.l.b16 %v279
    %v1756 = vunpack.c.h.b16 %v279
    %v1757 = vunpack.c.l.b16 %v280
    %v1758 = vunpack.c.h.b16 %v280
    %v1759 = vunpack.c.l.b16 %v281
    %v1760 = vunpack.c.h.b16 %v281
    %v1761 = vunpack.c.l.b16 %v282
    %v1762 = vunpack.c.h.b16 %v282
    %v1763 = vunpack.c.l.b16 %v283
    %v1764 = vunpack.c.h.b16 %v283
    %v1765 = vunpack.c.l.b16 %v284
    %v1766 = vunpack.c.h.b16 %v284
    %v1767 = vunpack.c.l.b16 %v285
    %v1768 = vunpack.c.h.b16 %v285
    %v1769 = vunpack.c.l.b16 %v286
    %v1770 = vunpack.c.h.b16 %v286
    %v1771 = vunpack.c.l.b16 %v287
    %v1772 = vunpack.c.h.b16 %v287
    %v1773 = vunpack.c.l.b16 %v288
    %v1774 = vunpack.c.h.b16 %v288
    %v1775 = vunpack.c.l.b16 %v289
    %v1776 = vunpack.c.h.b16 %v289
    %v1777 = vunpack.c.l.b16 %v290
    %v1778 = vunpack.c.h.b16 %v290
    %v1779 = vunpack.c.l.b16 %v291
    %v1780 = vunpack.c.h.b16 %v291
    %v1781 = vunpack.c.l.b16 %v292
    %v1782 = vunpack.c.h.b16 %v292
    %v1783 = vunpack.c.l.b16 %v293
    %v1784 = vunpack.c.h.b16 %v293
    %v1785 = vunpack.c.l.b16 %v294
    %v1786 = vunpack.c.h.b16 %v294
    %v1787 = vunpack.c.l.b16 %v295
    %v1788 = vunpack.c.h.b16 %v295
    %v1789 = vunpack.c.l.b16 %v296
    %v1790 = vunpack.c.h.b16 %v296
    %v1791 = vunpack.c.l.b16 %v297
    %v1792 = vunpack.c.h.b16 %v297
    %v1793 = vunpack.c.l.b16 %v298
    %v1794 = vunpack.c.h.b16 %v298
    %v1795 = vunpack.c.l.b16 %v299
    %v1796 = vunpack.c.h.b16 %v299
    %v1797 = vunpack.c.l.b16 %v300
    %v1798 = vunpack.c.h.b16 %v300
    %v1799 = vunpack.c.l.b16 %v301
    %v1800 = vunpack.c.h.b16 %v301
    %v1801 = vunpack.c.l.b16 %v302
    %v1802 = vunpack.c.h.b16 %v302
    %v1803 = vunpack.c.l.b16 %v303
    %v1804 = vunpack.c.h.b16 %v303
    %v1805 = vunpack.c.l.b16 %v304
    %v1806 = vunpack.c.h.b16 %v304
    %v1807 = vunpack.c.l.b16 %v305
    %v1808 = vunpack.c.h.b16 %v305
    %v1809 = vunpack.c.l.b16 %v306
    %v1810 = vunpack.c.h.b16 %v306
    %v1811 = vunpack.c.l.b16 %v307
    %v1812 = vunpack.c.h.b16 %v307
    %v1813 = vunpack.c.l.b16 %v308
    %v1814 = vunpack.c.h.b16 %v308
    %v1815 = vunpack.c.l.b16 %v309
    %v1816 = vunpack.c.h.b16 %v309
    %v1817 = vunpack.c.l.b16 %v310
    %v1818 = vunpack.c.h.b16 %v310
    %v1819 = vunpack.c.l.b16 %v311
    %v1820 = vunpack.c.h.b16 %v311
    %v1821 = vunpack.c.l.b16 %v312
    %v1822 = vunpack.c.h.b16 %v312
    %v1823 = vunpack.c.l.b16 %v313
    %v1824 = vunpack.c.h.b16 %v313
    %v1825 = vunpack.c.l.b16 %v314
    %v1826 = vunpack.c.h.b16 %v314
    %v1827 = vunpack.c.l.b16 %v315
    %v1828 = vunpack.c.h.b16 %v315
    %v1829 = vunpack.c.l.b16 %v316
    %v1830 = vunpack.c.h.b16 %v316
    %v1831 = vunpack.c.l.b16 %v317
    %v1832 = vunpack.c.h.b16 %v317
    %v1833 = vunpack.c.l.b16 %v318
    %v1834 = vunpack.c.h.b16 %v318
    %v1835 = vunpack.c.l.b16 %v319
    %v1836 = vunpack.c.h.b16 %v319
    %v1837 = vunpack.c.l.b16 %v320
    %v1838 = vunpack.c.h.b16 %v320
    %v1839 = vunpack.c.l.b16 %v321
    %v1840 = vunpack.c.h.b16 %v321
    %v1841 = vunpack.c.l.b16 %v322
    %v1842 = vunpack.c.h.b16 %v322
    %v1843 = vunpack.c.l.b16 %v323
    %v1844 = vunpack.c.h.b16 %v323
    %v1845 = vunpack.c.l.b16 %v324
    %v1846 = vunpack.c.h.b16 %v324
    %v1847 = vunpack.c.l.b16 %v325
    %v1848 = vunpack.c.h.b16 %v325
    %v1849 = vunpack.c.l.b16 %v326
    %v1850 = vunpack.c.h.b16 %v326
    %v1851 = vunpack.c.l.b16 %v327
    %v1852 = vunpack.c.h.b16 %v327
    %v1853 = vunpack.c.l.b16 %v328
    %v1854 = vunpack.c.h.b16 %v328
    %v1855 = vunpack.c.l.b16 %v329
    %v1856 = vunpack.c.h.b16 %v329
    %v1857 = vunpack.c.l.b16 %v330
    %v1858 = vunpack.c.h.b16 %v330
    %v1859 = vunpack.c.l.b16 %v331
    %v1860 = vunpack.c.h.b16 %v331
    %v1861 = vunpack.c.l.b16 %v332
    %v1862 = vunpack.c.h.b16 %v332
    %v1863 = vunpack.c.l.b16 %v333
    %v1864 = vunpack.c.h.b16 %v333
    %v1865 = vunpack.c.l.b16 %v334
    %v1866 = vunpack.c.h.b16 %v334
    %v1867 = vunpack.c.l.b16 %v335
    %v1868 = vunpack.c.h.b16 %v335
    %v1869 = vunpack.c.l.b16 %v336
    %v1870 = vunpack.c.h.b16 %v336
    %v1871 = vunpack.c.l.b16 %v337
    %v1872 = vunpack.c.h.b16 %v337
    %v1873 = vunpack.c.l.b16 %v338
    %v1874 = vunpack.c.h.b16 %v338
    %v1875 = vunpack.c.l.b16 %v339
    %v1876 = vunpack.c.h.b16 %v339
    %v1877 = vunpack.c.l.b16 %v340
    %v1878 = vunpack.c.h.b16 %v340
    %v1879 = vunpack.c.l.b16 %v341
    %v1880 = vunpack.c.h.b16 %v341
    %v1881 = vunpack.c.l.b16 %v342
    %v1882 = vunpack.c.h.b16 %v342
    %v1883 = vunpack.c.l.b16 %v343
    %v1884 = vunpack.c.h.b16 %v343
    %v1885 = vunpack.c.l.b16 %v344
    %v1886 = vunpack.c.h.b16 %v344
    %v1887 = vunpack.c.l.b16 %v345
    %v1888 = vunpack.c.h.b16 %v345
    %v1889 = vunpack.c.l.b16 %v346
    %v1890 = vunpack.c.h.b16 %v346
    %v1891 = vunpack.c.l.b16 %v347
    %v1892 = vunpack.c.h.b16 %v347
    %v1893 = vunpack.c.l.b16 %v348
    %v1894 = vunpack.c.h.b16 %v348
    %v1895 = vunpack.c.l.b16 %v349
    %v1896 = vunpack.c.h.b16 %v349
    %v1897 = vunpack.c.l.b16 %v350
    %v1898 = vunpack.c.h.b16 %v350
    %v1899 = vunpack.c.l.b16 %v351
    %v1900 = vunpack.c.h.b16 %v351
    %v1901 = vunpack.c.l.b16 %v352
    %v1902 = vunpack.c.h.b16 %v352
    %v1903 = vunpack.c.l.b16 %v353
    %v1904 = vunpack.c.h.b16 %v353
    %v1905 = vunpack.c.l.b16 %v354
    %v1906 = vunpack.c.h.b16 %v354
    %v1907 = vunpack.c.l.b16 %v355
    %v1908 = vunpack.c.h.b16 %v355
    %v1909 = vunpack.c.l.b16 %v356
    %v1910 = vunpack.c.h.b16 %v356
    %v1911 = vunpack.c.l.b16 %v357
    %v1912 = vunpack.c.h.b16 %v357
    %v1913 = vunpack.c.l.b16 %v358
    %v1914 = vunpack.c.h.b16 %v358
    %v1915 = vunpack.c.l.b16 %v359
    %v1916 = vunpack.c.h.b16 %v359
    %v1917 = vunpack.c.l.b16 %v360
    %v1918 = vunpack.c.h.b16 %v360
    %v1919 = vunpack.c.l.b16 %v361
    %v1920 = vunpack.c.h.b16 %v361
    %v1921 = vunpack.c.l.b16 %v362
    %v1922 = vunpack.c.h.b16 %v362
    %v1923 = vunpack.c.l.b16 %v363
    %v1924 = vunpack.c.h.b16 %v363
    %v1925 = vunpack.c.l.b16 %v364
    %v1926 = vunpack.c.h.b16 %v364
    %v1927 = vunpack.c.l.b16 %v365
    %v1928 = vunpack.c.h.b16 %v365
    %v1929 = vunpack.c.l.b16 %v366
    %v1930 = vunpack.c.h.b16 %v366
    %v1931 = vunpack.c.l.b16 %v367
    %v1932 = vunpack.c.h.b16 %v367
    %v1933 = vunpack.c.l.b16 %v368
    %v1934 = vunpack.c.h.b16 %v368
    %v1935 = vunpack.c.l.b16 %v369
    %v1936 = vunpack.c.h.b16 %v369
    %v1937 = vunpack.c.l.b16 %v370
    %v1938 = vunpack.c.h.b16 %v370
    %v1939 = vunpack.c.l.b16 %v371
    %v1940 = vunpack.c.h.b16 %v371
    %v1941 = vunpack.c.l.b16 %v372
    %v1942 = vunpack.c.h.b16 %v372
    %v1943 = vunpack.c.l.b16 %v373
    %v1944 = vunpack.c.h.b16 %v373
    %v1945 = vunpack.c.l.b16 %v374
    %v1946 = vunpack.c.h.b16 %v374
    %v1947 = vunpack.c.l.b16 %v375
    %v1948 = vunpack.c.h.b16 %v375
    %v1949 = vunpack.c.l.b16 %v376
    %v1950 = vunpack.c.h.b16 %v376
    %v1951 = vunpack.c.l.b16 %v377
    %v1952 = vunpack.c.h.b16 %v377
    %v1953 = vunpack.c.l.b16 %v378
    %v1954 = vunpack.c.h.b16 %v378
    %v1955 = vunpack.c.l.b16 %v379
    %v1956 = vunpack.c.h.b16 %v379
    %v1957 = vunpack.c.l.b16 %v380
    %v1958 = vunpack.c.h.b16 %v380
    %v1959 = vunpack.c.l.b16 %v381
    %v1960 = vunpack.c.h.b16 %v381
    %v1961 = vunpack.c.l.b16 %v382
    %v1962 = vunpack.c.h.b16 %v382
    %v1963 = vunpack.c.l.b16 %v383
    %v1964 = vunpack.c.h.b16 %v383
    %v1965 = vunpack.c.l.b16 %v384
    %v1966 = vunpack.c.h.b16 %v384
    %v1967 = vunpack.c.l.b16 %v385
    %v1968 = vunpack.c.h.b16 %v385
    %v1969 = vunpack.c.l.b16 %v386
    %v1970 = vunpack.c.h.b16 %v386
    %v1971 = vunpack.c.l.b16 %v387
    %v1972 = vunpack.c.h.b16 %v387
    %v1973 = vunpack.c.l.b16 %v388
    %v1974 = vunpack.c.h.b16 %v388
    %v1975 = vunpack.c.l.b16 %v389
    %v1976 = vunpack.c.h.b16 %v389
    %v1977 = vunpack.c.l.b16 %v390
    %v1978 = vunpack.c.h.b16 %v390
    %v1979 = vunpack.c.l.b16 %v391
    %v1980 = vunpack.c.h.b16 %v391
    %v1981 = vunpack.c.l.b16 %v392
    %v1982 = vunpack.c.h.b16 %v392
    %v1983 = vunpack.c.l.b16 %v393
    %v1984 = vunpack.c.h.b16 %v393
    %v1985 = vunpack.c.l.b16 %v394
    %v1986 = vunpack.c.h.b16 %v394
    %v1987 = vunpack.c.l.b16 %v395
    %v1988 = vunpack.c.h.b16 %v395
    %v1989 = vunpack.c.l.b16 %v396
    %v1990 = vunpack.c.h.b16 %v396
    %v1991 = vunpack.c.l.b16 %v397
    %v1992 = vunpack.c.h.b16 %v397
    %v1993 = vunpack.c.l.b16 %v398
    %v1994 = vunpack.c.h.b16 %v398
    %v1995 = vunpack.c.l.b16 %v399
    %v1996 = vunpack.c.h.b16 %v399
    %v1997 = vunpack.c.l.b16 %v400
    %v1998 = vunpack.c.h.b16 %v400
    %v1999 = vunpack.c.l.b16 %v401
    %v2000 = vunpack.c.h.b16 %v401
    %v2001 = vunpack.c.l.b16 %v402
    %v2002 = vunpack.c.h.b16 %v402
    %v2003 = vunpack.c.l.b16 %v403
    %v2004 = vunpack.c.h.b16 %v403
    %v2005 = vunpack.c.l.b16 %v404
    %v2006 = vunpack.c.h.b16 %v404
    %v2007 = vunpack.c.l.b16 %v405
    %v2008 = vunpack.c.h.b16 %v405
    %v2009 = vunpack.c.l.b16 %v406
    %v2010 = vunpack.c.h.b16 %v406
    %v2011 = vunpack.c.l.b16 %v407
    %v2012 = vunpack.c.h.b16 %v407
    %v2013 = vunpack.c.l.b16 %v408
    %v2014 = vunpack.c.h.b16 %v408
    %v2015 = vunpack.c.l.b16 %v409
    %v2016 = vunpack.c.h.b16 %v409
    %v2017 = vunpack.c.l.b16 %v410
    %v2018 = vunpack.c.h.b16 %v410
    %v2019 = vunpack.c.l.b16 %v411
    %v2020 = vunpack.c.h.b16 %v411
    %v2021 = vunpack.c.l.b16 %v412
    %v2022 = vunpack.c.h.b16 %v412
    %v2023 = vunpack.c.l.b16 %v413
    %v2024 = vunpack.c.h.b16 %v413
    %v2025 = vunpack.c.l.b16 %v414
    %v2026 = vunpack.c.h.b16 %v414
    %v2027 = vunpack.c.l.b16 %v415
    %v2028 = vunpack.c.h.b16 %v415
    %v2029 = vunpack.c.l.b16 %v416
    %v2030 = vunpack.c.h.b16 %v416
    %v2031 = vunpack.c.l.b16 %v417
    %v2032 = vunpack.c.h.b16 %v417
    %v2033 = vunpack.c.l.b16 %v418
    %v2034 = vunpack.c.h.b16 %v418
    %v2035 = vunpack.c.l.b16 %v419
    %v2036 = vunpack.c.h.b16 %v419
    %v2037 = vunpack.c.l.b16 %v420
    %v2038 = vunpack.c.h.b16 %v420
    %v2039 = vunpack.c.l.b16 %v421
    %v2040 = vunpack.c.h.b16 %v421
    %v2041 = vunpack.c.l.b16 %v422
    %v2042 = vunpack.c.h.b16 %v422
    %v2043 = vunpack.c.l.b16 %v423
    %v2044 = vunpack.c.h.b16 %v423
    %v2045 = vunpack.c.l.b16 %v424
    %v2046 = vunpack.c.h.b16 %v424
    %v2047 = vunpack.c.l.b16 %v425
    %v2048 = vunpack.c.h.b16 %v425
    %v2049 = vunpack.c.l.b16 %v426
    %v2050 = vunpack.c.h.b16 %v426
    %v2051 = vunpack.c.l.b16 %v427
    %v2052 = vunpack.c.h.b16 %v427
    %v2053 = vunpack.c.l.b16 %v428
    %v2054 = vunpack.c.h.b16 %v428
    %v2055 = vunpack.c.l.b16 %v429
    %v2056 = vunpack.c.h.b16 %v429
    %v2057 = vunpack.c.l.b16 %v430
    %v2058 = vunpack.c.h.b16 %v430
    %v2059 = vunpack.c.l.b16 %v431
    %v2060 = vunpack.c.h.b16 %v431
    %v2061 = vunpack.c.l.b16 %v432
    %v2062 = vunpack.c.h.b16 %v432
    %v2063 = vunpack.c.l.b16 %v433
    %v2064 = vunpack.c.h.b16 %v433
    %v2065 = vunpack.c.l.b16 %v434
    %v2066 = vunpack.c.h.b16 %v434
    %v2067 = vunpack.c.l.b16 %v435
    %v2068 = vunpack.c.h.b16 %v435
    %v2069 = vunpack.c.l.b16 %v436
    %v2070 = vunpack.c.h.b16 %v436
    %v2071 = vunpack.c.l.b16 %v437
    %v2072 = vunpack.c.h.b16 %v437
    %v2073 = vunpack.c.l.b16 %v438
    %v2074 = vunpack.c.h.b16 %v438
    %v2075 = vunpack.c.l.b16 %v439
    %v2076 = vunpack.c.h.b16 %v439
    %v2077 = vunpack.c.l.b16 %v440
    %v2078 = vunpack.c.h.b16 %v440
    %v2079 = vunpack.c.l.b16 %v441
    %v2080 = vunpack.c.h.b16 %v441
    %v2081 = vunpack.c.l.b16 %v442
    %v2082 = vunpack.c.h.b16 %v442
    %v2083 = vunpack.c.l.b16 %v443
    %v2084 = vunpack.c.h.b16 %v443
    %v2085 = vunpack.c.l.b16 %v444
    %v2086 = vunpack.c.h.b16 %v444
    %v2087 = vunpack.c.l.b16 %v445
    %v2088 = vunpack.c.h.b16 %v445
    %v2089 = vunpack.c.l.b16 %v446
    %v2090 = vunpack.c.h.b16 %v446
    %v2091 = vunpack.c.l.b16 %v447
    %v2092 = vunpack.c.h.b16 %v447
    %v2093 = vunpack.c.l.b16 %v448
    %v2094 = vunpack.c.h.b16 %v448
    %v2095 = vunpack.c.l.b16 %v449
    %v2096 = vunpack.c.h.b16 %v449
    %v2097 = vunpack.c.l.b16 %v450
    %v2098 = vunpack.c.h.b16 %v450
    %v2099 = vunpack.c.l.b16 %v451
    %v2100 = vunpack.c.h.b16 %v451
    %v2101 = vunpack.c.l.b16 %v452
    %v2102 = vunpack.c.h.b16 %v452
    %v2103 = vunpack.c.l.b16 %v453
    %v2104 = vunpack.c.h.b16 %v453
    %v2105 = vunpack.c.l.b16 %v454
    %v2106 = vunpack.c.h.b16 %v454
    %v2107 = vunpack.c.l.b16 %v455
    %v2108 = vunpack.c.h.b16 %v455
    %v2109 = vunpack.c.l.b16 %v456
    %v2110 = vunpack.c.h.b16 %v456
    %v2111 = vunpack.c.l.b16 %v457
    %v2112 = vunpack.c.h.b16 %v457
    %v2113 = vunpack.c.l.b16 %v458
    %v2114 = vunpack.c.h.b16 %v458
    %v2115 = vunpack.c.l.b16 %v459
    %v2116 = vunpack.c.h.b16 %v459
    %v2117 = vunpack.c.l.b16 %v460
    %v2118 = vunpack.c.h.b16 %v460
    %v2119 = vunpack.c.l.b16 %v461
    %v2120 = vunpack.c.h.b16 %v461
    %v2121 = vunpack.c.l.b16 %v462
    %v2122 = vunpack.c.h.b16 %v462
    %v2123 = vunpack.c.l.b16 %v463
    %v2124 = vunpack.c.h.b16 %v463
    %v2125 = vunpack.c.l.b16 %v464
    %v2126 = vunpack.c.h.b16 %v464
    %v2127 = vunpack.c.l.b16 %v465
    %v2128 = vunpack.c.h.b16 %v465
    %v2129 = vunpack.c.l.b16 %v466
    %v2130 = vunpack.c.h.b16 %v466
    %v2131 = vunpack.c.l.b16 %v467
    %v2132 = vunpack.c.h.b16 %v467
    %v2133 = vunpack.c.l.b16 %v468
    %v2134 = vunpack.c.h.b16 %v468
    %v2135 = vunpack.c.l.b16 %v469
    %v2136 = vunpack.c.h.b16 %v469
    %v2137 = vunpack.c.l.b16 %v470
    %v2138 = vunpack.c.h.b16 %v470
    %v2139 = vunpack.c.l.b16 %v471
    %v2140 = vunpack.c.h.b16 %v471
    %v2141 = vunpack.c.l.b16 %v472
    %v2142 = vunpack.c.h.b16 %v472
    %v2143 = vunpack.c.l.b16 %v473
    %v2144 = vunpack.c.h.b16 %v473
    %v2145 = vunpack.c.l.b16 %v474
    %v2146 = vunpack.c.h.b16 %v474
    %v2147 = vunpack.c.l.b16 %v475
    %v2148 = vunpack.c.h.b16 %v475
    %v2149 = vunpack.c.l.b16 %v476
    %v2150 = vunpack.c.h.b16 %v476
    %v2151 = vunpack.c.l.b16 %v477
    %v2152 = vunpack.c.h.b16 %v477
    %v2153 = vunpack.c.l.b16 %v478
    %v2154 = vunpack.c.h.b16 %v478
    %v2155 = vunpack.c.l.b16 %v479
    %v2156 = vunpack.c.h.b16 %v479
    %v2157 = vunpack.c.l.b16 %v480
    %v2158 = vunpack.c.h.b16 %v480
    %v2159 = vunpack.c.l.b16 %v481
    %v2160 = vunpack.c.h.b16 %v481
    %v2161 = vunpack.c.l.b16 %v482
    %v2162 = vunpack.c.h.b16 %v482
    %v2163 = vunpack.c.l.b16 %v483
    %v2164 = vunpack.c.h.b16 %v483
    %v2165 = vunpack.c.l.b16 %v484
    %v2166 = vunpack.c.h.b16 %v484
    %v2167 = vunpack.c.l.b16 %v485
    %v2168 = vunpack.c.h.b16 %v485
    %v2169 = vunpack.c.l.b16 %v486
    %v2170 = vunpack.c.h.b16 %v486
    %v2171 = vunpack.c.l.b16 %v487
    %v2172 = vunpack.c.h.b16 %v487
    %v2173 = vunpack.c.l.b16 %v488
    %v2174 = vunpack.c.h.b16 %v488
    %v2175 = vunpack.c.l.b16 %v489
    %v2176 = vunpack.c.h.b16 %v489
    %v2177 = vunpack.c.l.b16 %v490
    %v2178 = vunpack.c.h.b16 %v490
    %v2179 = vunpack.c.l.b16 %v491
    %v2180 = vunpack.c.h.b16 %v491
    %v2181 = vunpack.c.l.b16 %v492
    %v2182 = vunpack.c.h.b16 %v492
    %v2183 = vunpack.c.l.b16 %v493
    %v2184 = vunpack.c.h.b16 %v493
    %v2185 = vunpack.c.l.b16 %v494
    %v2186 = vunpack.c.h.b16 %v494
    %v2187 = vunpack.c.l.b16 %v495
    %v2188 = vunpack.c.h.b16 %v495
    %v2189 = vunpack.c.l.b16 %v496
    %v2190 = vunpack.c.h.b16 %v496
    %v2191 = vunpack.c.l.b16 %v497
    %v2192 = vunpack.c.h.b16 %v497
    %v2193 = vunpack.c.l.b16 %v498
    %v2194 = vunpack.c.h.b16 %v498
    %v2195 = vunpack.c.l.b16 %v499
    %v2196 = vunpack.c.h.b16 %v499
    %v2197 = vunpack.c.l.b16 %v500
    %v2198 = vunpack.c.h.b16 %v500
    %v2199 = vunpack.c.l.b16 %v501
    %v2200 = vunpack.c.h.b16 %v501
    %v2201 = vunpack.c.l.b16 %v502
    %v2202 = vunpack.c.h.b16 %v502
    %v2203 = vunpack.c.l.b16 %v503
    %v2204 = vunpack.c.h.b16 %v503
    %v2205 = vunpack.c.l.b16 %v504
    %v2206 = vunpack.c.h.b16 %v504
    %v2207 = vunpack.c.l.b16 %v505
    %v2208 = vunpack.c.h.b16 %v505
    %v2209 = vunpack.c.l.b16 %v506
    %v2210 = vunpack.c.h.b16 %v506
    %v2211 = vunpack.c.l.b16 %v507
    %v2212 = vunpack.c.h.b16 %v507
    %v2213 = vunpack.c.l.b16 %v508
    %v2214 = vunpack.c.h.b16 %v508
    %v2215 = vunpack.c.l.b16 %v509
    %v2216 = vunpack.c.h.b16 %v509
    %v2217 = vunpack.c.l.b16 %v510
    %v2218 = vunpack.c.h.b16 %v510
    %v2219 = vunpack.c.l.b16 %v511
    %v2220 = vunpack.c.h.b16 %v511
    %v2221 = vunpack.c.l.b16 %v512
    %v2222 = vunpack.c.h.b16 %v512
    %v2223 = vunpack.c.l.b16 %v513
    %v2224 = vunpack.c.h.b16 %v513
    %v2225 = vunpack.c.l.b16 %v514
    %v2226 = vunpack.c.h.b16 %v514
    %v2227 = vunpack.c.l.b16 %v515
    %v2228 = vunpack.c.h.b16 %v515
    %v2229 = vunpack.c.l.b16 %v516
    %v2230 = vunpack.c.h.b16 %v516
    %v2231 = vunpack.c.l.b16 %v517
    %v2232 = vunpack.c.h.b16 %v517
    %v2233 = vunpack.c.l.b16 %v518
    %v2234 = vunpack.c.h.b16 %v518
    %v2235 = vunpack.c.l.b16 %v519
    %v2236 = vunpack.c.h.b16 %v519
    %v2237 = vunpack.c.l.b16 %v520
    %v2238 = vunpack.c.h.b16 %v520
    %v2239 = vunpack.c.l.b16 %v521
    %v2240 = vunpack.c.h.b16 %v521
    %v2241 = vunpack.c.l.b16 %v522
    %v2242 = vunpack.c.h.b16 %v522
    %v2243 = vunpack.c.l.b16 %v523
    %v2244 = vunpack.c.h.b16 %v523
    %v2245 = vunpack.c.l.b16 %v524
    %v2246 = vunpack.c.h.b16 %v524
    %v2247 = vunpack.c.l.b16 %v525
    %v2248 = vunpack.c.h.b16 %v525
    %v2249 = vunpack.c.l.b16 %v526
    %v2250 = vunpack.c.h.b16 %v526
    %v2251 = vunpack.c.l.b16 %v527
    %v2252 = vunpack.c.h.b16 %v527
    %v2253 = vunpack.c.l.b16 %v528
    %v2254 = vunpack.c.h.b16 %v528
    %v2255 = vunpack.c.l.b16 %v529
    %v2256 = vunpack.c.h.b16 %v529
    %v2257 = vunpack.c.l.b16 %v530
    %v2258 = vunpack.c.h.b16 %v530
    %v2259 = vunpack.c.l.b16 %v531
    %v2260 = vunpack.c.h.b16 %v531
    %v2261 = vunpack.c.l.b16 %v532
    %v2262 = vunpack.c.h.b16 %v532
    %v2263 = vunpack.c.l.b16 %v533
    %v2264 = vunpack.c.h.b16 %v533
    %v2265 = vunpack.c.l.b16 %v534
    %v2266 = vunpack.c.h.b16 %v534
    %v2267 = vunpack.c.l.b16 %v535
    %v2268 = vunpack.c.h.b16 %v535
    %v2269 = vunpack.c.l.b16 %v536
    %v2270 = vunpack.c.h.b16 %v536
    %v2271 = vunpack.c.l.b16 %v537
    %v2272 = vunpack.c.h.b16 %v537
    %v2273 = vunpack.c.l.b16 %v538
    %v2274 = vunpack.c.h.b16 %v538
    %v2275 = vunpack.c.l.b16 %v539
    %v2276 = vunpack.c.h.b16 %v539
    %v2277 = vunpack.c.l.b16 %v540
    %v2278 = vunpack.c.h.b16 %v540
    %v2279 = vunpack.c.l.b16 %v541
    %v2280 = vunpack.c.h.b16 %v541
    %v2281 = vunpack.c.l.b16 %v542
    %v2282 = vunpack.c.h.b16 %v542
    %v2283 = vunpack.c.l.b16 %v543
    %v2284 = vunpack.c.h.b16 %v543
    %v2285 = vunpack.c.l.b16 %v544
    %v2286 = vunpack.c.h.b16 %v544
    %v2287 = vunpack.c.l.b16 %v545
    %v2288 = vunpack.c.h.b16 %v545
    %v2289 = vunpack.c.l.b16 %v546
    %v2290 = vunpack.c.h.b16 %v546
    %v2291 = vunpack.c.l.b16 %v547
    %v2292 = vunpack.c.h.b16 %v547
    %v2293 = vunpack.c.l.b16 %v548
    %v2294 = vunpack.c.h.b16 %v548
    %v2295 = vunpack.c.l.b16 %v549
    %v2296 = vunpack.c.h.b16 %v549
    %v2297 = vunpack.c.l.b16 %v550
    %v2298 = vunpack.c.h.b16 %v550
    %v2299 = vunpack.c.l.b16 %v551
    %v2300 = vunpack.c.h.b16 %v551
    %v2301 = vunpack.c.l.b16 %v552
    %v2302 = vunpack.c.h.b16 %v552
    %v2303 = vunpack.c.l.b16 %v553
    %v2304 = vunpack.c.h.b16 %v553
    %v2305 = vunpack.c.l.b16 %v554
    %v2306 = vunpack.c.h.b16 %v554
    %v2307 = vunpack.c.l.b16 %v555
    %v2308 = vunpack.c.h.b16 %v555
    %v2309 = vunpack.c.l.b16 %v556
    %v2310 = vunpack.c.h.b16 %v556
    %v2311 = vunpack.c.l.b16 %v557
    %v2312 = vunpack.c.h.b16 %v557
    %v2313 = vunpack.c.l.b16 %v558
    %v2314 = vunpack.c.h.b16 %v558
    %v2315 = vunpack.c.l.b16 %v559
    %v2316 = vunpack.c.h.b16 %v559
    %v2317 = vunpack.c.l.b16 %v560
    %v2318 = vunpack.c.h.b16 %v560
    %v2319 = vunpack.c.l.b16 %v561
    %v2320 = vunpack.c.h.b16 %v561
    %v2321 = vunpack.c.l.b16 %v562
    %v2322 = vunpack.c.h.b16 %v562
    %v2323 = vunpack.c.l.b16 %v563
    %v2324 = vunpack.c.h.b16 %v563
    %v2325 = vunpack.c.l.b16 %v564
    %v2326 = vunpack.c.h.b16 %v564
    %v2327 = vunpack.c.l.b16 %v565
    %v2328 = vunpack.c.h.b16 %v565
    %v2329 = vunpack.c.l.b16 %v566
    %v2330 = vunpack.c.h.b16 %v566
    %v2331 = vunpack.c.l.b16 %v567
    %v2332 = vunpack.c.h.b16 %v567
    %v2333 = vunpack.c.l.b16 %v568
    %v2334 = vunpack.c.h.b16 %v568
    %v2335 = vunpack.c.l.b16 %v569
    %v2336 = vunpack.c.h.b16 %v569
    %v2337 = vunpack.c.l.b16 %v570
    %v2338 = vunpack.c.h.b16 %v570
    %v2339 = vunpack.c.l.b16 %v571
    %v2340 = vunpack.c.h.b16 %v571
    %v2341 = vunpack.c.l.b16 %v572
    %v2342 = vunpack.c.h.b16 %v572
    %v2343 = vunpack.c.l.b16 %v573
    %v2344 = vunpack.c.h.b16 %v573
    %v2345 = vunpack.c.l.b16 %v574
    %v2346 = vunpack.c.h.b16 %v574
    %v2347 = vunpack.c.l.b16 %v575
    %v2348 = vunpack.c.h.b16 %v575
    %v2349 = vunpack.c.l.b16 %v576
    %v2350 = vunpack.c.h.b16 %v576
    %v2351 = vunpack.c.l.b16 %v577
    %v2352 = vunpack.c.h.b16 %v577
    %v2353 = vunpack.c.l.b16 %v578
    %v2354 = vunpack.c.h.b16 %v578
    %v2355 = vunpack.c.l.b16 %v579
    %v2356 = vunpack.c.h.b16 %v579
    %v2357 = vunpack.c.l.b16 %v580
    %v2358 = vunpack.c.h.b16 %v580
    %v2359 = vunpack.c.l.b16 %v581
    %v2360 = vunpack.c.h.b16 %v581
    %v2361 = vunpack.c.l.b16 %v582
    %v2362 = vunpack.c.h.b16 %v582
    %v2363 = vunpack.c.l.b16 %v583
    %v2364 = vunpack.c.h.b16 %v583
    %v2365 = vunpack.c.l.b16 %v584
    %v2366 = vunpack.c.h.b16 %v584
    %v2367 = vunpack.c.l.b16 %v585
    %v2368 = vunpack.c.h.b16 %v585
    %v2369 = vunpack.c.l.b16 %v586
    %v2370 = vunpack.c.h.b16 %v586
    %v2371 = vunpack.c.l.b16 %v587
    %v2372 = vunpack.c.h.b16 %v587
    %v2373 = vunpack.c.l.b16 %v588
    %v2374 = vunpack.c.h.b16 %v588
    %v2375 = vunpack.c.l.b16 %v589
    %v2376 = vunpack.c.h.b16 %v589
    %v2377 = vunpack.c.l.b16 %v590
    %v2378 = vunpack.c.h.b16 %v590
    %v2379 = vunpack.c.l.b16 %v591
    %v2380 = vunpack.c.h.b16 %v591
    %v2381 = vunpack.c.l.b16 %v592
    %v2382 = vunpack.c.h.b16 %v592
    %v2383 = vunpack.c.l.b16 %v593
    %v2384 = vunpack.c.h.b16 %v593
    %v2385 = vunpack.c.l.b16 %v594
    %v2386 = vunpack.c.h.b16 %v594
    %v2387 = vunpack.c.l.b16 %v595
    %v2388 = vunpack.c.h.b16 %v595
    %v2389 = vunpack.c.l.b16 %v596
    %v2390 = vunpack.c.h.b16 %v596
    %v2391 = vunpack.c.l.b16 %v597
    %v2392 = vunpack.c.h.b16 %v597
    %v2393 = vunpack.c.l.b16 %v598
    %v2394 = vunpack.c.h.b16 %v598
    %v2395 = vunpack.c.l.b16 %v599
    %v2396 = vunpack.c.h.b16 %v599
    %v2397 = vunpack.c.l.b16 %v600
    %v2398 = vunpack.c.h.b16 %v600
    %v2399 = vunpack.c.l.b16 %v601
    %v2400 = vunpack.c.h.b16 %v601
    %v2401 = vunpack.c.l.b16 %v602
    %v2402 = vunpack.c.h.b16 %v602
    %v2403 = vunpack.c.l.b16 %v603
    %v2404 = vunpack.c.h.b16 %v603
    %v2405 = vunpack.c.l.b16 %v604
    %v2406 = vunpack.c.h.b16 %v604
    %v2407 = vunpack.c.l.b16 %v605
    %v2408 = vunpack.c.h.b16 %v605
    %v2409 = vunpack.c.l.b16 %v606
    %v2410 = vunpack.c.h.b16 %v606
    %v2411 = vunpack.c.l.b16 %v607
    %v2412 = vunpack.c.h.b16 %v607
    %v2413 = vunpack.c.l.b16 %v608
    %v2414 = vunpack.c.h.b16 %v608
    %v2415 = vunpack.c.l.b16 %v609
    %v2416 = vunpack.c.h.b16 %v609
    %v2417 = vunpack.c.l.b16 %v610
    %v2418 = vunpack.c.h.b16 %v610
    %v2419 = vunpack.c.l.b16 %v611
    %v2420 = vunpack.c.h.b16 %v611
    %v2421 = vunpack.c.l.b16 %v612
    %v2422 = vunpack.c.h.b16 %v612
    %v2423 = vunpack.c.l.b16 %v613
    %v2424 = vunpack.c.h.b16 %v613
    %v2425 = vunpack.c.l.b16 %v614
    %v2426 = vunpack.c.h.b16 %v614
    %v2427 = vunpack.c.l.b16 %v615
    %v2428 = vunpack.c.h.b16 %v615
    %v2429 = vunpack.c.l.b16 %v616
    %v2430 = vunpack.c.h.b16 %v616
    %v2431 = vunpack.c.l.b16 %v617
    %v2432 = vunpack.c.h.b16 %v617
    %v2433 = vunpack.c.l.b16 %v618
    %v2434 = vunpack.c.h.b16 %v618
    %v2435 = vunpack.c.l.b16 %v619
    %v2436 = vunpack.c.h.b16 %v619
    %v2437 = vunpack.c.l.b16 %v620
    %v2438 = vunpack.c.h.b16 %v620
    %v2439 = vunpack.c.l.b16 %v621
    %v2440 = vunpack.c.h.b16 %v621
    %v2441 = vunpack.c.l.b16 %v622
    %v2442 = vunpack.c.h.b16 %v622
    %v2443 = vunpack.c.l.b16 %v623
    %v2444 = vunpack.c.h.b16 %v623
    %v2445 = vunpack.c.l.b16 %v624
    %v2446 = vunpack.c.h.b16 %v624
    %v2447 = vunpack.c.l.b16 %v625
    %v2448 = vunpack.c.h.b16 %v625
    %v2449 = vunpack.c.l.b16 %v626
    %v2450 = vunpack.c.h.b16 %v626
    %v2451 = vunpack.c.l.b16 %v627
    %v2452 = vunpack.c.h.b16 %v627
    %v2453 = vunpack.c.l.b16 %v628
    %v2454 = vunpack.c.h.b16 %v628
    %v2455 = vunpack.c.l.b16 %v629
    %v2456 = vunpack.c.h.b16 %v629
    %v2457 = vunpack.c.l.b16 %v630
    %v2458 = vunpack.c.h.b16 %v630
    %v2459 = vunpack.c.l.b16 %v631
    %v2460 = vunpack.c.h.b16 %v631
    %v2461 = vunpack.c.l.b16 %v632
    %v2462 = vunpack.c.h.b16 %v632
    %v2463 = vunpack.c.l.b16 %v633
    %v2464 = vunpack.c.h.b16 %v633
    %v2465 = vunpack.c.l.b16 %v634
    %v2466 = vunpack.c.h.b16 %v634
    %v2467 = vunpack.c.l.b16 %v635
    %v2468 = vunpack.c.h.b16 %v635
    %v2469 = vunpack.c.l.b16 %v636
    %v2470 = vunpack.c.h.b16 %v636
    %v2471 = vunpack.c.l.b16 %v637
    %v2472 = vunpack.c.h.b16 %v637
    %v2473 = vunpack.c.l.b16 %v638
    %v2474 = vunpack.c.h.b16 %v638
    %v2475 = vunpack.c.l.b16 %v639
    %v2476 = vunpack.c.h.b16 %v639
    %v2477 = vunpack.c.l.b16 %v640
    %v2478 = vunpack.c.h.b16 %v640
    %v2479 = vunpack.c.l.b16 %v641
    %v2480 = vunpack.c.h.b16 %v641
    %v2481 = vunpack.c.l.b16 %v642
    %v2482 = vunpack.c.h.b16 %v642
    %v2483 = vunpack.c.l.b16 %v643
    %v2484 = vunpack.c.h.b16 %v643
    %v2485 = vunpack.c.l.b16 %v644
    %v2486 = vunpack.c.h.b16 %v644
    %v2487 = vunpack.c.l.b16 %v645
    %v2488 = vunpack.c.h.b16 %v645
    %v2489 = vunpack.c.l.b16 %v646
    %v2490 = vunpack.c.h.b16 %v646
    %v2491 = vunpack.c.l.b16 %v647
    %v2492 = vunpack.c.h.b16 %v647
    %v2493 = vunpack.c.l.b16 %v648
    %v2494 = vunpack.c.h.b16 %v648
    %v2495 = vunpack.c.l.b16 %v649
    %v2496 = vunpack.c.h.b16 %v649
    %v2497 = vunpack.c.l.b16 %v650
    %v2498 = vunpack.c.h.b16 %v650
    %v2499 = vunpack.c.l.b16 %v651
    %v2500 = vunpack.c.h.b16 %v651
    %v2501 = vunpack.c.l.b16 %v652
    %v2502 = vunpack.c.h.b16 %v652
    %v2503 = vunpack.c.l.b16 %v653
    %v2504 = vunpack.c.h.b16 %v653
    %v2505 = vunpack.c.l.b16 %v654
    %v2506 = vunpack.c.h.b16 %v654
    %v2507 = vunpack.c.l.b16 %v655
    %v2508 = vunpack.c.h.b16 %v655
    %v2509 = vunpack.c.l.b16 %v656
    %v2510 = vunpack.c.h.b16 %v656
    %v2511 = vunpack.c.l.b16 %v657
    %v2512 = vunpack.c.h.b16 %v657
    %v2513 = vunpack.c.l.b16 %v658
    %v2514 = vunpack.c.h.b16 %v658
    %v2515 = vunpack.c.l.b16 %v659
    %v2516 = vunpack.c.h.b16 %v659
    %v2517 = vunpack.c.l.b16 %v660
    %v2518 = vunpack.c.h.b16 %v660
    %v2519 = vunpack.c.l.b16 %v661
    %v2520 = vunpack.c.h.b16 %v661
    %v2521 = vunpack.c.l.b16 %v662
    %v2522 = vunpack.c.h.b16 %v662
    %v2523 = vunpack.c.l.b16 %v663
    %v2524 = vunpack.c.h.b16 %v663
    %v2525 = vunpack.c.l.b16 %v664
    %v2526 = vunpack.c.h.b16 %v664
    %v2527 = vunpack.c.l.b16 %v665
    %v2528 = vunpack.c.h.b16 %v665
    %v2529 = vunpack.c.l.b16 %v666
    %v2530 = vunpack.c.h.b16 %v666
    %v2531 = vunpack.c.l.b16 %v667
    %v2532 = vunpack.c.h.b16 %v667
    %v2533 = vunpack.c.l.b16 %v668
    %v2534 = vunpack.c.h.b16 %v668
    %v2535 = vunpack.c.l.b16 %v669
    %v2536 = vunpack.c.h.b16 %v669
    %v2537 = vunpack.c.l.b16 %v670
    %v2538 = vunpack.c.h.b16 %v670
    %v2539 = vunpack.c.l.b16 %v671
    %v2540 = vunpack.c.h.b16 %v671
    %v2541 = vunpack.c.l.b16 %v672
    %v2542 = vunpack.c.h.b16 %v672
    %v2543 = vunpack.c.l.b16 %v673
    %v2544 = vunpack.c.h.b16 %v673
    %v2545 = vunpack.c.l.b16 %v674
    %v2546 = vunpack.c.h.b16 %v674
    %v2547 = vunpack.c.l.b16 %v675
    %v2548 = vunpack.c.h.b16 %v675
    %v2549 = vunpack.c.l.b16 %v676
    %v2550 = vunpack.c.h.b16 %v676
    %v2551 = vunpack.c.l.b16 %v677
    %v2552 = vunpack.c.h.b16 %v677
    %v2553 = vunpack.c.l.b16 %v678
    %v2554 = vunpack.c.h.b16 %v678
    %v2555 = vunpack.c.l.b16 %v679
    %v2556 = vunpack.c.h.b16 %v679
    %v2557 = vunpack.c.l.b16 %v680
    %v2558 = vunpack.c.h.b16 %v680
    %v2559 = vunpack.c.l.b16 %v681
    %v2560 = vunpack.c.h.b16 %v681
    %v2561 = vunpack.c.l.b16 %v682
    %v2562 = vunpack.c.h.b16 %v682
    %v2563 = vunpack.c.l.b16 %v683
    %v2564 = vunpack.c.h.b16 %v683
    %v2565 = vunpack.c.l.b16 %v684
    %v2566 = vunpack.c.h.b16 %v684
    %v2567 = vunpack.c.l.b16 %v685
    %v2568 = vunpack.c.h.b16 %v685
    %v2569 = vunpack.c.l.b16 %v686
    %v2570 = vunpack.c.h.b16 %v686
    %v2571 = vunpack.c.l.b16 %v687
    %v2572 = vunpack.c.h.b16 %v687
    %v2573 = vunpack.c.l.b16 %v688
    %v2574 = vunpack.c.h.b16 %v688
    %v2575 = vunpack.c.l.b16 %v689
    %v2576 = vunpack.c.h.b16 %v689
    %v2577 = vunpack.c.l.b16 %v690
    %v2578 = vunpack.c.h.b16 %v690
    %v2579 = vunpack.c.l.b16 %v691
    %v2580 = vunpack.c.h.b16 %v691
    %v2581 = vunpack.c.l.b16 %v692
    %v2582 = vunpack.c.h.b16 %v692
    %v2583 = vunpack.c.l.b16 %v693
    %v2584 = vunpack.c.h.b16 %v693
    %v2585 = vunpack.c.l.b16 %v694
    %v2586 = vunpack.c.h.b16 %v694
    %v2587 = vunpack.c.l.b16 %v695
    %v2588 = vunpack.c.h.b16 %v695
    %v2589 = vunpack.c.l.b16 %v696
    %v2590 = vunpack.c.h.b16 %v696
    %v2591 = vunpack.c.l.b16 %v697
    %v2592 = vunpack.c.h.b16 %v697
    %v2593 = vunpack.c.l.b16 %v698
    %v2594 = vunpack.c.h.b16 %v698
    %v2595 = vunpack.c.l.b16 %v699
    %v2596 = vunpack.c.h.b16 %v699
    %v2597 = vunpack.c.l.b16 %v700
    %v2598 = vunpack.c.h.b16 %v700
    %v2599 = vunpack.c.l.b16 %v701
    %v2600 = vunpack.c.h.b16 %v701
    %v2601 = vunpack.c.l.b16 %v702
    %v2602 = vunpack.c.h.b16 %v702
    %v2603 = vunpack.c.l.b16 %v703
    %v2604 = vunpack.c.h.b16 %v703
    %v2605 = vunpack.c.l.b16 %v704
    %v2606 = vunpack.c.h.b16 %v704
    %v2607 = vunpack.c.l.b16 %v705
    %v2608 = vunpack.c.h.b16 %v705
    %v2609 = vunpack.c.l.b16 %v706
    %v2610 = vunpack.c.h.b16 %v706
    %v2611 = vunpack.c.l.b16 %v707
    %v2612 = vunpack.c.h.b16 %v707
    %v2613 = vunpack.c.l.b16 %v708
    %v2614 = vunpack.c.h.b16 %v708
    %v2615 = vunpack.c.l.b16 %v709
    %v2616 = vunpack.c.h.b16 %v709
    %v2617 = vunpack.c.l.b16 %v710
    %v2618 = vunpack.c.h.b16 %v710
    %v2619 = vunpack.c.l.b16 %v711
    %v2620 = vunpack.c.h.b16 %v711
    %v2621 = vunpack.c.l.b16 %v712
    %v2622 = vunpack.c.h.b16 %v712
    %v2623 = vunpack.c.l.b16 %v713
    %v2624 = vunpack.c.h.b16 %v713
    %v2625 = vunpack.c.l.b16 %v714
    %v2626 = vunpack.c.h.b16 %v714
    %v2627 = vunpack.c.l.b16 %v715
    %v2628 = vunpack.c.h.b16 %v715
    %v2629 = vunpack.c.l.b16 %v716
    %v2630 = vunpack.c.h.b16 %v716
    %v2631 = vunpack.c.l.b16 %v717
    %v2632 = vunpack.c.h.b16 %v717
    %v2633 = vunpack.c.l.b16 %v718
    %v2634 = vunpack.c.h.b16 %v718
    %v2635 = vunpack.c.l.b16 %v719
    %v2636 = vunpack.c.h.b16 %v719
    %v2637 = vunpack.c.l.b16 %v720
    %v2638 = vunpack.c.h.b16 %v720
    %v2639 = vunpack.c.l.b16 %v721
    %v2640 = vunpack.c.h.b16 %v721
    %v2641 = vunpack.c.l.b16 %v722
    %v2642 = vunpack.c.h.b16 %v722
    %v2643 = vunpack.c.l.b16 %v723
    %v2644 = vunpack.c.h.b16 %v723
    %v2645 = vunpack.c.l.b16 %v724
    %v2646 = vunpack.c.h.b16 %v724
    %v2647 = vunpack.c.l.b16 %v725
    %v2648 = vunpack.c.h.b16 %v725
    %v2649 = vunpack.c.l.b16 %v726
    %v2650 = vunpack.c.h.b16 %v726
    %v2651 = vunpack.c.l.b16 %v727
    %v2652 = vunpack.c.h.b16 %v727
    %v2653 = vunpack.c.l.b16 %v728
    %v2654 = vunpack.c.h.b16 %v728
    %v2655 = vunpack.c.l.b16 %v729
    %v2656 = vunpack.c.h.b16 %v729
    %v2657 = vunpack.c.l.b16 %v730
    %v2658 = vunpack.c.h.b16 %v730
    %v2659 = vunpack.c.l.b16 %v731
    %v2660 = vunpack.c.h.b16 %v731
    %v2661 = vunpack.c.l.b16 %v732
    %v2662 = vunpack.c.h.b16 %v732
    %v2663 = vunpack.c.l.b16 %v733
    %v2664 = vunpack.c.h.b16 %v733
    %v2665 = vunpack.c.l.b16 %v734
    %v2666 = vunpack.c.h.b16 %v734
    %v2667 = vunpack.c.l.b16 %v735
    %v2668 = vunpack.c.h.b16 %v735
    %v2669 = vunpack.c.l.b16 %v736
    %v2670 = vunpack.c.h.b16 %v736
    %v2671 = vunpack.c.l.b16 %v737
    %v2672 = vunpack.c.h.b16 %v737
    %v2673 = vunpack.c.l.b16 %v738
    %v2674 = vunpack.c.h.b16 %v738
    %v2675 = vunpack.c.l.b16 %v739
    %v2676 = vunpack.c.h.b16 %v739
    %v2677 = vunpack.c.l.b16 %v740
    %v2678 = vunpack.c.h.b16 %v740
    %v2679 = vunpack.c.l.b16 %v741
    %v2680 = vunpack.c.h.b16 %v741
    %v2681 = vunpack.c.l.b16 %v742
    %v2682 = vunpack.c.h.b16 %v742
    %v2683 = vunpack.c.l.b16 %v743
    %v2684 = vunpack.c.h.b16 %v743
    %v2685 = vunpack.c.l.b16 %v744
    %v2686 = vunpack.c.h.b16 %v744
    %v2687 = vunpack.c.l.b16 %v745
    %v2688 = vunpack.c.h.b16 %v745
    %v2689 = vunpack.c.l.b16 %v746
    %v2690 = vunpack.c.h.b16 %v746
    %v2691 = vunpack.c.l.b16 %v747
    %v2692 = vunpack.c.h.b16 %v747
    %v2693 = vunpack.c.l.b16 %v748
    %v2694 = vunpack.c.h.b16 %v748
    %v2695 = vunpack.c.l.b16 %v749
    %v2696 = vunpack.c.h.b16 %v749
    %v2697 = vunpack.c.l.b16 %v750
    %v2698 = vunpack.c.h.b16 %v750
    %v2699 = vunpack.c.l.b16 %v751
    %v2700 = vunpack.c.h.b16 %v751
    %v2701 = vunpack.c.l.b16 %v752
    %v2702 = vunpack.c.h.b16 %v752
    %v2703 = vunpack.c.l.b16 %v753
    %v2704 = vunpack.c.h.b16 %v753
    %v2705 = vunpack.c.l.b16 %v754
    %v2706 = vunpack.c.h.b16 %v754
    %v2707 = vunpack.c.l.b16 %v755
    %v2708 = vunpack.c.h.b16 %v755
    %v2709 = vunpack.c.l.b16 %v756
    %v2710 = vunpack.c.h.b16 %v756
    %v2711 = vunpack.c.l.b16 %v757
    %v2712 = vunpack.c.h.b16 %v757
    %v2713 = vunpack.c.l.b16 %v758
    %v2714 = vunpack.c.h.b16 %v758
    %v2715 = vunpack.c.l.b16 %v759
    %v2716 = vunpack.c.h.b16 %v759
    %v2717 = vunpack.c.l.b16 %v760
    %v2718 = vunpack.c.h.b16 %v760
    %v2719 = vunpack.c.l.b16 %v761
    %v2720 = vunpack.c.h.b16 %v761
    %v2721 = vunpack.c.l.b16 %v762
    %v2722 = vunpack.c.h.b16 %v762
    %v2723 = vunpack.c.l.b16 %v763
    %v2724 = vunpack.c.h.b16 %v763
    %v2725 = vunpack.c.l.b16 %v764
    %v2726 = vunpack.c.h.b16 %v764
    %v2727 = vunpack.c.l.b16 %v765
    %v2728 = vunpack.c.h.b16 %v765
    %v2729 = vunpack.c.l.b16 %v766
    %v2730 = vunpack.c.h.b16 %v766
    %v2731 = vunpack.c.l.b16 %v767
    %v2732 = vunpack.c.h.b16 %v767
    %v2733 = vunpack.c.l.b16 %v768
    %v2734 = vunpack.c.h.b16 %v768
    %v2735 = vunpack.c.l.b16 %v769
    %v2736 = vunpack.c.h.b16 %v769
    %v2737 = vunpack.c.l.b16 %v770
    %v2738 = vunpack.c.h.b16 %v770
    %v2739 = vunpack.c.l.b16 %v771
    %v2740 = vunpack.c.h.b16 %v771
    %v2741 = vunpack.c.l.b16 %v772
    %v2742 = vunpack.c.h.b16 %v772
    %v2743 = vunpack.c.l.b16 %v773
    %v2744 = vunpack.c.h.b16 %v773
    %v2745 = vunpack.c.l.b16 %v774
    %v2746 = vunpack.c.h.b16 %v774
    %v2747 = vunpack.c.l.b16 %v775
    %v2748 = vunpack.c.h.b16 %v775
    %v2749 = vunpack.c.l.b16 %v776
    %v2750 = vunpack.c.h.b16 %v776
    %v2751 = vunpack.c.l.b16 %v777
    %v2752 = vunpack.c.h.b16 %v777
    %v2753 = vunpack.c.l.b16 %v778
    %v2754 = vunpack.c.h.b16 %v778
    %v2755 = vunpack.c.l.b16 %v779
    %v2756 = vunpack.c.h.b16 %v779
    %v2757 = vunpack.c.l.b16 %v780
    %v2758 = vunpack.c.h.b16 %v780
    %v2759 = vunpack.c.l.b16 %v781
    %v2760 = vunpack.c.h.b16 %v781
    %v2761 = vunpack.c.l.b16 %v782
    %v2762 = vunpack.c.h.b16 %v782
    %v2763 = vunpack.c.l.b16 %v783
    %v2764 = vunpack.c.h.b16 %v783
    %v2765 = vunpack.c.l.b16 %v784
    %v2766 = vunpack.c.h.b16 %v784
    %v2767 = vunpack.c.l.b16 %v785
    %v2768 = vunpack.c.h.b16 %v785
    %v2769 = vunpack.c.l.b16 %v786
    %v2770 = vunpack.c.h.b16 %v786
    %v2771 = vunpack.c.l.b16 %v787
    %v2772 = vunpack.c.h.b16 %v787
    %v2773 = vunpack.c.l.b16 %v788
    %v2774 = vunpack.c.h.b16 %v788
    %v2775 = vunpack.c.l.b16 %v789
    %v2776 = vunpack.c.h.b16 %v789
    %v2777 = vunpack.c.l.b16 %v790
    %v2778 = vunpack.c.h.b16 %v790
    %v2779 = vunpack.c.l.b16 %v791
    %v2780 = vunpack.c.h.b16 %v791
    %v2781 = vunpack.c.l.b16 %v792
    %v2782 = vunpack.c.h.b16 %v792
    %v2783 = vunpack.c.l.b16 %v793
    %v2784 = vunpack.c.h.b16 %v793
    %v2785 = vunpack.c.l.b16 %v794
    %v2786 = vunpack.c.h.b16 %v794
    %v2787 = vunpack.c.l.b16 %v795
    %v2788 = vunpack.c.h.b16 %v795
    %v2789 = vunpack.c.l.b16 %v796
    %v2790 = vunpack.c.h.b16 %v796
    %v2791 = vunpack.c.l.b16 %v797
    %v2792 = vunpack.c.h.b16 %v797
    %v2793 = vunpack.c.l.b16 %v798
    %v2794 = vunpack.c.h.b16 %v798
    %v2795 = vunpack.c.l.b16 %v799
    %v2796 = vunpack.c.h.b16 %v799
    %v2797 = vunpack.c.l.b16 %v800
    %v2798 = vunpack.c.h.b16 %v800
    %v2799 = vunpack.c.l.b16 %v801
    %v2800 = vunpack.c.h.b16 %v801
    %v2801 = vunpack.c.l.b16 %v802
    %v2802 = vunpack.c.h.b16 %v802
    %v2803 = vunpack.c.l.b16 %v803
    %v2804 = vunpack.c.h.b16 %v803
    %v2805 = vunpack.c.l.b16 %v804
    %v2806 = vunpack.c.h.b16 %v804
    %v2807 = vunpack.c.l.b16 %v805
    %v2808 = vunpack.c.h.b16 %v805
    %v2809 = vunpack.c.l.b16 %v806
    %v2810 = vunpack.c.h.b16 %v806
    %v2811 = vunpack.c.l.b16 %v807
    %v2812 = vunpack.c.h.b16 %v807
    %v2813 = vunpack.c.l.b16 %v808
    %v2814 = vunpack.c.h.b16 %v808
    %v2815 = vunpack.c.l.b16 %v809
    %v2816 = vunpack.c.h.b16 %v809
    %v2817 = vunpack.c.l.b16 %v810
    %v2818 = vunpack.c.h.b16 %v810
    %v2819 = vunpack.c.l.b16 %v811
    %v2820 = vunpack.c.h.b16 %v811
    %v2821 = vunpack.c.l.b16 %v812
    %v2822 = vunpack.c.h.b16 %v812
    %v2823 = vunpack.c.l.b16 %v813
    %v2824 = vunpack.c.h.b16 %v813
    %v2825 = vunpack.c.l.b16 %v814
    %v2826 = vunpack.c.h.b16 %v814
    %v2827 = vunpack.c.l.b16 %v815
    %v2828 = vunpack.c.h.b16 %v815
    %v2829 = vunpack.c.l.b16 %v816
    %v2830 = vunpack.c.h.b16 %v816
    %v2831 = vunpack.c.l.b16 %v817
    %v2832 = vunpack.c.h.b16 %v817
    %v2833 = vunpack.c.l.b16 %v818
    %v2834 = vunpack.c.h.b16 %v818
    %v2835 = vunpack.c.l.b16 %v819
    %v2836 = vunpack.c.h.b16 %v819
    %v2837 = vunpack.c.l.b16 %v820
    %v2838 = vunpack.c.h.b16 %v820
    %v2839 = vunpack.c.l.b16 %v821
    %v2840 = vunpack.c.h.b16 %v821
    %v2841 = vunpack.c.l.b16 %v822
    %v2842 = vunpack.c.h.b16 %v822
    %v2843 = vunpack.c.l.b16 %v823
    %v2844 = vunpack.c.h.b16 %v823
    %v2845 = vunpack.c.l.b16 %v824
    %v2846 = vunpack.c.h.b16 %v824
    %v2847 = vunpack.c.l.b16 %v825
    %v2848 = vunpack.c.h.b16 %v825
    %v2849 = vunpack.c.l.b16 %v826
    %v2850 = vunpack.c.h.b16 %v826
    %v2851 = vunpack.c.l.b16 %v827
    %v2852 = vunpack.c.h.b16 %v827
    %v2853 = vunpack.c.l.b16 %v828
    %v2854 = vunpack.c.h.b16 %v828
    %v2855 = vunpack.c.l.b16 %v829
    %v2856 = vunpack.c.h.b16 %v829
    %v2857 = vunpack.c.l.b16 %v830
    %v2858 = vunpack.c.h.b16 %v830
    %v2859 = vunpack.c.l.b16 %v831
    %v2860 = vunpack.c.h.b16 %v831
    %v2861 = vunpack.c.l.b16 %v832
    %v2862 = vunpack.c.h.b16 %v832
    %v2863 = vunpack.c.l.b16 %v833
    %v2864 = vunpack.c.h.b16 %v833
    %v2865 = vunpack.c.l.b16 %v834
    %v2866 = vunpack.c.h.b16 %v834
    %v2867 = vunpack.c.l.b16 %v835
    %v2868 = vunpack.c.h.b16 %v835
    %v2869 = vunpack.c.l.b16 %v836
    %v2870 = vunpack.c.h.b16 %v836
    %v2871 = vunpack.c.l.b16 %v837
    %v2872 = vunpack.c.h.b16 %v837
    %v2873 = vunpack.c.l.b16 %v838
    %v2874 = vunpack.c.h.b16 %v838
    %v2875 = vunpack.c.l.b16 %v839
    %v2876 = vunpack.c.h.b16 %v839
    %v2877 = vunpack.c.l.b16 %v840
    %v2878 = vunpack.c.h.b16 %v840
    %v2879 = vunpack.c.l.b16 %v841
    %v2880 = vunpack.c.h.b16 %v841
    %v2881 = vunpack.c.l.b16 %v842
    %v2882 = vunpack.c.h.b16 %v842
    %v2883 = vunpack.c.l.b16 %v843
    %v2884 = vunpack.c.h.b16 %v843
    %v2885 = vunpack.c.l.b16 %v844
    %v2886 = vunpack.c.h.b16 %v844
    %v2887 = vunpack.c.l.b16 %v845
    %v2888 = vunpack.c.h.b16 %v845
    %v2889 = vunpack.c.l.b16 %v846
    %v2890 = vunpack.c.h.b16 %v846
    %v2891 = vunpack.c.l.b16 %v847
    %v2892 = vunpack.c.h.b16 %v847
    %v2893 = vunpack.c.l.b16 %v848
    %v2894 = vunpack.c.h.b16 %v848
    %v2895 = vunpack.c.l.b16 %v849
    %v2896 = vunpack.c.h.b16 %v849
    %v2897 = vunpack.c.l.b16 %v850
    %v2898 = vunpack.c.h.b16 %v850
    %v2899 = vunpack.c.l.b16 %v851
    %v2900 = vunpack.c.h.b16 %v851
    %v2901 = vunpack.c.l.b16 %v852
    %v2902 = vunpack.c.h.b16 %v852
    %v2903 = vpack.c.b16 %v1555, %v1551
    %v2904 = vpack.c.b16 %v1556, %v1552
    %v2905 = vpack.c.b16 %v1557, %v1553
    %v2906 = vpack.c.b16 %v1558, %v1554
    %v2907 = vpack.c.b16 %v1563, %v1559
    %v2908 = vpack.c.b16 %v1564, %v1560
    %v2909 = vpack.c.b16 %v1565, %v1561
    %v2910 = vpack.c.b16 %v1566, %v1562
    %v2911 = vpack.c.b16 %v1571, %v1567
    %v2912 = vpack.c.b16 %v1572, %v1568
    %v2913 = vpack.c.b16 %v1573, %v1569
    %v2914 = vpack.c.b16 %v1574, %v1570
    %v2915 = vpack.c.b16 %v1579, %v1575
    %v2916 = vpack.c.b16 %v1580, %v1576
    %v2917 = vpack.c.b16 %v1581, %v1577
    %v2918 = vpack.c.b16 %v1582, %v1578
    %v2919 = vpack.c.b16 %v1587, %v1583
    %v2920 = vpack.c.b16 %v1588, %v1584
    %v2921 = vpack.c.b16 %v1589, %v1585
    %v2922 = vpack.c.b16 %v1590, %v1586
    %v2923 = vpack.c.b16 %v1595, %v1591
    %v2924 = vpack.c.b16 %v1596, %v1592
    %v2925 = vpack.c.b16 %v1597, %v1593
    %v2926 = vpack.c.b16 %v1598, %v1594
    %v2927 = vpack.c.b16 %v1603, %v1599
    %v2928 = vpack.c.b16 %v1604, %v1600
    %v2929 = vpack.c.b16 %v1605, %v1601
    %v2930 = vpack.c.b16 %v1606, %v1602
    %v2931 = vpack.c.b16 %v1611, %v1607
    %v2932 = vpack.c.b16 %v1612, %v1608
    %v2933 = vpack.c.b16 %v1613, %v1609
    %v2934 = vpack.c.b16 %v1614, %v1610
    %v2935 = vpack.c.b16 %v1619, %v1615
    %v2936 = vpack.c.b16 %v1620, %v1616
    %v2937 = vpack.c.b16 %v1621, %v1617
    %v2938 = vpack.c.b16 %v1622, %v1618
    %v2939 = vpack.c.b16 %v1627, %v1623
    %v2940 = vpack.c.b16 %v1628, %v1624
    %v2941 = vpack.c.b16 %v1629, %v1625
    %v2942 = vpack.c.b16 %v1630, %v1626
    %v2943 = vpack.c.b16 %v1635, %v1631
    %v2944 = vpack.c.b16 %v1636, %v1632
    %v2945 = vpack.c.b16 %v1637, %v1633
    %v2946 = vpack.c.b16 %v1638, %v1634
    %v2947 = vpack.c.b16 %v1643, %v1639
    %v2948 = vpack.c.b16 %v1644, %v1640
    %v2949 = vpack.c.b16 %v1645, %v1641
    %v2950 = vpack.c.b16 %v1646, %v1642
    %v2951 = vpack.c.b16 %v1651, %v1647
    %v2952 = vpack.c.b16 %v1652, %v1648
    %v2953 = vpack.c.b16 %v1653, %v1649
    %v2954 = vpack.c.b16 %v1654, %v1650
    %v2955 = vpack.c.b16 %v1659, %v1655
    %v2956 = vpack.c.b16 %v1660, %v1656
    %v2957 = vpack.c.b16 %v1661, %v1657
    %v2958 = vpack.c.b16 %v1662, %v1658
    %v2959 = vpack.c.b16 %v1667, %v1663
    %v2960 = vpack.c.b16 %v1668, %v1664
    %v2961 = vpack.c.b16 %v1669, %v1665
    %v2962 = vpack.c.b16 %v1670, %v1666
    %v2963 = vpack.c.b16 %v1675, %v1671
    %v2964 = vpack.c.b16 %v1676, %v1672
    %v2965 = vpack.c.b16 %v1677, %v1673
    %v2966 = vpack.c.b16 %v1678, %v1674
    %v2967 = vpack.c.b16 %v1683, %v1679
    %v2968 = vpack.c.b16 %v1684, %v1680
    %v2969 = vpack.c.b16 %v1685, %v1681
    %v2970 = vpack.c.b16 %v1686, %v1682
    %v2971 = vpack.c.b16 %v1691, %v1687
    %v2972 = vpack.c.b16 %v1692, %v1688
    %v2973 = vpack.c.b16 %v1693, %v1689
    %v2974 = vpack.c.b16 %v1694, %v1690
    %v2975 = vpack.c.b16 %v1699, %v1695
    %v2976 = vpack.c.b16 %v1700, %v1696
    %v2977 = vpack.c.b16 %v1701, %v1697
    %v2978 = vpack.c.b16 %v1702, %v1698
    %v2979 = vpack.c.b16 %v1707, %v1703
    %v2980 = vpack.c.b16 %v1708, %v1704
    %v2981 = vpack.c.b16 %v1709, %v1705
    %v2982 = vpack.c.b16 %v1710, %v1706
    %v2983 = vpack.c.b16 %v1715, %v1711
    %v2984 = vpack.c.b16 %v1716, %v1712
    %v2985 = vpack.c.b16 %v1717, %v1713
    %v2986 = vpack.c.b16 %v1718, %v1714
    %v2987 = vpack.c.b16 %v1723, %v1719
    %v2988 = vpack.c.b16 %v1724, %v1720
    %v2989 = vpack.c.b16 %v1725, %v1721
    %v2990 = vpack.c.b16 %v1726, %v1722
    %v2991 = vpack.c.b16 %v1731, %v1727
    %v2992 = vpack.c.b16 %v1732, %v1728
    %v2993 = vpack.c.b16 %v1733, %v1729
    %v2994 = vpack.c.b16 %v1734, %v1730
    %v2995 = vpack.c.b16 %v1739, %v1735
    %v2996 = vpack.c.b16 %v1740, %v1736
    %v2997 = vpack.c.b16 %v1741, %v1737
    %v2998 = vpack.c.b16 %v1742, %v1738
    %v2999 = vpack.c.b16 %v1747, %v1743
    %v3000 = vpack.c.b16 %v1748, %v1744
    %v3001 = vpack.c.b16 %v1749, %v1745
    %v3002 = vpack.c.b16 %v1750, %v1746
    %v3003 = vpack.c.b16 %v1755, %v1751
    %v3004 = vpack.c.b16 %v1756, %v1752
    %v3005 = vpack.c.b16 %v1757, %v1753
    %v3006 = vpack.c.b16 %v1758, %v1754
    %v3007 = vpack.c.b16 %v1763, %v1759
    %v3008 = vpack.c.b16 %v1764, %v1760
    %v3009 = vpack.c.b16 %v1765, %v1761
    %v3010 = vpack.c.b16 %v1766, %v1762
    %v3011 = vpack.c.b16 %v1771, %v1767
    %v3012 = vpack.c.b16 %v1772, %v1768
    %v3013 = vpack.c.b16 %v1773, %v1769
    %v3014 = vpack.c.b16 %v1774, %v1770
    %v3015 = vpack.c.b16 %v1779, %v1775
    %v3016 = vpack.c.b16 %v1780, %v1776
    %v3017 = vpack.c.b16 %v1781, %v1777
    %v3018 = vpack.c.b16 %v1782, %v1778
    %v3019 = vpack.c.b16 %v1787, %v1783
    %v3020 = vpack.c.b16 %v1788, %v1784
    %v3021 = vpack.c.b16 %v1789, %v1785
    %v3022 = vpack.c.b16 %v1790, %v1786
    %v3023 = vpack.c.b16 %v1795, %v1791
    %v3024 = vpack.c.b16 %v1796, %v1792
    %v3025 = vpack.c.b16 %v1797, %v1793
    %v3026 = vpack.c.b16 %v1798, %v1794
    %v3027 = vpack.c.b16 %v1803, %v1799
    %v3028 = vpack.c.b16 %v1804, %v1800
    %v3029 = vpack.c.b16 %v1805, %v1801
    %v3030 = vpack.c.b16 %v1806, %v1802
    %v3031 = vpack.c.b16 %v1811, %v1807
    %v3032 = vpack.c.b16 %v1812, %v1808
    %v3033 = vpack.c.b16 %v1813, %v1809
    %v3034 = vpack.c.b16 %v1814, %v1810
    %v3035 = vpack.c.b16 %v1819, %v1815
    %v3036 = vpack.c.b16 %v1820, %v1816
    %v3037 = vpack.c.b16 %v1821, %v1817
    %v3038 = vpack.c.b16 %v1822, %v1818
    %v3039 = vpack.c.b16 %v1827, %v1823
    %v3040 = vpack.c.b16 %v1828, %v1824
    %v3041 = vpack.c.b16 %v1829, %v1825
    %v3042 = vpack.c.b16 %v1830, %v1826
    %v3043 = vpack.c.b16 %v1835, %v1831
    %v3044 = vpack.c.b16 %v1836, %v1832
    %v3045 = vpack.c.b16 %v1837, %v1833
    %v3046 = vpack.c.b16 %v1838, %v1834
    %v3047 = vpack.c.b16 %v1843, %v1839
    %v3048 = vpack.c.b16 %v1844, %v1840
    %v3049 = vpack.c.b16 %v1845, %v1841
    %v3050 = vpack.c.b16 %v1846, %v1842
    %v3051 = vpack.c.b16 %v1851, %v1847
    %v3052 = vpack.c.b16 %v1852, %v1848
    %v3053 = vpack.c.b16 %v1853, %v1849
    %v3054 = vpack.c.b16 %v1854, %v1850
    %v3055 = vpack.c.b16 %v1859, %v1855
    %v3056 = vpack.c.b16 %v1860, %v1856
    %v3057 = vpack.c.b16 %v1861, %v1857
    %v3058 = vpack.c.b16 %v1862, %v1858
    %v3059 = vpack.c.b16 %v1867, %v1863
    %v3060 = vpack.c.b16 %v1868, %v1864
    %v3061 = vpack.c.b16 %v1869, %v1865
    %v3062 = vpack.c.b16 %v1870, %v1866
    %v3063 = vpack.c.b16 %v1875, %v1871
    %v3064 = vpack.c.b16 %v1876, %v1872
    %v3065 = vpack.c.b16 %v1877, %v1873
    %v3066 = vpack.c.b16 %v1878, %v1874
    %v3067 = vpack.c.b16 %v1883, %v1879
    %v3068 = vpack.c.b16 %v1884, %v1880
    %v3069 = vpack.c.b16 %v1885, %v1881
    %v3070 = vpack.c.b16 %v1886, %v1882
    %v3071 = vpack.c.b16 %v1891, %v1887
    %v3072 = vpack.c.b16 %v1892, %v1888
    %v3073 = vpack.c.b16 %v1893, %v1889
    %v3074 = vpack.c.b16 %v1894, %v1890
    %v3075 = vpack.c.b16 %v1899, %v1895
    %v3076 = vpack.c.b16 %v1900, %v1896
    %v3077 = vpack.c.b16 %v1901, %v1897
    %v3078 = vpack.c.b16 %v1902, %v1898
    %v3079 = vpack.c.b16 %v1907, %v1903
    %v3080 = vpack.c.b16 %v1908, %v1904
    %v3081 = vpack.c.b16 %v1909, %v1905
    %v3082 = vpack.c.b16 %v1910, %v1906
    %v3083 = vpack.c.b16 %v1915, %v1911
    %v3084 = vpack.c.b16 %v1916, %v1912
    %v3085 = vpack.c.b16 %v1917, %v1913
    %v3086 = vpack.c.b16 %v1918, %v1914
    %v3087 = vpack.c.b16 %v1923, %v1919
    %v3088 = vpack.c.b16 %v1924, %v1920
    %v3089 = vpack.c.b16 %v1925, %v1921
    %v3090 = vpack.c.b16 %v1926, %v1922
    %v3091 = vpack.c.b16 %v1931, %v1927
    %v3092 = vpack.c.b16 %v1932, %v1928
    %v3093 = vpack.c.b16 %v1933, %v1929
    %v3094 = vpack.c.b16 %v1934, %v1930
    %v3095 = vpack.c.b16 %v1939, %v1935
    %v3096 = vpack.c.b16 %v1940, %v1936
    %v3097 = vpack.c.b16 %v1941, %v1937
    %v3098 = vpack.c.b16 %v1942, %v1938
    %v3099 = vpack.c.b16 %v1947, %v1943
    %v3100 = vpack.c.b16 %v1948, %v1944
    %v3101 = vpack.c.b16 %v1949, %v1945
    %v3102 = vpack.c.b16 %v1950, %v1946
    %v3103 = vpack.c.b16 %v1955, %v1951
    %v3104 = vpack.c.b16 %v1956, %v1952
    %v3105 = vpack.c.b16 %v1957, %v1953
    %v3106 = vpack.c.b16 %v1958, %v1954
    %v3107 = vpack.c.b16 %v1963, %v1959
    %v3108 = vpack.c.b16 %v1964, %v1960
    %v3109 = vpack.c.b16 %v1965, %v1961
    %v3110 = vpack.c.b16 %v1966, %v1962
    %v3111 = vpack.c.b16 %v1971, %v1967
    %v3112 = vpack.c.b16 %v1972, %v1968
    %v3113 = vpack.c.b16 %v1973, %v1969
    %v3114 = vpack.c.b16 %v1974, %v1970
    %v3115 = vpack.c.b16 %v1979, %v1975
    %v3116 = vpack.c.b16 %v1980, %v1976
    %v3117 = vpack.c.b16 %v1981, %v1977
    %v3118 = vpack.c.b16 %v1982, %v1978
    %v3119 = vpack.c.b16 %v1987, %v1983
    %v3120 = vpack.c.b16 %v1988, %v1984
    %v3121 = vpack.c.b16 %v1989, %v1985
    %v3122 = vpack.c.b16 %v1990, %v1986
    %v3123 = vpack.c.b16 %v1995, %v1991
    %v3124 = vpack.c.b16 %v1996, %v1992
    %v3125 = vpack.c.b16 %v1997, %v1993
    %v3126 = vpack.c.b16 %v1998, %v1994
    %v3127 = vpack.c.b16 %v2003, %v1999
    %v3128 = vpack.c.b16 %v2004, %v2000
    %v3129 = vpack.c.b16 %v2005, %v2001
    %v3130 = vpack.c.b16 %v2006, %v2002
    %v3131 = vpack.c.b16 %v2011, %v2007
    %v3132 = vpack.c.b16 %v2012, %v2008
    %v3133 = vpack.c.b16 %v2013, %v2009
    %v3134 = vpack.c.b16 %v2014, %v2010
    %v3135 = vpack.c.b16 %v2019, %v2015
    %v3136 = vpack.c.b16 %v2020, %v2016
    %v3137 = vpack.c.b16 %v2021, %v2017
    %v3138 = vpack.c.b16 %v2022, %v2018
    %v3139 = vpack.c.b16 %v2027, %v2023
    %v3140 = vpack.c.b16 %v2028, %v2024
    %v3141 = vpack.c.b16 %v2029, %v2025
    %v3142 = vpack.c.b16 %v2030, %v2026
    %v3143 = vpack.c.b16 %v2035, %v2031
    %v3144 = vpack.c.b16 %v2036, %v2032
    %v3145 = vpack.c.b16 %v2037, %v2033
    %v3146 = vpack.c.b16 %v2038, %v2034
    %v3147 = vpack.c.b16 %v2043, %v2039
    %v3148 = vpack.c.b16 %v2044, %v2040
    %v3149 = vpack.c.b16 %v2045, %v2041
    %v3150 = vpack.c.b16 %v2046, %v2042
    %v3151 = vpack.c.b16 %v2051, %v2047
    %v3152 = vpack.c.b16 %v2052, %v2048
    %v3153 = vpack.c.b16 %v2053, %v2049
    %v3154 = vpack.c.b16 %v2054, %v2050
    %v3155 = vpack.c.b16 %v2059, %v2055
    %v3156 = vpack.c.b16 %v2060, %v2056
    %v3157 = vpack.c.b16 %v2061, %v2057
    %v3158 = vpack.c.b16 %v2062, %v2058
    %v3159 = vpack.c.b16 %v2067, %v2063
    %v3160 = vpack.c.b16 %v2068, %v2064
    %v3161 = vpack.c.b16 %v2069, %v2065
    %v3162 = vpack.c.b16 %v2070, %v2066
    %v3163 = vpack.c.b16 %v2075, %v2071
    %v3164 = vpack.c.b16 %v2076, %v2072
    %v3165 = vpack.c.b16 %v2077, %v2073
    %v3166 = vpack.c.b16 %v2078, %v2074
    %v3167 = vpack.c.b16 %v2083, %v2079
    %v3168 = vpack.c.b16 %v2084, %v2080
    %v3169 = vpack.c.b16 %v2085, %v2081
    %v3170 = vpack.c.b16 %v2086, %v2082
    %v3171 = vpack.c.b16 %v2091, %v2087
    %v3172 = vpack.c.b16 %v2092, %v2088
    %v3173 = vpack.c.b16 %v2093, %v2089
    %v3174 = vpack.c.b16 %v2094, %v2090
    %v3175 = vpack.c.b16 %v2099, %v2095
    %v3176 = vpack.c.b16 %v2100, %v2096
    %v3177 = vpack.c.b16 %v2101, %v2097
    %v3178 = vpack.c.b16 %v2102, %v2098
    %v3179 = vpack.c.b16 %v2107, %v2103
    %v3180 = vpack.c.b16 %v2108, %v2104
    %v3181 = vpack.c.b16 %v2109, %v2105
    %v3182 = vpack.c.b16 %v2110, %v2106
    %v3183 = vpack.c.b16 %v2115, %v2111
    %v3184 = vpack.c.b16 %v2116, %v2112
    %v3185 = vpack.c.b16 %v2117, %v2113
    %v3186 = vpack.c.b16 %v2118, %v2114
    %v3187 = vpack.c.b16 %v2123, %v2119
    %v3188 = vpack.c.b16 %v2124, %v2120
    %v3189 = vpack.c.b16 %v2125, %v2121
    %v3190 = vpack.c.b16 %v2126, %v2122
    %v3191 = vpack.c.b16 %v2131, %v2127
    %v3192 = vpack.c.b16 %v2132, %v2128
    %v3193 = vpack.c.b16 %v2133, %v2129
    %v3194 = vpack.c.b16 %v2134, %v2130
    %v3195 = vpack.c.b16 %v2139, %v2135
    %v3196 = vpack.c.b16 %v2140, %v2136
    %v3197 = vpack.c.b16 %v2141, %v2137
    %v3198 = vpack.c.b16 %v2142, %v2138
    %v3199 = vpack.c.b16 %v2147, %v2143
    %v3200 = vpack.c.b16 %v2148, %v2144
    %v3201 = vpack.c.b16 %v2149, %v2145
    %v3202 = vpack.c.b16 %v2150, %v2146
    %v3203 = vpack.c.b16 %v2155, %v2151
    %v3204 = vpack.c.b16 %v2156, %v2152
    %v3205 = vpack.c.b16 %v2157, %v2153
    %v3206 = vpack.c.b16 %v2158, %v2154
    %v3207 = vpack.c.b16 %v2163, %v2159
    %v3208 = vpack.c.b16 %v2164, %v2160
    %v3209 = vpack.c.b16 %v2165, %v2161
    %v3210 = vpack.c.b16 %v2166, %v2162
    %v3211 = vpack.c.b16 %v2171, %v2167
    %v3212 = vpack.c.b16 %v2172, %v2168
    %v3213 = vpack.c.b16 %v2173, %v2169
    %v3214 = vpack.c.b16 %v2174, %v2170
    %v3215 = vpack.c.b16 %v2179, %v2175
    %v3216 = vpack.c.b16 %v2180, %v2176
    %v3217 = vpack.c.b16 %v2181, %v2177
    %v3218 = vpack.c.b16 %v2182, %v2178
    %v3219 = vpack.c.b16 %v2187, %v2183
    %v3220 = vpack.c.b16 %v2188, %v2184
    %v3221 = vpack.c.b16 %v2189, %v2185
    %v3222 = vpack.c.b16 %v2190, %v2186
    %v3223 = vpack.c.b16 %v2195, %v2191
    %v3224 = vpack.c.b16 %v2196, %v2192
    %v3225 = vpack.c.b16 %v2197, %v2193
    %v3226 = vpack.c.b16 %v2198, %v2194
    %v3227 = vpack.c.b16 %v2203, %v2199
    %v3228 = vpack.c.b16 %v2204, %v2200
    %v3229 = vpack.c.b16 %v2205, %v2201
    %v3230 = vpack.c.b16 %v2206, %v2202
    %v3231 = vpack.c.b16 %v2211, %v2207
    %v3232 = vpack.c.b16 %v2212, %v2208
    %v3233 = vpack.c.b16 %v2213, %v2209
    %v3234 = vpack.c.b16 %v2214, %v2210
    %v3235 = vpack.c.b16 %v2219, %v2215
    %v3236 = vpack.c.b16 %v2220, %v2216
    %v3237 = vpack.c.b16 %v2221, %v2217
    %v3238 = vpack.c.b16 %v2222, %v2218
    %v3239 = vpack.c.b16 %v2227, %v2223
    %v3240 = vpack.c.b16 %v2228, %v2224
    %v3241 = vpack.c.b16 %v2229, %v2225
    %v3242 = vpack.c.b16 %v2230, %v2226
    %v3243 = vpack.c.b16 %v2235, %v2231
    %v3244 = vpack.c.b16 %v2236, %v2232
    %v3245 = vpack.c.b16 %v2237, %v2233
    %v3246 = vpack.c.b16 %v2238, %v2234
    %v3247 = vpack.c.b16 %v2243, %v2239
    %v3248 = vpack.c.b16 %v2244, %v2240
    %v3249 = vpack.c.b16 %v2245, %v2241
    %v3250 = vpack.c.b16 %v2246, %v2242
    %v3251 = vpack.c.b16 %v2251, %v2247
    %v3252 = vpack.c.b16 %v2252, %v2248
    %v3253 = vpack.c.b16 %v2253, %v2249
    %v3254 = vpack.c.b16 %v2254, %v2250
    %v3255 = vpack.c.b16 %v2259, %v2255
    %v3256 = vpack.c.b16 %v2260, %v2256
    %v3257 = vpack.c.b16 %v2261, %v2257
    %v3258 = vpack.c.b16 %v2262, %v2258
    %v3259 = vpack.c.b16 %v2267, %v2263
    %v3260 = vpack.c.b16 %v2268, %v2264
    %v3261 = vpack.c.b16 %v2269, %v2265
    %v3262 = vpack.c.b16 %v2270, %v2266
    %v3263 = vpack.c.b16 %v2275, %v2271
    %v3264 = vpack.c.b16 %v2276, %v2272
    %v3265 = vpack.c.b16 %v2277, %v2273
    %v3266 = vpack.c.b16 %v2278, %v2274
    %v3267 = vpack.c.b16 %v2283, %v2279
    %v3268 = vpack.c.b16 %v2284, %v2280
    %v3269 = vpack.c.b16 %v2285, %v2281
    %v3270 = vpack.c.b16 %v2286, %v2282
    %v3271 = vpack.c.b16 %v2291, %v2287
    %v3272 = vpack.c.b16 %v2292, %v2288
    %v3273 = vpack.c.b16 %v2293, %v2289
    %v3274 = vpack.c.b16 %v2294, %v2290
    %v3275 = vpack.c.b16 %v2299, %v2295
    %v3276 = vpack.c.b16 %v2300, %v2296
    %v3277 = vpack.c.b16 %v2301, %v2297
    %v3278 = vpack.c.b16 %v2302, %v2298
    %v3279 = vpack.c.b16 %v2307, %v2303
    %v3280 = vpack.c.b16 %v2308, %v2304
    %v3281 = vpack.c.b16 %v2309, %v2305
    %v3282 = vpack.c.b16 %v2310, %v2306
    %v3283 = vpack.c.b16 %v2315, %v2311
    %v3284 = vpack.c.b16 %v2316, %v2312
    %v3285 = vpack.c.b16 %v2317, %v2313
    %v3286 = vpack.c.b16 %v2318, %v2314
    %v3287 = vpack.c.b16 %v2323, %v2319
    %v3288 = vpack.c.b16 %v2324, %v2320
    %v3289 = vpack.c.b16 %v2325, %v2321
    %v3290 = vpack.c.b16 %v2326, %v2322
    %v3291 = vpack.c.b16 %v2331, %v2327
    %v3292 = vpack.c.b16 %v2332, %v2328
    %v3293 = vpack.c.b16 %v2333, %v2329
    %v3294 = vpack.c.b16 %v2334, %v2330
    %v3295 = vpack.c.b16 %v2339, %v2335
    %v3296 = vpack.c.b16 %v2340, %v2336
    %v3297 = vpack.c.b16 %v2341, %v2337
    %v3298 = vpack.c.b16 %v2342, %v2338
    %v3299 = vpack.c.b16 %v2347, %v2343
    %v3300 = vpack.c.b16 %v2348, %v2344
    %v3301 = vpack.c.b16 %v2349, %v2345
    %v3302 = vpack.c.b16 %v2350, %v2346
    %v3303 = vpack.c.b16 %v2355, %v2351
    %v3304 = vpack.c.b16 %v2356, %v2352
    %v3305 = vpack.c.b16 %v2357, %v2353
    %v3306 = vpack.c.b16 %v2358, %v2354
    %v3307 = vpack.c.b16 %v2363, %v2359
    %v3308 = vpack.c.b16 %v2364, %v2360
    %v3309 = vpack.c.b16 %v2365, %v2361
    %v3310 = vpack.c.b16 %v2366, %v2362
    %v3311 = vpack.c.b16 %v2371, %v2367
    %v3312 = vpack.c.b16 %v2372, %v2368
    %v3313 = vpack.c.b16 %v2373, %v2369
    %v3314 = vpack.c.b16 %v2374, %v2370
    %v3315 = vpack.c.b16 %v2379, %v2375
    %v3316 = vpack.c.b16 %v2380, %v2376
    %v3317 = vpack.c.b16 %v2381, %v2377
    %v3318 = vpack.c.b16 %v2382, %v2378
    %v3319 = vpack.c.b16 %v2387, %v2383
    %v3320 = vpack.c.b16 %v2388, %v2384
    %v3321 = vpack.c.b16 %v2389, %v2385
    %v3322 = vpack.c.b16 %v2390, %v2386
    %v3323 = vpack.c.b16 %v2395, %v2391
    %v3324 = vpack.c.b16 %v2396, %v2392
    %v3325 = vpack.c.b16 %v2397, %v2393
    %v3326 = vpack.c.b16 %v2398, %v2394
    %v3327 = vpack.c.b16 %v2403, %v2399
    %v3328 = vpack.c.b16 %v2404, %v2400
    %v3329 = vpack.c.b16 %v2405, %v2401
    %v3330 = vpack.c.b16 %v2406, %v2402
    %v3331 = vpack.c.b16 %v2411, %v2407
    %v3332 = vpack.c.b16 %v2412, %v2408
    %v3333 = vpack.c.b16 %v2413, %v2409
    %v3334 = vpack.c.b16 %v2414, %v2410
    %v3335 = vpack.c.b16 %v2419, %v2415
    %v3336 = vpack.c.b16 %v2420, %v2416
    %v3337 = vpack.c.b16 %v2421, %v2417
    %v3338 = vpack.c.b16 %v2422, %v2418
    %v3339 = vpack.c.b16 %v2427, %v2423
    %v3340 = vpack.c.b16 %v2428, %v2424
    %v3341 = vpack.c.b16 %v2429, %v2425
    %v3342 = vpack.c.b16 %v2430, %v2426
    %v3343 = vpack.c.b16 %v2435, %v2431
    %v3344 = vpack.c.b16 %v2436, %v2432
    %v3345 = vpack.c.b16 %v2437, %v2433
    %v3346 = vpack.c.b16 %v2438, %v2434
    %v3347 = vpack.c.b16 %v2443, %v2439
    %v3348 = vpack.c.b16 %v2444, %v2440
    %v3349 = vpack.c.b16 %v2445, %v2441
    %v3350 = vpack.c.b16 %v2446, %v2442
    %v3351 = vpack.c.b16 %v2451, %v2447
    %v3352 = vpack.c.b16 %v2452, %v2448
    %v3353 = vpack.c.b16 %v2453, %v2449
    %v3354 = vpack.c.b16 %v2454, %v2450
    %v3355 = vpack.c.b16 %v2459, %v2455
    %v3356 = vpack.c.b16 %v2460, %v2456
    %v3357 = vpack.c.b16 %v2461, %v2457
    %v3358 = vpack.c.b16 %v2462, %v2458
    %v3359 = vpack.c.b16 %v2467, %v2463
    %v3360 = vpack.c.b16 %v2468, %v2464
    %v3361 = vpack.c.b16 %v2469, %v2465
    %v3362 = vpack.c.b16 %v2470, %v2466
    %v3363 = vpack.c.b16 %v2475, %v2471
    %v3364 = vpack.c.b16 %v2476, %v2472
    %v3365 = vpack.c.b16 %v2477, %v2473
    %v3366 = vpack.c.b16 %v2478, %v2474
    %v3367 = vpack.c.b16 %v2483, %v2479
    %v3368 = vpack.c.b16 %v2484, %v2480
    %v3369 = vpack.c.b16 %v2485, %v2481
    %v3370 = vpack.c.b16 %v2486, %v2482
    %v3371 = vpack.c.b16 %v2491, %v2487
    %v3372 = vpack.c.b16 %v2492, %v2488
    %v3373 = vpack.c.b16 %v2493, %v2489
    %v3374 = vpack.c.b16 %v2494, %v2490
    %v3375 = vpack.c.b16 %v2499, %v2495
    %v3376 = vpack.c.b16 %v2500, %v2496
    %v3377 = vpack.c.b16 %v2501, %v2497
    %v3378 = vpack.c.b16 %v2502, %v2498
    %v3379 = vpack.c.b16 %v2507, %v2503
    %v3380 = vpack.c.b16 %v2508, %v2504
    %v3381 = vpack.c.b16 %v2509, %v2505
    %v3382 = vpack.c.b16 %v2510, %v2506
    %v3383 = vpack.c.b16 %v2515, %v2511
    %v3384 = vpack.c.b16 %v2516, %v2512
    %v3385 = vpack.c.b16 %v2517, %v2513
    %v3386 = vpack.c.b16 %v2518, %v2514
    %v3387 = vpack.c.b16 %v2523, %v2519
    %v3388 = vpack.c.b16 %v2524, %v2520
    %v3389 = vpack.c.b16 %v2525, %v2521
    %v3390 = vpack.c.b16 %v2526, %v2522
    %v3391 = vpack.c.b16 %v2531, %v2527
    %v3392 = vpack.c.b16 %v2532, %v2528
    %v3393 = vpack.c.b16 %v2533, %v2529
    %v3394 = vpack.c.b16 %v2534, %v2530
    %v3395 = vpack.c.b16 %v2539, %v2535
    %v3396 = vpack.c.b16 %v2540, %v2536
    %v3397 = vpack.c.b16 %v2541, %v2537
    %v3398 = vpack.c.b16 %v2542, %v2538
    %v3399 = vpack.c.b16 %v2547, %v2543
    %v3400 = vpack.c.b16 %v2548, %v2544
    %v3401 = vpack.c.b16 %v2549, %v2545
    %v3402 = vpack.c.b16 %v2550, %v2546
    %v3403 = vpack.c.b16 %v2555, %v2551
    %v3404 = vpack.c.b16 %v2556, %v2552
    %v3405 = vpack.c.b16 %v2557, %v2553
    %v3406 = vpack.c.b16 %v2558, %v2554
    %v3407 = vpack.c.b16 %v2563, %v2559
    %v3408 = vpack.c.b16 %v2564, %v2560
    %v3409 = vpack.c.b16 %v2565, %v2561
    %v3410 = vpack.c.b16 %v2566, %v2562
    %v3411 = vpack.c.b16 %v2571, %v2567
    %v3412 = vpack.c.b16 %v2572, %v2568
    %v3413 = vpack.c.b16 %v2573, %v2569
    %v3414 = vpack.c.b16 %v2574, %v2570
    %v3415 = vpack.c.b16 %v2579, %v2575
    %v3416 = vpack.c.b16 %v2580, %v2576
    %v3417 = vpack.c.b16 %v2581, %v2577
    %v3418 = vpack.c.b16 %v2582, %v2578
    %v3419 = vpack.c.b16 %v2587, %v2583
    %v3420 = vpack.c.b16 %v2588, %v2584
    %v3421 = vpack.c.b16 %v2589, %v2585
    %v3422 = vpack.c.b16 %v2590, %v2586
    %v3423 = vpack.c.b16 %v2595, %v2591
    %v3424 = vpack.c.b16 %v2596, %v2592
    %v3425 = vpack.c.b16 %v2597, %v2593
    %v3426 = vpack.c.b16 %v2598, %v2594
    %v3427 = vpack.c.b16 %v2603, %v2599
    %v3428 = vpack.c.b16 %v2604, %v2600
    %v3429 = vpack.c.b16 %v2605, %v2601
    %v3430 = vpack.c.b16 %v2606, %v2602
    %v3431 = vpack.c.b16 %v2611, %v2607
    %v3432 = vpack.c.b16 %v2612, %v2608
    %v3433 = vpack.c.b16 %v2613, %v2609
    %v3434 = vpack.c.b16 %v2614, %v2610
    %v3435 = vpack.c.b16 %v2619, %v2615
    %v3436 = vpack.c.b16 %v2620, %v2616
    %v3437 = vpack.c.b16 %v2621, %v2617
    %v3438 = vpack.c.b16 %v2622, %v2618
    %v3439 = vpack.c.b16 %v2627, %v2623
    %v3440 = vpack.c.b16 %v2628, %v2624
    %v3441 = vpack.c.b16 %v2629, %v2625
    %v3442 = vpack.c.b16 %v2630, %v2626
    %v3443 = vpack.c.b16 %v2635, %v2631
    %v3444 = vpack.c.b16 %v2636, %v2632
    %v3445 = vpack.c.b16 %v2637, %v2633
    %v3446 = vpack.c.b16 %v2638, %v2634
    %v3447 = vpack.c.b16 %v2643, %v2639
    %v3448 = vpack.c.b16 %v2644, %v2640
    %v3449 = vpack.c.b16 %v2645, %v2641
    %v3450 = vpack.c.b16 %v2646, %v2642
    %v3451 = vpack.c.b16 %v2651, %v2647
    %v3452 = vpack.c.b16 %v2652, %v2648
    %v3453 = vpack.c.b16 %v2653, %v2649
    %v3454 = vpack.c.b16 %v2654, %v2650
    %v3455 = vpack.c.b16 %v2659, %v2655
    %v3456 = vpack.c.b16 %v2660, %v2656
    %v3457 = vpack.c.b16 %v2661, %v2657
    %v3458 = vpack.c.b16 %v2662, %v2658
    %v3459 = vpack.c.b16 %v2667, %v2663
    %v3460 = vpack.c.b16 %v2668, %v2664
    %v3461 = vpack.c.b16 %v2669, %v2665
    %v3462 = vpack.c.b16 %v2670, %v2666
    %v3463 = vpack.c.b16 %v2675, %v2671
    %v3464 = vpack.c.b16 %v2676, %v2672
    %v3465 = vpack.c.b16 %v2677, %v2673
    %v3466 = vpack.c.b16 %v2678, %v2674
    %v3467 = vpack.c.b16 %v2683, %v2679
    %v3468 = vpack.c.b16 %v2684, %v2680
    %v3469 = vpack.c.b16 %v2685, %v2681
    %v3470 = vpack.c.b16 %v2686, %v2682
    %v3471 = vpack.c.b16 %v2691, %v2687
    %v3472 = vpack.c.b16 %v2692, %v2688
    %v3473 = vpack.c.b16 %v2693, %v2689
    %v3474 = vpack.c.b16 %v2694, %v2690
    %v3475 = vpack.c.b16 %v2699, %v2695
    %v3476 = vpack.c.b16 %v2700, %v2696
    %v3477 = vpack.c.b16 %v2701, %v2697
    %v3478 = vpack.c.b16 %v2702, %v2698
    %v3479 = vpack.c.b16 %v2707, %v2703
    %v3480 = vpack.c.b16 %v2708, %v2704
    %v3481 = vpack.c.b16 %v2709, %v2705
    %v3482 = vpack.c.b16 %v2710, %v2706
    %v3483 = vpack.c.b16 %v2715, %v2711
    %v3484 = vpack.c.b16 %v2716, %v2712
    %v3485 = vpack.c.b16 %v2717, %v2713
    %v3486 = vpack.c.b16 %v2718, %v2714
    %v3487 = vpack.c.b16 %v2723, %v2719
    %v3488 = vpack.c.b16 %v2724, %v2720
    %v3489 = vpack.c.b16 %v2725, %v2721
    %v3490 = vpack.c.b16 %v2726, %v2722
    %v3491 = vpack.c.b16 %v2731, %v2727
    %v3492 = vpack.c.b16 %v2732, %v2728
    %v3493 = vpack.c.b16 %v2733, %v2729
    %v3494 = vpack.c.b16 %v2734, %v2730
    %v3495 = vpack.c.b16 %v2739, %v2735
    %v3496 = vpack.c.b16 %v2740, %v2736
    %v3497 = vpack.c.b16 %v2741, %v2737
    %v3498 = vpack.c.b16 %v2742, %v2738
    %v3499 = vpack.c.b16 %v2747, %v2743
    %v3500 = vpack.c.b16 %v2748, %v2744
    %v3501 = vpack.c.b16 %v2749, %v2745
    %v3502 = vpack.c.b16 %v2750, %v2746
    %v3503 = vpack.c.b16 %v2755, %v2751
    %v3504 = vpack.c.b16 %v2756, %v2752
    %v3505 = vpack.c.b16 %v2757, %v2753
    %v3506 = vpack.c.b16 %v2758, %v2754
    %v3507 = vpack.c.b16 %v2763, %v2759
    %v3508 = vpack.c.b16 %v2764, %v2760
    %v3509 = vpack.c.b16 %v2765, %v2761
    %v3510 = vpack.c.b16 %v2766, %v2762
    %v3511 = vpack.c.b16 %v2771, %v2767
    %v3512 = vpack.c.b16 %v2772, %v2768
    %v3513 = vpack.c.b16 %v2773, %v2769
    %v3514 = vpack.c.b16 %v2774, %v2770
    %v3515 = vpack.c.b16 %v2779, %v2775
    %v3516 = vpack.c.b16 %v2780, %v2776
    %v3517 = vpack.c.b16 %v2781, %v2777
    %v3518 = vpack.c.b16 %v2782, %v2778
    %v3519 = vpack.c.b16 %v2787, %v2783
    %v3520 = vpack.c.b16 %v2788, %v2784
    %v3521 = vpack.c.b16 %v2789, %v2785
    %v3522 = vpack.c.b16 %v2790, %v2786
    %v3523 = vpack.c.b16 %v2795, %v2791
    %v3524 = vpack.c.b16 %v2796, %v2792
    %v3525 = vpack.c.b16 %v2797, %v2793
    %v3526 = vpack.c.b16 %v2798, %v2794
    %v3527 = vpack.c.b16 %v2803, %v2799
    %v3528 = vpack.c.b16 %v2804, %v2800
    %v3529 = vpack.c.b16 %v2805, %v2801
    %v3530 = vpack.c.b16 %v2806, %v2802
    %v3531 = vpack.c.b16 %v2811, %v2807
    %v3532 = vpack.c.b16 %v2812, %v2808
    %v3533 = vpack.c.b16 %v2813, %v2809
    %v3534 = vpack.c.b16 %v2814, %v2810
    %v3535 = vpack.c.b16 %v2819, %v2815
    %v3536 = vpack.c.b16 %v2820, %v2816
    %v3537 = vpack.c.b16 %v2821, %v2817
    %v3538 = vpack.c.b16 %v2822, %v2818
    %v3539 = vpack.c.b16 %v2827, %v2823
    %v3540 = vpack.c.b16 %v2828, %v2824
    %v3541 = vpack.c.b16 %v2829, %v2825
    %v3542 = vpack.c.b16 %v2830, %v2826
    %v3543 = vpack.c.b16 %v2835, %v2831
    %v3544 = vpack.c.b16 %v2836, %v2832
    %v3545 = vpack.c.b16 %v2837, %v2833
    %v3546 = vpack.c.b16 %v2838, %v2834
    %v3547 = vpack.c.b16 %v2843, %v2839
    %v3548 = vpack.c.b16 %v2844, %v2840
    %v3549 = vpack.c.b16 %v2845, %v2841
    %v3550 = vpack.c.b16 %v2846, %v2842
    %v3551 = vpack.c.b16 %v2851, %v2847
    %v3552 = vpack.c.b16 %v2852, %v2848
    %v3553 = vpack.c.b16 %v2853, %v2849
    %v3554 = vpack.c.b16 %v2854, %v2850
    %v3555 = vpack.c.b16 %v2859, %v2855
    %v3556 = vpack.c.b16 %v2860, %v2856
    %v3557 = vpack.c.b16 %v2861, %v2857
    %v3558 = vpack.c.b16 %v2862, %v2858
    %v3559 = vpack.c.b16 %v2867, %v2863
    %v3560 = vpack.c.b16 %v2868, %v2864
    %v3561 = vpack.c.b16 %v2869, %v2865
    %v3562 = vpack.c.b16 %v2870, %v2866
    %v3563 = vpack.c.b16 %v2875, %v2871
    %v3564 = vpack.c.b16 %v2876, %v2872
    %v3565 = vpack.c.b16 %v2877, %v2873
    %v3566 = vpack.c.b16 %v2878, %v2874
    %v3567 = vpack.c.b16 %v2883, %v2879
    %v3568 = vpack.c.b16 %v2884, %v2880
    %v3569 = vpack.c.b16 %v2885, %v2881
    %v3570 = vpack.c.b16 %v2886, %v2882
    %v3571 = vpack.c.b16 %v2891, %v2887
    %v3572 = vpack.c.b16 %v2892, %v2888
    %v3573 = vpack.c.b16 %v2893, %v2889
    %v3574 = vpack.c.b16 %v2894, %v2890
    %v3575 = vpack.c.b16 %v2899, %v2895
    %v3576 = vpack.c.b16 %v2900, %v2896
    %v3577 = vpack.c.b16 %v2901, %v2897
    %v3578 = vpack.c.b16 %v2902, %v2898
    %vm4255 = vcmask 130048
    %v4257 = vsel %vm4255, %v176, 0
    %4259 = vmatprep.subr.bf16.mxu0 %v2932
    %4260 = vmatpush1.bf16.msra.mxu0 %v2931
    %4261 = vmatprep.subr.bf16.mxu0 %v2928
    %4262 = vmatpush1.bf16.msra.mxu0 %v2927
    %4263 = vmatprep.subr.bf16.mxu0 %v2924
    %4264 = vmatpush1.bf16.msra.mxu0 %v2923
    %4265 = vmatprep.subr.bf16.mxu0 %v2920
    %4266 = vmatpush1.bf16.msra.mxu0 %v2919
    %4267 = vmatprep.subr.bf16.mxu0 %v2916
    %4268 = vmatpush1.bf16.msra.mxu0 %v2915
    %4269 = vmatprep.subr.bf16.mxu0 %v2912
    %4270 = vmatpush1.bf16.msra.mxu0 %v2911
    %4271 = vmatprep.subr.bf16.mxu0 %v2908
    %4272 = vmatpush1.bf16.msra.mxu0 %v2907
    %4273 = vmatprep.subr.bf16.mxu0 %v2904
    %4274 = vmatpush1.bf16.msra.mxu0 %v2903
    %4275 = vmatprep.subr.bf16.mxu0 %v2964
    %4276 = vmatpush2.bf16.msra.mxu0 %v2963
    %4277 = vmatprep.subr.bf16.mxu0 %v2960
    %4278 = vmatpush2.bf16.msra.mxu0 %v2959
    %4279 = vmatprep.subr.bf16.mxu0 %v2956
    %4280 = vmatpush2.bf16.msra.mxu0 %v2955
    %4281 = vmatprep.subr.bf16.mxu0 %v2952
    %4282 = vmatpush2.bf16.msra.mxu0 %v2951
    %4283 = vmatprep.subr.bf16.mxu0 %v2948
    %4284 = vmatpush2.bf16.msra.mxu0 %v2947
    %4285 = vmatprep.subr.bf16.mxu0 %v2944
    %4286 = vmatpush2.bf16.msra.mxu0 %v2943
    %4287 = vmatprep.subr.bf16.mxu0 %v2940
    %4288 = vmatpush2.bf16.msra.mxu0 %v2939
    %4289 = vmatprep.subr.bf16.mxu0 %v2936
    %4290 = vmatpush2.bf16.msra.mxu0 %v2935
    %4291 = vmatprep.mubr.bf16.mxu0 %v156
    %4292 = vmatmul.mubr.bf16.gmra.mxu0 %v155
    %v4293 = vpop.f32.mrf.mxu0
    %v4294 = vadd.f32 %v858, %v4293
    %v4295 = vpop.f32.mrf.mxu0
    %v4296 = vadd.f32 %v862, %v4295
    %v4297 = vpop.f32.mrf.mxu0
    %v4298 = vpop.f32.mrf.mxu0
    %4299 = vdwg.mxu0
    %4300 = vmatprep.subr.bf16.mxu0 %v2996
    %4301 = vmatpush1.bf16.msra.mxu0 %v2995
    %4302 = vmatprep.subr.bf16.mxu0 %v2992
    %4303 = vmatpush1.bf16.msra.mxu0 %v2991
    %4304 = vmatprep.subr.bf16.mxu0 %v2988
    %4305 = vmatpush1.bf16.msra.mxu0 %v2987
    %4306 = vmatprep.subr.bf16.mxu0 %v2984
    %4307 = vmatpush1.bf16.msra.mxu0 %v2983
    %4308 = vmatprep.subr.bf16.mxu0 %v2980
    %4309 = vmatpush1.bf16.msra.mxu0 %v2979
    %4310 = vmatprep.subr.bf16.mxu0 %v2976
    %4311 = vmatpush1.bf16.msra.mxu0 %v2975
    %4312 = vmatprep.subr.bf16.mxu0 %v2972
    %4313 = vmatpush1.bf16.msra.mxu0 %v2971
    %4314 = vmatprep.subr.bf16.mxu0 %v2968
    %4315 = vmatpush1.bf16.msra.mxu0 %v2967
    %4316 = vmatprep.subr.bf16.mxu0 %v3028
    %4317 = vmatpush2.bf16.msra.mxu0 %v3027
    %4318 = vmatprep.subr.bf16.mxu0 %v3024
    %4319 = vmatpush2.bf16.msra.mxu0 %v3023
    %4320 = vmatprep.subr.bf16.mxu0 %v3020
    %4321 = vmatpush2.bf16.msra.mxu0 %v3019
    %4322 = vmatprep.subr.bf16.mxu0 %v3016
    %4323 = vmatpush2.bf16.msra.mxu0 %v3015
    %4324 = vmatprep.subr.bf16.mxu0 %v3012
    %4325 = vmatpush2.bf16.msra.mxu0 %v3011
    %4326 = vmatprep.subr.bf16.mxu0 %v3008
    %4327 = vmatpush2.bf16.msra.mxu0 %v3007
    %4328 = vmatprep.subr.bf16.mxu0 %v3004
    %4329 = vmatpush2.bf16.msra.mxu0 %v3003
    %4330 = vmatprep.subr.bf16.mxu0 %v3000
    %4331 = vmatpush2.bf16.msra.mxu0 %v2999
    %4332 = vmatprep.mubr.bf16.mxu0 %v158
    %4333 = vmatmul.mubr.bf16.gmra.mxu0 %v157
    %v4334 = vpop.f32.mrf.mxu0
    %v4335 = vadd.f32 %v4294, %v4334
    %v4336 = vpop.f32.mrf.mxu0
    %v4337 = vadd.f32 %v4296, %v4336
    %v4338 = vpop.f32.mrf.mxu0
    %v4339 = vpop.f32.mrf.mxu0
    %4340 = vdwg.mxu0
    %4341 = vmatprep.subr.bf16.mxu0 %v3060
    %4342 = vmatpush1.bf16.msra.mxu0 %v3059
    %4343 = vmatprep.subr.bf16.mxu0 %v3056
    %4344 = vmatpush1.bf16.msra.mxu0 %v3055
    %4345 = vmatprep.subr.bf16.mxu0 %v3052
    %4346 = vmatpush1.bf16.msra.mxu0 %v3051
    %4347 = vmatprep.subr.bf16.mxu0 %v3048
    %4348 = vmatpush1.bf16.msra.mxu0 %v3047
    %4349 = vmatprep.subr.bf16.mxu0 %v3044
    %4350 = vmatpush1.bf16.msra.mxu0 %v3043
    %4351 = vmatprep.subr.bf16.mxu0 %v3040
    %4352 = vmatpush1.bf16.msra.mxu0 %v3039
    %4353 = vmatprep.subr.bf16.mxu0 %v3036
    %4354 = vmatpush1.bf16.msra.mxu0 %v3035
    %4355 = vmatprep.subr.bf16.mxu0 %v3032
    %4356 = vmatpush1.bf16.msra.mxu0 %v3031
    %4357 = vmatprep.subr.bf16.mxu0 %v3092
    %4358 = vmatpush2.bf16.msra.mxu0 %v3091
    %4359 = vmatprep.subr.bf16.mxu0 %v3088
    %4360 = vmatpush2.bf16.msra.mxu0 %v3087
    %4361 = vmatprep.subr.bf16.mxu0 %v3084
    %4362 = vmatpush2.bf16.msra.mxu0 %v3083
    %4363 = vmatprep.subr.bf16.mxu0 %v3080
    %4364 = vmatpush2.bf16.msra.mxu0 %v3079
    %4365 = vmatprep.subr.bf16.mxu0 %v3076
    %4366 = vmatpush2.bf16.msra.mxu0 %v3075
    %4367 = vmatprep.subr.bf16.mxu0 %v3072
    %4368 = vmatpush2.bf16.msra.mxu0 %v3071
    %4369 = vmatprep.subr.bf16.mxu0 %v3068
    %4370 = vmatpush2.bf16.msra.mxu0 %v3067
    %4371 = vmatprep.subr.bf16.mxu0 %v3064
    %4372 = vmatpush2.bf16.msra.mxu0 %v3063
    %4373 = vmatprep.mubr.bf16.mxu0 %v160
    %4374 = vmatmul.mubr.bf16.gmra.mxu0 %v159
    %v4375 = vpop.f32.mrf.mxu0
    %v4376 = vadd.f32 %v4335, %v4375
    %v4377 = vpop.f32.mrf.mxu0
    %v4378 = vadd.f32 %v4337, %v4377
    %v4379 = vpop.f32.mrf.mxu0
    %v4380 = vpop.f32.mrf.mxu0
    %4381 = vdwg.mxu0
    %4382 = vmatprep.subr.bf16.mxu0 %v3124
    %4383 = vmatpush1.bf16.msra.mxu0 %v3123
    %4384 = vmatprep.subr.bf16.mxu0 %v3120
    %4385 = vmatpush1.bf16.msra.mxu0 %v3119
    %4386 = vmatprep.subr.bf16.mxu0 %v3116
    %4387 = vmatpush1.bf16.msra.mxu0 %v3115
    %4388 = vmatprep.subr.bf16.mxu0 %v3112
    %4389 = vmatpush1.bf16.msra.mxu0 %v3111
    %4390 = vmatprep.subr.bf16.mxu0 %v3108
    %4391 = vmatpush1.bf16.msra.mxu0 %v3107
    %4392 = vmatprep.subr.bf16.mxu0 %v3104
    %4393 = vmatpush1.bf16.msra.mxu0 %v3103
    %4394 = vmatprep.subr.bf16.mxu0 %v3100
    %4395 = vmatpush1.bf16.msra.mxu0 %v3099
    %4396 = vmatprep.subr.bf16.mxu0 %v3096
    %4397 = vmatpush1.bf16.msra.mxu0 %v3095
    %4398 = vmatprep.subr.bf16.mxu0 %v3156
    %4399 = vmatpush2.bf16.msra.mxu0 %v3155
    %4400 = vmatprep.subr.bf16.mxu0 %v3152
    %4401 = vmatpush2.bf16.msra.mxu0 %v3151
    %4402 = vmatprep.subr.bf16.mxu0 %v3148
    %4403 = vmatpush2.bf16.msra.mxu0 %v3147
    %4404 = vmatprep.subr.bf16.mxu0 %v3144
    %4405 = vmatpush2.bf16.msra.mxu0 %v3143
    %4406 = vmatprep.subr.bf16.mxu0 %v3140
    %4407 = vmatpush2.bf16.msra.mxu0 %v3139
    %4408 = vmatprep.subr.bf16.mxu0 %v3136
    %4409 = vmatpush2.bf16.msra.mxu0 %v3135
    %4410 = vmatprep.subr.bf16.mxu0 %v3132
    %4411 = vmatpush2.bf16.msra.mxu0 %v3131
    %4412 = vmatprep.subr.bf16.mxu0 %v3128
    %4413 = vmatpush2.bf16.msra.mxu0 %v3127
    %4414 = vmatprep.mubr.bf16.mxu0 %v162
    %4415 = vmatmul.mubr.bf16.gmra.mxu0 %v161
    %v4416 = vpop.f32.mrf.mxu0
    %v4417 = vadd.f32 %v4376, %v4416
    %v4418 = vpop.f32.mrf.mxu0
    %v4419 = vadd.f32 %v4378, %v4418
    %v4420 = vpop.f32.mrf.mxu0
    %v4421 = vpop.f32.mrf.mxu0
    %4422 = vdwg.mxu0
    %4423 = vmatprep.subr.bf16.mxu0 %v3188
    %4424 = vmatpush1.bf16.msra.mxu0 %v3187
    %4425 = vmatprep.subr.bf16.mxu0 %v3184
    %4426 = vmatpush1.bf16.msra.mxu0 %v3183
    %4427 = vmatprep.subr.bf16.mxu0 %v3180
    %4428 = vmatpush1.bf16.msra.mxu0 %v3179
    %4429 = vmatprep.subr.bf16.mxu0 %v3176
    %4430 = vmatpush1.bf16.msra.mxu0 %v3175
    %4431 = vmatprep.subr.bf16.mxu0 %v3172
    %4432 = vmatpush1.bf16.msra.mxu0 %v3171
    %4433 = vmatprep.subr.bf16.mxu0 %v3168
    %4434 = vmatpush1.bf16.msra.mxu0 %v3167
    %4435 = vmatprep.subr.bf16.mxu0 %v3164
    %4436 = vmatpush1.bf16.msra.mxu0 %v3163
    %4437 = vmatprep.subr.bf16.mxu0 %v3160
    %4438 = vmatpush1.bf16.msra.mxu0 %v3159
    %4439 = vmatprep.subr.bf16.mxu0 %v3220
    %4440 = vmatpush2.bf16.msra.mxu0 %v3219
    %4441 = vmatprep.subr.bf16.mxu0 %v3216
    %4442 = vmatpush2.bf16.msra.mxu0 %v3215
    %4443 = vmatprep.subr.bf16.mxu0 %v3212
    %4444 = vmatpush2.bf16.msra.mxu0 %v3211
    %4445 = vmatprep.subr.bf16.mxu0 %v3208
    %4446 = vmatpush2.bf16.msra.mxu0 %v3207
    %4447 = vmatprep.subr.bf16.mxu0 %v3204
    %4448 = vmatpush2.bf16.msra.mxu0 %v3203
    %4449 = vmatprep.subr.bf16.mxu0 %v3200
    %4450 = vmatpush2.bf16.msra.mxu0 %v3199
    %4451 = vmatprep.subr.bf16.mxu0 %v3196
    %4452 = vmatpush2.bf16.msra.mxu0 %v3195
    %4453 = vmatprep.subr.bf16.mxu0 %v3192
    %4454 = vmatpush2.bf16.msra.mxu0 %v3191
    %4455 = vmatprep.mubr.bf16.mxu0 %v164
    %4456 = vmatmul.mubr.bf16.gmra.mxu0 %v163
    %v4457 = vpop.f32.mrf.mxu0
    %v4458 = vadd.f32 %v4417, %v4457
    %v4459 = vpop.f32.mrf.mxu0
    %v4460 = vadd.f32 %v4419, %v4459
    %v4461 = vpop.f32.mrf.mxu0
    %v4462 = vpop.f32.mrf.mxu0
    %4463 = vdwg.mxu0
    %4464 = vmatprep.subr.bf16.mxu0 %v3252
    %4465 = vmatpush1.bf16.msra.mxu0 %v3251
    %4466 = vmatprep.subr.bf16.mxu0 %v3248
    %4467 = vmatpush1.bf16.msra.mxu0 %v3247
    %4468 = vmatprep.subr.bf16.mxu0 %v3244
    %4469 = vmatpush1.bf16.msra.mxu0 %v3243
    %4470 = vmatprep.subr.bf16.mxu0 %v3240
    %4471 = vmatpush1.bf16.msra.mxu0 %v3239
    %4472 = vmatprep.subr.bf16.mxu0 %v3236
    %4473 = vmatpush1.bf16.msra.mxu0 %v3235
    %4474 = vmatprep.subr.bf16.mxu0 %v3232
    %4475 = vmatpush1.bf16.msra.mxu0 %v3231
    %4476 = vmatprep.subr.bf16.mxu0 %v3228
    %4477 = vmatpush1.bf16.msra.mxu0 %v3227
    %4478 = vmatprep.subr.bf16.mxu0 %v3224
    %4479 = vmatpush1.bf16.msra.mxu0 %v3223
    %4480 = vmatprep.subr.bf16.mxu0 %v3284
    %4481 = vmatpush2.bf16.msra.mxu0 %v3283
    %4482 = vmatprep.subr.bf16.mxu0 %v3280
    %4483 = vmatpush2.bf16.msra.mxu0 %v3279
    %4484 = vmatprep.subr.bf16.mxu0 %v3276
    %4485 = vmatpush2.bf16.msra.mxu0 %v3275
    %4486 = vmatprep.subr.bf16.mxu0 %v3272
    %4487 = vmatpush2.bf16.msra.mxu0 %v3271
    %4488 = vmatprep.subr.bf16.mxu0 %v3268
    %4489 = vmatpush2.bf16.msra.mxu0 %v3267
    %4490 = vmatprep.subr.bf16.mxu0 %v3264
    %4491 = vmatpush2.bf16.msra.mxu0 %v3263
    %4492 = vmatprep.subr.bf16.mxu0 %v3260
    %4493 = vmatpush2.bf16.msra.mxu0 %v3259
    %4494 = vmatprep.subr.bf16.mxu0 %v3256
    %4495 = vmatpush2.bf16.msra.mxu0 %v3255
    %4496 = vmatprep.mubr.bf16.mxu0 %v166
    %4497 = vmatmul.mubr.bf16.gmra.mxu0 %v165
    %v4498 = vpop.f32.mrf.mxu0
    %v4499 = vadd.f32 %v4458, %v4498
    %v4500 = vpop.f32.mrf.mxu0
    %v4501 = vadd.f32 %v4460, %v4500
    %v4502 = vpop.f32.mrf.mxu0
    %v4503 = vpop.f32.mrf.mxu0
    %4504 = vdwg.mxu0
    %4505 = vmatprep.subr.bf16.mxu0 %v3316
    %4506 = vmatpush1.bf16.msra.mxu0 %v3315
    %4507 = vmatprep.subr.bf16.mxu0 %v3312
    %4508 = vmatpush1.bf16.msra.mxu0 %v3311
    %4509 = vmatprep.subr.bf16.mxu0 %v3308
    %4510 = vmatpush1.bf16.msra.mxu0 %v3307
    %4511 = vmatprep.subr.bf16.mxu0 %v3304
    %4512 = vmatpush1.bf16.msra.mxu0 %v3303
    %4513 = vmatprep.subr.bf16.mxu0 %v3300
    %4514 = vmatpush1.bf16.msra.mxu0 %v3299
    %4515 = vmatprep.subr.bf16.mxu0 %v3296
    %4516 = vmatpush1.bf16.msra.mxu0 %v3295
    %4517 = vmatprep.subr.bf16.mxu0 %v3292
    %4518 = vmatpush1.bf16.msra.mxu0 %v3291
    %4519 = vmatprep.subr.bf16.mxu0 %v3288
    %4520 = vmatpush1.bf16.msra.mxu0 %v3287
    %4521 = vmatprep.subr.bf16.mxu0 %v3348
    %4522 = vmatpush2.bf16.msra.mxu0 %v3347
    %4523 = vmatprep.subr.bf16.mxu0 %v3344
    %4524 = vmatpush2.bf16.msra.mxu0 %v3343
    %4525 = vmatprep.subr.bf16.mxu0 %v3340
    %4526 = vmatpush2.bf16.msra.mxu0 %v3339
    %4527 = vmatprep.subr.bf16.mxu0 %v3336
    %4528 = vmatpush2.bf16.msra.mxu0 %v3335
    %4529 = vmatprep.subr.bf16.mxu0 %v3332
    %4530 = vmatpush2.bf16.msra.mxu0 %v3331
    %4531 = vmatprep.subr.bf16.mxu0 %v3328
    %4532 = vmatpush2.bf16.msra.mxu0 %v3327
    %4533 = vmatprep.subr.bf16.mxu0 %v3324
    %4534 = vmatpush2.bf16.msra.mxu0 %v3323
    %4535 = vmatprep.subr.bf16.mxu0 %v3320
    %4536 = vmatpush2.bf16.msra.mxu0 %v3319
    %4537 = vmatprep.mubr.bf16.mxu0 %v168
    %4538 = vmatmul.mubr.bf16.gmra.mxu0 %v167
    %v4539 = vpop.f32.mrf.mxu0
    %v4540 = vadd.f32 %v4499, %v4539
    %v4541 = vpop.f32.mrf.mxu0
    %v4542 = vadd.f32 %v4501, %v4541
    %v4543 = vpop.f32.mrf.mxu0
    %v4544 = vpop.f32.mrf.mxu0
    %4545 = vdwg.mxu0
    %4546 = vmatprep.subr.bf16.mxu0 %v3380
    %4547 = vmatpush1.bf16.msra.mxu0 %v3379
    %4548 = vmatprep.subr.bf16.mxu0 %v3376
    %4549 = vmatpush1.bf16.msra.mxu0 %v3375
    %4550 = vmatprep.subr.bf16.mxu0 %v3372
    %4551 = vmatpush1.bf16.msra.mxu0 %v3371
    %4552 = vmatprep.subr.bf16.mxu0 %v3368
    %4553 = vmatpush1.bf16.msra.mxu0 %v3367
    %4554 = vmatprep.subr.bf16.mxu0 %v3364
    %4555 = vmatpush1.bf16.msra.mxu0 %v3363
    %4556 = vmatprep.subr.bf16.mxu0 %v3360
    %4557 = vmatpush1.bf16.msra.mxu0 %v3359
    %4558 = vmatprep.subr.bf16.mxu0 %v3356
    %4559 = vmatpush1.bf16.msra.mxu0 %v3355
    %4560 = vmatprep.subr.bf16.mxu0 %v3352
    %4561 = vmatpush1.bf16.msra.mxu0 %v3351
    %4562 = vmatprep.subr.bf16.mxu0 %v3412
    %4563 = vmatpush2.bf16.msra.mxu0 %v3411
    %4564 = vmatprep.subr.bf16.mxu0 %v3408
    %4565 = vmatpush2.bf16.msra.mxu0 %v3407
    %4566 = vmatprep.subr.bf16.mxu0 %v3404
    %4567 = vmatpush2.bf16.msra.mxu0 %v3403
    %4568 = vmatprep.subr.bf16.mxu0 %v3400
    %4569 = vmatpush2.bf16.msra.mxu0 %v3399
    %4570 = vmatprep.subr.bf16.mxu0 %v3396
    %4571 = vmatpush2.bf16.msra.mxu0 %v3395
    %4572 = vmatprep.subr.bf16.mxu0 %v3392
    %4573 = vmatpush2.bf16.msra.mxu0 %v3391
    %4574 = vmatprep.subr.bf16.mxu0 %v3388
    %4575 = vmatpush2.bf16.msra.mxu0 %v3387
    %4576 = vmatprep.subr.bf16.mxu0 %v3384
    %4577 = vmatpush2.bf16.msra.mxu0 %v3383
    %4578 = vmatprep.mubr.bf16.mxu0 %v170
    %4579 = vmatmul.mubr.bf16.gmra.mxu0 %v169
    %v4580 = vpop.f32.mrf.mxu0
    %v4581 = vadd.f32 %v4540, %v4580
    %v4582 = vpop.f32.mrf.mxu0
    %v4583 = vadd.f32 %v4542, %v4582
    %v4584 = vpop.f32.mrf.mxu0
    %v4585 = vpop.f32.mrf.mxu0
    %4586 = vdwg.mxu0
    %4587 = vmatprep.subr.bf16.mxu0 %v3444
    %4588 = vmatpush1.bf16.msra.mxu0 %v3443
    %4589 = vmatprep.subr.bf16.mxu0 %v3440
    %4590 = vmatpush1.bf16.msra.mxu0 %v3439
    %4591 = vmatprep.subr.bf16.mxu0 %v3436
    %4592 = vmatpush1.bf16.msra.mxu0 %v3435
    %4593 = vmatprep.subr.bf16.mxu0 %v3432
    %4594 = vmatpush1.bf16.msra.mxu0 %v3431
    %4595 = vmatprep.subr.bf16.mxu0 %v3428
    %4596 = vmatpush1.bf16.msra.mxu0 %v3427
    %4597 = vmatprep.subr.bf16.mxu0 %v3424
    %4598 = vmatpush1.bf16.msra.mxu0 %v3423
    %4599 = vmatprep.subr.bf16.mxu0 %v3420
    %4600 = vmatpush1.bf16.msra.mxu0 %v3419
    %4601 = vmatprep.subr.bf16.mxu0 %v3416
    %4602 = vmatpush1.bf16.msra.mxu0 %v3415
    %4603 = vmatprep.subr.bf16.mxu0 %v3476
    %4604 = vmatpush2.bf16.msra.mxu0 %v3475
    %4605 = vmatprep.subr.bf16.mxu0 %v3472
    %4606 = vmatpush2.bf16.msra.mxu0 %v3471
    %4607 = vmatprep.subr.bf16.mxu0 %v3468
    %4608 = vmatpush2.bf16.msra.mxu0 %v3467
    %4609 = vmatprep.subr.bf16.mxu0 %v3464
    %4610 = vmatpush2.bf16.msra.mxu0 %v3463
    %4611 = vmatprep.subr.bf16.mxu0 %v3460
    %4612 = vmatpush2.bf16.msra.mxu0 %v3459
    %4613 = vmatprep.subr.bf16.mxu0 %v3456
    %4614 = vmatpush2.bf16.msra.mxu0 %v3455
    %4615 = vmatprep.subr.bf16.mxu0 %v3452
    %4616 = vmatpush2.bf16.msra.mxu0 %v3451
    %4617 = vmatprep.subr.bf16.mxu0 %v3448
    %4618 = vmatpush2.bf16.msra.mxu0 %v3447
    %4619 = vmatprep.mubr.bf16.mxu0 %v172
    %4620 = vmatmul.mubr.bf16.gmra.mxu0 %v171
    %v4621 = vpop.f32.mrf.mxu0
    %v4622 = vadd.f32 %v4581, %v4621
    %v4623 = vpop.f32.mrf.mxu0
    %v4624 = vadd.f32 %v4583, %v4623
    %v4625 = vpop.f32.mrf.mxu0
    %v4626 = vpop.f32.mrf.mxu0
    %4627 = vdwg.mxu0
    %4628 = vmatprep.subr.bf16.mxu0 %v3508
    %4629 = vmatpush1.bf16.msra.mxu0 %v3507
    %4630 = vmatprep.subr.bf16.mxu0 %v3504
    %4631 = vmatpush1.bf16.msra.mxu0 %v3503
    %4632 = vmatprep.subr.bf16.mxu0 %v3500
    %4633 = vmatpush1.bf16.msra.mxu0 %v3499
    %4634 = vmatprep.subr.bf16.mxu0 %v3496
    %4635 = vmatpush1.bf16.msra.mxu0 %v3495
    %4636 = vmatprep.subr.bf16.mxu0 %v3492
    %4637 = vmatpush1.bf16.msra.mxu0 %v3491
    %4638 = vmatprep.subr.bf16.mxu0 %v3488
    %4639 = vmatpush1.bf16.msra.mxu0 %v3487
    %4640 = vmatprep.subr.bf16.mxu0 %v3484
    %4641 = vmatpush1.bf16.msra.mxu0 %v3483
    %4642 = vmatprep.subr.bf16.mxu0 %v3480
    %4643 = vmatpush1.bf16.msra.mxu0 %v3479
    %4644 = vmatprep.subr.bf16.mxu0 %v3540
    %4645 = vmatpush2.bf16.msra.mxu0 %v3539
    %4646 = vmatprep.subr.bf16.mxu0 %v3536
    %4647 = vmatpush2.bf16.msra.mxu0 %v3535
    %4648 = vmatprep.subr.bf16.mxu0 %v3532
    %4649 = vmatpush2.bf16.msra.mxu0 %v3531
    %4650 = vmatprep.subr.bf16.mxu0 %v3528
    %4651 = vmatpush2.bf16.msra.mxu0 %v3527
    %4652 = vmatprep.subr.bf16.mxu0 %v3524
    %4653 = vmatpush2.bf16.msra.mxu0 %v3523
    %4654 = vmatprep.subr.bf16.mxu0 %v3520
    %4655 = vmatpush2.bf16.msra.mxu0 %v3519
    %4656 = vmatprep.subr.bf16.mxu0 %v3516
    %4657 = vmatpush2.bf16.msra.mxu0 %v3515
    %4658 = vmatprep.subr.bf16.mxu0 %v3512
    %4659 = vmatpush2.bf16.msra.mxu0 %v3511
    %4660 = vmatprep.mubr.bf16.mxu0 %v174
    %4661 = vmatmul.mubr.bf16.gmra.mxu0 %v173
    %v4662 = vpop.f32.mrf.mxu0
    %v4663 = vadd.f32 %v4622, %v4662
    %v4664 = vpop.f32.mrf.mxu0
    %v4665 = vadd.f32 %v4624, %v4664
    %v4666 = vpop.f32.mrf.mxu0
    %v4667 = vpop.f32.mrf.mxu0
    %4668 = vdwg.mxu0
    %4669 = vmatprep.subr.bf16.mxu0 %v3572
    %4670 = vmatpush1.bf16.msra.mxu0 %v3571
    %4671 = vmatprep.subr.bf16.mxu0 %v3568
    %4672 = vmatpush1.bf16.msra.mxu0 %v3567
    %4673 = vmatprep.subr.bf16.mxu0 %v3564
    %4674 = vmatpush1.bf16.msra.mxu0 %v3563
    %4675 = vmatprep.subr.bf16.mxu0 %v3560
    %4676 = vmatpush1.bf16.msra.mxu0 %v3559
    %4677 = vmatprep.subr.bf16.mxu0 %v3556
    %4678 = vmatpush1.bf16.msra.mxu0 %v3555
    %4679 = vmatprep.subr.bf16.mxu0 %v3552
    %4680 = vmatpush1.bf16.msra.mxu0 %v3551
    %4681 = vmatprep.subr.bf16.mxu0 %v3548
    %4682 = vmatpush1.bf16.msra.mxu0 %v3547
    %4683 = vmatprep.subr.bf16.mxu0 %v3544
    %4684 = vmatpush1.bf16.msra.mxu0 %v3543
    %4685 = vmatprep.subr.bf16.mxu0 0
    %4686 = vmatpush2.bf16.msra.mxu0 0
    %4687 = vmatprep.subr.bf16.mxu0 0
    %4688 = vmatpush2.bf16.msra.mxu0 0
    %4689 = vmatprep.subr.bf16.mxu0 0
    %4690 = vmatpush2.bf16.msra.mxu0 0
    %4691 = vmatprep.subr.bf16.mxu0 0
    %4692 = vmatpush2.bf16.msra.mxu0 0
    %4693 = vmatprep.subr.bf16.mxu0 0
    %4694 = vmatpush2.bf16.msra.mxu0 0
    %4695 = vmatprep.subr.bf16.mxu0 0
    %4696 = vmatpush2.bf16.msra.mxu0 0
    %4697 = vmatprep.subr.bf16.mxu0 0
    %4698 = vmatpush2.bf16.msra.mxu0 0
    %4699 = vmatprep.subr.bf16.mxu0 %v3576
    %4700 = vmatpush2.bf16.msra.mxu0 %v3575
    %4701 = vmatprep.mubr.bf16.mxu0 %v4257
    %4702 = vmatmul.mubr.bf16.gmra.mxu0 %v175
    %v4703 = vpop.f32.mrf.mxu0
    %v4704 = vadd.f32 %v4663, %v4703
    %v4705 = vpop.f32.mrf.mxu0
    %v4706 = vadd.f32 %v4665, %v4705
    %v4707 = vpop.f32.mrf.mxu0
    %v4708 = vpop.f32.mrf.mxu0
    %4709 = vdwg.mxu0
    %4710 = vmatprep.subr.bf16.mxu0 %v2934
    %4711 = vmatpush1.bf16.msra.mxu0 %v2933
    %4712 = vmatprep.subr.bf16.mxu0 %v2930
    %4713 = vmatpush1.bf16.msra.mxu0 %v2929
    %4714 = vmatprep.subr.bf16.mxu0 %v2926
    %4715 = vmatpush1.bf16.msra.mxu0 %v2925
    %4716 = vmatprep.subr.bf16.mxu0 %v2922
    %4717 = vmatpush1.bf16.msra.mxu0 %v2921
    %4718 = vmatprep.subr.bf16.mxu0 %v2918
    %4719 = vmatpush1.bf16.msra.mxu0 %v2917
    %4720 = vmatprep.subr.bf16.mxu0 %v2914
    %4721 = vmatpush1.bf16.msra.mxu0 %v2913
    %4722 = vmatprep.subr.bf16.mxu0 %v2910
    %4723 = vmatpush1.bf16.msra.mxu0 %v2909
    %4724 = vmatprep.subr.bf16.mxu0 %v2906
    %4725 = vmatpush1.bf16.msra.mxu0 %v2905
    %4726 = vmatprep.subr.bf16.mxu0 %v2966
    %4727 = vmatpush2.bf16.msra.mxu0 %v2965
    %4728 = vmatprep.subr.bf16.mxu0 %v2962
    %4729 = vmatpush2.bf16.msra.mxu0 %v2961
    %4730 = vmatprep.subr.bf16.mxu0 %v2958
    %4731 = vmatpush2.bf16.msra.mxu0 %v2957
    %4732 = vmatprep.subr.bf16.mxu0 %v2954
    %4733 = vmatpush2.bf16.msra.mxu0 %v2953
    %4734 = vmatprep.subr.bf16.mxu0 %v2950
    %4735 = vmatpush2.bf16.msra.mxu0 %v2949
    %4736 = vmatprep.subr.bf16.mxu0 %v2946
    %4737 = vmatpush2.bf16.msra.mxu0 %v2945
    %4738 = vmatprep.subr.bf16.mxu0 %v2942
    %4739 = vmatpush2.bf16.msra.mxu0 %v2941
    %4740 = vmatprep.subr.bf16.mxu0 %v2938
    %4741 = vmatpush2.bf16.msra.mxu0 %v2937
    %4742 = vmatprep.mubr.bf16.mxu0 %v156
    %4743 = vmatmul.mubr.bf16.gmra.mxu0 %v155
    %v4744 = vpop.f32.mrf.mxu0
    %v4745 = vadd.f32 %v866, %v4744
    %v4746 = vpop.f32.mrf.mxu0
    %v4747 = vadd.f32 %v870, %v4746
    %v4748 = vpop.f32.mrf.mxu0
    %v4749 = vpop.f32.mrf.mxu0
    %4750 = vdwg.mxu0
    %4751 = vmatprep.subr.bf16.mxu0 %v2998
    %4752 = vmatpush1.bf16.msra.mxu0 %v2997
    %4753 = vmatprep.subr.bf16.mxu0 %v2994
    %4754 = vmatpush1.bf16.msra.mxu0 %v2993
    %4755 = vmatprep.subr.bf16.mxu0 %v2990
    %4756 = vmatpush1.bf16.msra.mxu0 %v2989
    %4757 = vmatprep.subr.bf16.mxu0 %v2986
    %4758 = vmatpush1.bf16.msra.mxu0 %v2985
    %4759 = vmatprep.subr.bf16.mxu0 %v2982
    %4760 = vmatpush1.bf16.msra.mxu0 %v2981
    %4761 = vmatprep.subr.bf16.mxu0 %v2978
    %4762 = vmatpush1.bf16.msra.mxu0 %v2977
    %4763 = vmatprep.subr.bf16.mxu0 %v2974
    %4764 = vmatpush1.bf16.msra.mxu0 %v2973
    %4765 = vmatprep.subr.bf16.mxu0 %v2970
    %4766 = vmatpush1.bf16.msra.mxu0 %v2969
    %4767 = vmatprep.subr.bf16.mxu0 %v3030
    %4768 = vmatpush2.bf16.msra.mxu0 %v3029
    %4769 = vmatprep.subr.bf16.mxu0 %v3026
    %4770 = vmatpush2.bf16.msra.mxu0 %v3025
    %4771 = vmatprep.subr.bf16.mxu0 %v3022
    %4772 = vmatpush2.bf16.msra.mxu0 %v3021
    %4773 = vmatprep.subr.bf16.mxu0 %v3018
    %4774 = vmatpush2.bf16.msra.mxu0 %v3017
    %4775 = vmatprep.subr.bf16.mxu0 %v3014
    %4776 = vmatpush2.bf16.msra.mxu0 %v3013
    %4777 = vmatprep.subr.bf16.mxu0 %v3010
    %4778 = vmatpush2.bf16.msra.mxu0 %v3009
    %4779 = vmatprep.subr.bf16.mxu0 %v3006
    %4780 = vmatpush2.bf16.msra.mxu0 %v3005
    %4781 = vmatprep.subr.bf16.mxu0 %v3002
    %4782 = vmatpush2.bf16.msra.mxu0 %v3001
    %4783 = vmatprep.mubr.bf16.mxu0 %v158
    %4784 = vmatmul.mubr.bf16.gmra.mxu0 %v157
    %v4785 = vpop.f32.mrf.mxu0
    %v4786 = vadd.f32 %v4745, %v4785
    %v4787 = vpop.f32.mrf.mxu0
    %v4788 = vadd.f32 %v4747, %v4787
    %v4789 = vpop.f32.mrf.mxu0
    %v4790 = vpop.f32.mrf.mxu0
    %4791 = vdwg.mxu0
    %4792 = vmatprep.subr.bf16.mxu0 %v3062
    %4793 = vmatpush1.bf16.msra.mxu0 %v3061
    %4794 = vmatprep.subr.bf16.mxu0 %v3058
    %4795 = vmatpush1.bf16.msra.mxu0 %v3057
    %4796 = vmatprep.subr.bf16.mxu0 %v3054
    %4797 = vmatpush1.bf16.msra.mxu0 %v3053
    %4798 = vmatprep.subr.bf16.mxu0 %v3050
    %4799 = vmatpush1.bf16.msra.mxu0 %v3049
    %4800 = vmatprep.subr.bf16.mxu0 %v3046
    %4801 = vmatpush1.bf16.msra.mxu0 %v3045
    %4802 = vmatprep.subr.bf16.mxu0 %v3042
    %4803 = vmatpush1.bf16.msra.mxu0 %v3041
    %4804 = vmatprep.subr.bf16.mxu0 %v3038
    %4805 = vmatpush1.bf16.msra.mxu0 %v3037
    %4806 = vmatprep.subr.bf16.mxu0 %v3034
    %4807 = vmatpush1.bf16.msra.mxu0 %v3033
    %4808 = vmatprep.subr.bf16.mxu0 %v3094
    %4809 = vmatpush2.bf16.msra.mxu0 %v3093
    %4810 = vmatprep.subr.bf16.mxu0 %v3090
    %4811 = vmatpush2.bf16.msra.mxu0 %v3089
    %4812 = vmatprep.subr.bf16.mxu0 %v3086
    %4813 = vmatpush2.bf16.msra.mxu0 %v3085
    %4814 = vmatprep.subr.bf16.mxu0 %v3082
    %4815 = vmatpush2.bf16.msra.mxu0 %v3081
    %4816 = vmatprep.subr.bf16.mxu0 %v3078
    %4817 = vmatpush2.bf16.msra.mxu0 %v3077
    %4818 = vmatprep.subr.bf16.mxu0 %v3074
    %4819 = vmatpush2.bf16.msra.mxu0 %v3073
    %4820 = vmatprep.subr.bf16.mxu0 %v3070
    %4821 = vmatpush2.bf16.msra.mxu0 %v3069
    %4822 = vmatprep.subr.bf16.mxu0 %v3066
    %4823 = vmatpush2.bf16.msra.mxu0 %v3065
    %4824 = vmatprep.mubr.bf16.mxu0 %v160
    %4825 = vmatmul.mubr.bf16.gmra.mxu0 %v159
    %v4826 = vpop.f32.mrf.mxu0
    %v4827 = vadd.f32 %v4786, %v4826
    %v4828 = vpop.f32.mrf.mxu0
    %v4829 = vadd.f32 %v4788, %v4828
    %v4830 = vpop.f32.mrf.mxu0
    %v4831 = vpop.f32.mrf.mxu0
    %4832 = vdwg.mxu0
    %4833 = vmatprep.subr.bf16.mxu0 %v3126
    %4834 = vmatpush1.bf16.msra.mxu0 %v3125
    %4835 = vmatprep.subr.bf16.mxu0 %v3122
    %4836 = vmatpush1.bf16.msra.mxu0 %v3121
    %4837 = vmatprep.subr.bf16.mxu0 %v3118
    %4838 = vmatpush1.bf16.msra.mxu0 %v3117
    %4839 = vmatprep.subr.bf16.mxu0 %v3114
    %4840 = vmatpush1.bf16.msra.mxu0 %v3113
    %4841 = vmatprep.subr.bf16.mxu0 %v3110
    %4842 = vmatpush1.bf16.msra.mxu0 %v3109
    %4843 = vmatprep.subr.bf16.mxu0 %v3106
    %4844 = vmatpush1.bf16.msra.mxu0 %v3105
    %4845 = vmatprep.subr.bf16.mxu0 %v3102
    %4846 = vmatpush1.bf16.msra.mxu0 %v3101
    %4847 = vmatprep.subr.bf16.mxu0 %v3098
    %4848 = vmatpush1.bf16.msra.mxu0 %v3097
    %4849 = vmatprep.subr.bf16.mxu0 %v3158
    %4850 = vmatpush2.bf16.msra.mxu0 %v3157
    %4851 = vmatprep.subr.bf16.mxu0 %v3154
    %4852 = vmatpush2.bf16.msra.mxu0 %v3153
    %4853 = vmatprep.subr.bf16.mxu0 %v3150
    %4854 = vmatpush2.bf16.msra.mxu0 %v3149
    %4855 = vmatprep.subr.bf16.mxu0 %v3146
    %4856 = vmatpush2.bf16.msra.mxu0 %v3145
    %4857 = vmatprep.subr.bf16.mxu0 %v3142
    %4858 = vmatpush2.bf16.msra.mxu0 %v3141
    %4859 = vmatprep.subr.bf16.mxu0 %v3138
    %4860 = vmatpush2.bf16.msra.mxu0 %v3137
    %4861 = vmatprep.subr.bf16.mxu0 %v3134
    %4862 = vmatpush2.bf16.msra.mxu0 %v3133
    %4863 = vmatprep.subr.bf16.mxu0 %v3130
    %4864 = vmatpush2.bf16.msra.mxu0 %v3129
    %4865 = vmatprep.mubr.bf16.mxu0 %v162
    %4866 = vmatmul.mubr.bf16.gmra.mxu0 %v161
    %v4867 = vpop.f32.mrf.mxu0
    %v4868 = vadd.f32 %v4827, %v4867
    %v4869 = vpop.f32.mrf.mxu0
    %v4870 = vadd.f32 %v4829, %v4869
    %v4871 = vpop.f32.mrf.mxu0
    %v4872 = vpop.f32.mrf.mxu0
    %4873 = vdwg.mxu0
    %4874 = vmatprep.subr.bf16.mxu0 %v3190
    %4875 = vmatpush1.bf16.msra.mxu0 %v3189
    %4876 = vmatprep.subr.bf16.mxu0 %v3186
    %4877 = vmatpush1.bf16.msra.mxu0 %v3185
    %4878 = vmatprep.subr.bf16.mxu0 %v3182
    %4879 = vmatpush1.bf16.msra.mxu0 %v3181
    %4880 = vmatprep.subr.bf16.mxu0 %v3178
    %4881 = vmatpush1.bf16.msra.mxu0 %v3177
    %4882 = vmatprep.subr.bf16.mxu0 %v3174
    %4883 = vmatpush1.bf16.msra.mxu0 %v3173
    %4884 = vmatprep.subr.bf16.mxu0 %v3170
    %4885 = vmatpush1.bf16.msra.mxu0 %v3169
    %4886 = vmatprep.subr.bf16.mxu0 %v3166
    %4887 = vmatpush1.bf16.msra.mxu0 %v3165
    %4888 = vmatprep.subr.bf16.mxu0 %v3162
    %4889 = vmatpush1.bf16.msra.mxu0 %v3161
    %4890 = vmatprep.subr.bf16.mxu0 %v3222
    %4891 = vmatpush2.bf16.msra.mxu0 %v3221
    %4892 = vmatprep.subr.bf16.mxu0 %v3218
    %4893 = vmatpush2.bf16.msra.mxu0 %v3217
    %4894 = vmatprep.subr.bf16.mxu0 %v3214
    %4895 = vmatpush2.bf16.msra.mxu0 %v3213
    %4896 = vmatprep.subr.bf16.mxu0 %v3210
    %4897 = vmatpush2.bf16.msra.mxu0 %v3209
    %4898 = vmatprep.subr.bf16.mxu0 %v3206
    %4899 = vmatpush2.bf16.msra.mxu0 %v3205
    %4900 = vmatprep.subr.bf16.mxu0 %v3202
    %4901 = vmatpush2.bf16.msra.mxu0 %v3201
    %4902 = vmatprep.subr.bf16.mxu0 %v3198
    %4903 = vmatpush2.bf16.msra.mxu0 %v3197
    %4904 = vmatprep.subr.bf16.mxu0 %v3194
    %4905 = vmatpush2.bf16.msra.mxu0 %v3193
    %4906 = vmatprep.mubr.bf16.mxu0 %v164
    %4907 = vmatmul.mubr.bf16.gmra.mxu0 %v163
    %v4908 = vpop.f32.mrf.mxu0
    %v4909 = vadd.f32 %v4868, %v4908
    %v4910 = vpop.f32.mrf.mxu0
    %v4911 = vadd.f32 %v4870, %v4910
    %v4912 = vpop.f32.mrf.mxu0
    %v4913 = vpop.f32.mrf.mxu0
    %4914 = vdwg.mxu0
    %4915 = vmatprep.subr.bf16.mxu0 %v3254
    %4916 = vmatpush1.bf16.msra.mxu0 %v3253
    %4917 = vmatprep.subr.bf16.mxu0 %v3250
    %4918 = vmatpush1.bf16.msra.mxu0 %v3249
    %4919 = vmatprep.subr.bf16.mxu0 %v3246
    %4920 = vmatpush1.bf16.msra.mxu0 %v3245
    %4921 = vmatprep.subr.bf16.mxu0 %v3242
    %4922 = vmatpush1.bf16.msra.mxu0 %v3241
    %4923 = vmatprep.subr.bf16.mxu0 %v3238
    %4924 = vmatpush1.bf16.msra.mxu0 %v3237
    %4925 = vmatprep.subr.bf16.mxu0 %v3234
    %4926 = vmatpush1.bf16.msra.mxu0 %v3233
    %4927 = vmatprep.subr.bf16.mxu0 %v3230
    %4928 = vmatpush1.bf16.msra.mxu0 %v3229
    %4929 = vmatprep.subr.bf16.mxu0 %v3226
    %4930 = vmatpush1.bf16.msra.mxu0 %v3225
    %4931 = vmatprep.subr.bf16.mxu0 %v3286
    %4932 = vmatpush2.bf16.msra.mxu0 %v3285
    %4933 = vmatprep.subr.bf16.mxu0 %v3282
    %4934 = vmatpush2.bf16.msra.mxu0 %v3281
    %4935 = vmatprep.subr.bf16.mxu0 %v3278
    %4936 = vmatpush2.bf16.msra.mxu0 %v3277
    %4937 = vmatprep.subr.bf16.mxu0 %v3274
    %4938 = vmatpush2.bf16.msra.mxu0 %v3273
    %4939 = vmatprep.subr.bf16.mxu0 %v3270
    %4940 = vmatpush2.bf16.msra.mxu0 %v3269
    %4941 = vmatprep.subr.bf16.mxu0 %v3266
    %4942 = vmatpush2.bf16.msra.mxu0 %v3265
    %4943 = vmatprep.subr.bf16.mxu0 %v3262
    %4944 = vmatpush2.bf16.msra.mxu0 %v3261
    %4945 = vmatprep.subr.bf16.mxu0 %v3258
    %4946 = vmatpush2.bf16.msra.mxu0 %v3257
    %4947 = vmatprep.mubr.bf16.mxu0 %v166
    %4948 = vmatmul.mubr.bf16.gmra.mxu0 %v165
    %v4949 = vpop.f32.mrf.mxu0
    %v4950 = vadd.f32 %v4909, %v4949
    %v4951 = vpop.f32.mrf.mxu0
    %v4952 = vadd.f32 %v4911, %v4951
    %v4953 = vpop.f32.mrf.mxu0
    %v4954 = vpop.f32.mrf.mxu0
    %4955 = vdwg.mxu0
    %4956 = vmatprep.subr.bf16.mxu0 %v3318
    %4957 = vmatpush1.bf16.msra.mxu0 %v3317
    %4958 = vmatprep.subr.bf16.mxu0 %v3314
    %4959 = vmatpush1.bf16.msra.mxu0 %v3313
    %4960 = vmatprep.subr.bf16.mxu0 %v3310
    %4961 = vmatpush1.bf16.msra.mxu0 %v3309
    %4962 = vmatprep.subr.bf16.mxu0 %v3306
    %4963 = vmatpush1.bf16.msra.mxu0 %v3305
    %4964 = vmatprep.subr.bf16.mxu0 %v3302
    %4965 = vmatpush1.bf16.msra.mxu0 %v3301
    %4966 = vmatprep.subr.bf16.mxu0 %v3298
    %4967 = vmatpush1.bf16.msra.mxu0 %v3297
    %4968 = vmatprep.subr.bf16.mxu0 %v3294
    %4969 = vmatpush1.bf16.msra.mxu0 %v3293
    %4970 = vmatprep.subr.bf16.mxu0 %v3290
    %4971 = vmatpush1.bf16.msra.mxu0 %v3289
    %4972 = vmatprep.subr.bf16.mxu0 %v3350
    %4973 = vmatpush2.bf16.msra.mxu0 %v3349
    %4974 = vmatprep.subr.bf16.mxu0 %v3346
    %4975 = vmatpush2.bf16.msra.mxu0 %v3345
    %4976 = vmatprep.subr.bf16.mxu0 %v3342
    %4977 = vmatpush2.bf16.msra.mxu0 %v3341
    %4978 = vmatprep.subr.bf16.mxu0 %v3338
    %4979 = vmatpush2.bf16.msra.mxu0 %v3337
    %4980 = vmatprep.subr.bf16.mxu0 %v3334
    %4981 = vmatpush2.bf16.msra.mxu0 %v3333
    %4982 = vmatprep.subr.bf16.mxu0 %v3330
    %4983 = vmatpush2.bf16.msra.mxu0 %v3329
    %4984 = vmatprep.subr.bf16.mxu0 %v3326
    %4985 = vmatpush2.bf16.msra.mxu0 %v3325
    %4986 = vmatprep.subr.bf16.mxu0 %v3322
    %4987 = vmatpush2.bf16.msra.mxu0 %v3321
    %4988 = vmatprep.mubr.bf16.mxu0 %v168
    %4989 = vmatmul.mubr.bf16.gmra.mxu0 %v167
    %v4990 = vpop.f32.mrf.mxu0
    %v4991 = vadd.f32 %v4950, %v4990
    %v4992 = vpop.f32.mrf.mxu0
    %v4993 = vadd.f32 %v4952, %v4992
    %v4994 = vpop.f32.mrf.mxu0
    %v4995 = vpop.f32.mrf.mxu0
    %4996 = vdwg.mxu0
    %4997 = vmatprep.subr.bf16.mxu0 %v3382
    %4998 = vmatpush1.bf16.msra.mxu0 %v3381
    %4999 = vmatprep.subr.bf16.mxu0 %v3378
    %5000 = vmatpush1.bf16.msra.mxu0 %v3377
    %5001 = vmatprep.subr.bf16.mxu0 %v3374
    %5002 = vmatpush1.bf16.msra.mxu0 %v3373
    %5003 = vmatprep.subr.bf16.mxu0 %v3370
    %5004 = vmatpush1.bf16.msra.mxu0 %v3369
    %5005 = vmatprep.subr.bf16.mxu0 %v3366
    %5006 = vmatpush1.bf16.msra.mxu0 %v3365
    %5007 = vmatprep.subr.bf16.mxu0 %v3362
    %5008 = vmatpush1.bf16.msra.mxu0 %v3361
    %5009 = vmatprep.subr.bf16.mxu0 %v3358
    %5010 = vmatpush1.bf16.msra.mxu0 %v3357
    %5011 = vmatprep.subr.bf16.mxu0 %v3354
    %5012 = vmatpush1.bf16.msra.mxu0 %v3353
    %5013 = vmatprep.subr.bf16.mxu0 %v3414
    %5014 = vmatpush2.bf16.msra.mxu0 %v3413
    %5015 = vmatprep.subr.bf16.mxu0 %v3410
    %5016 = vmatpush2.bf16.msra.mxu0 %v3409
    %5017 = vmatprep.subr.bf16.mxu0 %v3406
    %5018 = vmatpush2.bf16.msra.mxu0 %v3405
    %5019 = vmatprep.subr.bf16.mxu0 %v3402
    %5020 = vmatpush2.bf16.msra.mxu0 %v3401
    %5021 = vmatprep.subr.bf16.mxu0 %v3398
    %5022 = vmatpush2.bf16.msra.mxu0 %v3397
    %5023 = vmatprep.subr.bf16.mxu0 %v3394
    %5024 = vmatpush2.bf16.msra.mxu0 %v3393
    %5025 = vmatprep.subr.bf16.mxu0 %v3390
    %5026 = vmatpush2.bf16.msra.mxu0 %v3389
    %5027 = vmatprep.subr.bf16.mxu0 %v3386
    %5028 = vmatpush2.bf16.msra.mxu0 %v3385
    %5029 = vmatprep.mubr.bf16.mxu0 %v170
    %5030 = vmatmul.mubr.bf16.gmra.mxu0 %v169
    %v5031 = vpop.f32.mrf.mxu0
    %v5032 = vadd.f32 %v4991, %v5031
    %v5033 = vpop.f32.mrf.mxu0
    %v5034 = vadd.f32 %v4993, %v5033
    %v5035 = vpop.f32.mrf.mxu0
    %v5036 = vpop.f32.mrf.mxu0
    %5037 = vdwg.mxu0
    %5038 = vmatprep.subr.bf16.mxu0 %v3446
    %5039 = vmatpush1.bf16.msra.mxu0 %v3445
    %5040 = vmatprep.subr.bf16.mxu0 %v3442
    %5041 = vmatpush1.bf16.msra.mxu0 %v3441
    %5042 = vmatprep.subr.bf16.mxu0 %v3438
    %5043 = vmatpush1.bf16.msra.mxu0 %v3437
    %5044 = vmatprep.subr.bf16.mxu0 %v3434
    %5045 = vmatpush1.bf16.msra.mxu0 %v3433
    %5046 = vmatprep.subr.bf16.mxu0 %v3430
    %5047 = vmatpush1.bf16.msra.mxu0 %v3429
    %5048 = vmatprep.subr.bf16.mxu0 %v3426
    %5049 = vmatpush1.bf16.msra.mxu0 %v3425
    %5050 = vmatprep.subr.bf16.mxu0 %v3422
    %5051 = vmatpush1.bf16.msra.mxu0 %v3421
    %5052 = vmatprep.subr.bf16.mxu0 %v3418
    %5053 = vmatpush1.bf16.msra.mxu0 %v3417
    %5054 = vmatprep.subr.bf16.mxu0 %v3478
    %5055 = vmatpush2.bf16.msra.mxu0 %v3477
    %5056 = vmatprep.subr.bf16.mxu0 %v3474
    %5057 = vmatpush2.bf16.msra.mxu0 %v3473
    %5058 = vmatprep.subr.bf16.mxu0 %v3470
    %5059 = vmatpush2.bf16.msra.mxu0 %v3469
    %5060 = vmatprep.subr.bf16.mxu0 %v3466
    %5061 = vmatpush2.bf16.msra.mxu0 %v3465
    %5062 = vmatprep.subr.bf16.mxu0 %v3462
    %5063 = vmatpush2.bf16.msra.mxu0 %v3461
    %5064 = vmatprep.subr.bf16.mxu0 %v3458
    %5065 = vmatpush2.bf16.msra.mxu0 %v3457
    %5066 = vmatprep.subr.bf16.mxu0 %v3454
    %5067 = vmatpush2.bf16.msra.mxu0 %v3453
    %5068 = vmatprep.subr.bf16.mxu0 %v3450
    %5069 = vmatpush2.bf16.msra.mxu0 %v3449
    %5070 = vmatprep.mubr.bf16.mxu0 %v172
    %5071 = vmatmul.mubr.bf16.gmra.mxu0 %v171
    %v5072 = vpop.f32.mrf.mxu0
    %v5073 = vadd.f32 %v5032, %v5072
    %v5074 = vpop.f32.mrf.mxu0
    %v5075 = vadd.f32 %v5034, %v5074
    %v5076 = vpop.f32.mrf.mxu0
    %v5077 = vpop.f32.mrf.mxu0
    %5078 = vdwg.mxu0
    %5079 = vmatprep.subr.bf16.mxu0 %v3510
    %5080 = vmatpush1.bf16.msra.mxu0 %v3509
    %5081 = vmatprep.subr.bf16.mxu0 %v3506
    %5082 = vmatpush1.bf16.msra.mxu0 %v3505
    %5083 = vmatprep.subr.bf16.mxu0 %v3502
    %5084 = vmatpush1.bf16.msra.mxu0 %v3501
    %5085 = vmatprep.subr.bf16.mxu0 %v3498
    %5086 = vmatpush1.bf16.msra.mxu0 %v3497
    %5087 = vmatprep.subr.bf16.mxu0 %v3494
    %5088 = vmatpush1.bf16.msra.mxu0 %v3493
    %5089 = vmatprep.subr.bf16.mxu0 %v3490
    %5090 = vmatpush1.bf16.msra.mxu0 %v3489
    %5091 = vmatprep.subr.bf16.mxu0 %v3486
    %5092 = vmatpush1.bf16.msra.mxu0 %v3485
    %5093 = vmatprep.subr.bf16.mxu0 %v3482
    %5094 = vmatpush1.bf16.msra.mxu0 %v3481
    %5095 = vmatprep.subr.bf16.mxu0 %v3542
    %5096 = vmatpush2.bf16.msra.mxu0 %v3541
    %5097 = vmatprep.subr.bf16.mxu0 %v3538
    %5098 = vmatpush2.bf16.msra.mxu0 %v3537
    %5099 = vmatprep.subr.bf16.mxu0 %v3534
    %5100 = vmatpush2.bf16.msra.mxu0 %v3533
    %5101 = vmatprep.subr.bf16.mxu0 %v3530
    %5102 = vmatpush2.bf16.msra.mxu0 %v3529
    %5103 = vmatprep.subr.bf16.mxu0 %v3526
    %5104 = vmatpush2.bf16.msra.mxu0 %v3525
    %5105 = vmatprep.subr.bf16.mxu0 %v3522
    %5106 = vmatpush2.bf16.msra.mxu0 %v3521
    %5107 = vmatprep.subr.bf16.mxu0 %v3518
    %5108 = vmatpush2.bf16.msra.mxu0 %v3517
    %5109 = vmatprep.subr.bf16.mxu0 %v3514
    %5110 = vmatpush2.bf16.msra.mxu0 %v3513
    %5111 = vmatprep.mubr.bf16.mxu0 %v174
    %5112 = vmatmul.mubr.bf16.gmra.mxu0 %v173
    %v5113 = vpop.f32.mrf.mxu0
    %v5114 = vadd.f32 %v5073, %v5113
    %v5115 = vpop.f32.mrf.mxu0
    %v5116 = vadd.f32 %v5075, %v5115
    %v5117 = vpop.f32.mrf.mxu0
    %v5118 = vpop.f32.mrf.mxu0
    %5119 = vdwg.mxu0
    %5120 = vmatprep.subr.bf16.mxu0 %v3574
    %5121 = vmatpush1.bf16.msra.mxu0 %v3573
    %5122 = vmatprep.subr.bf16.mxu0 %v3570
    %5123 = vmatpush1.bf16.msra.mxu0 %v3569
    %5124 = vmatprep.subr.bf16.mxu0 %v3566
    %5125 = vmatpush1.bf16.msra.mxu0 %v3565
    %5126 = vmatprep.subr.bf16.mxu0 %v3562
    %5127 = vmatpush1.bf16.msra.mxu0 %v3561
    %5128 = vmatprep.subr.bf16.mxu0 %v3558
    %5129 = vmatpush1.bf16.msra.mxu0 %v3557
    %5130 = vmatprep.subr.bf16.mxu0 %v3554
    %5131 = vmatpush1.bf16.msra.mxu0 %v3553
    %5132 = vmatprep.subr.bf16.mxu0 %v3550
    %5133 = vmatpush1.bf16.msra.mxu0 %v3549
    %5134 = vmatprep.subr.bf16.mxu0 %v3546
    %5135 = vmatpush1.bf16.msra.mxu0 %v3545
    %5136 = vmatprep.subr.bf16.mxu0 0
    %5137 = vmatpush2.bf16.msra.mxu0 0
    %5138 = vmatprep.subr.bf16.mxu0 0
    %5139 = vmatpush2.bf16.msra.mxu0 0
    %5140 = vmatprep.subr.bf16.mxu0 0
    %5141 = vmatpush2.bf16.msra.mxu0 0
    %5142 = vmatprep.subr.bf16.mxu0 0
    %5143 = vmatpush2.bf16.msra.mxu0 0
    %5144 = vmatprep.subr.bf16.mxu0 0
    %5145 = vmatpush2.bf16.msra.mxu0 0
    %5146 = vmatprep.subr.bf16.mxu0 0
    %5147 = vmatpush2.bf16.msra.mxu0 0
    %5148 = vmatprep.subr.bf16.mxu0 0
    %5149 = vmatpush2.bf16.msra.mxu0 0
    %5150 = vmatprep.subr.bf16.mxu0 %v3578
    %5151 = vmatpush2.bf16.msra.mxu0 %v3577
    %5152 = vmatprep.mubr.bf16.mxu0 %v4257
    %5153 = vmatmul.mubr.bf16.gmra.mxu0 %v175
    %v5154 = vpop.f32.mrf.mxu0
    %v5155 = vadd.f32 %v5114, %v5154
    %v5156 = vpop.f32.mrf.mxu0
    %v5157 = vadd.f32 %v5116, %v5156
    %v5158 = vpop.f32.mrf.mxu0
    %v5159 = vpop.f32.mrf.mxu0
    %5160 = vdwg.mxu0
    %v5161 = vmax.f32 %v4704, 0.0
    %v5162 = vmax.f32 %v4706, 0.0
    %v5163 = vmax.f32 %v5155, 0.0
    %v5164 = vmax.f32 %v5157, 0.0
    %v5165 = vld [vmem:[%s3] sm:$0xff]
    %v5166 = vld [vmem:[%s3 + $0x8] sm:$0xff]
    %v5167 = vld [vmem:[%s3 + $0x10] sm:$0xff]
    %v5168 = vld [vmem:[%s3 + $0x18] sm:$0xff]
    %v5169 = vld [vmem:[%s3 + $0x20] sm:$0xff]
    %v5170 = vld [vmem:[%s3 + $0x28] sm:$0xff]
    %v5171 = vld [vmem:[%s3 + $0x30] sm:$0xff]
    %v5172 = vld [vmem:[%s3 + $0x38] sm:$0xff]
    %v5173 = vld [vmem:[%s3 + $0x40] sm:$0xff]
    %v5174 = vld [vmem:[%s3 + $0x48] sm:$0xff]
    %v5175 = vld [vmem:[%s3 + $0x50] sm:$0xff]
    %v5176 = vld [vmem:[%s3 + $0x58] sm:$0xff]
    %v5177 = vld [vmem:[%s3 + $0x60] sm:$0xff]
    %v5178 = vld [vmem:[%s3 + $0x68] sm:$0xff]
    %v5179 = vld [vmem:[%s3 + $0x70] sm:$0xff]
    %v5180 = vld [vmem:[%s3 + $0x78] sm:$0xff]
    %v5181 = vld [vmem:[%s3 + $0x80] sm:$0xff]
    %v5182 = vld [vmem:[%s3 + $0x88] sm:$0xff]
    %v5183 = vld [vmem:[%s3 + $0x90] sm:$0xff]
    %v5184 = vld [vmem:[%s3 + $0x98] sm:$0xff]
    %v5185 = vld [vmem:[%s3 + $0xa0] sm:$0xff]
    %v5186 = vld [vmem:[%s3 + $0xa8] sm:$0xff]
    %v5187 = vld [vmem:[%s3 + $0xb0] sm:$0xff]
    %v5188 = vld [vmem:[%s3 + $0xb8] sm:$0xff]
    %v5189 = vld [vmem:[%s3 + $0xc0] sm:$0xff]
    %v5190 = vld [vmem:[%s3 + $0xc8] sm:$0xff]
    %v5191 = vld [vmem:[%s3 + $0xd0] sm:$0xff]
    %v5192 = vld [vmem:[%s3 + $0xd8] sm:$0xff]
    %v5193 = vld [vmem:[%s3 + $0xe0] sm:$0xff]
    %v5194 = vld [vmem:[%s3 + $0xe8] sm:$0xff]
    %v5195 = vld [vmem:[%s3 + $0xf0] sm:$0xff]
    %v5196 = vld [vmem:[%s3 + $0xf8] sm:$0xff]
    %v5197 = vld [vmem:[%s3 + $0x100] sm:$0xff]
    %v5198 = vld [vmem:[%s3 + $0x108] sm:$0xff]
    %v5199 = vld [vmem:[%s3 + $0x110] sm:$0xff]
    %v5200 = vld [vmem:[%s3 + $0x118] sm:$0xff]
    %v5201 = vld [vmem:[%s3 + $0x120] sm:$0xff]
    %v5202 = vld [vmem:[%s3 + $0x128] sm:$0xff]
    %v5203 = vld [vmem:[%s3 + $0x130] sm:$0xff]
    %v5204 = vld [vmem:[%s3 + $0x138] sm:$0xff]
    %v5205 = vld [vmem:[%s3 + $0x140] sm:$0xff]
    %v5206 = vld [vmem:[%s3 + $0x148] sm:$0xff]
    %v5207 = vld [vmem:[%s3 + $0x150] sm:$0xff]
    %v5208 = vld [vmem:[%s3 + $0x158] sm:$0xff]
    %v5209 = vld [vmem:[%s3 + $0x160] sm:$0xff]
    %v5210 = vld [vmem:[%s3 + $0x168] sm:$0xff]
    %v5211 = vld [vmem:[%s3 + $0x170] sm:$0xff]
    %v5212 = vld [vmem:[%s3 + $0x178] sm:$0xff]
    %v5213 = vld [vmem:[%s3 + $0x180] sm:$0xff]
    %v5214 = vld [vmem:[%s3 + $0x188] sm:$0xff]
    %v5215 = vld [vmem:[%s3 + $0x190] sm:$0xff]
    %v5216 = vld [vmem:[%s3 + $0x198] sm:$0xff]
    %v5217 = vld [vmem:[%s3 + $0x1a0] sm:$0xff]
    %v5218 = vld [vmem:[%s3 + $0x1a8] sm:$0xff]
    %v5219 = vld [vmem:[%s3 + $0x1b0] sm:$0xff]
    %v5220 = vld [vmem:[%s3 + $0x1b8] sm:$0xff]
    %v5221 = vld [vmem:[%s3 + $0x1c0] sm:$0xff]
    %v5222 = vld [vmem:[%s3 + $0x1c8] sm:$0xff]
    %v5223 = vld [vmem:[%s3 + $0x1d0] sm:$0xff]
    %v5224 = vld [vmem:[%s3 + $0x1d8] sm:$0xff]
    %v5225 = vld [vmem:[%s3 + $0x1e0] sm:$0xff]
    %v5226 = vld [vmem:[%s3 + $0x1e8] sm:$0xff]
    %v5227 = vld [vmem:[%s3 + $0x1f0] sm:$0xff]
    %v5228 = vld [vmem:[%s3 + $0x1f8] sm:$0xff]
    %v5229 = vld [vmem:[%s4] sm:$0x1]
    %v5231 = vlaneseq
    %v5232 = vshrl.u32 %v5231, 7
    %v5233 = vsub.s32 0, %v5232
    %v5234 = vrot.slane %v5229, %v5233
    %5236 = vmatprep.subr.mxu0 0.0
    %5237 = vmatpush1.msra.mxu0 %v5180
    %5238 = vmatprep.subr.mxu0 0.0
    %5239 = vmatpush1.msra.mxu0 %v5179
    %5240 = vmatprep.subr.mxu0 0.0
    %5241 = vmatpush1.msra.mxu0 %v5178
    %5242 = vmatprep.subr.mxu0 0.0
    %5243 = vmatpush1.msra.mxu0 %v5177
    %5244 = vmatprep.subr.mxu0 0.0
    %5245 = vmatpush1.msra.mxu0 %v5176
    %5246 = vmatprep.subr.mxu0 0.0
    %5247 = vmatpush1.msra.mxu0 %v5175
    %5248 = vmatprep.subr.mxu0 0.0
    %5249 = vmatpush1.msra.mxu0 %v5174
    %5250 = vmatprep.subr.mxu0 0.0
    %5251 = vmatpush1.msra.mxu0 %v5173
    %5252 = vmatprep.subr.mxu0 0.0
    %5253 = vmatpush1.msra.mxu0 %v5172
    %5254 = vmatprep.subr.mxu0 0.0
    %5255 = vmatpush1.msra.mxu0 %v5171
    %5256 = vmatprep.subr.mxu0 0.0
    %5257 = vmatpush1.msra.mxu0 %v5170
    %5258 = vmatprep.subr.mxu0 0.0
    %5259 = vmatpush1.msra.mxu0 %v5169
    %5260 = vmatprep.subr.mxu0 0.0
    %5261 = vmatpush1.msra.mxu0 %v5168
    %5262 = vmatprep.subr.mxu0 0.0
    %5263 = vmatpush1.msra.mxu0 %v5167
    %5264 = vmatprep.subr.mxu0 0.0
    %5265 = vmatpush1.msra.mxu0 %v5166
    %5266 = vmatprep.subr.mxu0 0.0
    %5267 = vmatpush1.msra.mxu0 %v5165
    %5268 = vmatprep.subr.mxu0 0.0
    %5269 = vmatpush2.msra.mxu0 %v5196
    %5270 = vmatprep.subr.mxu0 0.0
    %5271 = vmatpush2.msra.mxu0 %v5195
    %5272 = vmatprep.subr.mxu0 0.0
    %5273 = vmatpush2.msra.mxu0 %v5194
    %5274 = vmatprep.subr.mxu0 0.0
    %5275 = vmatpush2.msra.mxu0 %v5193
    %5276 = vmatprep.subr.mxu0 0.0
    %5277 = vmatpush2.msra.mxu0 %v5192
    %5278 = vmatprep.subr.mxu0 0.0
    %5279 = vmatpush2.msra.mxu0 %v5191
    %5280 = vmatprep.subr.mxu0 0.0
    %5281 = vmatpush2.msra.mxu0 %v5190
    %5282 = vmatprep.subr.mxu0 0.0
    %5283 = vmatpush2.msra.mxu0 %v5189
    %5284 = vmatprep.subr.mxu0 0.0
    %5285 = vmatpush2.msra.mxu0 %v5188
    %5286 = vmatprep.subr.mxu0 0.0
    %5287 = vmatpush2.msra.mxu0 %v5187
    %5288 = vmatprep.subr.mxu0 0.0
    %5289 = vmatpush2.msra.mxu0 %v5186
    %5290 = vmatprep.subr.mxu0 0.0
    %5291 = vmatpush2.msra.mxu0 %v5185
    %5292 = vmatprep.subr.mxu0 0.0
    %5293 = vmatpush2.msra.mxu0 %v5184
    %5294 = vmatprep.subr.mxu0 0.0
    %5295 = vmatpush2.msra.mxu0 %v5183
    %5296 = vmatprep.subr.mxu0 0.0
    %5297 = vmatpush2.msra.mxu0 %v5182
    %5298 = vmatprep.subr.mxu0 0.0
    %5299 = vmatpush2.msra.mxu0 %v5181
    %5300 = vmatprep.mubr.f32.mxu0 %v5162
    %5301 = vmatmul.mubr.f32.gmra.mxu0 %v5161
    %v5302 = vpop.f32.mrf.mxu0
    %v5303 = vadd.f32 %v5234, %v5302
    %v5304 = vpop.f32.mrf.mxu0
    %5305 = vdwg.mxu0
    %5306 = vmatprep.subr.mxu0 0.0
    %5307 = vmatpush1.msra.mxu0 %v5212
    %5308 = vmatprep.subr.mxu0 0.0
    %5309 = vmatpush1.msra.mxu0 %v5211
    %5310 = vmatprep.subr.mxu0 0.0
    %5311 = vmatpush1.msra.mxu0 %v5210
    %5312 = vmatprep.subr.mxu0 0.0
    %5313 = vmatpush1.msra.mxu0 %v5209
    %5314 = vmatprep.subr.mxu0 0.0
    %5315 = vmatpush1.msra.mxu0 %v5208
    %5316 = vmatprep.subr.mxu0 0.0
    %5317 = vmatpush1.msra.mxu0 %v5207
    %5318 = vmatprep.subr.mxu0 0.0
    %5319 = vmatpush1.msra.mxu0 %v5206
    %5320 = vmatprep.subr.mxu0 0.0
    %5321 = vmatpush1.msra.mxu0 %v5205
    %5322 = vmatprep.subr.mxu0 0.0
    %5323 = vmatpush1.msra.mxu0 %v5204
    %5324 = vmatprep.subr.mxu0 0.0
    %5325 = vmatpush1.msra.mxu0 %v5203
    %5326 = vmatprep.subr.mxu0 0.0
    %5327 = vmatpush1.msra.mxu0 %v5202
    %5328 = vmatprep.subr.mxu0 0.0
    %5329 = vmatpush1.msra.mxu0 %v5201
    %5330 = vmatprep.subr.mxu0 0.0
    %5331 = vmatpush1.msra.mxu0 %v5200
    %5332 = vmatprep.subr.mxu0 0.0
    %5333 = vmatpush1.msra.mxu0 %v5199
    %5334 = vmatprep.subr.mxu0 0.0
    %5335 = vmatpush1.msra.mxu0 %v5198
    %5336 = vmatprep.subr.mxu0 0.0
    %5337 = vmatpush1.msra.mxu0 %v5197
    %5338 = vmatprep.subr.mxu0 0.0
    %5339 = vmatpush2.msra.mxu0 %v5228
    %5340 = vmatprep.subr.mxu0 0.0
    %5341 = vmatpush2.msra.mxu0 %v5227
    %5342 = vmatprep.subr.mxu0 0.0
    %5343 = vmatpush2.msra.mxu0 %v5226
    %5344 = vmatprep.subr.mxu0 0.0
    %5345 = vmatpush2.msra.mxu0 %v5225
    %5346 = vmatprep.subr.mxu0 0.0
    %5347 = vmatpush2.msra.mxu0 %v5224
    %5348 = vmatprep.subr.mxu0 0.0
    %5349 = vmatpush2.msra.mxu0 %v5223
    %5350 = vmatprep.subr.mxu0 0.0
    %5351 = vmatpush2.msra.mxu0 %v5222
    %5352 = vmatprep.subr.mxu0 0.0
    %5353 = vmatpush2.msra.mxu0 %v5221
    %5354 = vmatprep.subr.mxu0 0.0
    %5355 = vmatpush2.msra.mxu0 %v5220
    %5356 = vmatprep.subr.mxu0 0.0
    %5357 = vmatpush2.msra.mxu0 %v5219
    %5358 = vmatprep.subr.mxu0 0.0
    %5359 = vmatpush2.msra.mxu0 %v5218
    %5360 = vmatprep.subr.mxu0 0.0
    %5361 = vmatpush2.msra.mxu0 %v5217
    %5362 = vmatprep.subr.mxu0 0.0
    %5363 = vmatpush2.msra.mxu0 %v5216
    %5364 = vmatprep.subr.mxu0 0.0
    %5365 = vmatpush2.msra.mxu0 %v5215
    %5366 = vmatprep.subr.mxu0 0.0
    %5367 = vmatpush2.msra.mxu0 %v5214
    %5368 = vmatprep.subr.mxu0 0.0
    %5369 = vmatpush2.msra.mxu0 %v5213
    %5370 = vmatprep.mubr.f32.mxu0 %v5164
    %5371 = vmatmul.mubr.f32.gmra.mxu0 %v5163
    %v5372 = vpop.f32.mrf.mxu0
    %v5373 = vadd.f32 %v5303, %v5372
    %v5374 = vpop.f32.mrf.mxu0
    %5375 = vdwg.mxu0
    %v5376 = vmax.f32 %v5373, 0.0
    %v5377 = vld [vmem:[%s5] sm:$0xff]
    %v5378 = vld [vmem:[%s5 + $0x8] sm:$0xff]
    %v5379 = vld [vmem:[%s5 + $0x10] sm:$0xff]
    %v5380 = vld [vmem:[%s5 + $0x18] sm:$0xff]
    %v5381 = vld [vmem:[%s5 + $0x20] sm:$0xff]
    %v5382 = vld [vmem:[%s5 + $0x28] sm:$0xff]
    %v5383 = vld [vmem:[%s5 + $0x30] sm:$0xff]
    %v5384 = vld [vmem:[%s5 + $0x38] sm:$0xff]
    %v5385 = vld [vmem:[%s5 + $0x40] sm:$0xff]
    %v5386 = vld [vmem:[%s5 + $0x48] sm:$0xff]
    %v5387 = vld [vmem:[%s5 + $0x50] sm:$0xf]
    %v5388 = vld [vmem:[%s6] sm:$0x1]
    %v5390 = vlaneseq
    %v5391 = vshrl.u32 %v5390, 7
    %v5392 = vsub.s32 0, %v5391
    %v5393 = vrot.slane %v5388, %v5392
    %vm5395 = vcmask 687104
    %v5397 = vsel %vm5395, %v5376, 0
    %vm5399 = vcmask 1043456
    %v5401 = vsel %vm5399, %v5387, 0
    %5403 = vmatprep.subr.mxu0 0.0
    %5404 = vmatpush1.msra.mxu0 0.0
    %5405 = vmatprep.subr.mxu0 0.0
    %5406 = vmatpush1.msra.mxu0 0.0
    %5407 = vmatprep.subr.mxu0 0.0
    %5408 = vmatpush1.msra.mxu0 0.0
    %5409 = vmatprep.subr.mxu0 0.0
    %5410 = vmatpush1.msra.mxu0 0.0
    %5411 = vmatprep.subr.mxu0 0.0
    %5412 = vmatpush1.msra.mxu0 0.0
    %5413 = vmatprep.subr.mxu0 0.0
    %5414 = vmatpush1.msra.mxu0 %v5401
    %5415 = vmatprep.subr.mxu0 0.0
    %5416 = vmatpush1.msra.mxu0 %v5386
    %5417 = vmatprep.subr.mxu0 0.0
    %5418 = vmatpush1.msra.mxu0 %v5385
    %5419 = vmatprep.subr.mxu0 0.0
    %5420 = vmatpush1.msra.mxu0 %v5384
    %5421 = vmatprep.subr.mxu0 0.0
    %5422 = vmatpush1.msra.mxu0 %v5383
    %5423 = vmatprep.subr.mxu0 0.0
    %5424 = vmatpush1.msra.mxu0 %v5382
    %5425 = vmatprep.subr.mxu0 0.0
    %5426 = vmatpush1.msra.mxu0 %v5381
    %5427 = vmatprep.subr.mxu0 0.0
    %5428 = vmatpush1.msra.mxu0 %v5380
    %5429 = vmatprep.subr.mxu0 0.0
    %5430 = vmatpush1.msra.mxu0 %v5379
    %5431 = vmatprep.subr.mxu0 0.0
    %5432 = vmatpush1.msra.mxu0 %v5378
    %5433 = vmatprep.subr.mxu0 0.0
    %5434 = vmatpush1.msra.mxu0 %v5377
    %5435 = vmatprep.subr.mxu0 0.0
    %5436 = vmatpush2.msra.mxu0 0.0
    %5437 = vmatprep.subr.mxu0 0.0
    %5438 = vmatpush2.msra.mxu0 0.0
    %5439 = vmatprep.subr.mxu0 0.0
    %5440 = vmatpush2.msra.mxu0 0.0
    %5441 = vmatprep.subr.mxu0 0.0
    %5442 = vmatpush2.msra.mxu0 0.0
    %5443 = vmatprep.subr.mxu0 0.0
    %5444 = vmatpush2.msra.mxu0 0.0
    %5445 = vmatprep.subr.mxu0 0.0
    %5446 = vmatpush2.msra.mxu0 0.0
    %5447 = vmatprep.subr.mxu0 0.0
    %5448 = vmatpush2.msra.mxu0 0.0
    %5449 = vmatprep.subr.mxu0 0.0
    %5450 = vmatpush2.msra.mxu0 0.0
    %5451 = vmatprep.subr.mxu0 0.0
    %5452 = vmatpush2.msra.mxu0 0.0
    %5453 = vmatprep.subr.mxu0 0.0
    %5454 = vmatpush2.msra.mxu0 0.0
    %5455 = vmatprep.subr.mxu0 0.0
    %5456 = vmatpush2.msra.mxu0 0.0
    %5457 = vmatprep.subr.mxu0 0.0
    %5458 = vmatpush2.msra.mxu0 0.0
    %5459 = vmatprep.subr.mxu0 0.0
    %5460 = vmatpush2.msra.mxu0 0.0
    %5461 = vmatprep.subr.mxu0 0.0
    %5462 = vmatpush2.msra.mxu0 0.0
    %5463 = vmatprep.subr.mxu0 0.0
    %5464 = vmatpush2.msra.mxu0 0.0
    %5465 = vmatprep.subr.mxu0 0.0
    %5466 = vmatpush2.msra.mxu0 0.0
    %5467 = vmatprep.mubr.f32.mxu0 0.0
    %5468 = vmatmul.mubr.f32.gmra.mxu0 %v5397
    %v5469 = vpop.f32.mrf.mxu0
    %v5470 = vadd.f32 %v5393, %v5469
    %v5471 = vpop.f32.mrf.mxu0
    %5472 = vdwg.mxu0
    %vm5473 = vcmask 812032
    %5474 = vst.msk [vmem:[#allocation2] sm:$0x3] %vm5473, %v5470
    // Predicated region
    $region30: #{net_small_forward.5} parent=1 // pred_check
      _
    $region31: #{net_small_forward.5} parent=1 // pred_check_branch
      %5476 = sbr.rel (0) target = $region33
    $region32: #{net_small_forward.5} parent=1 // pred_region
      %s5478 = ssub.s32 32, 32
      %5479 = vsyncadd [#allocation3], %s5478
      %s5481 = sshll.u32 [#allocation2], 4
      %s5482 = int_to_ptr.vmem [resolvable:$true] %s5481
      %5484 = dma.vmem_to_hbm [thread:$0]  %s5482, 32, %s7, [#allocation3]
    $region33: #{net_small_forward.5} parent=1 // pred_fallthru
      _
    // Predicated region
    $region34: #{net_small_forward.5} parent=1 // pred_check
      _
    $region35: #{net_small_forward.5} parent=1 // pred_check_branch
      %5486 = sbr.rel (0) target = $region37
    $region36: #{net_small_forward.5} parent=1 // pred_region
      %5487 = dma.done [#allocation3], 32
    $region37: #{net_small_forward.5} parent=1 // pred_fallthru
      _
    %5488 = vsyncpa [#allocation3], 1

</llo_original>
